<compile_context>
chip_gen: v7x
topology: tpu7x:2x2x1
jax: 0.10.0
libtpu: 0.0.40
codegen_flags: <defaults>
</compile_context>

<pallas_src>
import functools

import jax
import jax.numpy as jnp
from jax.experimental import pallas as pl
from jax.experimental.pallas import tpu as pltpu


# ----------------------------- Pallas kernels ------------------------------

def _conv_leaky_kernel(w_ref, p_ref, o_ref):
    # init_layer: conv-as-matmul (bf16 operands, f32 accumulate) + LeakyReLU(0.2)
    # Output layout (Cout, M): long M on lanes -> unmasked lane-dense stores.
    y = jnp.dot(w_ref[...], p_ref[...], preferred_element_type=jnp.float32)
    o_ref[...] = jnp.maximum(y, 0.2 * y).astype(o_ref.dtype)


def _conv_bn_lrelu_fsm(w_ref, p_ref, g_ref, b_ref, a_ref, bx_ref, by_ref,
                       alpha, s):
    # conv-as-matmul (bf16 operands, f32 accumulate): (tc, M)
    y = jnp.dot(w_ref[...], p_ref[...], preferred_element_type=jnp.float32)

    # BatchNorm3d, training mode: per-channel batch stats over all N*D*H*W
    # positions (the channel-grid split keeps the full M axis per block),
    # biased variance for normalization, eps = 1e-5.
    mu = jnp.mean(y, axis=1, keepdims=True)
    var = jnp.mean((y - mu) ** 2, axis=1, keepdims=True)
    ybn = (y - mu) * jax.lax.rsqrt(var + 1e-5) * g_ref[...] + b_ref[...]

    # LeakyReLU(0.2): single vmax.
    x = jnp.maximum(ybn, 0.2 * ybn)

    # FSM via reduce (M -> N) + broadcast (N -> M) matmuls.
    #   a  : (M, N) per-sample averaging (entries 1/s)
    #   bx : (N, M) broadcast own sample's stats back to its columns
    #   by : (N, M) broadcast the *permuted* sample's stats (perm baked in)
    # torch.var default is unbiased -> scale the biased spatial variance.
    a = a_ref[...]
    bx = bx_ref[...]
    by = by_ref[...]
    mu_s = jnp.dot(x, a, preferred_element_type=jnp.float32)          # (tc, N)
    mu_x = jnp.dot(mu_s, bx, preferred_element_type=jnp.float32)      # (tc, M)
    mu_y = jnp.dot(mu_s, by, preferred_element_type=jnp.float32)
    d = x - mu_x
    dd = d * d
    unbias = s / (s - 1.0)
    var_s = jnp.dot(dd, a, preferred_element_type=jnp.float32) * unbias
    var_x = jnp.dot(var_s, bx, preferred_element_type=jnp.float32)
    var_y = jnp.dot(var_s, by, preferred_element_type=jnp.float32)
    x_fsm = d * jax.lax.rsqrt(var_x + 1e-5) * jnp.sqrt(var_y + 1e-5) + mu_y
    return alpha * x + (1.0 - alpha) * x_fsm


def _main_fused_kernel(w_ref, p_ref, g_ref, b_ref, a_ref, bx_ref, by_ref,
                       o_ref, *, alpha, s):
    # Intermediate main layer: emit the FSM-mixed activation (tc, M) in bf16
    # (it only feeds the next conv's bf16 patches -> identical numerics,
    #  half the HBM writeback).
    o_ref[...] = _conv_bn_lrelu_fsm(w_ref, p_ref, g_ref, b_ref,
                                    a_ref, bx_ref, by_ref, alpha, s
                                    ).astype(o_ref.dtype)


def _main_final_fused_kernel(w_ref, p_ref, g_ref, b_ref, a_ref, bx_ref, by_ref,
                             wf_ref, sel_ref, o_ref, *, alpha, s):
    # Last main layer + final_layer Conv3d(c, 1, 4, 1, 0): the 4^3 kernel spans
    # the whole remaining volume, so it is a per-sample full reduction against
    # w_final.  wf (C, 64) is broadcast across the batch inside the kernel via
    # a tiny hoisted (64, M) selector matmul (no N-replicated tensor in glue);
    # per-sample sums reuse the averaging matrix (scaled by s).
    x = _conv_bn_lrelu_fsm(w_ref, p_ref, g_ref, b_ref, a_ref, bx_ref, by_ref,
                           alpha, s)                                  # (C, M)
    wf_full = jnp.dot(wf_ref[...], sel_ref[...],
                      preferred_element_type=jnp.float32)             # (C, M)
    colprod = jnp.sum(x * wf_full, axis=0, keepdims=True)             # (1, M)
    o_ref[...] = s * jnp.dot(colprod, a_ref[...],
                             preferred_element_type=jnp.float32)      # (1, N)


# ----------------------------- pallas_call wrappers -------------------------

_VMEM_BUDGET = 40 << 20          # conservative for v7x (64 MiB physical)
_VMEM_DEFAULT_SCOPED = 24 << 20  # stay under the 32 MiB default with headroom


def _compiler_params(dim_sem, block_in_bytes, block_out_bytes, live_f32_elems):
    """dimension_semantics + explicit VMEM budget check for fused blocks."""
    est = 2 * block_in_bytes + 2 * block_out_bytes + 4 * live_f32_elems
    assert est <= _VMEM_BUDGET, (
        f"fused block needs ~{est >> 20} MiB VMEM (> {_VMEM_BUDGET >> 20} MiB "
        "v7x budget); tile M / channels further")
    kwargs = {"dimension_semantics": dim_sem}
    if est > _VMEM_DEFAULT_SCOPED:
        kwargs["vmem_limit_bytes"] = int(min(2 * est, 56 << 20))
    return pltpu.CompilerParams(**kwargs)


def _pick_tile(m):
    # Large lane tiles amortize ~0.35us/grid-step (v5e/v6e, 1 TC) but keep
    # >= 4 blocks when possible so v7x's 2 TCs each get a pipelined stream.
    for t in (2048, 1024, 512, 256, 128):
        if m % t == 0 and m // t >= 4:
            return t
    for t in (2048, 1024, 512, 256, 128):
        if m % t == 0:
            return t
    return m


def _pick_channel_tile(cout):
    # Split the output-channel axis across >= 2 grid blocks (v7x megacore)
    # whenever a multiple-of-8 sublane tile allows it.
    if cout >= 32 and (cout // 4) % 8 == 0:
        return cout // 4
    if cout >= 16 and (cout // 2) % 8 == 0:
        return cout // 2
    return cout


def conv_leaky(w_mat, p_mat):
    """w_mat: (Cout, K^3*Cin) bf16, p_mat: (K^3*Cin, M) bf16 -> (Cout, M) bf16."""
    cout, kdim = w_mat.shape
    _, m = p_mat.shape
    tm = _pick_tile(m)
    return pl.pallas_call(
        _conv_leaky_kernel,
        out_shape=jax.ShapeDtypeStruct((cout, m), jnp.bfloat16),
        grid=(m // tm,),
        in_specs=[pl.BlockSpec((cout, kdim), lambda i: (0, 0)),
                  pl.BlockSpec((kdim, tm), lambda i: (0, i))],
        out_specs=pl.BlockSpec((cout, tm), lambda i: (0, i)),
        compiler_params=pltpu.CompilerParams(
            dimension_semantics=("parallel",)),   # M blocks across v7x's 2 TCs
    )(w_mat, p_mat)


def _full_spec(shape):
    nd = len(shape)
    return pl.BlockSpec(shape, lambda i, _nd=nd: (0,) * _nd)


def main_fused(w, p, g, b, a_mat, bx, by, *, alpha, s):
    """Conv + BN + LeakyReLU + FSM for an intermediate main layer.

    Grid over output channels ("parallel"): BN / FSM stats are per-channel, so
    each channel block is fully independent while still holding the whole M
    axis it needs for batch statistics.
    """
    cout, kdim = w.shape
    m = p.shape[1]
    tc = _pick_channel_tile(cout)
    kern = functools.partial(_main_fused_kernel, alpha=float(alpha), s=float(s))
    blk_in = (tc * kdim * 2 + p.size * 2
              + (2 * tc + a_mat.size + bx.size + by.size) * 4)
    blk_out = tc * m * 2
    cp = _compiler_params(("parallel",), blk_in, blk_out, 10 * tc * m)
    return pl.pallas_call(
        kern,
        out_shape=jax.ShapeDtypeStruct((cout, m), jnp.bfloat16),
        grid=(cout // tc,),
        in_specs=[pl.BlockSpec((tc, kdim), lambda i: (i, 0)),
                  pl.BlockSpec(p.shape, lambda i: (0, 0)),
                  pl.BlockSpec((tc, 1), lambda i: (i, 0)),
                  pl.BlockSpec((tc, 1), lambda i: (i, 0)),
                  pl.BlockSpec(a_mat.shape, lambda i: (0, 0)),
                  pl.BlockSpec(bx.shape, lambda i: (0, 0)),
                  pl.BlockSpec(by.shape, lambda i: (0, 0))],
        out_specs=pl.BlockSpec((tc, m), lambda i: (i, 0)),
        compiler_params=cp,
    )(w, p, g, b, a_mat, bx, by)


def main_final_fused(w, p, g, b, a_mat, bx, by, wf, sel, *, alpha, s):
    """Last main layer + folded final 4^3 valid conv -> per-sample scores (1, N).

    The final conv reduces over ALL channels, so this launch stays a single
    block (M = 64*N here is always tiny); the VMEM assert still applies.
    """
    cout, kdim = w.shape
    m = p.shape[1]
    n = a_mat.shape[1]
    kern = functools.partial(_main_final_fused_kernel,
                             alpha=float(alpha), s=float(s))
    blk_in = (w.size * 2 + p.size * 2
              + (g.size + b.size + a_mat.size + bx.size + by.size
                 + wf.size + sel.size) * 4)
    cp = _compiler_params(("arbitrary",), blk_in, n * 4, 10 * cout * m)
    return pl.pallas_call(
        kern,
        out_shape=jax.ShapeDtypeStruct((1, n), jnp.float32),
        grid=(1,),
        in_specs=[_full_spec(w.shape), _full_spec(p.shape), _full_spec(g.shape),
                  _full_spec(b.shape), _full_spec(a_mat.shape),
                  _full_spec(bx.shape), _full_spec(by.shape),
                  _full_spec(wf.shape), _full_spec(sel.shape)],
        out_specs=_full_spec((1, n)),
        compiler_params=cp,
    )(w, p, g, b, a_mat, bx, by, wf, sel)


# ----------------------------- JAX glue -------------------------------------

def conv3d_patches_T(x_cf, K, stride, pad):
    """x_cf: (C, N, D, H, W) -> transposed patches (C*K^3, N*Do*Ho*Wo).

    Patch row order is (ci, kd, kh, kw), matching a PyTorch Conv3d weight
    reshaped as w.reshape(Cout, -1); column order is (n, do, ho, wo).
    Input is bf16 so the ~8x-expanded patch tensor is materialized in bf16.
    """
    if pad > 0:
        x_cf = jnp.pad(x_cf, ((0, 0), (0, 0),
                              (pad, pad), (pad, pad), (pad, pad)))
    C, N, Dp, Hp, Wp = x_cf.shape
    Do = (Dp - K) // stride + 1
    Ho = (Hp - K) // stride + 1
    Wo = (Wp - K) // stride + 1
    taps = []
    for kd in range(K):
        for kh in range(K):
            for kw in range(K):
                taps.append(
                    x_cf[:, :, kd:kd + stride * (Do - 1) + 1:stride,
                              kh:kh + stride * (Ho - 1) + 1:stride,
                              kw:kw + stride * (Wo - 1) + 1:stride])
    p = jnp.stack(taps, axis=1)                  # (C, K^3, N, Do, Ho, Wo)
    return p.reshape(C * K * K * K, N * Do * Ho * Wo), (Do, Ho, Wo)


def _num_main_layers(isize):
    n, csize = 0, isize // 2
    while csize > 4:
        n += 1
        csize //= 2
    return n


def make_fsm_plan(isize, n_batch, perm):
    """Per-main-layer FSM reduce/broadcast matrices + final-conv selector.

    Hoisted out of the per-forward path: these depend only on (isize, batch,
    perm).  Sizes are O(M*N), not O(M^2).
    TODO(synk): PyTorch draws torch.randperm fresh each forward; here the
    fixed permutation is baked into the broadcast matrices once.
    """
    plan = []
    n_main = _num_main_layers(isize)
    d = isize // 2
    samp = jnp.arange(n_batch, dtype=jnp.int32)
    for li in range(n_main):
        d_out = d // 2
        s = d_out ** 3
        m = n_batch * s
        col = jnp.arange(m, dtype=jnp.int32) // s          # sample per column
        a = (col[:, None] == samp[None, :]).astype(jnp.float32) / float(s)
        bx = (samp[:, None] == col[None, :]).astype(jnp.float32)
        by = (samp[:, None] == perm[col][None, :]).astype(jnp.float32)
        entry = {"a": a, "bx": bx, "by": by}
        if li == n_main - 1:
            # Selector broadcasting wf (c, 64) across the batch inside the
            # final kernel: wf_full = wf @ sel, sel[k, m] = 1 iff m % s == k.
            k = jnp.arange(s, dtype=jnp.int32)
            pos = jnp.arange(m, dtype=jnp.int32) % s
            entry["sel"] = (k[:, None] == pos[None, :]).astype(jnp.float32)
        plan.append(entry)
        d = d_out
    return plan


def init_params(key, isize, nz, nc, ndf, n_extra_layers=0):
    assert isize % 16 == 0, "isize has to be a multiple of 16"
    # TODO(synk): the optional 3x3 "extra" layers are not implemented here.
    assert n_extra_layers == 0
    keys = jax.random.split(key, 16)
    ki = iter(keys)
    params = {"w_init": 0.02 * jax.random.normal(
        next(ki), (ndf, nc, 4, 4, 4), jnp.float32)}
    main = []
    csize, cndf = isize // 2, ndf
    while csize > 4:
        w = 0.02 * jax.random.normal(next(ki), (cndf * 2, cndf, 4, 4, 4),
                                     jnp.float32)
        g = jnp.ones((cndf * 2, 1), jnp.float32)    # BatchNorm3d weight
        b = jnp.zeros((cndf * 2, 1), jnp.float32)   # BatchNorm3d bias
        main.append((w, g, b))
        cndf *= 2
        csize //= 2
    params["main"] = main
    params["w_final"] = 0.02 * jax.random.normal(
        next(ki), (1, cndf, 4, 4, 4), jnp.float32)
    return params


def prepare_params(params):
    """Hoist weight reshape + bf16 cast out of the per-forward path."""
    w_init = params["w_init"]
    return {
        # (Cout, Cin, kD, kH, kW) -> (Cout, Cin*kD*kH*kW); rows match patches.
        "w_init": w_init.reshape(w_init.shape[0], -1).astype(jnp.bfloat16),
        "main": [(w.reshape(w.shape[0], -1).astype(jnp.bfloat16), g, b)
                 for (w, g, b) in params["main"]],
        # final conv (1, c, 4, 4, 4) -> (c, 64); stays f32 (stat-path use).
        "w_final": params["w_final"][0].reshape(params["w_final"].shape[1], -1),
    }


def wgan3d_d_forward(x_ncdhw, prep, plan, alpha=0.5):
    # NCDHW -> (C, N, D, H, W): channels lead so conv outputs are (Cout, M)
    # with the long M = N*Do*Ho*Wo axis lane-dense.  Cast to bf16 once so the
    # im2col patch tensors materialize in bf16 (conv operands are bf16 anyway;
    # f32 accumulation + f32 BN/FSM statistics inside the kernels).
    x = jnp.transpose(x_ncdhw, (1, 0, 2, 3, 4)).astype(jnp.bfloat16)
    n_batch = x.shape[1]

    # init_layer: Conv3d(nc, ndf, 4, 2, 1, bias=False) + LeakyReLU(0.2)
    p, (do, ho, wo) = conv3d_patches_T(x, 4, 2, 1)
    y = conv_leaky(prep["w_init"], p)                         # (ndf, M) bf16
    x = y.reshape(-1, n_batch, do, ho, wo)

    # main: [Conv3d(c,2c,4,2,1) + BN + LeakyReLU] then FSM(x, x[perm], alpha);
    # the final Conv3d(cndf, 1, 4, 1, 0) is folded into the last fused kernel.
    # TODO(synk): bf16 conv operands perturb BN/FSM stats slightly vs an f32
    # PyTorch reference; validate with an explicit tolerance before training.
    n_main = len(prep["main"])
    assert n_main >= 1
    for li, (w, g, b) in enumerate(prep["main"]):
        # TODO(synk): move im2col in-kernel (per-tap accumulation over a
        # windowed DMA of the (C, N, D, H, W) activation) to remove the ~8x
        # patch expansion in HBM at large isize.
        p, (do, ho, wo) = conv3d_patches_T(x, 4, 2, 1)
        s = do * ho * wo
        lp = plan[li]
        if li < n_main - 1:
            xm = main_fused(w, p, g, b, lp["a"], lp["bx"], lp["by"],
                            alpha=alpha, s=s)                 # (2c, M) bf16
            x = xm.reshape(-1, n_batch, do, ho, wo)
        else:
            assert (do, ho, wo) == (4, 4, 4)
            scores = main_final_fused(w, p, g, b, lp["a"], lp["bx"], lp["by"],
                                      prep["w_final"], lp["sel"],
                                      alpha=alpha, s=s)       # (1, N)
            return scores.reshape(-1, 1)


# ----------------------------- main ------------------------------------------

if __name__ == "__main__":
    # isize=32 exercises both fused kernels (one intermediate main layer with
    # the channel-parallel grid, plus the final fused layer).
    isize, nz, nc, ndf, ngpu = 32, 100, 3, 8, 1
    n_batch = 2

    key = jax.random.PRNGKey(0)
    k_in, k_par, k_perm = jax.random.split(key, 3)

    x = jax.random.normal(k_in, (n_batch, nc, isize, isize, isize), jnp.float32)
    params = init_params(k_par, isize, nz, nc, ndf)
    prep = prepare_params(params)                    # weights prepped once
    perm = jax.random.permutation(k_perm, n_batch)
    plan = make_fsm_plan(isize, n_batch, perm)       # FSM matrices hoisted

    fwd = jax.jit(wgan3d_d_forward, static_argnames=("alpha",))
    out = jax.block_until_ready(fwd(x, prep, plan, alpha=0.5))

    assert out.shape == (n_batch, 1), out.shape
    assert bool(jnp.all(jnp.isfinite(out)))
    print("KERNEL_OK")
</pallas_src>

<mosaic_0001>
module attributes {stable_mosaic.version = 11 : i64} {
  func.func @_conv_leaky_kernel(%arg0: i32, %arg1: memref<8x192xbf16, #tpu.memory_space<vmem>>, %arg2: memref<192x2048xbf16, #tpu.memory_space<vmem>>, %arg3: memref<8x2048xbf16, #tpu.memory_space<vmem>>) attributes {dimension_semantics = [#tpu.dimension_semantics<parallel>], iteration_bounds = array<i64: 4>, scalar_prefetch = 0 : i64, scratch_operands = 0 : i64, tpu.core_type = #tpu.core_type<tc>, window_params = [{pipeline_mode = #tpu.pipeline_mode<synchronous>, transform_indices = @transform_0, window_bounds = array<i64: 8, 192>}, {transform_indices = @transform_1, window_bounds = array<i64: 192, 2048>}, {transform_indices = @transform_2, window_bounds = array<i64: 8, 2048>}]} {
    %c0 = arith.constant 0 : index
    %c0_0 = arith.constant 0 : index
    %0 = vector.load %arg1[%c0, %c0_0] : memref<8x192xbf16, #tpu.memory_space<vmem>>, vector<8x192xbf16>
    %c0_1 = arith.constant 0 : index
    %c0_2 = arith.constant 0 : index
    %1 = vector.load %arg2[%c0_1, %c0_2] : memref<192x2048xbf16, #tpu.memory_space<vmem>>, vector<192x2048xbf16>
    %cst = arith.constant dense<0.000000e+00> : vector<8x2048xf32>
    %2 = tpu.matmul %0, %1, %cst {dimension_numbers = #tpu.dot_dimension_numbers<[1], [0], [0], [1], [0, 0, 1, 1], [], []>} : vector<8x192xbf16>, vector<192x2048xbf16>, vector<8x2048xf32> -> vector<8x2048xf32>
    %cst_3 = arith.constant 2.000000e-01 : f32
    %3 = vector.broadcast %cst_3 : f32 to vector<8x2048xf32>
    %4 = arith.mulf %3, %2 : vector<8x2048xf32>
    %5 = arith.maximumf %2, %4 : vector<8x2048xf32>
    %6 = arith.truncf %5 : vector<8x2048xf32> to vector<8x2048xbf16>
    %c0_4 = arith.constant 0 : index
    %c0_5 = arith.constant 0 : index
    %7 = vector.load %arg3[%c0_4, %c0_5] : memref<8x2048xbf16, #tpu.memory_space<vmem>>, vector<8x2048xbf16>
    tpu.vector_store %arg3[%c0_4, %c0_5], %6 {strides = array<i32>} : memref<8x2048xbf16, #tpu.memory_space<vmem>>, vector<8x2048xbf16>,
    return
  }
  func.func @transform_0(%arg0: i32) -> (i32, i32) {
    %c0_i32 = arith.constant 0 : i32
    %c0_i32_0 = arith.constant 0 : i32
    %c0_i32_1 = arith.constant 0 : i32
    return %c0_i32, %c0_i32_0 : i32, i32
  }
  func.func @transform_1(%arg0: i32) -> (i32, i32) {
    %c0_i32 = arith.constant 0 : i32
    %c0_i32_0 = arith.constant 0 : i32
    return %c0_i32, %arg0 : i32, i32
  }
  func.func @transform_2(%arg0: i32) -> (i32, i32) {
    %c0_i32 = arith.constant 0 : i32
    %c0_i32_0 = arith.constant 0 : i32
    return %c0_i32, %arg0 : i32, i32
  }
}

module attributes {stable_mosaic.version = 11 : i64} {
  func.func @_main_fused_kernel(%arg0: i32, %arg1: memref<8x512xbf16, #tpu.memory_space<vmem>>, %arg2: memref<512x1024xbf16, #tpu.memory_space<vmem>>, %arg3: memref<8x1xf32, #tpu.memory_space<vmem>>, %arg4: memref<8x1xf32, #tpu.memory_space<vmem>>, %arg5: memref<1024x2xf32, #tpu.memory_space<vmem>>, %arg6: memref<2x1024xf32, #tpu.memory_space<vmem>>, %arg7: memref<2x1024xf32, #tpu.memory_space<vmem>>, %arg8: memref<8x1024xbf16, #tpu.memory_space<vmem>>) attributes {dimension_semantics = [#tpu.dimension_semantics<parallel>], iteration_bounds = array<i64: 2>, scalar_prefetch = 0 : i64, scratch_operands = 0 : i64, tpu.core_type = #tpu.core_type<tc>, window_params = [{transform_indices = @transform_0, window_bounds = array<i64: 8, 512>}, {pipeline_mode = #tpu.pipeline_mode<synchronous>, transform_indices = @transform_1, window_bounds = array<i64: 512, 1024>}, {transform_indices = @transform_2, window_bounds = array<i64: 8, 1>}, {transform_indices = @transform_3, window_bounds = array<i64: 8, 1>}, {pipeline_mode = #tpu.pipeline_mode<synchronous>, transform_indices = @transform_4, window_bounds = array<i64: 1024, 2>}, {pipeline_mode = #tpu.pipeline_mode<synchronous>, transform_indices = @transform_5, window_bounds = array<i64: 2, 1024>}, {pipeline_mode = #tpu.pipeline_mode<synchronous>, transform_indices = @transform_6, window_bounds = array<i64: 2, 1024>}, {transform_indices = @transform_7, window_bounds = array<i64: 8, 1024>}]} {
    %c0 = arith.constant 0 : index
    %c0_0 = arith.constant 0 : index
    %0 = vector.load %arg1[%c0, %c0_0] : memref<8x512xbf16, #tpu.memory_space<vmem>>, vector<8x512xbf16>
    %c0_1 = arith.constant 0 : index
    %c0_2 = arith.constant 0 : index
    %1 = vector.load %arg2[%c0_1, %c0_2] : memref<512x1024xbf16, #tpu.memory_space<vmem>>, vector<512x1024xbf16>
    %cst = arith.constant dense<0.000000e+00> : vector<8x1024xf32>
    %2 = tpu.matmul %0, %1, %cst {dimension_numbers = #tpu.dot_dimension_numbers<[1], [0], [0], [1], [0, 0, 1, 1], [], []>} : vector<8x512xbf16>, vector<512x1024xbf16>, vector<8x1024xf32> -> vector<8x1024xf32>
    %cst_3 = arith.constant dense<0.000000e+00> : vector<8xf32>
    %3 = vector.multi_reduction <add>, %2, %cst_3 [1] : vector<8x1024xf32> to vector<8xf32>
    %4 = vector.shape_cast %3 : vector<8xf32> to vector<8x1xf32>
    %cst_4 = arith.constant 1.024000e+03 : f32
    %5 = vector.broadcast %cst_4 : f32 to vector<8x1xf32>
    %6 = arith.divf %4, %5 : vector<8x1xf32>
    %7 = vector.broadcast %6 : vector<8x1xf32> to vector<8x1024xf32>
    %8 = arith.subf %2, %7 : vector<8x1024xf32>
    %9 = arith.mulf %8, %8 : vector<8x1024xf32>
    %cst_5 = arith.constant dense<0.000000e+00> : vector<8xf32>
    %10 = vector.multi_reduction <add>, %9, %cst_5 [1] : vector<8x1024xf32> to vector<8xf32>
    %11 = vector.shape_cast %10 : vector<8xf32> to vector<8x1xf32>
    %cst_6 = arith.constant 1.024000e+03 : f32
    %12 = vector.broadcast %cst_6 : f32 to vector<8x1xf32>
    %13 = arith.divf %11, %12 : vector<8x1xf32>
    %14 = vector.broadcast %6 : vector<8x1xf32> to vector<8x1024xf32>
    %15 = arith.subf %2, %14 : vector<8x1024xf32>
    %cst_7 = arith.constant 9.99999974E-6 : f32
    %16 = vector.broadcast %cst_7 : f32 to vector<8x1xf32>
    %17 = arith.addf %13, %16 : vector<8x1xf32>
    %18 = math.rsqrt %17 : vector<8x1xf32>
    %19 = vector.broadcast %18 : vector<8x1xf32> to vector<8x1024xf32>
    %20 = arith.mulf %15, %19 : vector<8x1024xf32>
    %c0_8 = arith.constant 0 : index
    %c0_9 = arith.constant 0 : index
    %21 = vector.load %arg3[%c0_8, %c0_9] : memref<8x1xf32, #tpu.memory_space<vmem>>, vector<8x1xf32>
    %22 = vector.broadcast %21 : vector<8x1xf32> to vector<8x1024xf32>
    %23 = arith.mulf %20, %22 : vector<8x1024xf32>
    %c0_10 = arith.constant 0 : index
    %c0_11 = arith.constant 0 : index
    %24 = vector.load %arg4[%c0_10, %c0_11] : memref<8x1xf32, #tpu.memory_space<vmem>>, vector<8x1xf32>
    %25 = vector.broadcast %24 : vector<8x1xf32> to vector<8x1024xf32>
    %26 = arith.addf %23, %25 : vector<8x1024xf32>
    %cst_12 = arith.constant 2.000000e-01 : f32
    %27 = vector.broadcast %cst_12 : f32 to vector<8x1024xf32>
    %28 = arith.mulf %27, %26 : vector<8x1024xf32>
    %29 = arith.maximumf %26, %28 : vector<8x1024xf32>
    %c0_13 = arith.constant 0 : index
    %c0_14 = arith.constant 0 : index
    %30 = vector.load %arg5[%c0_13, %c0_14] : memref<1024x2xf32, #tpu.memory_space<vmem>>, vector<1024x2xf32>
    %c0_15 = arith.constant 0 : index
    %c0_16 = arith.constant 0 : index
    %31 = vector.load %arg6[%c0_15, %c0_16] : memref<2x1024xf32, #tpu.memory_space<vmem>>, vector<2x1024xf32>
    %c0_17 = arith.constant 0 : index
    %c0_18 = arith.constant 0 : index
    %32 = vector.load %arg7[%c0_17, %c0_18] : memref<2x1024xf32, #tpu.memory_space<vmem>>, vector<2x1024xf32>
    %cst_19 = arith.constant dense<0.000000e+00> : vector<8x2xf32>
    %33 = tpu.matmul %29, %30, %cst_19 {dimension_numbers = #tpu.dot_dimension_numbers<[1], [0], [0], [1], [0, 0, 1, 1], [], []>} : vector<8x1024xf32>, vector<1024x2xf32>, vector<8x2xf32> -> vector<8x2xf32>
    %cst_20 = arith.constant dense<0.000000e+00> : vector<8x1024xf32>
    %34 = tpu.matmul %33, %31, %cst_20 {dimension_numbers = #tpu.dot_dimension_numbers<[1], [0], [0], [1], [0, 0, 1, 1], [], []>} : vector<8x2xf32>, vector<2x1024xf32>, vector<8x1024xf32> -> vector<8x1024xf32>
    %cst_21 = arith.constant dense<0.000000e+00> : vector<8x1024xf32>
    %35 = tpu.matmul %33, %32, %cst_21 {dimension_numbers = #tpu.dot_dimension_numbers<[1], [0], [0], [1], [0, 0, 1, 1], [], []>} : vector<8x2xf32>, vector<2x1024xf32>, vector<8x1024xf32> -> vector<8x1024xf32>
    %36 = arith.subf %29, %34 : vector<8x1024xf32>
    %37 = arith.mulf %36, %36 : vector<8x1024xf32>
    %cst_22 = arith.constant dense<0.000000e+00> : vector<8x2xf32>
    %38 = tpu.matmul %37, %30, %cst_22 {dimension_numbers = #tpu.dot_dimension_numbers<[1], [0], [0], [1], [0, 0, 1, 1], [], []>} : vector<8x1024xf32>, vector<1024x2xf32>, vector<8x2xf32> -> vector<8x2xf32>
    %cst_23 = arith.constant 1.00195694 : f32
    %39 = vector.broadcast %cst_23 : f32 to vector<8x2xf32>
    %40 = arith.mulf %38, %39 : vector<8x2xf32>
    %cst_24 = arith.constant dense<0.000000e+00> : vector<8x1024xf32>
    %41 = tpu.matmul %40, %31, %cst_24 {dimension_numbers = #tpu.dot_dimension_numbers<[1], [0], [0], [1], [0, 0, 1, 1], [], []>} : vector<8x2xf32>, vector<2x1024xf32>, vector<8x1024xf32> -> vector<8x1024xf32>
    %cst_25 = arith.constant dense<0.000000e+00> : vector<8x1024xf32>
    %42 = tpu.matmul %40, %32, %cst_25 {dimension_numbers = #tpu.dot_dimension_numbers<[1], [0], [0], [1], [0, 0, 1, 1], [], []>} : vector<8x2xf32>, vector<2x1024xf32>, vector<8x1024xf32> -> vector<8x1024xf32>
    %cst_26 = arith.constant 9.99999974E-6 : f32
    %43 = vector.broadcast %cst_26 : f32 to vector<8x1024xf32>
    %44 = arith.addf %41, %43 : vector<8x1024xf32>
    %45 = math.rsqrt %44 : vector<8x1024xf32>
    %46 = arith.mulf %36, %45 : vector<8x1024xf32>
    %cst_27 = arith.constant 9.99999974E-6 : f32
    %47 = vector.broadcast %cst_27 : f32 to vector<8x1024xf32>
    %48 = arith.addf %42, %47 : vector<8x1024xf32>
    %49 = math.sqrt %48 : vector<8x1024xf32>
    %50 = arith.mulf %46, %49 : vector<8x1024xf32>
    %51 = arith.addf %50, %35 : vector<8x1024xf32>
    %cst_28 = arith.constant 5.000000e-01 : f32
    %52 = vector.broadcast %cst_28 : f32 to vector<8x1024xf32>
    %53 = arith.mulf %52, %29 : vector<8x1024xf32>
    %cst_29 = arith.constant 5.000000e-01 : f32
    %54 = vector.broadcast %cst_29 : f32 to vector<8x1024xf32>
    %55 = arith.mulf %54, %51 : vector<8x1024xf32>
    %56 = arith.addf %53, %55 : vector<8x1024xf32>
    %57 = arith.truncf %56 : vector<8x1024xf32> to vector<8x1024xbf16>
    %c0_30 = arith.constant 0 : index
    %c0_31 = arith.constant 0 : index
    %58 = vector.load %arg8[%c0_30, %c0_31] : memref<8x1024xbf16, #tpu.memory_space<vmem>>, vector<8x1024xbf16>
    tpu.vector_store %arg8[%c0_30, %c0_31], %57 {strides = array<i32>} : memref<8x1024xbf16, #tpu.memory_space<vmem>>, vector<8x1024xbf16>,
    return
  }
  func.func @transform_0(%arg0: i32) -> (i32, i32) {
    %c0_i32 = arith.constant 0 : i32
    %c0_i32_0 = arith.constant 0 : i32
    return %arg0, %c0_i32 : i32, i32
  }
  func.func @transform_1(%arg0: i32) -> (i32, i32) {
    %c0_i32 = arith.constant 0 : i32
    %c0_i32_0 = arith.constant 0 : i32
    %c0_i32_1 = arith.constant 0 : i32
    return %c0_i32, %c0_i32_0 : i32, i32
  }
  func.func @transform_2(%arg0: i32) -> (i32, i32) {
    %c0_i32 = arith.constant 0 : i32
    %c0_i32_0 = arith.constant 0 : i32
    return %arg0, %c0_i32 : i32, i32
  }
  func.func @transform_3(%arg0: i32) -> (i32, i32) {
    %c0_i32 = arith.constant 0 : i32
    %c0_i32_0 = arith.constant 0 : i32
    return %arg0, %c0_i32 : i32, i32
  }
  func.func @transform_4(%arg0: i32) -> (i32, i32) {
    %c0_i32 = arith.constant 0 : i32
    %c0_i32_0 = arith.constant 0 : i32
    %c0_i32_1 = arith.constant 0 : i32
    return %c0_i32, %c0_i32_0 : i32, i32
  }
  func.func @transform_5(%arg0: i32) -> (i32, i32) {
    %c0_i32 = arith.constant 0 : i32
    %c0_i32_0 = arith.constant 0 : i32
    %c0_i32_1 = arith.constant 0 : i32
    return %c0_i32, %c0_i32_0 : i32, i32
  }
  func.func @transform_6(%arg0: i32) -> (i32, i32) {
    %c0_i32 = arith.constant 0 : i32
    %c0_i32_0 = arith.constant 0 : i32
    %c0_i32_1 = arith.constant 0 : i32
    return %c0_i32, %c0_i32_0 : i32, i32
  }
  func.func @transform_7(%arg0: i32) -> (i32, i32) {
    %c0_i32 = arith.constant 0 : i32
    %c0_i32_0 = arith.constant 0 : i32
    return %arg0, %c0_i32 : i32, i32
  }
}

module attributes {stable_mosaic.version = 11 : i64} {
  func.func @_main_final_fused_kernel(%arg0: i32, %arg1: memref<32x1024xbf16, #tpu.memory_space<vmem>>, %arg2: memref<1024x128xbf16, #tpu.memory_space<vmem>>, %arg3: memref<32x1xf32, #tpu.memory_space<vmem>>, %arg4: memref<32x1xf32, #tpu.memory_space<vmem>>, %arg5: memref<128x2xf32, #tpu.memory_space<vmem>>, %arg6: memref<2x128xf32, #tpu.memory_space<vmem>>, %arg7: memref<2x128xf32, #tpu.memory_space<vmem>>, %arg8: memref<32x64xf32, #tpu.memory_space<vmem>>, %arg9: memref<64x128xf32, #tpu.memory_space<vmem>>, %arg10: memref<1x2xf32, #tpu.memory_space<vmem>>) attributes {dimension_semantics = [#tpu.dimension_semantics<arbitrary>], iteration_bounds = array<i64: 1>, scalar_prefetch = 0 : i64, scratch_operands = 0 : i64, tpu.core_type = #tpu.core_type<tc>, window_params = [{pipeline_mode = #tpu.pipeline_mode<synchronous>, transform_indices = @transform_0, window_bounds = array<i64: 32, 1024>}, {pipeline_mode = #tpu.pipeline_mode<synchronous>, transform_indices = @transform_1, window_bounds = array<i64: 1024, 128>}, {pipeline_mode = #tpu.pipeline_mode<synchronous>, transform_indices = @transform_2, window_bounds = array<i64: 32, 1>}, {pipeline_mode = #tpu.pipeline_mode<synchronous>, transform_indices = @transform_3, window_bounds = array<i64: 32, 1>}, {pipeline_mode = #tpu.pipeline_mode<synchronous>, transform_indices = @transform_4, window_bounds = array<i64: 128, 2>}, {pipeline_mode = #tpu.pipeline_mode<synchronous>, transform_indices = @transform_5, window_bounds = array<i64: 2, 128>}, {pipeline_mode = #tpu.pipeline_mode<synchronous>, transform_indices = @transform_6, window_bounds = array<i64: 2, 128>}, {pipeline_mode = #tpu.pipeline_mode<synchronous>, transform_indices = @transform_7, window_bounds = array<i64: 32, 64>}, {pipeline_mode = #tpu.pipeline_mode<synchronous>, transform_indices = @transform_8, window_bounds = array<i64: 64, 128>}, {pipeline_mode = #tpu.pipeline_mode<synchronous>, transform_indices = @transform_9, window_bounds = array<i64: 1, 2>}]} {
    %c0 = arith.constant 0 : index
    %c0_0 = arith.constant 0 : index
    %0 = vector.load %arg1[%c0, %c0_0] : memref<32x1024xbf16, #tpu.memory_space<vmem>>, vector<32x1024xbf16>
    %c0_1 = arith.constant 0 : index
    %c0_2 = arith.constant 0 : index
    %1 = vector.load %arg2[%c0_1, %c0_2] : memref<1024x128xbf16, #tpu.memory_space<vmem>>, vector<1024x128xbf16>
    %cst = arith.constant dense<0.000000e+00> : vector<32x128xf32>
    %2 = tpu.matmul %0, %1, %cst {dimension_numbers = #tpu.dot_dimension_numbers<[1], [0], [0], [1], [0, 0, 1, 1], [], []>} : vector<32x1024xbf16>, vector<1024x128xbf16>, vector<32x128xf32> -> vector<32x128xf32>
    %cst_3 = arith.constant dense<0.000000e+00> : vector<32xf32>
    %3 = vector.multi_reduction <add>, %2, %cst_3 [1] : vector<32x128xf32> to vector<32xf32>
    %4 = vector.shape_cast %3 : vector<32xf32> to vector<32x1xf32>
    %cst_4 = arith.constant 1.280000e+02 : f32
    %5 = vector.broadcast %cst_4 : f32 to vector<32x1xf32>
    %6 = arith.divf %4, %5 : vector<32x1xf32>
    %7 = vector.broadcast %6 : vector<32x1xf32> to vector<32x128xf32>
    %8 = arith.subf %2, %7 : vector<32x128xf32>
    %9 = arith.mulf %8, %8 : vector<32x128xf32>
    %cst_5 = arith.constant dense<0.000000e+00> : vector<32xf32>
    %10 = vector.multi_reduction <add>, %9, %cst_5 [1] : vector<32x128xf32> to vector<32xf32>
    %11 = vector.shape_cast %10 : vector<32xf32> to vector<32x1xf32>
    %cst_6 = arith.constant 1.280000e+02 : f32
    %12 = vector.broadcast %cst_6 : f32 to vector<32x1xf32>
    %13 = arith.divf %11, %12 : vector<32x1xf32>
    %14 = vector.broadcast %6 : vector<32x1xf32> to vector<32x128xf32>
    %15 = arith.subf %2, %14 : vector<32x128xf32>
    %cst_7 = arith.constant 9.99999974E-6 : f32
    %16 = vector.broadcast %cst_7 : f32 to vector<32x1xf32>
    %17 = arith.addf %13, %16 : vector<32x1xf32>
    %18 = math.rsqrt %17 : vector<32x1xf32>
    %19 = vector.broadcast %18 : vector<32x1xf32> to vector<32x128xf32>
    %20 = arith.mulf %15, %19 : vector<32x128xf32>
    %c0_8 = arith.constant 0 : index
    %c0_9 = arith.constant 0 : index
    %21 = vector.load %arg3[%c0_8, %c0_9] : memref<32x1xf32, #tpu.memory_space<vmem>>, vector<32x1xf32>
    %22 = vector.broadcast %21 : vector<32x1xf32> to vector<32x128xf32>
    %23 = arith.mulf %20, %22 : vector<32x128xf32>
    %c0_10 = arith.constant 0 : index
    %c0_11 = arith.constant 0 : index
    %24 = vector.load %arg4[%c0_10, %c0_11] : memref<32x1xf32, #tpu.memory_space<vmem>>, vector<32x1xf32>
    %25 = vector.broadcast %24 : vector<32x1xf32> to vector<32x128xf32>
    %26 = arith.addf %23, %25 : vector<32x128xf32>
    %cst_12 = arith.constant 2.000000e-01 : f32
    %27 = vector.broadcast %cst_12 : f32 to vector<32x128xf32>
    %28 = arith.mulf %27, %26 : vector<32x128xf32>
    %29 = arith.maximumf %26, %28 : vector<32x128xf32>
    %c0_13 = arith.constant 0 : index
    %c0_14 = arith.constant 0 : index
    %30 = vector.load %arg5[%c0_13, %c0_14] : memref<128x2xf32, #tpu.memory_space<vmem>>, vector<128x2xf32>
    %c0_15 = arith.constant 0 : index
    %c0_16 = arith.constant 0 : index
    %31 = vector.load %arg6[%c0_15, %c0_16] : memref<2x128xf32, #tpu.memory_space<vmem>>, vector<2x128xf32>
    %c0_17 = arith.constant 0 : index
    %c0_18 = arith.constant 0 : index
    %32 = vector.load %arg7[%c0_17, %c0_18] : memref<2x128xf32, #tpu.memory_space<vmem>>, vector<2x128xf32>
    %cst_19 = arith.constant dense<0.000000e+00> : vector<32x2xf32>
    %33 = tpu.matmul %29, %30, %cst_19 {dimension_numbers = #tpu.dot_dimension_numbers<[1], [0], [0], [1], [0, 0, 1, 1], [], []>} : vector<32x128xf32>, vector<128x2xf32>, vector<32x2xf32> -> vector<32x2xf32>
    %cst_20 = arith.constant dense<0.000000e+00> : vector<32x128xf32>
    %34 = tpu.matmul %33, %31, %cst_20 {dimension_numbers = #tpu.dot_dimension_numbers<[1], [0], [0], [1], [0, 0, 1, 1], [], []>} : vector<32x2xf32>, vector<2x128xf32>, vector<32x128xf32> -> vector<32x128xf32>
    %cst_21 = arith.constant dense<0.000000e+00> : vector<32x128xf32>
    %35 = tpu.matmul %33, %32, %cst_21 {dimension_numbers = #tpu.dot_dimension_numbers<[1], [0], [0], [1], [0, 0, 1, 1], [], []>} : vector<32x2xf32>, vector<2x128xf32>, vector<32x128xf32> -> vector<32x128xf32>
    %36 = arith.subf %29, %34 : vector<32x128xf32>
    %37 = arith.mulf %36, %36 : vector<32x128xf32>
    %cst_22 = arith.constant dense<0.000000e+00> : vector<32x2xf32>
    %38 = tpu.matmul %37, %30, %cst_22 {dimension_numbers = #tpu.dot_dimension_numbers<[1], [0], [0], [1], [0, 0, 1, 1], [], []>} : vector<32x128xf32>, vector<128x2xf32>, vector<32x2xf32> -> vector<32x2xf32>
    %cst_23 = arith.constant 1.01587307 : f32
    %39 = vector.broadcast %cst_23 : f32 to vector<32x2xf32>
    %40 = arith.mulf %38, %39 : vector<32x2xf32>
    %cst_24 = arith.constant dense<0.000000e+00> : vector<32x128xf32>
    %41 = tpu.matmul %40, %31, %cst_24 {dimension_numbers = #tpu.dot_dimension_numbers<[1], [0], [0], [1], [0, 0, 1, 1], [], []>} : vector<32x2xf32>, vector<2x128xf32>, vector<32x128xf32> -> vector<32x128xf32>
    %cst_25 = arith.constant dense<0.000000e+00> : vector<32x128xf32>
    %42 = tpu.matmul %40, %32, %cst_25 {dimension_numbers = #tpu.dot_dimension_numbers<[1], [0], [0], [1], [0, 0, 1, 1], [], []>} : vector<32x2xf32>, vector<2x128xf32>, vector<32x128xf32> -> vector<32x128xf32>
    %cst_26 = arith.constant 9.99999974E-6 : f32
    %43 = vector.broadcast %cst_26 : f32 to vector<32x128xf32>
    %44 = arith.addf %41, %43 : vector<32x128xf32>
    %45 = math.rsqrt %44 : vector<32x128xf32>
    %46 = arith.mulf %36, %45 : vector<32x128xf32>
    %cst_27 = arith.constant 9.99999974E-6 : f32
    %47 = vector.broadcast %cst_27 : f32 to vector<32x128xf32>
    %48 = arith.addf %42, %47 : vector<32x128xf32>
    %49 = math.sqrt %48 : vector<32x128xf32>
    %50 = arith.mulf %46, %49 : vector<32x128xf32>
    %51 = arith.addf %50, %35 : vector<32x128xf32>
    %cst_28 = arith.constant 5.000000e-01 : f32
    %52 = vector.broadcast %cst_28 : f32 to vector<32x128xf32>
    %53 = arith.mulf %52, %29 : vector<32x128xf32>
    %cst_29 = arith.constant 5.000000e-01 : f32
    %54 = vector.broadcast %cst_29 : f32 to vector<32x128xf32>
    %55 = arith.mulf %54, %51 : vector<32x128xf32>
    %56 = arith.addf %53, %55 : vector<32x128xf32>
    %c0_30 = arith.constant 0 : index
    %c0_31 = arith.constant 0 : index
    %57 = vector.load %arg8[%c0_30, %c0_31] : memref<32x64xf32, #tpu.memory_space<vmem>>, vector<32x64xf32>
    %c0_32 = arith.constant 0 : index
    %c0_33 = arith.constant 0 : index
    %58 = vector.load %arg9[%c0_32, %c0_33] : memref<64x128xf32, #tpu.memory_space<vmem>>, vector<64x128xf32>
    %cst_34 = arith.constant dense<0.000000e+00> : vector<32x128xf32>
    %59 = tpu.matmul %57, %58, %cst_34 {dimension_numbers = #tpu.dot_dimension_numbers<[1], [0], [0], [1], [0, 0, 1, 1], [], []>} : vector<32x64xf32>, vector<64x128xf32>, vector<32x128xf32> -> vector<32x128xf32>
    %60 = arith.mulf %56, %59 : vector<32x128xf32>
    %cst_35 = arith.constant dense<0.000000e+00> : vector<128xf32>
    %61 = vector.multi_reduction <add>, %60, %cst_35 [0] : vector<32x128xf32> to vector<128xf32>
    %62 = vector.shape_cast %61 : vector<128xf32> to vector<1x128xf32>
    %c0_36 = arith.constant 0 : index
    %c0_37 = arith.constant 0 : index
    %63 = vector.load %arg5[%c0_36, %c0_37] : memref<128x2xf32, #tpu.memory_space<vmem>>, vector<128x2xf32>
    %cst_38 = arith.constant dense<0.000000e+00> : vector<1x2xf32>
    %64 = tpu.matmul %62, %63, %cst_38 {dimension_numbers = #tpu.dot_dimension_numbers<[1], [0], [0], [1], [0, 0, 1, 1], [], []>} : vector<1x128xf32>, vector<128x2xf32>, vector<1x2xf32> -> vector<1x2xf32>
    %cst_39 = arith.constant 6.400000e+01 : f32
    %65 = vector.broadcast %cst_39 : f32 to vector<1x2xf32>
    %66 = arith.mulf %65, %64 : vector<1x2xf32>
    %c0_40 = arith.constant 0 : index
    %c0_41 = arith.constant 0 : index
    %67 = vector.load %arg10[%c0_40, %c0_41] : memref<1x2xf32, #tpu.memory_space<vmem>>, vector<1x2xf32>
    tpu.vector_store %arg10[%c0_40, %c0_41], %66 {strides = array<i32>} : memref<1x2xf32, #tpu.memory_space<vmem>>, vector<1x2xf32>,
    return
  }
  func.func @transform_0(%arg0: i32) -> (i32, i32) {
    %c0_i32 = arith.constant 0 : i32
    %c0_i32_0 = arith.constant 0 : i32
    %c0_i32_1 = arith.constant 0 : i32
    return %c0_i32, %c0_i32_0 : i32, i32
  }
  func.func @transform_1(%arg0: i32) -> (i32, i32) {
    %c0_i32 = arith.constant 0 : i32
    %c0_i32_0 = arith.constant 0 : i32
    %c0_i32_1 = arith.constant 0 : i32
    return %c0_i32, %c0_i32_0 : i32, i32
  }
  func.func @transform_2(%arg0: i32) -> (i32, i32) {
    %c0_i32 = arith.constant 0 : i32
    %c0_i32_0 = arith.constant 0 : i32
    %c0_i32_1 = arith.constant 0 : i32
    return %c0_i32, %c0_i32_0 : i32, i32
  }
  func.func @transform_3(%arg0: i32) -> (i32, i32) {
    %c0_i32 = arith.constant 0 : i32
    %c0_i32_0 = arith.constant 0 : i32
    %c0_i32_1 = arith.constant 0 : i32
    return %c0_i32, %c0_i32_0 : i32, i32
  }
  func.func @transform_4(%arg0: i32) -> (i32, i32) {
    %c0_i32 = arith.constant 0 : i32
    %c0_i32_0 = arith.constant 0 : i32
    %c0_i32_1 = arith.constant 0 : i32
    return %c0_i32, %c0_i32_0 : i32, i32
  }
  func.func @transform_5(%arg0: i32) -> (i32, i32) {
    %c0_i32 = arith.constant 0 : i32
    %c0_i32_0 = arith.constant 0 : i32
    %c0_i32_1 = arith.constant 0 : i32
    return %c0_i32, %c0_i32_0 : i32, i32
  }
  func.func @transform_6(%arg0: i32) -> (i32, i32) {
    %c0_i32 = arith.constant 0 : i32
    %c0_i32_0 = arith.constant 0 : i32
    %c0_i32_1 = arith.constant 0 : i32
    return %c0_i32, %c0_i32_0 : i32, i32
  }
  func.func @transform_7(%arg0: i32) -> (i32, i32) {
    %c0_i32 = arith.constant 0 : i32
    %c0_i32_0 = arith.constant 0 : i32
    %c0_i32_1 = arith.constant 0 : i32
    return %c0_i32, %c0_i32_0 : i32, i32
  }
  func.func @transform_8(%arg0: i32) -> (i32, i32) {
    %c0_i32 = arith.constant 0 : i32
    %c0_i32_0 = arith.constant 0 : i32
    %c0_i32_1 = arith.constant 0 : i32
    return %c0_i32, %c0_i32_0 : i32, i32
  }
  func.func @transform_9(%arg0: i32) -> (i32, i32) {
    %c0_i32 = arith.constant 0 : i32
    %c0_i32_0 = arith.constant 0 : i32
    %c0_i32_1 = arith.constant 0 : i32
    return %c0_i32, %c0_i32_0 : i32, i32
  }
}

</mosaic_0001>

<llo_original>
// kernel: wgan3d_d_forward.3
$region0: #{wgan3d_d_forward.3}
  #allocation0 [shape = 'u32[]', space=smem, size = 0x4, offset = 0x4, fixed_abs, tag = 'smem constant byte address 0x4 - core index']
  #allocation1 [shape = 'u32[144,128]{1,0:T(1,128)}', space=vmem, size = 0x12000, scoped, tag = 'internal scratch']
  %s0 = inlined_call_operand.vmem [shape: bf16[8,192], index: 0, kind: input, shape index: {}]
  %s1 = inlined_call_operand.vmem [shape: bf16[192,8192], index: 1, kind: input, shape index: {}]
  %s2 = inlined_call_operand.vmem [shape: bf16[8,8192], index: 2, kind: output, shape index: {}]
  %s3 = sld [smem:[#allocation0]]
  $region64: #{wgan3d_d_forward.3} parent=0
    _
  %s5 = ssub.s32 1, %s3
  %s6 = scalar_select 0, %s5, %s3
  $region1: #{wgan3d_d_forward.3} parent=0
    #allocation2 [shape = 'u8[1572864]{0}', space=vmem, size = 0x180000, scoped, tag = 'input window, operand 1']
    loop: start=0, step=1, limit=6
    $region2: #{wgan3d_d_forward.3} parent=1 // loop_pre_header
      _
    $region3: #{wgan3d_d_forward.3} parent=1 // loop_header
      %s8 = sphi 0, %s12
      %p9 = scmp.ge.s32.totalorder %s8, 6
      %s16 = sphi 0, %s16
      %s18 = sphi 0, %s16
      %s19 = sphi 0, %s18
      %s33 = sphi 0, %s19
      %s39 = sphi 0, %s41
      %s42 = sphi 0, %s39
      %s43 = sphi 0, %s42
      %s59 = sphi 0, %s43
      %s65 = sphi 0, %s67
      %s68 = sphi 0, %s65
      %s69 = sphi 0, %s68
      %s85 = sphi 0, %s69
    $region4: #{wgan3d_d_forward.3} parent=1 // loop_header_branch
      %11 = sbr.rel (%p9) target = $region8
    $region5: #{wgan3d_d_forward.3} parent=1 // loop_body
      %s13 = ssub.s32 %s8, 1
      %s14 = ssub.s32 %s8, 2
      %s15 = sadd.s32 %s8, 1
      %s17 = sadd.s32 %s16, 1
      %p20 = scmp.eq.s32.totalorder %s8, 3
      %p21 = scmp.ne.s32.totalorder %s16, %s18
      %p22 = scmp.eq.s32.totalorder %s8, 0
      %p23 = por %p21, %p22
      %p24 = scmp.ne.s32.totalorder %s16, %s18
      %p25 = scmp.eq.s32.totalorder %s13, 3
      %p26 = por %p24, %p25
      %p27 = scmp.ne.s32.totalorder %s18, %s19
      %p28 = scmp.eq.s32.totalorder %s13, 0
      %p29 = por %p27, %p28
      %p30 = scmp.ne.s32.totalorder %s18, %s19
      %p31 = scmp.eq.s32.totalorder %s14, 3
      %p32 = por %p30, %p31
      %p34 = scmp.ne.s32.totalorder %s19, %s33
      %p35 = scmp.eq.s32.totalorder %s14, 0
      %p36 = por %p34, %p35
      %s37 = ssub.s32 %s8, %s15
      %p38 = scmp.eq.s32.totalorder %s37, 0
      %s40 = sadd.s32 %s39, 1
      %s41 = scalar_select %p38, %s39, %s40
      %p44 = pneg %p38
      %p45 = scmp.eq.s32.totalorder %s8, 3
      %p46 = por %p44, %p45
      %p47 = scmp.ne.s32.totalorder %s39, %s42
      %p48 = scmp.eq.s32.totalorder %s8, 0
      %p49 = por %p47, %p48
      %p50 = scmp.ne.s32.totalorder %s39, %s42
      %p51 = scmp.eq.s32.totalorder %s13, 3
      %p52 = por %p50, %p51
      %p53 = scmp.ne.s32.totalorder %s42, %s43
      %p54 = scmp.eq.s32.totalorder %s13, 0
      %p55 = por %p53, %p54
      %p56 = scmp.ne.s32.totalorder %s42, %s43
      %p57 = scmp.eq.s32.totalorder %s14, 3
      %p58 = por %p56, %p57
      %p60 = scmp.ne.s32.totalorder %s43, %s59
      %p61 = scmp.eq.s32.totalorder %s14, 0
      %p62 = por %p60, %p61
      %s63 = ssub.s32 %s8, %s15
      %p64 = scmp.eq.s32.totalorder %s63, 0
      %s66 = sadd.s32 %s65, 1
      %s67 = scalar_select %p64, %s65, %s66
      %p70 = pneg %p64
      %p71 = scmp.eq.s32.totalorder %s8, 3
      %p72 = por %p70, %p71
      %p73 = scmp.ne.s32.totalorder %s65, %s68
      %p74 = scmp.eq.s32.totalorder %s8, 0
      %p75 = por %p73, %p74
      %p76 = scmp.ne.s32.totalorder %s65, %s68
      %p77 = scmp.eq.s32.totalorder %s13, 3
      %p78 = por %p76, %p77
      %p79 = scmp.ne.s32.totalorder %s68, %s69
      %p80 = scmp.eq.s32.totalorder %s13, 0
      %p81 = por %p79, %p80
      %p82 = scmp.ne.s32.totalorder %s68, %s69
      %p83 = scmp.eq.s32.totalorder %s14, 3
      %p84 = por %p82, %p83
      %p86 = scmp.ne.s32.totalorder %s69, %s85
      %p87 = scmp.eq.s32.totalorder %s14, 0
      %p88 = por %p86, %p87
      %p89 = scmp.le.s32.totalorder 1, %s8
      %p90 = scmp.lt.s32.totalorder %s8, 5
      %p91 = pnand %p89, %p90
      %p92 = pneg %p91
      // Predicated region
      $region9: #{wgan3d_d_forward.3} parent=5 // pred_check
        _
      $region10: #{wgan3d_d_forward.3} parent=5 // pred_check_branch
        %94 = sbr.rel (%p91) target = $region12
      $region11: #{wgan3d_d_forward.3} parent=5 // pred_region
        %s95 = ssub.s32 %s8, 1
        // Predicated region
        $region13: #{wgan3d_d_forward.3} parent=11 // pred_check
          %p96 = pneg %p29
        $region14: #{wgan3d_d_forward.3} parent=11 // pred_check_branch
          %98 = sbr.rel (%p96) target = $region16
        $region15: #{wgan3d_d_forward.3} parent=11 // pred_region
          _
        $region16: #{wgan3d_d_forward.3} parent=11 // pred_fallthru
          _
      $region12: #{wgan3d_d_forward.3} parent=5 // pred_fallthru
        _
      %p99 = scmp.lt.s32.totalorder %s8, 4
      // Predicated region
      $region17: #{wgan3d_d_forward.3} parent=5 // pred_check
        %p100 = pneg %p99
      $region18: #{wgan3d_d_forward.3} parent=5 // pred_check_branch
        %102 = sbr.rel (%p100) target = $region20
      $region19: #{wgan3d_d_forward.3} parent=5 // pred_region
        // Predicated region
        $region21: #{wgan3d_d_forward.3} parent=19 // pred_check
          %p103 = pneg %p49
        $region22: #{wgan3d_d_forward.3} parent=19 // pred_check_branch
          %105 = sbr.rel (%p103) target = $region24
        $region23: #{wgan3d_d_forward.3} parent=19 // pred_region
          %s106 = sand.u32 %s39, 1
          %s107 = sand.u32 %s39, 1
          %s108 = smul.addr %s107, 1536
          %s109 = scalar_lea.vmem [#allocation2], %s108
          %s110 = smul.u32 16, %s8
          %s111 = smul.addr %s110, 4
          %s112 = scalar_lea.vmem %s1, %s111
          // Predicated region
          $region25: #{wgan3d_d_forward.3} parent=23 // pred_check
            _
          $region26: #{wgan3d_d_forward.3} parent=23 // pred_check_branch
            %114 = sbr.rel (0) target = $region28
          $region27: #{wgan3d_d_forward.3} parent=23 // pred_region
            // Predicated region
            $region29: #{wgan3d_d_forward.3} parent=27 // pred_check
              _
            $region30: #{wgan3d_d_forward.3} parent=27 // pred_check_branch
              %116 = sbr.rel (0) target = $region32
            $region31: #{wgan3d_d_forward.3} parent=27 // pred_region
              loop: start=0, step=1, limit=1
              $region33: #{wgan3d_d_forward.3} parent=31 // loop_pre_header
                _
              $region34: #{wgan3d_d_forward.3} parent=31 // loop_header
                %s118 = sphi 0, %s122
                %p119 = scmp.ge.s32.totalorder %s118, 1
                %s123 = sphi %s112, %s112
                %s124 = sphi %s109, %s109
              $region35: #{wgan3d_d_forward.3} parent=31 // loop_header_branch
                %121 = sbr.rel (%p119) target = $region39
              $region36: #{wgan3d_d_forward.3} parent=31 // loop_body
                %v125 = vld [vmem:[%s123] sm:$0xff]
                %126 = vst [vmem:[%s124] sm:$0xff] %v125
                %v127 = vld [vmem:[%s123 + $0x8] sm:$0xff]
                %128 = vst [vmem:[%s124 + $0x8] sm:$0xff] %v127
                %v129 = vld [vmem:[%s123 + $0x10] sm:$0xff]
                %130 = vst [vmem:[%s124 + $0x10] sm:$0xff] %v129
                %v131 = vld [vmem:[%s123 + $0x18] sm:$0xff]
                %132 = vst [vmem:[%s124 + $0x18] sm:$0xff] %v131
                %v133 = vld [vmem:[%s123 + $0x20] sm:$0xff]
                %134 = vst [vmem:[%s124 + $0x20] sm:$0xff] %v133
                %v135 = vld [vmem:[%s123 + $0x28] sm:$0xff]
                %136 = vst [vmem:[%s124 + $0x28] sm:$0xff] %v135
                %v137 = vld [vmem:[%s123 + $0x30] sm:$0xff]
                %138 = vst [vmem:[%s124 + $0x30] sm:$0xff] %v137
                %v139 = vld [vmem:[%s123 + $0x38] sm:$0xff]
                %140 = vst [vmem:[%s124 + $0x38] sm:$0xff] %v139
                %v141 = vld [vmem:[%s123 + $0x100] sm:$0xff]
                %142 = vst [vmem:[%s124 + $0x40] sm:$0xff] %v141
                %v143 = vld [vmem:[%s123 + $0x108] sm:$0xff]
                %144 = vst [vmem:[%s124 + $0x48] sm:$0xff] %v143
                %v145 = vld [vmem:[%s123 + $0x110] sm:$0xff]
                %146 = vst [vmem:[%s124 + $0x50] sm:$0xff] %v145
                %v147 = vld [vmem:[%s123 + $0x118] sm:$0xff]
                %148 = vst [vmem:[%s124 + $0x58] sm:$0xff] %v147
                %v149 = vld [vmem:[%s123 + $0x120] sm:$0xff]
                %150 = vst [vmem:[%s124 + $0x60] sm:$0xff] %v149
                %v151 = vld [vmem:[%s123 + $0x128] sm:$0xff]
                %152 = vst [vmem:[%s124 + $0x68] sm:$0xff] %v151
                %v153 = vld [vmem:[%s123 + $0x130] sm:$0xff]
                %154 = vst [vmem:[%s124 + $0x70] sm:$0xff] %v153
                %v155 = vld [vmem:[%s123 + $0x138] sm:$0xff]
                %156 = vst [vmem:[%s124 + $0x78] sm:$0xff] %v155
                %v157 = vld [vmem:[%s123 + $0x200] sm:$0xff]
                %158 = vst [vmem:[%s124 + $0x80] sm:$0xff] %v157
                %v159 = vld [vmem:[%s123 + $0x208] sm:$0xff]
                %160 = vst [vmem:[%s124 + $0x88] sm:$0xff] %v159
                %v161 = vld [vmem:[%s123 + $0x210] sm:$0xff]
                %162 = vst [vmem:[%s124 + $0x90] sm:$0xff] %v161
                %v163 = vld [vmem:[%s123 + $0x218] sm:$0xff]
                %164 = vst [vmem:[%s124 + $0x98] sm:$0xff] %v163
                %v165 = vld [vmem:[%s123 + $0x220] sm:$0xff]
                %166 = vst [vmem:[%s124 + $0xa0] sm:$0xff] %v165
                %v167 = vld [vmem:[%s123 + $0x228] sm:$0xff]
                %168 = vst [vmem:[%s124 + $0xa8] sm:$0xff] %v167
                %v169 = vld [vmem:[%s123 + $0x230] sm:$0xff]
                %170 = vst [vmem:[%s124 + $0xb0] sm:$0xff] %v169
                %v171 = vld [vmem:[%s123 + $0x238] sm:$0xff]
                %172 = vst [vmem:[%s124 + $0xb8] sm:$0xff] %v171
                %v173 = vld [vmem:[%s123 + $0x300] sm:$0xff]
                %174 = vst [vmem:[%s124 + $0xc0] sm:$0xff] %v173
                %v175 = vld [vmem:[%s123 + $0x308] sm:$0xff]
                %176 = vst [vmem:[%s124 + $0xc8] sm:$0xff] %v175
                %v177 = vld [vmem:[%s123 + $0x310] sm:$0xff]
                %178 = vst [vmem:[%s124 + $0xd0] sm:$0xff] %v177
                %v179 = vld [vmem:[%s123 + $0x318] sm:$0xff]
                %180 = vst [vmem:[%s124 + $0xd8] sm:$0xff] %v179
                %v181 = vld [vmem:[%s123 + $0x320] sm:$0xff]
                %182 = vst [vmem:[%s124 + $0xe0] sm:$0xff] %v181
                %v183 = vld [vmem:[%s123 + $0x328] sm:$0xff]
                %184 = vst [vmem:[%s124 + $0xe8] sm:$0xff] %v183
                %v185 = vld [vmem:[%s123 + $0x330] sm:$0xff]
                %186 = vst [vmem:[%s124 + $0xf0] sm:$0xff] %v185
                %v187 = vld [vmem:[%s123 + $0x338] sm:$0xff]
                %188 = vst [vmem:[%s124 + $0xf8] sm:$0xff] %v187
                %v189 = vld [vmem:[%s123 + $0x400] sm:$0xff]
                %190 = vst [vmem:[%s124 + $0x100] sm:$0xff] %v189
                %v191 = vld [vmem:[%s123 + $0x408] sm:$0xff]
                %192 = vst [vmem:[%s124 + $0x108] sm:$0xff] %v191
                %v193 = vld [vmem:[%s123 + $0x410] sm:$0xff]
                %194 = vst [vmem:[%s124 + $0x110] sm:$0xff] %v193
                %v195 = vld [vmem:[%s123 + $0x418] sm:$0xff]
                %196 = vst [vmem:[%s124 + $0x118] sm:$0xff] %v195
                %v197 = vld [vmem:[%s123 + $0x420] sm:$0xff]
                %198 = vst [vmem:[%s124 + $0x120] sm:$0xff] %v197
                %v199 = vld [vmem:[%s123 + $0x428] sm:$0xff]
                %200 = vst [vmem:[%s124 + $0x128] sm:$0xff] %v199
                %v201 = vld [vmem:[%s123 + $0x430] sm:$0xff]
                %202 = vst [vmem:[%s124 + $0x130] sm:$0xff] %v201
                %v203 = vld [vmem:[%s123 + $0x438] sm:$0xff]
                %204 = vst [vmem:[%s124 + $0x138] sm:$0xff] %v203
                %v205 = vld [vmem:[%s123 + $0x500] sm:$0xff]
                %206 = vst [vmem:[%s124 + $0x140] sm:$0xff] %v205
                %v207 = vld [vmem:[%s123 + $0x508] sm:$0xff]
                %208 = vst [vmem:[%s124 + $0x148] sm:$0xff] %v207
                %v209 = vld [vmem:[%s123 + $0x510] sm:$0xff]
                %210 = vst [vmem:[%s124 + $0x150] sm:$0xff] %v209
                %v211 = vld [vmem:[%s123 + $0x518] sm:$0xff]
                %212 = vst [vmem:[%s124 + $0x158] sm:$0xff] %v211
                %v213 = vld [vmem:[%s123 + $0x520] sm:$0xff]
                %214 = vst [vmem:[%s124 + $0x160] sm:$0xff] %v213
                %v215 = vld [vmem:[%s123 + $0x528] sm:$0xff]
                %216 = vst [vmem:[%s124 + $0x168] sm:$0xff] %v215
                %v217 = vld [vmem:[%s123 + $0x530] sm:$0xff]
                %218 = vst [vmem:[%s124 + $0x170] sm:$0xff] %v217
                %v219 = vld [vmem:[%s123 + $0x538] sm:$0xff]
                %220 = vst [vmem:[%s124 + $0x178] sm:$0xff] %v219
                %v221 = vld [vmem:[%s123 + $0x600] sm:$0xff]
                %222 = vst [vmem:[%s124 + $0x180] sm:$0xff] %v221
                %v223 = vld [vmem:[%s123 + $0x608] sm:$0xff]
                %224 = vst [vmem:[%s124 + $0x188] sm:$0xff] %v223
                %v225 = vld [vmem:[%s123 + $0x610] sm:$0xff]
                %226 = vst [vmem:[%s124 + $0x190] sm:$0xff] %v225
                %v227 = vld [vmem:[%s123 + $0x618] sm:$0xff]
                %228 = vst [vmem:[%s124 + $0x198] sm:$0xff] %v227
                %v229 = vld [vmem:[%s123 + $0x620] sm:$0xff]
                %230 = vst [vmem:[%s124 + $0x1a0] sm:$0xff] %v229
                %v231 = vld [vmem:[%s123 + $0x628] sm:$0xff]
                %232 = vst [vmem:[%s124 + $0x1a8] sm:$0xff] %v231
                %v233 = vld [vmem:[%s123 + $0x630] sm:$0xff]
                %234 = vst [vmem:[%s124 + $0x1b0] sm:$0xff] %v233
                %v235 = vld [vmem:[%s123 + $0x638] sm:$0xff]
                %236 = vst [vmem:[%s124 + $0x1b8] sm:$0xff] %v235
                %v237 = vld [vmem:[%s123 + $0x700] sm:$0xff]
                %238 = vst [vmem:[%s124 + $0x1c0] sm:$0xff] %v237
                %v239 = vld [vmem:[%s123 + $0x708] sm:$0xff]
                %240 = vst [vmem:[%s124 + $0x1c8] sm:$0xff] %v239
                %v241 = vld [vmem:[%s123 + $0x710] sm:$0xff]
                %242 = vst [vmem:[%s124 + $0x1d0] sm:$0xff] %v241
                %v243 = vld [vmem:[%s123 + $0x718] sm:$0xff]
                %244 = vst [vmem:[%s124 + $0x1d8] sm:$0xff] %v243
                %v245 = vld [vmem:[%s123 + $0x720] sm:$0xff]
                %246 = vst [vmem:[%s124 + $0x1e0] sm:$0xff] %v245
                %v247 = vld [vmem:[%s123 + $0x728] sm:$0xff]
                %248 = vst [vmem:[%s124 + $0x1e8] sm:$0xff] %v247
                %v249 = vld [vmem:[%s123 + $0x730] sm:$0xff]
                %250 = vst [vmem:[%s124 + $0x1f0] sm:$0xff] %v249
                %v251 = vld [vmem:[%s123 + $0x738] sm:$0xff]
                %252 = vst [vmem:[%s124 + $0x1f8] sm:$0xff] %v251
                %v253 = vld [vmem:[%s123 + $0x800] sm:$0xff]
                %254 = vst [vmem:[%s124 + $0x200] sm:$0xff] %v253
                %v255 = vld [vmem:[%s123 + $0x808] sm:$0xff]
                %256 = vst [vmem:[%s124 + $0x208] sm:$0xff] %v255
                %v257 = vld [vmem:[%s123 + $0x810] sm:$0xff]
                %258 = vst [vmem:[%s124 + $0x210] sm:$0xff] %v257
                %v259 = vld [vmem:[%s123 + $0x818] sm:$0xff]
                %260 = vst [vmem:[%s124 + $0x218] sm:$0xff] %v259
                %v261 = vld [vmem:[%s123 + $0x820] sm:$0xff]
                %262 = vst [vmem:[%s124 + $0x220] sm:$0xff] %v261
                %v263 = vld [vmem:[%s123 + $0x828] sm:$0xff]
                %264 = vst [vmem:[%s124 + $0x228] sm:$0xff] %v263
                %v265 = vld [vmem:[%s123 + $0x830] sm:$0xff]
                %266 = vst [vmem:[%s124 + $0x230] sm:$0xff] %v265
                %v267 = vld [vmem:[%s123 + $0x838] sm:$0xff]
                %268 = vst [vmem:[%s124 + $0x238] sm:$0xff] %v267
                %v269 = vld [vmem:[%s123 + $0x900] sm:$0xff]
                %270 = vst [vmem:[%s124 + $0x240] sm:$0xff] %v269
                %v271 = vld [vmem:[%s123 + $0x908] sm:$0xff]
                %272 = vst [vmem:[%s124 + $0x248] sm:$0xff] %v271
                %v273 = vld [vmem:[%s123 + $0x910] sm:$0xff]
                %274 = vst [vmem:[%s124 + $0x250] sm:$0xff] %v273
                %v275 = vld [vmem:[%s123 + $0x918] sm:$0xff]
                %276 = vst [vmem:[%s124 + $0x258] sm:$0xff] %v275
                %v277 = vld [vmem:[%s123 + $0x920] sm:$0xff]
                %278 = vst [vmem:[%s124 + $0x260] sm:$0xff] %v277
                %v279 = vld [vmem:[%s123 + $0x928] sm:$0xff]
                %280 = vst [vmem:[%s124 + $0x268] sm:$0xff] %v279
                %v281 = vld [vmem:[%s123 + $0x930] sm:$0xff]
                %282 = vst [vmem:[%s124 + $0x270] sm:$0xff] %v281
                %v283 = vld [vmem:[%s123 + $0x938] sm:$0xff]
                %284 = vst [vmem:[%s124 + $0x278] sm:$0xff] %v283
                %v285 = vld [vmem:[%s123 + $0xa00] sm:$0xff]
                %286 = vst [vmem:[%s124 + $0x280] sm:$0xff] %v285
                %v287 = vld [vmem:[%s123 + $0xa08] sm:$0xff]
                %288 = vst [vmem:[%s124 + $0x288] sm:$0xff] %v287
                %v289 = vld [vmem:[%s123 + $0xa10] sm:$0xff]
                %290 = vst [vmem:[%s124 + $0x290] sm:$0xff] %v289
                %v291 = vld [vmem:[%s123 + $0xa18] sm:$0xff]
                %292 = vst [vmem:[%s124 + $0x298] sm:$0xff] %v291
                %v293 = vld [vmem:[%s123 + $0xa20] sm:$0xff]
                %294 = vst [vmem:[%s124 + $0x2a0] sm:$0xff] %v293
                %v295 = vld [vmem:[%s123 + $0xa28] sm:$0xff]
                %296 = vst [vmem:[%s124 + $0x2a8] sm:$0xff] %v295
                %v297 = vld [vmem:[%s123 + $0xa30] sm:$0xff]
                %298 = vst [vmem:[%s124 + $0x2b0] sm:$0xff] %v297
                %v299 = vld [vmem:[%s123 + $0xa38] sm:$0xff]
                %300 = vst [vmem:[%s124 + $0x2b8] sm:$0xff] %v299
                %v301 = vld [vmem:[%s123 + $0xb00] sm:$0xff]
                %302 = vst [vmem:[%s124 + $0x2c0] sm:$0xff] %v301
                %v303 = vld [vmem:[%s123 + $0xb08] sm:$0xff]
                %304 = vst [vmem:[%s124 + $0x2c8] sm:$0xff] %v303
                %v305 = vld [vmem:[%s123 + $0xb10] sm:$0xff]
                %306 = vst [vmem:[%s124 + $0x2d0] sm:$0xff] %v305
                %v307 = vld [vmem:[%s123 + $0xb18] sm:$0xff]
                %308 = vst [vmem:[%s124 + $0x2d8] sm:$0xff] %v307
                %v309 = vld [vmem:[%s123 + $0xb20] sm:$0xff]
                %310 = vst [vmem:[%s124 + $0x2e0] sm:$0xff] %v309
                %v311 = vld [vmem:[%s123 + $0xb28] sm:$0xff]
                %312 = vst [vmem:[%s124 + $0x2e8] sm:$0xff] %v311
                %v313 = vld [vmem:[%s123 + $0xb30] sm:$0xff]
                %314 = vst [vmem:[%s124 + $0x2f0] sm:$0xff] %v313
                %v315 = vld [vmem:[%s123 + $0xb38] sm:$0xff]
                %316 = vst [vmem:[%s124 + $0x2f8] sm:$0xff] %v315
                %v317 = vld [vmem:[%s123 + $0xc00] sm:$0xff]
                %318 = vst [vmem:[%s124 + $0x300] sm:$0xff] %v317
                %v319 = vld [vmem:[%s123 + $0xc08] sm:$0xff]
                %320 = vst [vmem:[%s124 + $0x308] sm:$0xff] %v319
                %v321 = vld [vmem:[%s123 + $0xc10] sm:$0xff]
                %322 = vst [vmem:[%s124 + $0x310] sm:$0xff] %v321
                %v323 = vld [vmem:[%s123 + $0xc18] sm:$0xff]
                %324 = vst [vmem:[%s124 + $0x318] sm:$0xff] %v323
                %v325 = vld [vmem:[%s123 + $0xc20] sm:$0xff]
                %326 = vst [vmem:[%s124 + $0x320] sm:$0xff] %v325
                %v327 = vld [vmem:[%s123 + $0xc28] sm:$0xff]
                %328 = vst [vmem:[%s124 + $0x328] sm:$0xff] %v327
                %v329 = vld [vmem:[%s123 + $0xc30] sm:$0xff]
                %330 = vst [vmem:[%s124 + $0x330] sm:$0xff] %v329
                %v331 = vld [vmem:[%s123 + $0xc38] sm:$0xff]
                %332 = vst [vmem:[%s124 + $0x338] sm:$0xff] %v331
                %v333 = vld [vmem:[%s123 + $0xd00] sm:$0xff]
                %334 = vst [vmem:[%s124 + $0x340] sm:$0xff] %v333
                %v335 = vld [vmem:[%s123 + $0xd08] sm:$0xff]
                %336 = vst [vmem:[%s124 + $0x348] sm:$0xff] %v335
                %v337 = vld [vmem:[%s123 + $0xd10] sm:$0xff]
                %338 = vst [vmem:[%s124 + $0x350] sm:$0xff] %v337
                %v339 = vld [vmem:[%s123 + $0xd18] sm:$0xff]
                %340 = vst [vmem:[%s124 + $0x358] sm:$0xff] %v339
                %v341 = vld [vmem:[%s123 + $0xd20] sm:$0xff]
                %342 = vst [vmem:[%s124 + $0x360] sm:$0xff] %v341
                %v343 = vld [vmem:[%s123 + $0xd28] sm:$0xff]
                %344 = vst [vmem:[%s124 + $0x368] sm:$0xff] %v343
                %v345 = vld [vmem:[%s123 + $0xd30] sm:$0xff]
                %346 = vst [vmem:[%s124 + $0x370] sm:$0xff] %v345
                %v347 = vld [vmem:[%s123 + $0xd38] sm:$0xff]
                %348 = vst [vmem:[%s124 + $0x378] sm:$0xff] %v347
                %v349 = vld [vmem:[%s123 + $0xe00] sm:$0xff]
                %350 = vst [vmem:[%s124 + $0x380] sm:$0xff] %v349
                %v351 = vld [vmem:[%s123 + $0xe08] sm:$0xff]
                %352 = vst [vmem:[%s124 + $0x388] sm:$0xff] %v351
                %v353 = vld [vmem:[%s123 + $0xe10] sm:$0xff]
                %354 = vst [vmem:[%s124 + $0x390] sm:$0xff] %v353
                %v355 = vld [vmem:[%s123 + $0xe18] sm:$0xff]
                %356 = vst [vmem:[%s124 + $0x398] sm:$0xff] %v355
                %v357 = vld [vmem:[%s123 + $0xe20] sm:$0xff]
                %358 = vst [vmem:[%s124 + $0x3a0] sm:$0xff] %v357
                %v359 = vld [vmem:[%s123 + $0xe28] sm:$0xff]
                %360 = vst [vmem:[%s124 + $0x3a8] sm:$0xff] %v359
                %v361 = vld [vmem:[%s123 + $0xe30] sm:$0xff]
                %362 = vst [vmem:[%s124 + $0x3b0] sm:$0xff] %v361
                %v363 = vld [vmem:[%s123 + $0xe38] sm:$0xff]
                %364 = vst [vmem:[%s124 + $0x3b8] sm:$0xff] %v363
                %v365 = vld [vmem:[%s123 + $0xf00] sm:$0xff]
                %366 = vst [vmem:[%s124 + $0x3c0] sm:$0xff] %v365
                %v367 = vld [vmem:[%s123 + $0xf08] sm:$0xff]
                %368 = vst [vmem:[%s124 + $0x3c8] sm:$0xff] %v367
                %v369 = vld [vmem:[%s123 + $0xf10] sm:$0xff]
                %370 = vst [vmem:[%s124 + $0x3d0] sm:$0xff] %v369
                %v371 = vld [vmem:[%s123 + $0xf18] sm:$0xff]
                %372 = vst [vmem:[%s124 + $0x3d8] sm:$0xff] %v371
                %v373 = vld [vmem:[%s123 + $0xf20] sm:$0xff]
                %374 = vst [vmem:[%s124 + $0x3e0] sm:$0xff] %v373
                %v375 = vld [vmem:[%s123 + $0xf28] sm:$0xff]
                %376 = vst [vmem:[%s124 + $0x3e8] sm:$0xff] %v375
                %v377 = vld [vmem:[%s123 + $0xf30] sm:$0xff]
                %378 = vst [vmem:[%s124 + $0x3f0] sm:$0xff] %v377
                %v379 = vld [vmem:[%s123 + $0xf38] sm:$0xff]
                %380 = vst [vmem:[%s124 + $0x3f8] sm:$0xff] %v379
                %v381 = vld [vmem:[%s123 + $0x1000] sm:$0xff]
                %382 = vst [vmem:[%s124 + $0x400] sm:$0xff] %v381
                %v383 = vld [vmem:[%s123 + $0x1008] sm:$0xff]
                %384 = vst [vmem:[%s124 + $0x408] sm:$0xff] %v383
                %v385 = vld [vmem:[%s123 + $0x1010] sm:$0xff]
                %386 = vst [vmem:[%s124 + $0x410] sm:$0xff] %v385
                %v387 = vld [vmem:[%s123 + $0x1018] sm:$0xff]
                %388 = vst [vmem:[%s124 + $0x418] sm:$0xff] %v387
                %v389 = vld [vmem:[%s123 + $0x1020] sm:$0xff]
                %390 = vst [vmem:[%s124 + $0x420] sm:$0xff] %v389
                %v391 = vld [vmem:[%s123 + $0x1028] sm:$0xff]
                %392 = vst [vmem:[%s124 + $0x428] sm:$0xff] %v391
                %v393 = vld [vmem:[%s123 + $0x1030] sm:$0xff]
                %394 = vst [vmem:[%s124 + $0x430] sm:$0xff] %v393
                %v395 = vld [vmem:[%s123 + $0x1038] sm:$0xff]
                %396 = vst [vmem:[%s124 + $0x438] sm:$0xff] %v395
                %v397 = vld [vmem:[%s123 + $0x1100] sm:$0xff]
                %398 = vst [vmem:[%s124 + $0x440] sm:$0xff] %v397
                %v399 = vld [vmem:[%s123 + $0x1108] sm:$0xff]
                %400 = vst [vmem:[%s124 + $0x448] sm:$0xff] %v399
                %v401 = vld [vmem:[%s123 + $0x1110] sm:$0xff]
                %402 = vst [vmem:[%s124 + $0x450] sm:$0xff] %v401
                %v403 = vld [vmem:[%s123 + $0x1118] sm:$0xff]
                %404 = vst [vmem:[%s124 + $0x458] sm:$0xff] %v403
                %v405 = vld [vmem:[%s123 + $0x1120] sm:$0xff]
                %406 = vst [vmem:[%s124 + $0x460] sm:$0xff] %v405
                %v407 = vld [vmem:[%s123 + $0x1128] sm:$0xff]
                %408 = vst [vmem:[%s124 + $0x468] sm:$0xff] %v407
                %v409 = vld [vmem:[%s123 + $0x1130] sm:$0xff]
                %410 = vst [vmem:[%s124 + $0x470] sm:$0xff] %v409
                %v411 = vld [vmem:[%s123 + $0x1138] sm:$0xff]
                %412 = vst [vmem:[%s124 + $0x478] sm:$0xff] %v411
                %v413 = vld [vmem:[%s123 + $0x1200] sm:$0xff]
                %414 = vst [vmem:[%s124 + $0x480] sm:$0xff] %v413
                %v415 = vld [vmem:[%s123 + $0x1208] sm:$0xff]
                %416 = vst [vmem:[%s124 + $0x488] sm:$0xff] %v415
                %v417 = vld [vmem:[%s123 + $0x1210] sm:$0xff]
                %418 = vst [vmem:[%s124 + $0x490] sm:$0xff] %v417
                %v419 = vld [vmem:[%s123 + $0x1218] sm:$0xff]
                %420 = vst [vmem:[%s124 + $0x498] sm:$0xff] %v419
                %v421 = vld [vmem:[%s123 + $0x1220] sm:$0xff]
                %422 = vst [vmem:[%s124 + $0x4a0] sm:$0xff] %v421
                %v423 = vld [vmem:[%s123 + $0x1228] sm:$0xff]
                %424 = vst [vmem:[%s124 + $0x4a8] sm:$0xff] %v423
                %v425 = vld [vmem:[%s123 + $0x1230] sm:$0xff]
                %426 = vst [vmem:[%s124 + $0x4b0] sm:$0xff] %v425
                %v427 = vld [vmem:[%s123 + $0x1238] sm:$0xff]
                %428 = vst [vmem:[%s124 + $0x4b8] sm:$0xff] %v427
                %v429 = vld [vmem:[%s123 + $0x1300] sm:$0xff]
                %430 = vst [vmem:[%s124 + $0x4c0] sm:$0xff] %v429
                %v431 = vld [vmem:[%s123 + $0x1308] sm:$0xff]
                %432 = vst [vmem:[%s124 + $0x4c8] sm:$0xff] %v431
                %v433 = vld [vmem:[%s123 + $0x1310] sm:$0xff]
                %434 = vst [vmem:[%s124 + $0x4d0] sm:$0xff] %v433
                %v435 = vld [vmem:[%s123 + $0x1318] sm:$0xff]
                %436 = vst [vmem:[%s124 + $0x4d8] sm:$0xff] %v435
                %v437 = vld [vmem:[%s123 + $0x1320] sm:$0xff]
                %438 = vst [vmem:[%s124 + $0x4e0] sm:$0xff] %v437
                %v439 = vld [vmem:[%s123 + $0x1328] sm:$0xff]
                %440 = vst [vmem:[%s124 + $0x4e8] sm:$0xff] %v439
                %v441 = vld [vmem:[%s123 + $0x1330] sm:$0xff]
                %442 = vst [vmem:[%s124 + $0x4f0] sm:$0xff] %v441
                %v443 = vld [vmem:[%s123 + $0x1338] sm:$0xff]
                %444 = vst [vmem:[%s124 + $0x4f8] sm:$0xff] %v443
                %v445 = vld [vmem:[%s123 + $0x1400] sm:$0xff]
                %446 = vst [vmem:[%s124 + $0x500] sm:$0xff] %v445
                %v447 = vld [vmem:[%s123 + $0x1408] sm:$0xff]
                %448 = vst [vmem:[%s124 + $0x508] sm:$0xff] %v447
                %v449 = vld [vmem:[%s123 + $0x1410] sm:$0xff]
                %450 = vst [vmem:[%s124 + $0x510] sm:$0xff] %v449
                %v451 = vld [vmem:[%s123 + $0x1418] sm:$0xff]
                %452 = vst [vmem:[%s124 + $0x518] sm:$0xff] %v451
                %v453 = vld [vmem:[%s123 + $0x1420] sm:$0xff]
                %454 = vst [vmem:[%s124 + $0x520] sm:$0xff] %v453
                %v455 = vld [vmem:[%s123 + $0x1428] sm:$0xff]
                %456 = vst [vmem:[%s124 + $0x528] sm:$0xff] %v455
                %v457 = vld [vmem:[%s123 + $0x1430] sm:$0xff]
                %458 = vst [vmem:[%s124 + $0x530] sm:$0xff] %v457
                %v459 = vld [vmem:[%s123 + $0x1438] sm:$0xff]
                %460 = vst [vmem:[%s124 + $0x538] sm:$0xff] %v459
                %v461 = vld [vmem:[%s123 + $0x1500] sm:$0xff]
                %462 = vst [vmem:[%s124 + $0x540] sm:$0xff] %v461
                %v463 = vld [vmem:[%s123 + $0x1508] sm:$0xff]
                %464 = vst [vmem:[%s124 + $0x548] sm:$0xff] %v463
                %v465 = vld [vmem:[%s123 + $0x1510] sm:$0xff]
                %466 = vst [vmem:[%s124 + $0x550] sm:$0xff] %v465
                %v467 = vld [vmem:[%s123 + $0x1518] sm:$0xff]
                %468 = vst [vmem:[%s124 + $0x558] sm:$0xff] %v467
                %v469 = vld [vmem:[%s123 + $0x1520] sm:$0xff]
                %470 = vst [vmem:[%s124 + $0x560] sm:$0xff] %v469
                %v471 = vld [vmem:[%s123 + $0x1528] sm:$0xff]
                %472 = vst [vmem:[%s124 + $0x568] sm:$0xff] %v471
                %v473 = vld [vmem:[%s123 + $0x1530] sm:$0xff]
                %474 = vst [vmem:[%s124 + $0x570] sm:$0xff] %v473
                %v475 = vld [vmem:[%s123 + $0x1538] sm:$0xff]
                %476 = vst [vmem:[%s124 + $0x578] sm:$0xff] %v475
                %v477 = vld [vmem:[%s123 + $0x1600] sm:$0xff]
                %478 = vst [vmem:[%s124 + $0x580] sm:$0xff] %v477
                %v479 = vld [vmem:[%s123 + $0x1608] sm:$0xff]
                %480 = vst [vmem:[%s124 + $0x588] sm:$0xff] %v479
                %v481 = vld [vmem:[%s123 + $0x1610] sm:$0xff]
                %482 = vst [vmem:[%s124 + $0x590] sm:$0xff] %v481
                %v483 = vld [vmem:[%s123 + $0x1618] sm:$0xff]
                %484 = vst [vmem:[%s124 + $0x598] sm:$0xff] %v483
                %v485 = vld [vmem:[%s123 + $0x1620] sm:$0xff]
                %486 = vst [vmem:[%s124 + $0x5a0] sm:$0xff] %v485
                %v487 = vld [vmem:[%s123 + $0x1628] sm:$0xff]
                %488 = vst [vmem:[%s124 + $0x5a8] sm:$0xff] %v487
                %v489 = vld [vmem:[%s123 + $0x1630] sm:$0xff]
                %490 = vst [vmem:[%s124 + $0x5b0] sm:$0xff] %v489
                %v491 = vld [vmem:[%s123 + $0x1638] sm:$0xff]
                %492 = vst [vmem:[%s124 + $0x5b8] sm:$0xff] %v491
                %v493 = vld [vmem:[%s123 + $0x1700] sm:$0xff]
                %494 = vst [vmem:[%s124 + $0x5c0] sm:$0xff] %v493
                %v495 = vld [vmem:[%s123 + $0x1708] sm:$0xff]
                %496 = vst [vmem:[%s124 + $0x5c8] sm:$0xff] %v495
                %v497 = vld [vmem:[%s123 + $0x1710] sm:$0xff]
                %498 = vst [vmem:[%s124 + $0x5d0] sm:$0xff] %v497
                %v499 = vld [vmem:[%s123 + $0x1718] sm:$0xff]
                %500 = vst [vmem:[%s124 + $0x5d8] sm:$0xff] %v499
                %v501 = vld [vmem:[%s123 + $0x1720] sm:$0xff]
                %502 = vst [vmem:[%s124 + $0x5e0] sm:$0xff] %v501
                %v503 = vld [vmem:[%s123 + $0x1728] sm:$0xff]
                %504 = vst [vmem:[%s124 + $0x5e8] sm:$0xff] %v503
                %v505 = vld [vmem:[%s123 + $0x1730] sm:$0xff]
                %506 = vst [vmem:[%s124 + $0x5f0] sm:$0xff] %v505
                %v507 = vld [vmem:[%s123 + $0x1738] sm:$0xff]
                %508 = vst [vmem:[%s124 + $0x5f8] sm:$0xff] %v507
              $region37: #{wgan3d_d_forward.3} parent=31 // loop_footer
                %s122 = sadd.s32 1, %s118
              $region38: #{wgan3d_d_forward.3} parent=31 // loop_footer_branch
                %117 = sbr.rel target = $region34
              $region39: #{wgan3d_d_forward.3} parent=31 // loop_exit
                _
            $region32: #{wgan3d_d_forward.3} parent=27 // pred_fallthru
              _
            // Predicated region
            $region40: #{wgan3d_d_forward.3} parent=27 // pred_check
              _
            $region41: #{wgan3d_d_forward.3} parent=27 // pred_check_branch
              %510 = sbr.rel target = $region43
            $region42: #{wgan3d_d_forward.3} parent=27 // pred_region
              _
            $region43: #{wgan3d_d_forward.3} parent=27 // pred_fallthru
              _
          $region28: #{wgan3d_d_forward.3} parent=23 // pred_fallthru
            _
          %511 = vnop
        $region24: #{wgan3d_d_forward.3} parent=19 // pred_fallthru
          _
      $region20: #{wgan3d_d_forward.3} parent=5 // pred_fallthru
        _
      %p512 = scmp.le.s32.totalorder 1, %s8
      %p513 = scmp.lt.s32.totalorder %s8, 5
      %p514 = pnand %p512, %p513
      %p515 = pneg %p514
      // Predicated region
      $region44: #{wgan3d_d_forward.3} parent=5 // pred_check
        _
      $region45: #{wgan3d_d_forward.3} parent=5 // pred_check_branch
        %517 = sbr.rel (%p514) target = $region47
      $region46: #{wgan3d_d_forward.3} parent=5 // pred_region
        %s518 = ssub.s32 %s8, 1
        %s519 = sand.u32 %s42, 1
        %s520 = sand.u32 %s42, 1
        %s521 = smul.addr %s520, 1536
        %s522 = scalar_lea.vmem [#allocation2], %s521
        // Predicated region
        $region48: #{wgan3d_d_forward.3} parent=46 // pred_check
          %p523 = pneg %p55
        $region49: #{wgan3d_d_forward.3} parent=46 // pred_check_branch
          %525 = sbr.rel (%p523) target = $region51
        $region50: #{wgan3d_d_forward.3} parent=46 // pred_region
          _
        $region51: #{wgan3d_d_forward.3} parent=46 // pred_fallthru
          _
        %p526 = pneg %p29
        %p527 = pneg %p26
        %s528 = sand.u32 %s42, 1
        %s529 = sand.u32 %s42, 1
        %s530 = smul.addr %s529, 1536
        %s531 = scalar_lea.vmem [#allocation2], %s530
        %p532 = pneg %p55
        %p533 = pneg %p52
        %p534 = pneg %p81
        %p535 = pneg %p78
        %s536 = smul.u32 16, %s13
        %p537 = scmp.lt.s32.totalorder %s536, 63
        %s538 = scalar_select %p537, %s536, 63
        %s539 = smul.addr %s538, 4
        %s540 = scalar_lea.vmem %s2, %s539
        %s541 = smul.u32 16, %s13
        %s542 = smul.u32 16, %s13
        %p543 = scmp.lt.s32.totalorder %s542, 63
        %s544 = scalar_select %p543, %s542, 63
        %s545 = smul.addr %s544, 4
        %s546 = scalar_lea.vmem %s2, %s545
        %s547 = smul.u32 16, %s13
        %v549 = vld [vmem:[%s0] sm:$0xff]
        %v550 = vld [vmem:[%s522] sm:$0xff]
        %v551 = vld [vmem:[%s522 + $0x8] sm:$0xff]
        %v552 = vld [vmem:[%s522 + $0x10] sm:$0xff]
        %v553 = vld [vmem:[%s522 + $0x18] sm:$0xff]
        %v554 = vld [vmem:[%s522 + $0x20] sm:$0xff]
        %v555 = vld [vmem:[%s522 + $0x28] sm:$0xff]
        %v556 = vld [vmem:[%s522 + $0x30] sm:$0xff]
        %v557 = vld [vmem:[%s522 + $0x38] sm:$0xff]
        %v558 = vld [vmem:[%s522 + $0x40] sm:$0xff]
        %v559 = vld [vmem:[%s522 + $0x48] sm:$0xff]
        %v560 = vld [vmem:[%s522 + $0x50] sm:$0xff]
        %v561 = vld [vmem:[%s522 + $0x58] sm:$0xff]
        %v562 = vld [vmem:[%s522 + $0x60] sm:$0xff]
        %v563 = vld [vmem:[%s522 + $0x68] sm:$0xff]
        %v564 = vld [vmem:[%s522 + $0x70] sm:$0xff]
        %v565 = vld [vmem:[%s522 + $0x78] sm:$0xff]
        %v566 = vld [vmem:[%s522 + $0x80] sm:$0xff]
        %v567 = vld [vmem:[%s522 + $0x88] sm:$0xff]
        %v568 = vld [vmem:[%s522 + $0x90] sm:$0xff]
        %v569 = vld [vmem:[%s522 + $0x98] sm:$0xff]
        %v570 = vld [vmem:[%s522 + $0xa0] sm:$0xff]
        %v571 = vld [vmem:[%s522 + $0xa8] sm:$0xff]
        %v572 = vld [vmem:[%s522 + $0xb0] sm:$0xff]
        %v573 = vld [vmem:[%s522 + $0xb8] sm:$0xff]
        %v574 = vld [vmem:[%s522 + $0xc0] sm:$0xff]
        %v575 = vld [vmem:[%s522 + $0xc8] sm:$0xff]
        %v576 = vld [vmem:[%s522 + $0xd0] sm:$0xff]
        %v577 = vld [vmem:[%s522 + $0xd8] sm:$0xff]
        %v578 = vld [vmem:[%s522 + $0xe0] sm:$0xff]
        %v579 = vld [vmem:[%s522 + $0xe8] sm:$0xff]
        %v580 = vld [vmem:[%s522 + $0xf0] sm:$0xff]
        %v581 = vld [vmem:[%s522 + $0xf8] sm:$0xff]
        %v582 = vld [vmem:[%s522 + $0x100] sm:$0xff]
        %v583 = vld [vmem:[%s522 + $0x108] sm:$0xff]
        %v584 = vld [vmem:[%s522 + $0x110] sm:$0xff]
        %v585 = vld [vmem:[%s522 + $0x118] sm:$0xff]
        %v586 = vld [vmem:[%s522 + $0x120] sm:$0xff]
        %v587 = vld [vmem:[%s522 + $0x128] sm:$0xff]
        %v588 = vld [vmem:[%s522 + $0x130] sm:$0xff]
        %v589 = vld [vmem:[%s522 + $0x138] sm:$0xff]
        %v590 = vld [vmem:[%s522 + $0x140] sm:$0xff]
        %v591 = vld [vmem:[%s522 + $0x148] sm:$0xff]
        %v592 = vld [vmem:[%s522 + $0x150] sm:$0xff]
        %v593 = vld [vmem:[%s522 + $0x158] sm:$0xff]
        %v594 = vld [vmem:[%s522 + $0x160] sm:$0xff]
        %v595 = vld [vmem:[%s522 + $0x168] sm:$0xff]
        %v596 = vld [vmem:[%s522 + $0x170] sm:$0xff]
        %v597 = vld [vmem:[%s522 + $0x178] sm:$0xff]
        %v598 = vld [vmem:[%s522 + $0x180] sm:$0xff]
        %v599 = vld [vmem:[%s522 + $0x188] sm:$0xff]
        %v600 = vld [vmem:[%s522 + $0x190] sm:$0xff]
        %v601 = vld [vmem:[%s522 + $0x198] sm:$0xff]
        %v602 = vld [vmem:[%s522 + $0x1a0] sm:$0xff]
        %v603 = vld [vmem:[%s522 + $0x1a8] sm:$0xff]
        %v604 = vld [vmem:[%s522 + $0x1b0] sm:$0xff]
        %v605 = vld [vmem:[%s522 + $0x1b8] sm:$0xff]
        %v606 = vld [vmem:[%s522 + $0x1c0] sm:$0xff]
        %v607 = vld [vmem:[%s522 + $0x1c8] sm:$0xff]
        %v608 = vld [vmem:[%s522 + $0x1d0] sm:$0xff]
        %v609 = vld [vmem:[%s522 + $0x1d8] sm:$0xff]
        %v610 = vld [vmem:[%s522 + $0x1e0] sm:$0xff]
        %v611 = vld [vmem:[%s522 + $0x1e8] sm:$0xff]
        %v612 = vld [vmem:[%s522 + $0x1f0] sm:$0xff]
        %v613 = vld [vmem:[%s522 + $0x1f8] sm:$0xff]
        %v614 = vld [vmem:[%s522 + $0x200] sm:$0xff]
        %v615 = vld [vmem:[%s522 + $0x208] sm:$0xff]
        %v616 = vld [vmem:[%s522 + $0x210] sm:$0xff]
        %v617 = vld [vmem:[%s522 + $0x218] sm:$0xff]
        %v618 = vld [vmem:[%s522 + $0x220] sm:$0xff]
        %v619 = vld [vmem:[%s522 + $0x228] sm:$0xff]
        %v620 = vld [vmem:[%s522 + $0x230] sm:$0xff]
        %v621 = vld [vmem:[%s522 + $0x238] sm:$0xff]
        %v622 = vld [vmem:[%s522 + $0x240] sm:$0xff]
        %v623 = vld [vmem:[%s522 + $0x248] sm:$0xff]
        %v624 = vld [vmem:[%s522 + $0x250] sm:$0xff]
        %v625 = vld [vmem:[%s522 + $0x258] sm:$0xff]
        %v626 = vld [vmem:[%s522 + $0x260] sm:$0xff]
        %v627 = vld [vmem:[%s522 + $0x268] sm:$0xff]
        %v628 = vld [vmem:[%s522 + $0x270] sm:$0xff]
        %v629 = vld [vmem:[%s522 + $0x278] sm:$0xff]
        %v630 = vld [vmem:[%s522 + $0x280] sm:$0xff]
        %v631 = vld [vmem:[%s522 + $0x288] sm:$0xff]
        %v632 = vld [vmem:[%s522 + $0x290] sm:$0xff]
        %v633 = vld [vmem:[%s522 + $0x298] sm:$0xff]
        %v634 = vld [vmem:[%s522 + $0x2a0] sm:$0xff]
        %v635 = vld [vmem:[%s522 + $0x2a8] sm:$0xff]
        %v636 = vld [vmem:[%s522 + $0x2b0] sm:$0xff]
        %v637 = vld [vmem:[%s522 + $0x2b8] sm:$0xff]
        %v638 = vld [vmem:[%s522 + $0x2c0] sm:$0xff]
        %v639 = vld [vmem:[%s522 + $0x2c8] sm:$0xff]
        %v640 = vld [vmem:[%s522 + $0x2d0] sm:$0xff]
        %v641 = vld [vmem:[%s522 + $0x2d8] sm:$0xff]
        %v642 = vld [vmem:[%s522 + $0x2e0] sm:$0xff]
        %v643 = vld [vmem:[%s522 + $0x2e8] sm:$0xff]
        %v644 = vld [vmem:[%s522 + $0x2f0] sm:$0xff]
        %v645 = vld [vmem:[%s522 + $0x2f8] sm:$0xff]
        %v646 = vld [vmem:[%s522 + $0x300] sm:$0xff]
        %v647 = vld [vmem:[%s522 + $0x308] sm:$0xff]
        %v648 = vld [vmem:[%s522 + $0x310] sm:$0xff]
        %v649 = vld [vmem:[%s522 + $0x318] sm:$0xff]
        %v650 = vld [vmem:[%s522 + $0x320] sm:$0xff]
        %v651 = vld [vmem:[%s522 + $0x328] sm:$0xff]
        %v652 = vld [vmem:[%s522 + $0x330] sm:$0xff]
        %v653 = vld [vmem:[%s522 + $0x338] sm:$0xff]
        %v654 = vld [vmem:[%s522 + $0x340] sm:$0xff]
        %v655 = vld [vmem:[%s522 + $0x348] sm:$0xff]
        %v656 = vld [vmem:[%s522 + $0x350] sm:$0xff]
        %v657 = vld [vmem:[%s522 + $0x358] sm:$0xff]
        %v658 = vld [vmem:[%s522 + $0x360] sm:$0xff]
        %v659 = vld [vmem:[%s522 + $0x368] sm:$0xff]
        %v660 = vld [vmem:[%s522 + $0x370] sm:$0xff]
        %v661 = vld [vmem:[%s522 + $0x378] sm:$0xff]
        %v662 = vld [vmem:[%s522 + $0x380] sm:$0xff]
        %v663 = vld [vmem:[%s522 + $0x388] sm:$0xff]
        %v664 = vld [vmem:[%s522 + $0x390] sm:$0xff]
        %v665 = vld [vmem:[%s522 + $0x398] sm:$0xff]
        %v666 = vld [vmem:[%s522 + $0x3a0] sm:$0xff]
        %v667 = vld [vmem:[%s522 + $0x3a8] sm:$0xff]
        %v668 = vld [vmem:[%s522 + $0x3b0] sm:$0xff]
        %v669 = vld [vmem:[%s522 + $0x3b8] sm:$0xff]
        %v670 = vld [vmem:[%s522 + $0x3c0] sm:$0xff]
        %v671 = vld [vmem:[%s522 + $0x3c8] sm:$0xff]
        %v672 = vld [vmem:[%s522 + $0x3d0] sm:$0xff]
        %v673 = vld [vmem:[%s522 + $0x3d8] sm:$0xff]
        %v674 = vld [vmem:[%s522 + $0x3e0] sm:$0xff]
        %v675 = vld [vmem:[%s522 + $0x3e8] sm:$0xff]
        %v676 = vld [vmem:[%s522 + $0x3f0] sm:$0xff]
        %v677 = vld [vmem:[%s522 + $0x3f8] sm:$0xff]
        %v678 = vld [vmem:[%s522 + $0x400] sm:$0xff]
        %v679 = vld [vmem:[%s522 + $0x408] sm:$0xff]
        %v680 = vld [vmem:[%s522 + $0x410] sm:$0xff]
        %v681 = vld [vmem:[%s522 + $0x418] sm:$0xff]
        %v682 = vld [vmem:[%s522 + $0x420] sm:$0xff]
        %v683 = vld [vmem:[%s522 + $0x428] sm:$0xff]
        %v684 = vld [vmem:[%s522 + $0x430] sm:$0xff]
        %v685 = vld [vmem:[%s522 + $0x438] sm:$0xff]
        %v686 = vld [vmem:[%s522 + $0x440] sm:$0xff]
        %v687 = vld [vmem:[%s522 + $0x448] sm:$0xff]
        %v688 = vld [vmem:[%s522 + $0x450] sm:$0xff]
        %v689 = vld [vmem:[%s522 + $0x458] sm:$0xff]
        %v690 = vld [vmem:[%s522 + $0x460] sm:$0xff]
        %v691 = vld [vmem:[%s522 + $0x468] sm:$0xff]
        %v692 = vld [vmem:[%s522 + $0x470] sm:$0xff]
        %v693 = vld [vmem:[%s522 + $0x478] sm:$0xff]
        %v694 = vld [vmem:[%s522 + $0x480] sm:$0xff]
        %v695 = vld [vmem:[%s522 + $0x488] sm:$0xff]
        %v696 = vld [vmem:[%s522 + $0x490] sm:$0xff]
        %v697 = vld [vmem:[%s522 + $0x498] sm:$0xff]
        %v698 = vld [vmem:[%s522 + $0x4a0] sm:$0xff]
        %v699 = vld [vmem:[%s522 + $0x4a8] sm:$0xff]
        %v700 = vld [vmem:[%s522 + $0x4b0] sm:$0xff]
        %v701 = vld [vmem:[%s522 + $0x4b8] sm:$0xff]
        %v702 = vld [vmem:[%s522 + $0x4c0] sm:$0xff]
        %v703 = vld [vmem:[%s522 + $0x4c8] sm:$0xff]
        %v704 = vld [vmem:[%s522 + $0x4d0] sm:$0xff]
        %v705 = vld [vmem:[%s522 + $0x4d8] sm:$0xff]
        %v706 = vld [vmem:[%s522 + $0x4e0] sm:$0xff]
        %v707 = vld [vmem:[%s522 + $0x4e8] sm:$0xff]
        %v708 = vld [vmem:[%s522 + $0x4f0] sm:$0xff]
        %v709 = vld [vmem:[%s522 + $0x4f8] sm:$0xff]
        %v710 = vld [vmem:[%s522 + $0x500] sm:$0xff]
        %v711 = vld [vmem:[%s522 + $0x508] sm:$0xff]
        %v712 = vld [vmem:[%s522 + $0x510] sm:$0xff]
        %v713 = vld [vmem:[%s522 + $0x518] sm:$0xff]
        %v714 = vld [vmem:[%s522 + $0x520] sm:$0xff]
        %v715 = vld [vmem:[%s522 + $0x528] sm:$0xff]
        %v716 = vld [vmem:[%s522 + $0x530] sm:$0xff]
        %v717 = vld [vmem:[%s522 + $0x538] sm:$0xff]
        %v718 = vld [vmem:[%s522 + $0x540] sm:$0xff]
        %v719 = vld [vmem:[%s522 + $0x548] sm:$0xff]
        %v720 = vld [vmem:[%s522 + $0x550] sm:$0xff]
        %v721 = vld [vmem:[%s522 + $0x558] sm:$0xff]
        %v722 = vld [vmem:[%s522 + $0x560] sm:$0xff]
        %v723 = vld [vmem:[%s522 + $0x568] sm:$0xff]
        %v724 = vld [vmem:[%s522 + $0x570] sm:$0xff]
        %v725 = vld [vmem:[%s522 + $0x578] sm:$0xff]
        %v726 = vld [vmem:[%s522 + $0x580] sm:$0xff]
        %v727 = vld [vmem:[%s522 + $0x588] sm:$0xff]
        %v728 = vld [vmem:[%s522 + $0x590] sm:$0xff]
        %v729 = vld [vmem:[%s522 + $0x598] sm:$0xff]
        %v730 = vld [vmem:[%s522 + $0x5a0] sm:$0xff]
        %v731 = vld [vmem:[%s522 + $0x5a8] sm:$0xff]
        %v732 = vld [vmem:[%s522 + $0x5b0] sm:$0xff]
        %v733 = vld [vmem:[%s522 + $0x5b8] sm:$0xff]
        %v734 = vld [vmem:[%s522 + $0x5c0] sm:$0xff]
        %v735 = vld [vmem:[%s522 + $0x5c8] sm:$0xff]
        %v736 = vld [vmem:[%s522 + $0x5d0] sm:$0xff]
        %v737 = vld [vmem:[%s522 + $0x5d8] sm:$0xff]
        %v738 = vld [vmem:[%s522 + $0x5e0] sm:$0xff]
        %v739 = vld [vmem:[%s522 + $0x5e8] sm:$0xff]
        %v740 = vld [vmem:[%s522 + $0x5f0] sm:$0xff]
        %v741 = vld [vmem:[%s522 + $0x5f8] sm:$0xff]
        %v743 = vunpack.c.l.b16 %v549
        %v744 = vunpack.c.h.b16 %v549
        %v745 = vpack.c.b16 %v743, %v743
        %v746 = vpack.c.b16 %v744, %v744
        %v940 = vunpack.c.l.b16 %v550
        %v941 = vunpack.c.h.b16 %v550
        %v942 = vunpack.c.l.b16 %v551
        %v943 = vunpack.c.h.b16 %v551
        %v944 = vunpack.c.l.b16 %v552
        %v945 = vunpack.c.h.b16 %v552
        %v946 = vunpack.c.l.b16 %v553
        %v947 = vunpack.c.h.b16 %v553
        %v948 = vunpack.c.l.b16 %v554
        %v949 = vunpack.c.h.b16 %v554
        %v950 = vunpack.c.l.b16 %v555
        %v951 = vunpack.c.h.b16 %v555
        %v952 = vunpack.c.l.b16 %v556
        %v953 = vunpack.c.h.b16 %v556
        %v954 = vunpack.c.l.b16 %v557
        %v955 = vunpack.c.h.b16 %v557
        %v956 = vunpack.c.l.b16 %v558
        %v957 = vunpack.c.h.b16 %v558
        %v958 = vunpack.c.l.b16 %v559
        %v959 = vunpack.c.h.b16 %v559
        %v960 = vunpack.c.l.b16 %v560
        %v961 = vunpack.c.h.b16 %v560
        %v962 = vunpack.c.l.b16 %v561
        %v963 = vunpack.c.h.b16 %v561
        %v964 = vunpack.c.l.b16 %v562
        %v965 = vunpack.c.h.b16 %v562
        %v966 = vunpack.c.l.b16 %v563
        %v967 = vunpack.c.h.b16 %v563
        %v968 = vunpack.c.l.b16 %v564
        %v969 = vunpack.c.h.b16 %v564
        %v970 = vunpack.c.l.b16 %v565
        %v971 = vunpack.c.h.b16 %v565
        %v972 = vunpack.c.l.b16 %v566
        %v973 = vunpack.c.h.b16 %v566
        %v974 = vunpack.c.l.b16 %v567
        %v975 = vunpack.c.h.b16 %v567
        %v976 = vunpack.c.l.b16 %v568
        %v977 = vunpack.c.h.b16 %v568
        %v978 = vunpack.c.l.b16 %v569
        %v979 = vunpack.c.h.b16 %v569
        %v980 = vunpack.c.l.b16 %v570
        %v981 = vunpack.c.h.b16 %v570
        %v982 = vunpack.c.l.b16 %v571
        %v983 = vunpack.c.h.b16 %v571
        %v984 = vunpack.c.l.b16 %v572
        %v985 = vunpack.c.h.b16 %v572
        %v986 = vunpack.c.l.b16 %v573
        %v987 = vunpack.c.h.b16 %v573
        %v988 = vunpack.c.l.b16 %v574
        %v989 = vunpack.c.h.b16 %v574
        %v990 = vunpack.c.l.b16 %v575
        %v991 = vunpack.c.h.b16 %v575
        %v992 = vunpack.c.l.b16 %v576
        %v993 = vunpack.c.h.b16 %v576
        %v994 = vunpack.c.l.b16 %v577
        %v995 = vunpack.c.h.b16 %v577
        %v996 = vunpack.c.l.b16 %v578
        %v997 = vunpack.c.h.b16 %v578
        %v998 = vunpack.c.l.b16 %v579
        %v999 = vunpack.c.h.b16 %v579
        %v1000 = vunpack.c.l.b16 %v580
        %v1001 = vunpack.c.h.b16 %v580
        %v1002 = vunpack.c.l.b16 %v581
        %v1003 = vunpack.c.h.b16 %v581
        %v1004 = vunpack.c.l.b16 %v582
        %v1005 = vunpack.c.h.b16 %v582
        %v1006 = vunpack.c.l.b16 %v583
        %v1007 = vunpack.c.h.b16 %v583
        %v1008 = vunpack.c.l.b16 %v584
        %v1009 = vunpack.c.h.b16 %v584
        %v1010 = vunpack.c.l.b16 %v585
        %v1011 = vunpack.c.h.b16 %v585
        %v1012 = vunpack.c.l.b16 %v586
        %v1013 = vunpack.c.h.b16 %v586
        %v1014 = vunpack.c.l.b16 %v587
        %v1015 = vunpack.c.h.b16 %v587
        %v1016 = vunpack.c.l.b16 %v588
        %v1017 = vunpack.c.h.b16 %v588
        %v1018 = vunpack.c.l.b16 %v589
        %v1019 = vunpack.c.h.b16 %v589
        %v1020 = vunpack.c.l.b16 %v590
        %v1021 = vunpack.c.h.b16 %v590
        %v1022 = vunpack.c.l.b16 %v591
        %v1023 = vunpack.c.h.b16 %v591
        %v1024 = vunpack.c.l.b16 %v592
        %v1025 = vunpack.c.h.b16 %v592
        %v1026 = vunpack.c.l.b16 %v593
        %v1027 = vunpack.c.h.b16 %v593
        %v1028 = vunpack.c.l.b16 %v594
        %v1029 = vunpack.c.h.b16 %v594
        %v1030 = vunpack.c.l.b16 %v595
        %v1031 = vunpack.c.h.b16 %v595
        %v1032 = vunpack.c.l.b16 %v596
        %v1033 = vunpack.c.h.b16 %v596
        %v1034 = vunpack.c.l.b16 %v597
        %v1035 = vunpack.c.h.b16 %v597
        %v1036 = vunpack.c.l.b16 %v598
        %v1037 = vunpack.c.h.b16 %v598
        %v1038 = vunpack.c.l.b16 %v599
        %v1039 = vunpack.c.h.b16 %v599
        %v1040 = vunpack.c.l.b16 %v600
        %v1041 = vunpack.c.h.b16 %v600
        %v1042 = vunpack.c.l.b16 %v601
        %v1043 = vunpack.c.h.b16 %v601
        %v1044 = vunpack.c.l.b16 %v602
        %v1045 = vunpack.c.h.b16 %v602
        %v1046 = vunpack.c.l.b16 %v603
        %v1047 = vunpack.c.h.b16 %v603
        %v1048 = vunpack.c.l.b16 %v604
        %v1049 = vunpack.c.h.b16 %v604
        %v1050 = vunpack.c.l.b16 %v605
        %v1051 = vunpack.c.h.b16 %v605
        %v1052 = vunpack.c.l.b16 %v606
        %v1053 = vunpack.c.h.b16 %v606
        %v1054 = vunpack.c.l.b16 %v607
        %v1055 = vunpack.c.h.b16 %v607
        %v1056 = vunpack.c.l.b16 %v608
        %v1057 = vunpack.c.h.b16 %v608
        %v1058 = vunpack.c.l.b16 %v609
        %v1059 = vunpack.c.h.b16 %v609
        %v1060 = vunpack.c.l.b16 %v610
        %v1061 = vunpack.c.h.b16 %v610
        %v1062 = vunpack.c.l.b16 %v611
        %v1063 = vunpack.c.h.b16 %v611
        %v1064 = vunpack.c.l.b16 %v612
        %v1065 = vunpack.c.h.b16 %v612
        %v1066 = vunpack.c.l.b16 %v613
        %v1067 = vunpack.c.h.b16 %v613
        %v1068 = vunpack.c.l.b16 %v614
        %v1069 = vunpack.c.h.b16 %v614
        %v1070 = vunpack.c.l.b16 %v615
        %v1071 = vunpack.c.h.b16 %v615
        %v1072 = vunpack.c.l.b16 %v616
        %v1073 = vunpack.c.h.b16 %v616
        %v1074 = vunpack.c.l.b16 %v617
        %v1075 = vunpack.c.h.b16 %v617
        %v1076 = vunpack.c.l.b16 %v618
        %v1077 = vunpack.c.h.b16 %v618
        %v1078 = vunpack.c.l.b16 %v619
        %v1079 = vunpack.c.h.b16 %v619
        %v1080 = vunpack.c.l.b16 %v620
        %v1081 = vunpack.c.h.b16 %v620
        %v1082 = vunpack.c.l.b16 %v621
        %v1083 = vunpack.c.h.b16 %v621
        %v1084 = vunpack.c.l.b16 %v622
        %v1085 = vunpack.c.h.b16 %v622
        %v1086 = vunpack.c.l.b16 %v623
        %v1087 = vunpack.c.h.b16 %v623
        %v1088 = vunpack.c.l.b16 %v624
        %v1089 = vunpack.c.h.b16 %v624
        %v1090 = vunpack.c.l.b16 %v625
        %v1091 = vunpack.c.h.b16 %v625
        %v1092 = vunpack.c.l.b16 %v626
        %v1093 = vunpack.c.h.b16 %v626
        %v1094 = vunpack.c.l.b16 %v627
        %v1095 = vunpack.c.h.b16 %v627
        %v1096 = vunpack.c.l.b16 %v628
        %v1097 = vunpack.c.h.b16 %v628
        %v1098 = vunpack.c.l.b16 %v629
        %v1099 = vunpack.c.h.b16 %v629
        %v1100 = vunpack.c.l.b16 %v630
        %v1101 = vunpack.c.h.b16 %v630
        %v1102 = vunpack.c.l.b16 %v631
        %v1103 = vunpack.c.h.b16 %v631
        %v1104 = vunpack.c.l.b16 %v632
        %v1105 = vunpack.c.h.b16 %v632
        %v1106 = vunpack.c.l.b16 %v633
        %v1107 = vunpack.c.h.b16 %v633
        %v1108 = vunpack.c.l.b16 %v634
        %v1109 = vunpack.c.h.b16 %v634
        %v1110 = vunpack.c.l.b16 %v635
        %v1111 = vunpack.c.h.b16 %v635
        %v1112 = vunpack.c.l.b16 %v636
        %v1113 = vunpack.c.h.b16 %v636
        %v1114 = vunpack.c.l.b16 %v637
        %v1115 = vunpack.c.h.b16 %v637
        %v1116 = vunpack.c.l.b16 %v638
        %v1117 = vunpack.c.h.b16 %v638
        %v1118 = vunpack.c.l.b16 %v639
        %v1119 = vunpack.c.h.b16 %v639
        %v1120 = vunpack.c.l.b16 %v640
        %v1121 = vunpack.c.h.b16 %v640
        %v1122 = vunpack.c.l.b16 %v641
        %v1123 = vunpack.c.h.b16 %v641
        %v1124 = vunpack.c.l.b16 %v642
        %v1125 = vunpack.c.h.b16 %v642
        %v1126 = vunpack.c.l.b16 %v643
        %v1127 = vunpack.c.h.b16 %v643
        %v1128 = vunpack.c.l.b16 %v644
        %v1129 = vunpack.c.h.b16 %v644
        %v1130 = vunpack.c.l.b16 %v645
        %v1131 = vunpack.c.h.b16 %v645
        %v1132 = vunpack.c.l.b16 %v646
        %v1133 = vunpack.c.h.b16 %v646
        %v1134 = vunpack.c.l.b16 %v647
        %v1135 = vunpack.c.h.b16 %v647
        %v1136 = vunpack.c.l.b16 %v648
        %v1137 = vunpack.c.h.b16 %v648
        %v1138 = vunpack.c.l.b16 %v649
        %v1139 = vunpack.c.h.b16 %v649
        %v1140 = vunpack.c.l.b16 %v650
        %v1141 = vunpack.c.h.b16 %v650
        %v1142 = vunpack.c.l.b16 %v651
        %v1143 = vunpack.c.h.b16 %v651
        %v1144 = vunpack.c.l.b16 %v652
        %v1145 = vunpack.c.h.b16 %v652
        %v1146 = vunpack.c.l.b16 %v653
        %v1147 = vunpack.c.h.b16 %v653
        %v1148 = vunpack.c.l.b16 %v654
        %v1149 = vunpack.c.h.b16 %v654
        %v1150 = vunpack.c.l.b16 %v655
        %v1151 = vunpack.c.h.b16 %v655
        %v1152 = vunpack.c.l.b16 %v656
        %v1153 = vunpack.c.h.b16 %v656
        %v1154 = vunpack.c.l.b16 %v657
        %v1155 = vunpack.c.h.b16 %v657
        %v1156 = vunpack.c.l.b16 %v658
        %v1157 = vunpack.c.h.b16 %v658
        %v1158 = vunpack.c.l.b16 %v659
        %v1159 = vunpack.c.h.b16 %v659
        %v1160 = vunpack.c.l.b16 %v660
        %v1161 = vunpack.c.h.b16 %v660
        %v1162 = vunpack.c.l.b16 %v661
        %v1163 = vunpack.c.h.b16 %v661
        %v1164 = vunpack.c.l.b16 %v662
        %v1165 = vunpack.c.h.b16 %v662
        %v1166 = vunpack.c.l.b16 %v663
        %v1167 = vunpack.c.h.b16 %v663
        %v1168 = vunpack.c.l.b16 %v664
        %v1169 = vunpack.c.h.b16 %v664
        %v1170 = vunpack.c.l.b16 %v665
        %v1171 = vunpack.c.h.b16 %v665
        %v1172 = vunpack.c.l.b16 %v666
        %v1173 = vunpack.c.h.b16 %v666
        %v1174 = vunpack.c.l.b16 %v667
        %v1175 = vunpack.c.h.b16 %v667
        %v1176 = vunpack.c.l.b16 %v668
        %v1177 = vunpack.c.h.b16 %v668
        %v1178 = vunpack.c.l.b16 %v669
        %v1179 = vunpack.c.h.b16 %v669
        %v1180 = vunpack.c.l.b16 %v670
        %v1181 = vunpack.c.h.b16 %v670
        %v1182 = vunpack.c.l.b16 %v671
        %v1183 = vunpack.c.h.b16 %v671
        %v1184 = vunpack.c.l.b16 %v672
        %v1185 = vunpack.c.h.b16 %v672
        %v1186 = vunpack.c.l.b16 %v673
        %v1187 = vunpack.c.h.b16 %v673
        %v1188 = vunpack.c.l.b16 %v674
        %v1189 = vunpack.c.h.b16 %v674
        %v1190 = vunpack.c.l.b16 %v675
        %v1191 = vunpack.c.h.b16 %v675
        %v1192 = vunpack.c.l.b16 %v676
        %v1193 = vunpack.c.h.b16 %v676
        %v1194 = vunpack.c.l.b16 %v677
        %v1195 = vunpack.c.h.b16 %v677
        %v1196 = vunpack.c.l.b16 %v678
        %v1197 = vunpack.c.h.b16 %v678
        %v1198 = vunpack.c.l.b16 %v679
        %v1199 = vunpack.c.h.b16 %v679
        %v1200 = vunpack.c.l.b16 %v680
        %v1201 = vunpack.c.h.b16 %v680
        %v1202 = vunpack.c.l.b16 %v681
        %v1203 = vunpack.c.h.b16 %v681
        %v1204 = vunpack.c.l.b16 %v682
        %v1205 = vunpack.c.h.b16 %v682
        %v1206 = vunpack.c.l.b16 %v683
        %v1207 = vunpack.c.h.b16 %v683
        %v1208 = vunpack.c.l.b16 %v684
        %v1209 = vunpack.c.h.b16 %v684
        %v1210 = vunpack.c.l.b16 %v685
        %v1211 = vunpack.c.h.b16 %v685
        %v1212 = vunpack.c.l.b16 %v686
        %v1213 = vunpack.c.h.b16 %v686
        %v1214 = vunpack.c.l.b16 %v687
        %v1215 = vunpack.c.h.b16 %v687
        %v1216 = vunpack.c.l.b16 %v688
        %v1217 = vunpack.c.h.b16 %v688
        %v1218 = vunpack.c.l.b16 %v689
        %v1219 = vunpack.c.h.b16 %v689
        %v1220 = vunpack.c.l.b16 %v690
        %v1221 = vunpack.c.h.b16 %v690
        %v1222 = vunpack.c.l.b16 %v691
        %v1223 = vunpack.c.h.b16 %v691
        %v1224 = vunpack.c.l.b16 %v692
        %v1225 = vunpack.c.h.b16 %v692
        %v1226 = vunpack.c.l.b16 %v693
        %v1227 = vunpack.c.h.b16 %v693
        %v1228 = vunpack.c.l.b16 %v694
        %v1229 = vunpack.c.h.b16 %v694
        %v1230 = vunpack.c.l.b16 %v695
        %v1231 = vunpack.c.h.b16 %v695
        %v1232 = vunpack.c.l.b16 %v696
        %v1233 = vunpack.c.h.b16 %v696
        %v1234 = vunpack.c.l.b16 %v697
        %v1235 = vunpack.c.h.b16 %v697
        %v1236 = vunpack.c.l.b16 %v698
        %v1237 = vunpack.c.h.b16 %v698
        %v1238 = vunpack.c.l.b16 %v699
        %v1239 = vunpack.c.h.b16 %v699
        %v1240 = vunpack.c.l.b16 %v700
        %v1241 = vunpack.c.h.b16 %v700
        %v1242 = vunpack.c.l.b16 %v701
        %v1243 = vunpack.c.h.b16 %v701
        %v1244 = vunpack.c.l.b16 %v702
        %v1245 = vunpack.c.h.b16 %v702
        %v1246 = vunpack.c.l.b16 %v703
        %v1247 = vunpack.c.h.b16 %v703
        %v1248 = vunpack.c.l.b16 %v704
        %v1249 = vunpack.c.h.b16 %v704
        %v1250 = vunpack.c.l.b16 %v705
        %v1251 = vunpack.c.h.b16 %v705
        %v1252 = vunpack.c.l.b16 %v706
        %v1253 = vunpack.c.h.b16 %v706
        %v1254 = vunpack.c.l.b16 %v707
        %v1255 = vunpack.c.h.b16 %v707
        %v1256 = vunpack.c.l.b16 %v708
        %v1257 = vunpack.c.h.b16 %v708
        %v1258 = vunpack.c.l.b16 %v709
        %v1259 = vunpack.c.h.b16 %v709
        %v1260 = vunpack.c.l.b16 %v710
        %v1261 = vunpack.c.h.b16 %v710
        %v1262 = vunpack.c.l.b16 %v711
        %v1263 = vunpack.c.h.b16 %v711
        %v1264 = vunpack.c.l.b16 %v712
        %v1265 = vunpack.c.h.b16 %v712
        %v1266 = vunpack.c.l.b16 %v713
        %v1267 = vunpack.c.h.b16 %v713
        %v1268 = vunpack.c.l.b16 %v714
        %v1269 = vunpack.c.h.b16 %v714
        %v1270 = vunpack.c.l.b16 %v715
        %v1271 = vunpack.c.h.b16 %v715
        %v1272 = vunpack.c.l.b16 %v716
        %v1273 = vunpack.c.h.b16 %v716
        %v1274 = vunpack.c.l.b16 %v717
        %v1275 = vunpack.c.h.b16 %v717
        %v1276 = vunpack.c.l.b16 %v718
        %v1277 = vunpack.c.h.b16 %v718
        %v1278 = vunpack.c.l.b16 %v719
        %v1279 = vunpack.c.h.b16 %v719
        %v1280 = vunpack.c.l.b16 %v720
        %v1281 = vunpack.c.h.b16 %v720
        %v1282 = vunpack.c.l.b16 %v721
        %v1283 = vunpack.c.h.b16 %v721
        %v1284 = vunpack.c.l.b16 %v722
        %v1285 = vunpack.c.h.b16 %v722
        %v1286 = vunpack.c.l.b16 %v723
        %v1287 = vunpack.c.h.b16 %v723
        %v1288 = vunpack.c.l.b16 %v724
        %v1289 = vunpack.c.h.b16 %v724
        %v1290 = vunpack.c.l.b16 %v725
        %v1291 = vunpack.c.h.b16 %v725
        %v1292 = vunpack.c.l.b16 %v726
        %v1293 = vunpack.c.h.b16 %v726
        %v1294 = vunpack.c.l.b16 %v727
        %v1295 = vunpack.c.h.b16 %v727
        %v1296 = vunpack.c.l.b16 %v728
        %v1297 = vunpack.c.h.b16 %v728
        %v1298 = vunpack.c.l.b16 %v729
        %v1299 = vunpack.c.h.b16 %v729
        %v1300 = vunpack.c.l.b16 %v730
        %v1301 = vunpack.c.h.b16 %v730
        %v1302 = vunpack.c.l.b16 %v731
        %v1303 = vunpack.c.h.b16 %v731
        %v1304 = vunpack.c.l.b16 %v732
        %v1305 = vunpack.c.h.b16 %v732
        %v1306 = vunpack.c.l.b16 %v733
        %v1307 = vunpack.c.h.b16 %v733
        %v1308 = vunpack.c.l.b16 %v734
        %v1309 = vunpack.c.h.b16 %v734
        %v1310 = vunpack.c.l.b16 %v735
        %v1311 = vunpack.c.h.b16 %v735
        %v1312 = vunpack.c.l.b16 %v736
        %v1313 = vunpack.c.h.b16 %v736
        %v1314 = vunpack.c.l.b16 %v737
        %v1315 = vunpack.c.h.b16 %v737
        %v1316 = vunpack.c.l.b16 %v738
        %v1317 = vunpack.c.h.b16 %v738
        %v1318 = vunpack.c.l.b16 %v739
        %v1319 = vunpack.c.h.b16 %v739
        %v1320 = vunpack.c.l.b16 %v740
        %v1321 = vunpack.c.h.b16 %v740
        %v1322 = vunpack.c.l.b16 %v741
        %v1323 = vunpack.c.h.b16 %v741
        %v1324 = vpack.c.b16 %v956, %v940
        %v1325 = vpack.c.b16 %v957, %v941
        %v1326 = vpack.c.b16 %v958, %v942
        %v1327 = vpack.c.b16 %v959, %v943
        %v1328 = vpack.c.b16 %v960, %v944
        %v1329 = vpack.c.b16 %v961, %v945
        %v1330 = vpack.c.b16 %v962, %v946
        %v1331 = vpack.c.b16 %v963, %v947
        %v1332 = vpack.c.b16 %v964, %v948
        %v1333 = vpack.c.b16 %v965, %v949
        %v1334 = vpack.c.b16 %v966, %v950
        %v1335 = vpack.c.b16 %v967, %v951
        %v1336 = vpack.c.b16 %v968, %v952
        %v1337 = vpack.c.b16 %v969, %v953
        %v1338 = vpack.c.b16 %v970, %v954
        %v1339 = vpack.c.b16 %v971, %v955
        %v1340 = vpack.c.b16 %v988, %v972
        %v1341 = vpack.c.b16 %v989, %v973
        %v1342 = vpack.c.b16 %v990, %v974
        %v1343 = vpack.c.b16 %v991, %v975
        %v1344 = vpack.c.b16 %v992, %v976
        %v1345 = vpack.c.b16 %v993, %v977
        %v1346 = vpack.c.b16 %v994, %v978
        %v1347 = vpack.c.b16 %v995, %v979
        %v1348 = vpack.c.b16 %v996, %v980
        %v1349 = vpack.c.b16 %v997, %v981
        %v1350 = vpack.c.b16 %v998, %v982
        %v1351 = vpack.c.b16 %v999, %v983
        %v1352 = vpack.c.b16 %v1000, %v984
        %v1353 = vpack.c.b16 %v1001, %v985
        %v1354 = vpack.c.b16 %v1002, %v986
        %v1355 = vpack.c.b16 %v1003, %v987
        %v1356 = vpack.c.b16 %v1020, %v1004
        %v1357 = vpack.c.b16 %v1021, %v1005
        %v1358 = vpack.c.b16 %v1022, %v1006
        %v1359 = vpack.c.b16 %v1023, %v1007
        %v1360 = vpack.c.b16 %v1024, %v1008
        %v1361 = vpack.c.b16 %v1025, %v1009
        %v1362 = vpack.c.b16 %v1026, %v1010
        %v1363 = vpack.c.b16 %v1027, %v1011
        %v1364 = vpack.c.b16 %v1028, %v1012
        %v1365 = vpack.c.b16 %v1029, %v1013
        %v1366 = vpack.c.b16 %v1030, %v1014
        %v1367 = vpack.c.b16 %v1031, %v1015
        %v1368 = vpack.c.b16 %v1032, %v1016
        %v1369 = vpack.c.b16 %v1033, %v1017
        %v1370 = vpack.c.b16 %v1034, %v1018
        %v1371 = vpack.c.b16 %v1035, %v1019
        %v1372 = vpack.c.b16 %v1052, %v1036
        %v1373 = vpack.c.b16 %v1053, %v1037
        %v1374 = vpack.c.b16 %v1054, %v1038
        %v1375 = vpack.c.b16 %v1055, %v1039
        %v1376 = vpack.c.b16 %v1056, %v1040
        %v1377 = vpack.c.b16 %v1057, %v1041
        %v1378 = vpack.c.b16 %v1058, %v1042
        %v1379 = vpack.c.b16 %v1059, %v1043
        %v1380 = vpack.c.b16 %v1060, %v1044
        %v1381 = vpack.c.b16 %v1061, %v1045
        %v1382 = vpack.c.b16 %v1062, %v1046
        %v1383 = vpack.c.b16 %v1063, %v1047
        %v1384 = vpack.c.b16 %v1064, %v1048
        %v1385 = vpack.c.b16 %v1065, %v1049
        %v1386 = vpack.c.b16 %v1066, %v1050
        %v1387 = vpack.c.b16 %v1067, %v1051
        %v1388 = vpack.c.b16 %v1084, %v1068
        %v1389 = vpack.c.b16 %v1085, %v1069
        %v1390 = vpack.c.b16 %v1086, %v1070
        %v1391 = vpack.c.b16 %v1087, %v1071
        %v1392 = vpack.c.b16 %v1088, %v1072
        %v1393 = vpack.c.b16 %v1089, %v1073
        %v1394 = vpack.c.b16 %v1090, %v1074
        %v1395 = vpack.c.b16 %v1091, %v1075
        %v1396 = vpack.c.b16 %v1092, %v1076
        %v1397 = vpack.c.b16 %v1093, %v1077
        %v1398 = vpack.c.b16 %v1094, %v1078
        %v1399 = vpack.c.b16 %v1095, %v1079
        %v1400 = vpack.c.b16 %v1096, %v1080
        %v1401 = vpack.c.b16 %v1097, %v1081
        %v1402 = vpack.c.b16 %v1098, %v1082
        %v1403 = vpack.c.b16 %v1099, %v1083
        %v1404 = vpack.c.b16 %v1116, %v1100
        %v1405 = vpack.c.b16 %v1117, %v1101
        %v1406 = vpack.c.b16 %v1118, %v1102
        %v1407 = vpack.c.b16 %v1119, %v1103
        %v1408 = vpack.c.b16 %v1120, %v1104
        %v1409 = vpack.c.b16 %v1121, %v1105
        %v1410 = vpack.c.b16 %v1122, %v1106
        %v1411 = vpack.c.b16 %v1123, %v1107
        %v1412 = vpack.c.b16 %v1124, %v1108
        %v1413 = vpack.c.b16 %v1125, %v1109
        %v1414 = vpack.c.b16 %v1126, %v1110
        %v1415 = vpack.c.b16 %v1127, %v1111
        %v1416 = vpack.c.b16 %v1128, %v1112
        %v1417 = vpack.c.b16 %v1129, %v1113
        %v1418 = vpack.c.b16 %v1130, %v1114
        %v1419 = vpack.c.b16 %v1131, %v1115
        %v1420 = vpack.c.b16 %v1148, %v1132
        %v1421 = vpack.c.b16 %v1149, %v1133
        %v1422 = vpack.c.b16 %v1150, %v1134
        %v1423 = vpack.c.b16 %v1151, %v1135
        %v1424 = vpack.c.b16 %v1152, %v1136
        %v1425 = vpack.c.b16 %v1153, %v1137
        %v1426 = vpack.c.b16 %v1154, %v1138
        %v1427 = vpack.c.b16 %v1155, %v1139
        %v1428 = vpack.c.b16 %v1156, %v1140
        %v1429 = vpack.c.b16 %v1157, %v1141
        %v1430 = vpack.c.b16 %v1158, %v1142
        %v1431 = vpack.c.b16 %v1159, %v1143
        %v1432 = vpack.c.b16 %v1160, %v1144
        %v1433 = vpack.c.b16 %v1161, %v1145
        %v1434 = vpack.c.b16 %v1162, %v1146
        %v1435 = vpack.c.b16 %v1163, %v1147
        %v1436 = vpack.c.b16 %v1180, %v1164
        %v1437 = vpack.c.b16 %v1181, %v1165
        %v1438 = vpack.c.b16 %v1182, %v1166
        %v1439 = vpack.c.b16 %v1183, %v1167
        %v1440 = vpack.c.b16 %v1184, %v1168
        %v1441 = vpack.c.b16 %v1185, %v1169
        %v1442 = vpack.c.b16 %v1186, %v1170
        %v1443 = vpack.c.b16 %v1187, %v1171
        %v1444 = vpack.c.b16 %v1188, %v1172
        %v1445 = vpack.c.b16 %v1189, %v1173
        %v1446 = vpack.c.b16 %v1190, %v1174
        %v1447 = vpack.c.b16 %v1191, %v1175
        %v1448 = vpack.c.b16 %v1192, %v1176
        %v1449 = vpack.c.b16 %v1193, %v1177
        %v1450 = vpack.c.b16 %v1194, %v1178
        %v1451 = vpack.c.b16 %v1195, %v1179
        %v1452 = vpack.c.b16 %v1212, %v1196
        %v1453 = vpack.c.b16 %v1213, %v1197
        %v1454 = vpack.c.b16 %v1214, %v1198
        %v1455 = vpack.c.b16 %v1215, %v1199
        %v1456 = vpack.c.b16 %v1216, %v1200
        %v1457 = vpack.c.b16 %v1217, %v1201
        %v1458 = vpack.c.b16 %v1218, %v1202
        %v1459 = vpack.c.b16 %v1219, %v1203
        %v1460 = vpack.c.b16 %v1220, %v1204
        %v1461 = vpack.c.b16 %v1221, %v1205
        %v1462 = vpack.c.b16 %v1222, %v1206
        %v1463 = vpack.c.b16 %v1223, %v1207
        %v1464 = vpack.c.b16 %v1224, %v1208
        %v1465 = vpack.c.b16 %v1225, %v1209
        %v1466 = vpack.c.b16 %v1226, %v1210
        %v1467 = vpack.c.b16 %v1227, %v1211
        %v1468 = vpack.c.b16 %v1244, %v1228
        %v1469 = vpack.c.b16 %v1245, %v1229
        %v1470 = vpack.c.b16 %v1246, %v1230
        %v1471 = vpack.c.b16 %v1247, %v1231
        %v1472 = vpack.c.b16 %v1248, %v1232
        %v1473 = vpack.c.b16 %v1249, %v1233
        %v1474 = vpack.c.b16 %v1250, %v1234
        %v1475 = vpack.c.b16 %v1251, %v1235
        %v1476 = vpack.c.b16 %v1252, %v1236
        %v1477 = vpack.c.b16 %v1253, %v1237
        %v1478 = vpack.c.b16 %v1254, %v1238
        %v1479 = vpack.c.b16 %v1255, %v1239
        %v1480 = vpack.c.b16 %v1256, %v1240
        %v1481 = vpack.c.b16 %v1257, %v1241
        %v1482 = vpack.c.b16 %v1258, %v1242
        %v1483 = vpack.c.b16 %v1259, %v1243
        %v1484 = vpack.c.b16 %v1276, %v1260
        %v1485 = vpack.c.b16 %v1277, %v1261
        %v1486 = vpack.c.b16 %v1278, %v1262
        %v1487 = vpack.c.b16 %v1279, %v1263
        %v1488 = vpack.c.b16 %v1280, %v1264
        %v1489 = vpack.c.b16 %v1281, %v1265
        %v1490 = vpack.c.b16 %v1282, %v1266
        %v1491 = vpack.c.b16 %v1283, %v1267
        %v1492 = vpack.c.b16 %v1284, %v1268
        %v1493 = vpack.c.b16 %v1285, %v1269
        %v1494 = vpack.c.b16 %v1286, %v1270
        %v1495 = vpack.c.b16 %v1287, %v1271
        %v1496 = vpack.c.b16 %v1288, %v1272
        %v1497 = vpack.c.b16 %v1289, %v1273
        %v1498 = vpack.c.b16 %v1290, %v1274
        %v1499 = vpack.c.b16 %v1291, %v1275
        %v1500 = vpack.c.b16 %v1308, %v1292
        %v1501 = vpack.c.b16 %v1309, %v1293
        %v1502 = vpack.c.b16 %v1310, %v1294
        %v1503 = vpack.c.b16 %v1311, %v1295
        %v1504 = vpack.c.b16 %v1312, %v1296
        %v1505 = vpack.c.b16 %v1313, %v1297
        %v1506 = vpack.c.b16 %v1314, %v1298
        %v1507 = vpack.c.b16 %v1315, %v1299
        %v1508 = vpack.c.b16 %v1316, %v1300
        %v1509 = vpack.c.b16 %v1317, %v1301
        %v1510 = vpack.c.b16 %v1318, %v1302
        %v1511 = vpack.c.b16 %v1319, %v1303
        %v1512 = vpack.c.b16 %v1320, %v1304
        %v1513 = vpack.c.b16 %v1321, %v1305
        %v1514 = vpack.c.b16 %v1322, %v1306
        %v1515 = vpack.c.b16 %v1323, %v1307
        %vm1708 = vcmask 523264
        %v1710 = vsel %vm1708, %v746, 0
        %1712 = vmatprep.subr.bf16.mxu0 %v1325
        %1713 = vmatpush1.bf16.msra.mxu0 %v1324
        %1714 = vmatprep.subr.bf16.mxu0 %v1341
        %1715 = vmatpush1.bf16.msra.mxu0 %v1340
        %1716 = vmatprep.subr.bf16.mxu0 %v1357
        %1717 = vmatpush1.bf16.msra.mxu0 %v1356
        %1718 = vmatprep.subr.bf16.mxu0 %v1373
        %1719 = vmatpush1.bf16.msra.mxu0 %v1372
        %1720 = vmatprep.subr.bf16.mxu0 %v1389
        %1721 = vmatpush1.bf16.msra.mxu0 %v1388
        %1722 = vmatprep.subr.bf16.mxu0 %v1405
        %1723 = vmatpush1.bf16.msra.mxu0 %v1404
        %1724 = vmatprep.subr.bf16.mxu0 %v1421
        %1725 = vmatpush1.bf16.msra.mxu0 %v1420
        %1726 = vmatprep.subr.bf16.mxu0 %v1437
        %1727 = vmatpush1.bf16.msra.mxu0 %v1436
        %1728 = vmatprep.subr.bf16.mxu0 %v1453
        %1729 = vmatpush1.bf16.msra.mxu0 %v1452
        %1730 = vmatprep.subr.bf16.mxu0 %v1469
        %1731 = vmatpush1.bf16.msra.mxu0 %v1468
        %1732 = vmatprep.subr.bf16.mxu0 %v1485
        %1733 = vmatpush1.bf16.msra.mxu0 %v1484
        %1734 = vmatprep.subr.bf16.mxu0 %v1501
        %1735 = vmatpush1.bf16.msra.mxu0 %v1500
        %1736 = vmatprep.subr.bf16.mxu0 0
        %1737 = vmatpush1.bf16.msra.mxu0 0
        %1738 = vmatprep.subr.bf16.mxu0 0
        %1739 = vmatpush1.bf16.msra.mxu0 0
        %1740 = vmatprep.subr.bf16.mxu0 0
        %1741 = vmatpush1.bf16.msra.mxu0 0
        %1742 = vmatprep.subr.bf16.mxu0 0
        %1743 = vmatpush1.bf16.msra.mxu0 0
        %1744 = vmatprep.mubr.bf16.mxu0 %v1710
        %1745 = vmatmul.mubr.bf16.gmra.mrb[0].mxu0 %v745
        %v1746 = vpop.f32.mrb[0].mxu0
        %v1747 = vadd.f32 0.0, %v1746
        %v1748 = vpop.f32.mrb[0].mxu0
        %v1749 = vadd.f32 0.0, %v1748
        %v1750 = vpop.f32.mrb[0].mxu0
        %v1751 = vpop.f32.mrb[0].mxu0
        %1752 = vdwg.mxu0
        %1753 = vmatprep.subr.bf16.mxu0 %v1327
        %1754 = vmatpush1.bf16.msra.mxu0 %v1326
        %1755 = vmatprep.subr.bf16.mxu0 %v1343
        %1756 = vmatpush1.bf16.msra.mxu0 %v1342
        %1757 = vmatprep.subr.bf16.mxu0 %v1359
        %1758 = vmatpush1.bf16.msra.mxu0 %v1358
        %1759 = vmatprep.subr.bf16.mxu0 %v1375
        %1760 = vmatpush1.bf16.msra.mxu0 %v1374
        %1761 = vmatprep.subr.bf16.mxu0 %v1391
        %1762 = vmatpush1.bf16.msra.mxu0 %v1390
        %1763 = vmatprep.subr.bf16.mxu0 %v1407
        %1764 = vmatpush1.bf16.msra.mxu0 %v1406
        %1765 = vmatprep.subr.bf16.mxu0 %v1423
        %1766 = vmatpush1.bf16.msra.mxu0 %v1422
        %1767 = vmatprep.subr.bf16.mxu0 %v1439
        %1768 = vmatpush1.bf16.msra.mxu0 %v1438
        %1769 = vmatprep.subr.bf16.mxu0 %v1455
        %1770 = vmatpush1.bf16.msra.mxu0 %v1454
        %1771 = vmatprep.subr.bf16.mxu0 %v1471
        %1772 = vmatpush1.bf16.msra.mxu0 %v1470
        %1773 = vmatprep.subr.bf16.mxu0 %v1487
        %1774 = vmatpush1.bf16.msra.mxu0 %v1486
        %1775 = vmatprep.subr.bf16.mxu0 %v1503
        %1776 = vmatpush1.bf16.msra.mxu0 %v1502
        %1777 = vmatprep.subr.bf16.mxu0 0
        %1778 = vmatpush1.bf16.msra.mxu0 0
        %1779 = vmatprep.subr.bf16.mxu0 0
        %1780 = vmatpush1.bf16.msra.mxu0 0
        %1781 = vmatprep.subr.bf16.mxu0 0
        %1782 = vmatpush1.bf16.msra.mxu0 0
        %1783 = vmatprep.subr.bf16.mxu0 0
        %1784 = vmatpush1.bf16.msra.mxu0 0
        %1785 = vmatprep.mubr.bf16.mxu0 %v1710
        %1786 = vmatmul.mubr.bf16.gmra.mrb[0].mxu0 %v745
        %v1787 = vpop.f32.mrb[0].mxu0
        %v1788 = vadd.f32 0.0, %v1787
        %v1789 = vpop.f32.mrb[0].mxu0
        %v1790 = vadd.f32 0.0, %v1789
        %v1791 = vpop.f32.mrb[0].mxu0
        %v1792 = vpop.f32.mrb[0].mxu0
        %1793 = vdwg.mxu0
        %1794 = vmatprep.subr.bf16.mxu0 %v1329
        %1795 = vmatpush1.bf16.msra.mxu0 %v1328
        %1796 = vmatprep.subr.bf16.mxu0 %v1345
        %1797 = vmatpush1.bf16.msra.mxu0 %v1344
        %1798 = vmatprep.subr.bf16.mxu0 %v1361
        %1799 = vmatpush1.bf16.msra.mxu0 %v1360
        %1800 = vmatprep.subr.bf16.mxu0 %v1377
        %1801 = vmatpush1.bf16.msra.mxu0 %v1376
        %1802 = vmatprep.subr.bf16.mxu0 %v1393
        %1803 = vmatpush1.bf16.msra.mxu0 %v1392
        %1804 = vmatprep.subr.bf16.mxu0 %v1409
        %1805 = vmatpush1.bf16.msra.mxu0 %v1408
        %1806 = vmatprep.subr.bf16.mxu0 %v1425
        %1807 = vmatpush1.bf16.msra.mxu0 %v1424
        %1808 = vmatprep.subr.bf16.mxu0 %v1441
        %1809 = vmatpush1.bf16.msra.mxu0 %v1440
        %1810 = vmatprep.subr.bf16.mxu0 %v1457
        %1811 = vmatpush1.bf16.msra.mxu0 %v1456
        %1812 = vmatprep.subr.bf16.mxu0 %v1473
        %1813 = vmatpush1.bf16.msra.mxu0 %v1472
        %1814 = vmatprep.subr.bf16.mxu0 %v1489
        %1815 = vmatpush1.bf16.msra.mxu0 %v1488
        %1816 = vmatprep.subr.bf16.mxu0 %v1505
        %1817 = vmatpush1.bf16.msra.mxu0 %v1504
        %1818 = vmatprep.subr.bf16.mxu0 0
        %1819 = vmatpush1.bf16.msra.mxu0 0
        %1820 = vmatprep.subr.bf16.mxu0 0
        %1821 = vmatpush1.bf16.msra.mxu0 0
        %1822 = vmatprep.subr.bf16.mxu0 0
        %1823 = vmatpush1.bf16.msra.mxu0 0
        %1824 = vmatprep.subr.bf16.mxu0 0
        %1825 = vmatpush1.bf16.msra.mxu0 0
        %1826 = vmatprep.mubr.bf16.mxu0 %v1710
        %1827 = vmatmul.mubr.bf16.gmra.mrb[0].mxu0 %v745
        %v1828 = vpop.f32.mrb[0].mxu0
        %v1829 = vadd.f32 0.0, %v1828
        %v1830 = vpop.f32.mrb[0].mxu0
        %v1831 = vadd.f32 0.0, %v1830
        %v1832 = vpop.f32.mrb[0].mxu0
        %v1833 = vpop.f32.mrb[0].mxu0
        %1834 = vdwg.mxu0
        %1835 = vmatprep.subr.bf16.mxu0 %v1331
        %1836 = vmatpush1.bf16.msra.mxu0 %v1330
        %1837 = vmatprep.subr.bf16.mxu0 %v1347
        %1838 = vmatpush1.bf16.msra.mxu0 %v1346
        %1839 = vmatprep.subr.bf16.mxu0 %v1363
        %1840 = vmatpush1.bf16.msra.mxu0 %v1362
        %1841 = vmatprep.subr.bf16.mxu0 %v1379
        %1842 = vmatpush1.bf16.msra.mxu0 %v1378
        %1843 = vmatprep.subr.bf16.mxu0 %v1395
        %1844 = vmatpush1.bf16.msra.mxu0 %v1394
        %1845 = vmatprep.subr.bf16.mxu0 %v1411
        %1846 = vmatpush1.bf16.msra.mxu0 %v1410
        %1847 = vmatprep.subr.bf16.mxu0 %v1427
        %1848 = vmatpush1.bf16.msra.mxu0 %v1426
        %1849 = vmatprep.subr.bf16.mxu0 %v1443
        %1850 = vmatpush1.bf16.msra.mxu0 %v1442
        %1851 = vmatprep.subr.bf16.mxu0 %v1459
        %1852 = vmatpush1.bf16.msra.mxu0 %v1458
        %1853 = vmatprep.subr.bf16.mxu0 %v1475
        %1854 = vmatpush1.bf16.msra.mxu0 %v1474
        %1855 = vmatprep.subr.bf16.mxu0 %v1491
        %1856 = vmatpush1.bf16.msra.mxu0 %v1490
        %1857 = vmatprep.subr.bf16.mxu0 %v1507
        %1858 = vmatpush1.bf16.msra.mxu0 %v1506
        %1859 = vmatprep.subr.bf16.mxu0 0
        %1860 = vmatpush1.bf16.msra.mxu0 0
        %1861 = vmatprep.subr.bf16.mxu0 0
        %1862 = vmatpush1.bf16.msra.mxu0 0
        %1863 = vmatprep.subr.bf16.mxu0 0
        %1864 = vmatpush1.bf16.msra.mxu0 0
        %1865 = vmatprep.subr.bf16.mxu0 0
        %1866 = vmatpush1.bf16.msra.mxu0 0
        %1867 = vmatprep.mubr.bf16.mxu0 %v1710
        %1868 = vmatmul.mubr.bf16.gmra.mrb[0].mxu0 %v745
        %v1869 = vpop.f32.mrb[0].mxu0
        %v1870 = vadd.f32 0.0, %v1869
        %v1871 = vpop.f32.mrb[0].mxu0
        %v1872 = vadd.f32 0.0, %v1871
        %v1873 = vpop.f32.mrb[0].mxu0
        %v1874 = vpop.f32.mrb[0].mxu0
        %1875 = vdwg.mxu0
        %1876 = vmatprep.subr.bf16.mxu0 %v1333
        %1877 = vmatpush1.bf16.msra.mxu0 %v1332
        %1878 = vmatprep.subr.bf16.mxu0 %v1349
        %1879 = vmatpush1.bf16.msra.mxu0 %v1348
        %1880 = vmatprep.subr.bf16.mxu0 %v1365
        %1881 = vmatpush1.bf16.msra.mxu0 %v1364
        %1882 = vmatprep.subr.bf16.mxu0 %v1381
        %1883 = vmatpush1.bf16.msra.mxu0 %v1380
        %1884 = vmatprep.subr.bf16.mxu0 %v1397
        %1885 = vmatpush1.bf16.msra.mxu0 %v1396
        %1886 = vmatprep.subr.bf16.mxu0 %v1413
        %1887 = vmatpush1.bf16.msra.mxu0 %v1412
        %1888 = vmatprep.subr.bf16.mxu0 %v1429
        %1889 = vmatpush1.bf16.msra.mxu0 %v1428
        %1890 = vmatprep.subr.bf16.mxu0 %v1445
        %1891 = vmatpush1.bf16.msra.mxu0 %v1444
        %1892 = vmatprep.subr.bf16.mxu0 %v1461
        %1893 = vmatpush1.bf16.msra.mxu0 %v1460
        %1894 = vmatprep.subr.bf16.mxu0 %v1477
        %1895 = vmatpush1.bf16.msra.mxu0 %v1476
        %1896 = vmatprep.subr.bf16.mxu0 %v1493
        %1897 = vmatpush1.bf16.msra.mxu0 %v1492
        %1898 = vmatprep.subr.bf16.mxu0 %v1509
        %1899 = vmatpush1.bf16.msra.mxu0 %v1508
        %1900 = vmatprep.subr.bf16.mxu0 0
        %1901 = vmatpush1.bf16.msra.mxu0 0
        %1902 = vmatprep.subr.bf16.mxu0 0
        %1903 = vmatpush1.bf16.msra.mxu0 0
        %1904 = vmatprep.subr.bf16.mxu0 0
        %1905 = vmatpush1.bf16.msra.mxu0 0
        %1906 = vmatprep.subr.bf16.mxu0 0
        %1907 = vmatpush1.bf16.msra.mxu0 0
        %1908 = vmatprep.mubr.bf16.mxu0 %v1710
        %1909 = vmatmul.mubr.bf16.gmra.mrb[0].mxu0 %v745
        %v1910 = vpop.f32.mrb[0].mxu0
        %v1911 = vadd.f32 0.0, %v1910
        %v1912 = vpop.f32.mrb[0].mxu0
        %v1913 = vadd.f32 0.0, %v1912
        %v1914 = vpop.f32.mrb[0].mxu0
        %v1915 = vpop.f32.mrb[0].mxu0
        %1916 = vdwg.mxu0
        %1917 = vmatprep.subr.bf16.mxu0 %v1335
        %1918 = vmatpush1.bf16.msra.mxu0 %v1334
        %1919 = vmatprep.subr.bf16.mxu0 %v1351
        %1920 = vmatpush1.bf16.msra.mxu0 %v1350
        %1921 = vmatprep.subr.bf16.mxu0 %v1367
        %1922 = vmatpush1.bf16.msra.mxu0 %v1366
        %1923 = vmatprep.subr.bf16.mxu0 %v1383
        %1924 = vmatpush1.bf16.msra.mxu0 %v1382
        %1925 = vmatprep.subr.bf16.mxu0 %v1399
        %1926 = vmatpush1.bf16.msra.mxu0 %v1398
        %1927 = vmatprep.subr.bf16.mxu0 %v1415
        %1928 = vmatpush1.bf16.msra.mxu0 %v1414
        %1929 = vmatprep.subr.bf16.mxu0 %v1431
        %1930 = vmatpush1.bf16.msra.mxu0 %v1430
        %1931 = vmatprep.subr.bf16.mxu0 %v1447
        %1932 = vmatpush1.bf16.msra.mxu0 %v1446
        %1933 = vmatprep.subr.bf16.mxu0 %v1463
        %1934 = vmatpush1.bf16.msra.mxu0 %v1462
        %1935 = vmatprep.subr.bf16.mxu0 %v1479
        %1936 = vmatpush1.bf16.msra.mxu0 %v1478
        %1937 = vmatprep.subr.bf16.mxu0 %v1495
        %1938 = vmatpush1.bf16.msra.mxu0 %v1494
        %1939 = vmatprep.subr.bf16.mxu0 %v1511
        %1940 = vmatpush1.bf16.msra.mxu0 %v1510
        %1941 = vmatprep.subr.bf16.mxu0 0
        %1942 = vmatpush1.bf16.msra.mxu0 0
        %1943 = vmatprep.subr.bf16.mxu0 0
        %1944 = vmatpush1.bf16.msra.mxu0 0
        %1945 = vmatprep.subr.bf16.mxu0 0
        %1946 = vmatpush1.bf16.msra.mxu0 0
        %1947 = vmatprep.subr.bf16.mxu0 0
        %1948 = vmatpush1.bf16.msra.mxu0 0
        %1949 = vmatprep.mubr.bf16.mxu0 %v1710
        %1950 = vmatmul.mubr.bf16.gmra.mrb[0].mxu0 %v745
        %v1951 = vpop.f32.mrb[0].mxu0
        %v1952 = vadd.f32 0.0, %v1951
        %v1953 = vpop.f32.mrb[0].mxu0
        %v1954 = vadd.f32 0.0, %v1953
        %v1955 = vpop.f32.mrb[0].mxu0
        %v1956 = vpop.f32.mrb[0].mxu0
        %1957 = vdwg.mxu0
        %1958 = vmatprep.subr.bf16.mxu0 %v1337
        %1959 = vmatpush1.bf16.msra.mxu0 %v1336
        %1960 = vmatprep.subr.bf16.mxu0 %v1353
        %1961 = vmatpush1.bf16.msra.mxu0 %v1352
        %1962 = vmatprep.subr.bf16.mxu0 %v1369
        %1963 = vmatpush1.bf16.msra.mxu0 %v1368
        %1964 = vmatprep.subr.bf16.mxu0 %v1385
        %1965 = vmatpush1.bf16.msra.mxu0 %v1384
        %1966 = vmatprep.subr.bf16.mxu0 %v1401
        %1967 = vmatpush1.bf16.msra.mxu0 %v1400
        %1968 = vmatprep.subr.bf16.mxu0 %v1417
        %1969 = vmatpush1.bf16.msra.mxu0 %v1416
        %1970 = vmatprep.subr.bf16.mxu0 %v1433
        %1971 = vmatpush1.bf16.msra.mxu0 %v1432
        %1972 = vmatprep.subr.bf16.mxu0 %v1449
        %1973 = vmatpush1.bf16.msra.mxu0 %v1448
        %1974 = vmatprep.subr.bf16.mxu0 %v1465
        %1975 = vmatpush1.bf16.msra.mxu0 %v1464
        %1976 = vmatprep.subr.bf16.mxu0 %v1481
        %1977 = vmatpush1.bf16.msra.mxu0 %v1480
        %1978 = vmatprep.subr.bf16.mxu0 %v1497
        %1979 = vmatpush1.bf16.msra.mxu0 %v1496
        %1980 = vmatprep.subr.bf16.mxu0 %v1513
        %1981 = vmatpush1.bf16.msra.mxu0 %v1512
        %1982 = vmatprep.subr.bf16.mxu0 0
        %1983 = vmatpush1.bf16.msra.mxu0 0
        %1984 = vmatprep.subr.bf16.mxu0 0
        %1985 = vmatpush1.bf16.msra.mxu0 0
        %1986 = vmatprep.subr.bf16.mxu0 0
        %1987 = vmatpush1.bf16.msra.mxu0 0
        %1988 = vmatprep.subr.bf16.mxu0 0
        %1989 = vmatpush1.bf16.msra.mxu0 0
        %1990 = vmatprep.mubr.bf16.mxu0 %v1710
        %1991 = vmatmul.mubr.bf16.gmra.mrb[0].mxu0 %v745
        %v1992 = vpop.f32.mrb[0].mxu0
        %v1993 = vadd.f32 0.0, %v1992
        %v1994 = vpop.f32.mrb[0].mxu0
        %v1995 = vadd.f32 0.0, %v1994
        %v1996 = vpop.f32.mrb[0].mxu0
        %v1997 = vpop.f32.mrb[0].mxu0
        %1998 = vdwg.mxu0
        %1999 = vmatprep.subr.bf16.mxu0 %v1339
        %2000 = vmatpush1.bf16.msra.mxu0 %v1338
        %2001 = vmatprep.subr.bf16.mxu0 %v1355
        %2002 = vmatpush1.bf16.msra.mxu0 %v1354
        %2003 = vmatprep.subr.bf16.mxu0 %v1371
        %2004 = vmatpush1.bf16.msra.mxu0 %v1370
        %2005 = vmatprep.subr.bf16.mxu0 %v1387
        %2006 = vmatpush1.bf16.msra.mxu0 %v1386
        %2007 = vmatprep.subr.bf16.mxu0 %v1403
        %2008 = vmatpush1.bf16.msra.mxu0 %v1402
        %2009 = vmatprep.subr.bf16.mxu0 %v1419
        %2010 = vmatpush1.bf16.msra.mxu0 %v1418
        %2011 = vmatprep.subr.bf16.mxu0 %v1435
        %2012 = vmatpush1.bf16.msra.mxu0 %v1434
        %2013 = vmatprep.subr.bf16.mxu0 %v1451
        %2014 = vmatpush1.bf16.msra.mxu0 %v1450
        %2015 = vmatprep.subr.bf16.mxu0 %v1467
        %2016 = vmatpush1.bf16.msra.mxu0 %v1466
        %2017 = vmatprep.subr.bf16.mxu0 %v1483
        %2018 = vmatpush1.bf16.msra.mxu0 %v1482
        %2019 = vmatprep.subr.bf16.mxu0 %v1499
        %2020 = vmatpush1.bf16.msra.mxu0 %v1498
        %2021 = vmatprep.subr.bf16.mxu0 %v1515
        %2022 = vmatpush1.bf16.msra.mxu0 %v1514
        %2023 = vmatprep.subr.bf16.mxu0 0
        %2024 = vmatpush1.bf16.msra.mxu0 0
        %2025 = vmatprep.subr.bf16.mxu0 0
        %2026 = vmatpush1.bf16.msra.mxu0 0
        %2027 = vmatprep.subr.bf16.mxu0 0
        %2028 = vmatpush1.bf16.msra.mxu0 0
        %2029 = vmatprep.subr.bf16.mxu0 0
        %2030 = vmatpush1.bf16.msra.mxu0 0
        %2031 = vmatprep.mubr.bf16.mxu0 %v1710
        %2032 = vmatmul.mubr.bf16.gmra.mrb[0].mxu0 %v745
        %v2033 = vpop.f32.mrb[0].mxu0
        %v2034 = vadd.f32 0.0, %v2033
        %v2035 = vpop.f32.mrb[0].mxu0
        %v2036 = vadd.f32 0.0, %v2035
        %v2037 = vpop.f32.mrb[0].mxu0
        %v2038 = vpop.f32.mrb[0].mxu0
        %2039 = vdwg.mxu0
        %v2040 = vmul.f32 %v1747, 0.2
        %v2041 = vmul.f32 %v1749, 0.2
        %v2042 = vmul.f32 %v1788, 0.2
        %v2043 = vmul.f32 %v1790, 0.2
        %v2044 = vmul.f32 %v1829, 0.2
        %v2045 = vmul.f32 %v1831, 0.2
        %v2046 = vmul.f32 %v1870, 0.2
        %v2047 = vmul.f32 %v1872, 0.2
        %v2048 = vmul.f32 %v1911, 0.2
        %v2049 = vmul.f32 %v1913, 0.2
        %v2050 = vmul.f32 %v1952, 0.2
        %v2051 = vmul.f32 %v1954, 0.2
        %v2052 = vmul.f32 %v1993, 0.2
        %v2053 = vmul.f32 %v1995, 0.2
        %v2054 = vmul.f32 %v2034, 0.2
        %v2055 = vmul.f32 %v2036, 0.2
        %v2056 = vmax.f32 %v1747, %v2040
        %v2057 = vmax.f32 %v1749, %v2041
        %v2058 = vmax.f32 %v1788, %v2042
        %v2059 = vmax.f32 %v1790, %v2043
        %v2060 = vmax.f32 %v1829, %v2044
        %v2061 = vmax.f32 %v1831, %v2045
        %v2062 = vmax.f32 %v1870, %v2046
        %v2063 = vmax.f32 %v1872, %v2047
        %v2064 = vmax.f32 %v1911, %v2048
        %v2065 = vmax.f32 %v1913, %v2049
        %v2066 = vmax.f32 %v1952, %v2050
        %v2067 = vmax.f32 %v1954, %v2051
        %v2068 = vmax.f32 %v1993, %v2052
        %v2069 = vmax.f32 %v1995, %v2053
        %v2070 = vmax.f32 %v2034, %v2054
        %v2071 = vmax.f32 %v2036, %v2055
        %v2072 = vpack.c.bf16 %v2056, %v2056
        %v2073 = vpack.c.bf16 %v2057, %v2057
        %v2074 = vpack.c.bf16 %v2058, %v2058
        %v2075 = vpack.c.bf16 %v2059, %v2059
        %v2076 = vpack.c.bf16 %v2060, %v2060
        %v2077 = vpack.c.bf16 %v2061, %v2061
        %v2078 = vpack.c.bf16 %v2062, %v2062
        %v2079 = vpack.c.bf16 %v2063, %v2063
        %v2080 = vpack.c.bf16 %v2064, %v2064
        %v2081 = vpack.c.bf16 %v2065, %v2065
        %v2082 = vpack.c.bf16 %v2066, %v2066
        %v2083 = vpack.c.bf16 %v2067, %v2067
        %v2084 = vpack.c.bf16 %v2068, %v2068
        %v2085 = vpack.c.bf16 %v2069, %v2069
        %v2086 = vpack.c.bf16 %v2070, %v2070
        %v2087 = vpack.c.bf16 %v2071, %v2071
        %v2104 = vunpack.c.l.b16 %v2072
        %v2105 = vunpack.c.l.b16 %v2073
        %v2106 = vunpack.c.l.b16 %v2074
        %v2107 = vunpack.c.l.b16 %v2075
        %v2108 = vunpack.c.l.b16 %v2076
        %v2109 = vunpack.c.l.b16 %v2077
        %v2110 = vunpack.c.l.b16 %v2078
        %v2111 = vunpack.c.l.b16 %v2079
        %v2112 = vunpack.c.l.b16 %v2080
        %v2113 = vunpack.c.l.b16 %v2081
        %v2114 = vunpack.c.l.b16 %v2082
        %v2115 = vunpack.c.l.b16 %v2083
        %v2116 = vunpack.c.l.b16 %v2084
        %v2117 = vunpack.c.l.b16 %v2085
        %v2118 = vunpack.c.l.b16 %v2086
        %v2119 = vunpack.c.l.b16 %v2087
        %v2120 = vpack.c.b16 %v2105, %v2104
        %v2121 = vpack.c.b16 %v2107, %v2106
        %v2122 = vpack.c.b16 %v2109, %v2108
        %v2123 = vpack.c.b16 %v2111, %v2110
        %v2124 = vpack.c.b16 %v2113, %v2112
        %v2125 = vpack.c.b16 %v2115, %v2114
        %v2126 = vpack.c.b16 %v2117, %v2116
        %v2127 = vpack.c.b16 %v2119, %v2118
        %2136 = vst [vmem:[%s546] sm:$0xff] %v2120
        %2137 = vst [vmem:[%s546 + $0x8] sm:$0xff] %v2121
        %2138 = vst [vmem:[%s546 + $0x10] sm:$0xff] %v2122
        %2139 = vst [vmem:[%s546 + $0x18] sm:$0xff] %v2123
        %2140 = vst [vmem:[%s546 + $0x20] sm:$0xff] %v2124
        %2141 = vst [vmem:[%s546 + $0x28] sm:$0xff] %v2125
        %2142 = vst [vmem:[%s546 + $0x30] sm:$0xff] %v2126
        %2143 = vst [vmem:[%s546 + $0x38] sm:$0xff] %v2127
        %s2144 = smul.u32 16, %s13
        %p2145 = scmp.lt.s32.totalorder %s2144, 63
        %s2146 = scalar_select %p2145, %s2144, 63
        %s2147 = smul.addr %s2146, 4
        %s2148 = scalar_lea.vmem %s2, %s2147
        // Predicated region
        $region52: #{wgan3d_d_forward.3} parent=46 // pred_check
          %p2149 = pneg %p78
        $region53: #{wgan3d_d_forward.3} parent=46 // pred_check_branch
          %2151 = sbr.rel (%p2149) target = $region55
        $region54: #{wgan3d_d_forward.3} parent=46 // pred_region
          %s2152 = smul.u32 16, %s13
        $region55: #{wgan3d_d_forward.3} parent=46 // pred_fallthru
          _
      $region47: #{wgan3d_d_forward.3} parent=5 // pred_fallthru
        _
      %p2153 = scmp.le.s32.totalorder 2, %s8
      // Predicated region
      $region56: #{wgan3d_d_forward.3} parent=5 // pred_check
        %p2154 = pneg %p2153
      $region57: #{wgan3d_d_forward.3} parent=5 // pred_check_branch
        %2156 = sbr.rel (%p2154) target = $region59
      $region58: #{wgan3d_d_forward.3} parent=5 // pred_region
        %s2157 = ssub.s32 %s8, 2
        // Predicated region
        $region60: #{wgan3d_d_forward.3} parent=58 // pred_check
          %p2158 = pneg %p84
        $region61: #{wgan3d_d_forward.3} parent=58 // pred_check_branch
          %2160 = sbr.rel (%p2158) target = $region63
        $region62: #{wgan3d_d_forward.3} parent=58 // pred_region
          %s2161 = smul.u32 16, %s14
          %p2162 = scmp.lt.s32.totalorder %s2161, 63
          %s2163 = scalar_select %p2162, %s2161, 63
          %s2164 = smul.addr %s2163, 4
          %s2165 = scalar_lea.vmem %s2, %s2164
        $region63: #{wgan3d_d_forward.3} parent=58 // pred_fallthru
          _
      $region59: #{wgan3d_d_forward.3} parent=5 // pred_fallthru
        _
    $region6: #{wgan3d_d_forward.3} parent=1 // loop_footer
      %s12 = sadd.s32 1, %s8
    $region7: #{wgan3d_d_forward.3} parent=1 // loop_footer_branch
      %7 = sbr.rel target = $region3
    $region8: #{wgan3d_d_forward.3} parent=1 // loop_exit
      _

// kernel: wgan3d_d_forward.4
$region0: #{wgan3d_d_forward.4}
  #allocation0 [shape = 'u32[]', space=smem, size = 0x4, offset = 0x4, fixed_abs, tag = 'smem constant byte address 0x4 - core index']
  #allocation1 [shape = 'u32[144,128]{1,0:T(1,128)}', space=vmem, size = 0x12000, scoped, tag = 'internal scratch']
  %s0 = inlined_call_operand.vmem [shape: bf16[16,512], index: 0, kind: input, shape index: {}]
  %s1 = inlined_call_operand.vmem [shape: bf16[512,1024], index: 1, kind: input, shape index: {}]
  %s2 = inlined_call_operand.vmem [shape: f32[16,1], index: 2, kind: input, shape index: {}]
  %s3 = inlined_call_operand.vmem [shape: f32[16,1], index: 3, kind: input, shape index: {}]
  %s4 = inlined_call_operand.vmem [shape: f32[1024,2], index: 4, kind: input, shape index: {}]
  %s5 = inlined_call_operand.vmem [shape: f32[2,1024], index: 5, kind: input, shape index: {}]
  %s6 = inlined_call_operand.vmem [shape: f32[2,1024], index: 6, kind: input, shape index: {}]
  %s7 = inlined_call_operand.vmem [shape: bf16[16,1024], index: 7, kind: output, shape index: {}]
  %s8 = sld [smem:[#allocation0]]
  $region61: #{wgan3d_d_forward.4} parent=0
    _
  %s10 = ssub.s32 1, %s8
  %s11 = scalar_select 0, %s10, %s8
  loop: start=0, step=1, limit=4
  $region2: #{wgan3d_d_forward.4} parent=0 // loop_pre_header
    _
  $region3: #{wgan3d_d_forward.4} parent=0 // loop_header
    %s13 = sphi 0, %s17
    %p14 = scmp.ge.s32.totalorder %s13, 4
    %s23 = sphi 0, %s25
    %s26 = sphi 0, %s23
    %s27 = sphi 0, %s26
    %s43 = sphi 0, %s27
    %s47 = sphi 0, %s47
    %s49 = sphi 0, %s47
    %s50 = sphi 0, %s49
    %s64 = sphi 0, %s50
    %s70 = sphi 0, %s72
    %s73 = sphi 0, %s70
    %s74 = sphi 0, %s73
    %s90 = sphi 0, %s74
    %s96 = sphi 0, %s98
    %s99 = sphi 0, %s96
    %s100 = sphi 0, %s99
    %s116 = sphi 0, %s100
    %s120 = sphi 0, %s120
    %s122 = sphi 0, %s120
    %s123 = sphi 0, %s122
    %s137 = sphi 0, %s123
    %s141 = sphi 0, %s141
    %s143 = sphi 0, %s141
    %s144 = sphi 0, %s143
    %s158 = sphi 0, %s144
    %s162 = sphi 0, %s162
    %s164 = sphi 0, %s162
    %s165 = sphi 0, %s164
    %s179 = sphi 0, %s165
    %s185 = sphi 0, %s187
    %s188 = sphi 0, %s185
    %s189 = sphi 0, %s188
    %s205 = sphi 0, %s189
  $region4: #{wgan3d_d_forward.4} parent=0 // loop_header_branch
    %16 = sbr.rel (%p14) target = $region8
  $region5: #{wgan3d_d_forward.4} parent=0 // loop_body
    %s18 = ssub.s32 %s13, 1
    %s19 = ssub.s32 %s13, 2
    %s20 = sadd.s32 %s13, 1
    %s21 = ssub.s32 %s13, %s20
    %p22 = scmp.eq.s32.totalorder %s21, 0
    %s24 = sadd.s32 %s23, 1
    %s25 = scalar_select %p22, %s23, %s24
    %p28 = pneg %p22
    %p29 = scmp.eq.s32.totalorder %s13, 1
    %p30 = por %p28, %p29
    %p31 = scmp.ne.s32.totalorder %s23, %s26
    %p32 = scmp.eq.s32.totalorder %s13, 0
    %p33 = por %p31, %p32
    %p34 = scmp.ne.s32.totalorder %s23, %s26
    %p35 = scmp.eq.s32.totalorder %s18, 1
    %p36 = por %p34, %p35
    %p37 = scmp.ne.s32.totalorder %s26, %s27
    %p38 = scmp.eq.s32.totalorder %s18, 0
    %p39 = por %p37, %p38
    %p40 = scmp.ne.s32.totalorder %s26, %s27
    %p41 = scmp.eq.s32.totalorder %s19, 1
    %p42 = por %p40, %p41
    %p44 = scmp.ne.s32.totalorder %s27, %s43
    %p45 = scmp.eq.s32.totalorder %s19, 0
    %p46 = por %p44, %p45
    %s48 = sadd.s32 %s47, 1
    %p51 = scmp.eq.s32.totalorder %s13, 1
    %p52 = scmp.ne.s32.totalorder %s47, %s49
    %p53 = scmp.eq.s32.totalorder %s13, 0
    %p54 = por %p52, %p53
    %p55 = scmp.ne.s32.totalorder %s47, %s49
    %p56 = scmp.eq.s32.totalorder %s18, 1
    %p57 = por %p55, %p56
    %p58 = scmp.ne.s32.totalorder %s49, %s50
    %p59 = scmp.eq.s32.totalorder %s18, 0
    %p60 = por %p58, %p59
    %p61 = scmp.ne.s32.totalorder %s49, %s50
    %p62 = scmp.eq.s32.totalorder %s19, 1
    %p63 = por %p61, %p62
    %p65 = scmp.ne.s32.totalorder %s50, %s64
    %p66 = scmp.eq.s32.totalorder %s19, 0
    %p67 = por %p65, %p66
    %s68 = ssub.s32 %s13, %s20
    %p69 = scmp.eq.s32.totalorder %s68, 0
    %s71 = sadd.s32 %s70, 1
    %s72 = scalar_select %p69, %s70, %s71
    %p75 = pneg %p69
    %p76 = scmp.eq.s32.totalorder %s13, 1
    %p77 = por %p75, %p76
    %p78 = scmp.ne.s32.totalorder %s70, %s73
    %p79 = scmp.eq.s32.totalorder %s13, 0
    %p80 = por %p78, %p79
    %p81 = scmp.ne.s32.totalorder %s70, %s73
    %p82 = scmp.eq.s32.totalorder %s18, 1
    %p83 = por %p81, %p82
    %p84 = scmp.ne.s32.totalorder %s73, %s74
    %p85 = scmp.eq.s32.totalorder %s18, 0
    %p86 = por %p84, %p85
    %p87 = scmp.ne.s32.totalorder %s73, %s74
    %p88 = scmp.eq.s32.totalorder %s19, 1
    %p89 = por %p87, %p88
    %p91 = scmp.ne.s32.totalorder %s74, %s90
    %p92 = scmp.eq.s32.totalorder %s19, 0
    %p93 = por %p91, %p92
    %s94 = ssub.s32 %s13, %s20
    %p95 = scmp.eq.s32.totalorder %s94, 0
    %s97 = sadd.s32 %s96, 1
    %s98 = scalar_select %p95, %s96, %s97
    %p101 = pneg %p95
    %p102 = scmp.eq.s32.totalorder %s13, 1
    %p103 = por %p101, %p102
    %p104 = scmp.ne.s32.totalorder %s96, %s99
    %p105 = scmp.eq.s32.totalorder %s13, 0
    %p106 = por %p104, %p105
    %p107 = scmp.ne.s32.totalorder %s96, %s99
    %p108 = scmp.eq.s32.totalorder %s18, 1
    %p109 = por %p107, %p108
    %p110 = scmp.ne.s32.totalorder %s99, %s100
    %p111 = scmp.eq.s32.totalorder %s18, 0
    %p112 = por %p110, %p111
    %p113 = scmp.ne.s32.totalorder %s99, %s100
    %p114 = scmp.eq.s32.totalorder %s19, 1
    %p115 = por %p113, %p114
    %p117 = scmp.ne.s32.totalorder %s100, %s116
    %p118 = scmp.eq.s32.totalorder %s19, 0
    %p119 = por %p117, %p118
    %s121 = sadd.s32 %s120, 1
    %p124 = scmp.eq.s32.totalorder %s13, 1
    %p125 = scmp.ne.s32.totalorder %s120, %s122
    %p126 = scmp.eq.s32.totalorder %s13, 0
    %p127 = por %p125, %p126
    %p128 = scmp.ne.s32.totalorder %s120, %s122
    %p129 = scmp.eq.s32.totalorder %s18, 1
    %p130 = por %p128, %p129
    %p131 = scmp.ne.s32.totalorder %s122, %s123
    %p132 = scmp.eq.s32.totalorder %s18, 0
    %p133 = por %p131, %p132
    %p134 = scmp.ne.s32.totalorder %s122, %s123
    %p135 = scmp.eq.s32.totalorder %s19, 1
    %p136 = por %p134, %p135
    %p138 = scmp.ne.s32.totalorder %s123, %s137
    %p139 = scmp.eq.s32.totalorder %s19, 0
    %p140 = por %p138, %p139
    %s142 = sadd.s32 %s141, 1
    %p145 = scmp.eq.s32.totalorder %s13, 1
    %p146 = scmp.ne.s32.totalorder %s141, %s143
    %p147 = scmp.eq.s32.totalorder %s13, 0
    %p148 = por %p146, %p147
    %p149 = scmp.ne.s32.totalorder %s141, %s143
    %p150 = scmp.eq.s32.totalorder %s18, 1
    %p151 = por %p149, %p150
    %p152 = scmp.ne.s32.totalorder %s143, %s144
    %p153 = scmp.eq.s32.totalorder %s18, 0
    %p154 = por %p152, %p153
    %p155 = scmp.ne.s32.totalorder %s143, %s144
    %p156 = scmp.eq.s32.totalorder %s19, 1
    %p157 = por %p155, %p156
    %p159 = scmp.ne.s32.totalorder %s144, %s158
    %p160 = scmp.eq.s32.totalorder %s19, 0
    %p161 = por %p159, %p160
    %s163 = sadd.s32 %s162, 1
    %p166 = scmp.eq.s32.totalorder %s13, 1
    %p167 = scmp.ne.s32.totalorder %s162, %s164
    %p168 = scmp.eq.s32.totalorder %s13, 0
    %p169 = por %p167, %p168
    %p170 = scmp.ne.s32.totalorder %s162, %s164
    %p171 = scmp.eq.s32.totalorder %s18, 1
    %p172 = por %p170, %p171
    %p173 = scmp.ne.s32.totalorder %s164, %s165
    %p174 = scmp.eq.s32.totalorder %s18, 0
    %p175 = por %p173, %p174
    %p176 = scmp.ne.s32.totalorder %s164, %s165
    %p177 = scmp.eq.s32.totalorder %s19, 1
    %p178 = por %p176, %p177
    %p180 = scmp.ne.s32.totalorder %s165, %s179
    %p181 = scmp.eq.s32.totalorder %s19, 0
    %p182 = por %p180, %p181
    %s183 = ssub.s32 %s13, %s20
    %p184 = scmp.eq.s32.totalorder %s183, 0
    %s186 = sadd.s32 %s185, 1
    %s187 = scalar_select %p184, %s185, %s186
    %p190 = pneg %p184
    %p191 = scmp.eq.s32.totalorder %s13, 1
    %p192 = por %p190, %p191
    %p193 = scmp.ne.s32.totalorder %s185, %s188
    %p194 = scmp.eq.s32.totalorder %s13, 0
    %p195 = por %p193, %p194
    %p196 = scmp.ne.s32.totalorder %s185, %s188
    %p197 = scmp.eq.s32.totalorder %s18, 1
    %p198 = por %p196, %p197
    %p199 = scmp.ne.s32.totalorder %s188, %s189
    %p200 = scmp.eq.s32.totalorder %s18, 0
    %p201 = por %p199, %p200
    %p202 = scmp.ne.s32.totalorder %s188, %s189
    %p203 = scmp.eq.s32.totalorder %s19, 1
    %p204 = por %p202, %p203
    %p206 = scmp.ne.s32.totalorder %s189, %s205
    %p207 = scmp.eq.s32.totalorder %s19, 0
    %p208 = por %p206, %p207
    %p209 = scmp.le.s32.totalorder 1, %s13
    %p210 = scmp.lt.s32.totalorder %s13, 3
    %p211 = pnand %p209, %p210
    %p212 = pneg %p211
    // Predicated region
    $region9: #{wgan3d_d_forward.4} parent=5 // pred_check
      _
    $region10: #{wgan3d_d_forward.4} parent=5 // pred_check_branch
      %214 = sbr.rel (%p211) target = $region12
    $region11: #{wgan3d_d_forward.4} parent=5 // pred_region
      %s215 = ssub.s32 %s13, 1
      // Predicated region
      $region13: #{wgan3d_d_forward.4} parent=11 // pred_check
        %p216 = pneg %p60
      $region14: #{wgan3d_d_forward.4} parent=11 // pred_check_branch
        %218 = sbr.rel (%p216) target = $region16
      $region15: #{wgan3d_d_forward.4} parent=11 // pred_region
        _
      $region16: #{wgan3d_d_forward.4} parent=11 // pred_fallthru
        _
      // Predicated region
      $region17: #{wgan3d_d_forward.4} parent=11 // pred_check
        %p219 = pneg %p133
      $region18: #{wgan3d_d_forward.4} parent=11 // pred_check_branch
        %221 = sbr.rel (%p219) target = $region20
      $region19: #{wgan3d_d_forward.4} parent=11 // pred_region
        _
      $region20: #{wgan3d_d_forward.4} parent=11 // pred_fallthru
        _
      // Predicated region
      $region21: #{wgan3d_d_forward.4} parent=11 // pred_check
        %p222 = pneg %p154
      $region22: #{wgan3d_d_forward.4} parent=11 // pred_check_branch
        %224 = sbr.rel (%p222) target = $region24
      $region23: #{wgan3d_d_forward.4} parent=11 // pred_region
        _
      $region24: #{wgan3d_d_forward.4} parent=11 // pred_fallthru
        _
      // Predicated region
      $region25: #{wgan3d_d_forward.4} parent=11 // pred_check
        %p225 = pneg %p175
      $region26: #{wgan3d_d_forward.4} parent=11 // pred_check_branch
        %227 = sbr.rel (%p225) target = $region28
      $region27: #{wgan3d_d_forward.4} parent=11 // pred_region
        _
      $region28: #{wgan3d_d_forward.4} parent=11 // pred_fallthru
        _
    $region12: #{wgan3d_d_forward.4} parent=5 // pred_fallthru
      _
    %p228 = scmp.lt.s32.totalorder %s13, 2
    // Predicated region
    $region29: #{wgan3d_d_forward.4} parent=5 // pred_check
      %p229 = pneg %p228
    $region30: #{wgan3d_d_forward.4} parent=5 // pred_check_branch
      %231 = sbr.rel (%p229) target = $region32
    $region31: #{wgan3d_d_forward.4} parent=5 // pred_region
      // Predicated region
      $region33: #{wgan3d_d_forward.4} parent=31 // pred_check
        %p232 = pneg %p33
      $region34: #{wgan3d_d_forward.4} parent=31 // pred_check_branch
        %234 = sbr.rel (%p232) target = $region36
      $region35: #{wgan3d_d_forward.4} parent=31 // pred_region
        %p235 = scmp.lt.s32.totalorder %s13, 1
        %s236 = scalar_select %p235, %s13, 1
        %s237 = smul.addr %s236, 4
        %s238 = smul.addr %s237, 4
        %s239 = scalar_lea.vmem %s0, %s238
      $region36: #{wgan3d_d_forward.4} parent=31 // pred_fallthru
        _
      // Predicated region
      $region37: #{wgan3d_d_forward.4} parent=31 // pred_check
        %p240 = pneg %p80
      $region38: #{wgan3d_d_forward.4} parent=31 // pred_check_branch
        %242 = sbr.rel (%p240) target = $region40
      $region39: #{wgan3d_d_forward.4} parent=31 // pred_region
        %p243 = scmp.lt.s32.totalorder %s13, 1
        %s244 = scalar_select %p243, %s13, 1
        %s245 = smul.addr %s244, 8
        %s246 = scalar_lea.vmem %s2, %s245
      $region40: #{wgan3d_d_forward.4} parent=31 // pred_fallthru
        _
      // Predicated region
      $region41: #{wgan3d_d_forward.4} parent=31 // pred_check
        %p247 = pneg %p106
      $region42: #{wgan3d_d_forward.4} parent=31 // pred_check_branch
        %249 = sbr.rel (%p247) target = $region44
      $region43: #{wgan3d_d_forward.4} parent=31 // pred_region
        %p250 = scmp.lt.s32.totalorder %s13, 1
        %s251 = scalar_select %p250, %s13, 1
        %s252 = smul.addr %s251, 8
        %s253 = scalar_lea.vmem %s3, %s252
      $region44: #{wgan3d_d_forward.4} parent=31 // pred_fallthru
        _
    $region32: #{wgan3d_d_forward.4} parent=5 // pred_fallthru
      _
    %p254 = scmp.le.s32.totalorder 1, %s13
    %p255 = scmp.lt.s32.totalorder %s13, 3
    %p256 = pnand %p254, %p255
    %p257 = pneg %p256
    // Predicated region
    $region45: #{wgan3d_d_forward.4} parent=5 // pred_check
      _
    $region46: #{wgan3d_d_forward.4} parent=5 // pred_check_branch
      %259 = sbr.rel (%p256) target = $region48
    $region47: #{wgan3d_d_forward.4} parent=5 // pred_region
      %s260 = ssub.s32 %s13, 1
      %p261 = scmp.lt.s32.totalorder %s18, 1
      %s262 = scalar_select %p261, %s18, 1
      %s263 = smul.addr %s262, 4
      %s264 = smul.addr %s263, 4
      %s265 = scalar_lea.vmem %s0, %s264
      %p266 = pneg %p39
      %p267 = pneg %p36
      %p268 = pneg %p60
      %p269 = pneg %p57
      %p270 = scmp.lt.s32.totalorder %s18, 1
      %s271 = scalar_select %p270, %s18, 1
      %s272 = smul.addr %s271, 8
      %s273 = scalar_lea.vmem %s2, %s272
      %p274 = pneg %p86
      %p275 = pneg %p83
      %p276 = scmp.lt.s32.totalorder %s18, 1
      %s277 = scalar_select %p276, %s18, 1
      %s278 = smul.addr %s277, 8
      %s279 = scalar_lea.vmem %s3, %s278
      %p280 = pneg %p112
      %p281 = pneg %p109
      %p282 = pneg %p133
      %p283 = pneg %p130
      %p284 = pneg %p154
      %p285 = pneg %p151
      %p286 = pneg %p175
      %p287 = pneg %p172
      %p288 = pneg %p201
      %p289 = pneg %p198
      %p290 = scmp.lt.s32.totalorder %s18, 1
      %s291 = scalar_select %p290, %s18, 1
      %s292 = smul.addr %s291, 8
      %s293 = smul.addr %s292, 4
      %s294 = scalar_lea.vmem %s7, %s293
      %p295 = scmp.lt.s32.totalorder %s18, 1
      %s296 = scalar_select %p295, %s18, 1
      %s297 = smul.addr %s296, 4
      %s298 = smul.addr %s297, 4
      %s299 = scalar_lea.vmem %s0, %s298
      %p300 = scmp.lt.s32.totalorder %s18, 1
      %s301 = scalar_select %p300, %s18, 1
      %s302 = smul.addr %s301, 8
      %s303 = scalar_lea.vmem %s2, %s302
      %p304 = scmp.lt.s32.totalorder %s18, 1
      %s305 = scalar_select %p304, %s18, 1
      %s306 = smul.addr %s305, 8
      %s307 = scalar_lea.vmem %s3, %s306
      %p308 = scmp.lt.s32.totalorder %s18, 1
      %s309 = scalar_select %p308, %s18, 1
      %s310 = smul.addr %s309, 8
      %s311 = smul.addr %s310, 4
      %s312 = scalar_lea.vmem %s7, %s311
      %v313 = vld [vmem:[%s299] sm:$0xff]
      %v314 = vld [vmem:[%s299 + $0x8] sm:$0xff]
      %v315 = vld [vmem:[%s1] sm:$0xff]
      %v316 = vld [vmem:[%s1 + $0x8] sm:$0xff]
      %v317 = vld [vmem:[%s1 + $0x10] sm:$0xff]
      %v318 = vld [vmem:[%s1 + $0x18] sm:$0xff]
      %v319 = vld [vmem:[%s1 + $0x20] sm:$0xff]
      %v320 = vld [vmem:[%s1 + $0x28] sm:$0xff]
      %v321 = vld [vmem:[%s1 + $0x30] sm:$0xff]
      %v322 = vld [vmem:[%s1 + $0x38] sm:$0xff]
      %v323 = vld [vmem:[%s1 + $0x40] sm:$0xff]
      %v324 = vld [vmem:[%s1 + $0x48] sm:$0xff]
      %v325 = vld [vmem:[%s1 + $0x50] sm:$0xff]
      %v326 = vld [vmem:[%s1 + $0x58] sm:$0xff]
      %v327 = vld [vmem:[%s1 + $0x60] sm:$0xff]
      %v328 = vld [vmem:[%s1 + $0x68] sm:$0xff]
      %v329 = vld [vmem:[%s1 + $0x70] sm:$0xff]
      %v330 = vld [vmem:[%s1 + $0x78] sm:$0xff]
      %v331 = vld [vmem:[%s1 + $0x80] sm:$0xff]
      %v332 = vld [vmem:[%s1 + $0x88] sm:$0xff]
      %v333 = vld [vmem:[%s1 + $0x90] sm:$0xff]
      %v334 = vld [vmem:[%s1 + $0x98] sm:$0xff]
      %v335 = vld [vmem:[%s1 + $0xa0] sm:$0xff]
      %v336 = vld [vmem:[%s1 + $0xa8] sm:$0xff]
      %v337 = vld [vmem:[%s1 + $0xb0] sm:$0xff]
      %v338 = vld [vmem:[%s1 + $0xb8] sm:$0xff]
      %v339 = vld [vmem:[%s1 + $0xc0] sm:$0xff]
      %v340 = vld [vmem:[%s1 + $0xc8] sm:$0xff]
      %v341 = vld [vmem:[%s1 + $0xd0] sm:$0xff]
      %v342 = vld [vmem:[%s1 + $0xd8] sm:$0xff]
      %v343 = vld [vmem:[%s1 + $0xe0] sm:$0xff]
      %v344 = vld [vmem:[%s1 + $0xe8] sm:$0xff]
      %v345 = vld [vmem:[%s1 + $0xf0] sm:$0xff]
      %v346 = vld [vmem:[%s1 + $0xf8] sm:$0xff]
      %v347 = vld [vmem:[%s1 + $0x100] sm:$0xff]
      %v348 = vld [vmem:[%s1 + $0x108] sm:$0xff]
      %v349 = vld [vmem:[%s1 + $0x110] sm:$0xff]
      %v350 = vld [vmem:[%s1 + $0x118] sm:$0xff]
      %v351 = vld [vmem:[%s1 + $0x120] sm:$0xff]
      %v352 = vld [vmem:[%s1 + $0x128] sm:$0xff]
      %v353 = vld [vmem:[%s1 + $0x130] sm:$0xff]
      %v354 = vld [vmem:[%s1 + $0x138] sm:$0xff]
      %v355 = vld [vmem:[%s1 + $0x140] sm:$0xff]
      %v356 = vld [vmem:[%s1 + $0x148] sm:$0xff]
      %v357 = vld [vmem:[%s1 + $0x150] sm:$0xff]
      %v358 = vld [vmem:[%s1 + $0x158] sm:$0xff]
      %v359 = vld [vmem:[%s1 + $0x160] sm:$0xff]
      %v360 = vld [vmem:[%s1 + $0x168] sm:$0xff]
      %v361 = vld [vmem:[%s1 + $0x170] sm:$0xff]
      %v362 = vld [vmem:[%s1 + $0x178] sm:$0xff]
      %v363 = vld [vmem:[%s1 + $0x180] sm:$0xff]
      %v364 = vld [vmem:[%s1 + $0x188] sm:$0xff]
      %v365 = vld [vmem:[%s1 + $0x190] sm:$0xff]
      %v366 = vld [vmem:[%s1 + $0x198] sm:$0xff]
      %v367 = vld [vmem:[%s1 + $0x1a0] sm:$0xff]
      %v368 = vld [vmem:[%s1 + $0x1a8] sm:$0xff]
      %v369 = vld [vmem:[%s1 + $0x1b0] sm:$0xff]
      %v370 = vld [vmem:[%s1 + $0x1b8] sm:$0xff]
      %v371 = vld [vmem:[%s1 + $0x1c0] sm:$0xff]
      %v372 = vld [vmem:[%s1 + $0x1c8] sm:$0xff]
      %v373 = vld [vmem:[%s1 + $0x1d0] sm:$0xff]
      %v374 = vld [vmem:[%s1 + $0x1d8] sm:$0xff]
      %v375 = vld [vmem:[%s1 + $0x1e0] sm:$0xff]
      %v376 = vld [vmem:[%s1 + $0x1e8] sm:$0xff]
      %v377 = vld [vmem:[%s1 + $0x1f0] sm:$0xff]
      %v378 = vld [vmem:[%s1 + $0x1f8] sm:$0xff]
      %v379 = vld [vmem:[%s1 + $0x200] sm:$0xff]
      %v380 = vld [vmem:[%s1 + $0x208] sm:$0xff]
      %v381 = vld [vmem:[%s1 + $0x210] sm:$0xff]
      %v382 = vld [vmem:[%s1 + $0x218] sm:$0xff]
      %v383 = vld [vmem:[%s1 + $0x220] sm:$0xff]
      %v384 = vld [vmem:[%s1 + $0x228] sm:$0xff]
      %v385 = vld [vmem:[%s1 + $0x230] sm:$0xff]
      %v386 = vld [vmem:[%s1 + $0x238] sm:$0xff]
      %v387 = vld [vmem:[%s1 + $0x240] sm:$0xff]
      %v388 = vld [vmem:[%s1 + $0x248] sm:$0xff]
      %v389 = vld [vmem:[%s1 + $0x250] sm:$0xff]
      %v390 = vld [vmem:[%s1 + $0x258] sm:$0xff]
      %v391 = vld [vmem:[%s1 + $0x260] sm:$0xff]
      %v392 = vld [vmem:[%s1 + $0x268] sm:$0xff]
      %v393 = vld [vmem:[%s1 + $0x270] sm:$0xff]
      %v394 = vld [vmem:[%s1 + $0x278] sm:$0xff]
      %v395 = vld [vmem:[%s1 + $0x280] sm:$0xff]
      %v396 = vld [vmem:[%s1 + $0x288] sm:$0xff]
      %v397 = vld [vmem:[%s1 + $0x290] sm:$0xff]
      %v398 = vld [vmem:[%s1 + $0x298] sm:$0xff]
      %v399 = vld [vmem:[%s1 + $0x2a0] sm:$0xff]
      %v400 = vld [vmem:[%s1 + $0x2a8] sm:$0xff]
      %v401 = vld [vmem:[%s1 + $0x2b0] sm:$0xff]
      %v402 = vld [vmem:[%s1 + $0x2b8] sm:$0xff]
      %v403 = vld [vmem:[%s1 + $0x2c0] sm:$0xff]
      %v404 = vld [vmem:[%s1 + $0x2c8] sm:$0xff]
      %v405 = vld [vmem:[%s1 + $0x2d0] sm:$0xff]
      %v406 = vld [vmem:[%s1 + $0x2d8] sm:$0xff]
      %v407 = vld [vmem:[%s1 + $0x2e0] sm:$0xff]
      %v408 = vld [vmem:[%s1 + $0x2e8] sm:$0xff]
      %v409 = vld [vmem:[%s1 + $0x2f0] sm:$0xff]
      %v410 = vld [vmem:[%s1 + $0x2f8] sm:$0xff]
      %v411 = vld [vmem:[%s1 + $0x300] sm:$0xff]
      %v412 = vld [vmem:[%s1 + $0x308] sm:$0xff]
      %v413 = vld [vmem:[%s1 + $0x310] sm:$0xff]
      %v414 = vld [vmem:[%s1 + $0x318] sm:$0xff]
      %v415 = vld [vmem:[%s1 + $0x320] sm:$0xff]
      %v416 = vld [vmem:[%s1 + $0x328] sm:$0xff]
      %v417 = vld [vmem:[%s1 + $0x330] sm:$0xff]
      %v418 = vld [vmem:[%s1 + $0x338] sm:$0xff]
      %v419 = vld [vmem:[%s1 + $0x340] sm:$0xff]
      %v420 = vld [vmem:[%s1 + $0x348] sm:$0xff]
      %v421 = vld [vmem:[%s1 + $0x350] sm:$0xff]
      %v422 = vld [vmem:[%s1 + $0x358] sm:$0xff]
      %v423 = vld [vmem:[%s1 + $0x360] sm:$0xff]
      %v424 = vld [vmem:[%s1 + $0x368] sm:$0xff]
      %v425 = vld [vmem:[%s1 + $0x370] sm:$0xff]
      %v426 = vld [vmem:[%s1 + $0x378] sm:$0xff]
      %v427 = vld [vmem:[%s1 + $0x380] sm:$0xff]
      %v428 = vld [vmem:[%s1 + $0x388] sm:$0xff]
      %v429 = vld [vmem:[%s1 + $0x390] sm:$0xff]
      %v430 = vld [vmem:[%s1 + $0x398] sm:$0xff]
      %v431 = vld [vmem:[%s1 + $0x3a0] sm:$0xff]
      %v432 = vld [vmem:[%s1 + $0x3a8] sm:$0xff]
      %v433 = vld [vmem:[%s1 + $0x3b0] sm:$0xff]
      %v434 = vld [vmem:[%s1 + $0x3b8] sm:$0xff]
      %v435 = vld [vmem:[%s1 + $0x3c0] sm:$0xff]
      %v436 = vld [vmem:[%s1 + $0x3c8] sm:$0xff]
      %v437 = vld [vmem:[%s1 + $0x3d0] sm:$0xff]
      %v438 = vld [vmem:[%s1 + $0x3d8] sm:$0xff]
      %v439 = vld [vmem:[%s1 + $0x3e0] sm:$0xff]
      %v440 = vld [vmem:[%s1 + $0x3e8] sm:$0xff]
      %v441 = vld [vmem:[%s1 + $0x3f0] sm:$0xff]
      %v442 = vld [vmem:[%s1 + $0x3f8] sm:$0xff]
      %v443 = vld [vmem:[%s1 + $0x400] sm:$0xff]
      %v444 = vld [vmem:[%s1 + $0x408] sm:$0xff]
      %v445 = vld [vmem:[%s1 + $0x410] sm:$0xff]
      %v446 = vld [vmem:[%s1 + $0x418] sm:$0xff]
      %v447 = vld [vmem:[%s1 + $0x420] sm:$0xff]
      %v448 = vld [vmem:[%s1 + $0x428] sm:$0xff]
      %v449 = vld [vmem:[%s1 + $0x430] sm:$0xff]
      %v450 = vld [vmem:[%s1 + $0x438] sm:$0xff]
      %v451 = vld [vmem:[%s1 + $0x440] sm:$0xff]
      %v452 = vld [vmem:[%s1 + $0x448] sm:$0xff]
      %v453 = vld [vmem:[%s1 + $0x450] sm:$0xff]
      %v454 = vld [vmem:[%s1 + $0x458] sm:$0xff]
      %v455 = vld [vmem:[%s1 + $0x460] sm:$0xff]
      %v456 = vld [vmem:[%s1 + $0x468] sm:$0xff]
      %v457 = vld [vmem:[%s1 + $0x470] sm:$0xff]
      %v458 = vld [vmem:[%s1 + $0x478] sm:$0xff]
      %v459 = vld [vmem:[%s1 + $0x480] sm:$0xff]
      %v460 = vld [vmem:[%s1 + $0x488] sm:$0xff]
      %v461 = vld [vmem:[%s1 + $0x490] sm:$0xff]
      %v462 = vld [vmem:[%s1 + $0x498] sm:$0xff]
      %v463 = vld [vmem:[%s1 + $0x4a0] sm:$0xff]
      %v464 = vld [vmem:[%s1 + $0x4a8] sm:$0xff]
      %v465 = vld [vmem:[%s1 + $0x4b0] sm:$0xff]
      %v466 = vld [vmem:[%s1 + $0x4b8] sm:$0xff]
      %v467 = vld [vmem:[%s1 + $0x4c0] sm:$0xff]
      %v468 = vld [vmem:[%s1 + $0x4c8] sm:$0xff]
      %v469 = vld [vmem:[%s1 + $0x4d0] sm:$0xff]
      %v470 = vld [vmem:[%s1 + $0x4d8] sm:$0xff]
      %v471 = vld [vmem:[%s1 + $0x4e0] sm:$0xff]
      %v472 = vld [vmem:[%s1 + $0x4e8] sm:$0xff]
      %v473 = vld [vmem:[%s1 + $0x4f0] sm:$0xff]
      %v474 = vld [vmem:[%s1 + $0x4f8] sm:$0xff]
      %v475 = vld [vmem:[%s1 + $0x500] sm:$0xff]
      %v476 = vld [vmem:[%s1 + $0x508] sm:$0xff]
      %v477 = vld [vmem:[%s1 + $0x510] sm:$0xff]
      %v478 = vld [vmem:[%s1 + $0x518] sm:$0xff]
      %v479 = vld [vmem:[%s1 + $0x520] sm:$0xff]
      %v480 = vld [vmem:[%s1 + $0x528] sm:$0xff]
      %v481 = vld [vmem:[%s1 + $0x530] sm:$0xff]
      %v482 = vld [vmem:[%s1 + $0x538] sm:$0xff]
      %v483 = vld [vmem:[%s1 + $0x540] sm:$0xff]
      %v484 = vld [vmem:[%s1 + $0x548] sm:$0xff]
      %v485 = vld [vmem:[%s1 + $0x550] sm:$0xff]
      %v486 = vld [vmem:[%s1 + $0x558] sm:$0xff]
      %v487 = vld [vmem:[%s1 + $0x560] sm:$0xff]
      %v488 = vld [vmem:[%s1 + $0x568] sm:$0xff]
      %v489 = vld [vmem:[%s1 + $0x570] sm:$0xff]
      %v490 = vld [vmem:[%s1 + $0x578] sm:$0xff]
      %v491 = vld [vmem:[%s1 + $0x580] sm:$0xff]
      %v492 = vld [vmem:[%s1 + $0x588] sm:$0xff]
      %v493 = vld [vmem:[%s1 + $0x590] sm:$0xff]
      %v494 = vld [vmem:[%s1 + $0x598] sm:$0xff]
      %v495 = vld [vmem:[%s1 + $0x5a0] sm:$0xff]
      %v496 = vld [vmem:[%s1 + $0x5a8] sm:$0xff]
      %v497 = vld [vmem:[%s1 + $0x5b0] sm:$0xff]
      %v498 = vld [vmem:[%s1 + $0x5b8] sm:$0xff]
      %v499 = vld [vmem:[%s1 + $0x5c0] sm:$0xff]
      %v500 = vld [vmem:[%s1 + $0x5c8] sm:$0xff]
      %v501 = vld [vmem:[%s1 + $0x5d0] sm:$0xff]
      %v502 = vld [vmem:[%s1 + $0x5d8] sm:$0xff]
      %v503 = vld [vmem:[%s1 + $0x5e0] sm:$0xff]
      %v504 = vld [vmem:[%s1 + $0x5e8] sm:$0xff]
      %v505 = vld [vmem:[%s1 + $0x5f0] sm:$0xff]
      %v506 = vld [vmem:[%s1 + $0x5f8] sm:$0xff]
      %v507 = vld [vmem:[%s1 + $0x600] sm:$0xff]
      %v508 = vld [vmem:[%s1 + $0x608] sm:$0xff]
      %v509 = vld [vmem:[%s1 + $0x610] sm:$0xff]
      %v510 = vld [vmem:[%s1 + $0x618] sm:$0xff]
      %v511 = vld [vmem:[%s1 + $0x620] sm:$0xff]
      %v512 = vld [vmem:[%s1 + $0x628] sm:$0xff]
      %v513 = vld [vmem:[%s1 + $0x630] sm:$0xff]
      %v514 = vld [vmem:[%s1 + $0x638] sm:$0xff]
      %v515 = vld [vmem:[%s1 + $0x640] sm:$0xff]
      %v516 = vld [vmem:[%s1 + $0x648] sm:$0xff]
      %v517 = vld [vmem:[%s1 + $0x650] sm:$0xff]
      %v518 = vld [vmem:[%s1 + $0x658] sm:$0xff]
      %v519 = vld [vmem:[%s1 + $0x660] sm:$0xff]
      %v520 = vld [vmem:[%s1 + $0x668] sm:$0xff]
      %v521 = vld [vmem:[%s1 + $0x670] sm:$0xff]
      %v522 = vld [vmem:[%s1 + $0x678] sm:$0xff]
      %v523 = vld [vmem:[%s1 + $0x680] sm:$0xff]
      %v524 = vld [vmem:[%s1 + $0x688] sm:$0xff]
      %v525 = vld [vmem:[%s1 + $0x690] sm:$0xff]
      %v526 = vld [vmem:[%s1 + $0x698] sm:$0xff]
      %v527 = vld [vmem:[%s1 + $0x6a0] sm:$0xff]
      %v528 = vld [vmem:[%s1 + $0x6a8] sm:$0xff]
      %v529 = vld [vmem:[%s1 + $0x6b0] sm:$0xff]
      %v530 = vld [vmem:[%s1 + $0x6b8] sm:$0xff]
      %v531 = vld [vmem:[%s1 + $0x6c0] sm:$0xff]
      %v532 = vld [vmem:[%s1 + $0x6c8] sm:$0xff]
      %v533 = vld [vmem:[%s1 + $0x6d0] sm:$0xff]
      %v534 = vld [vmem:[%s1 + $0x6d8] sm:$0xff]
      %v535 = vld [vmem:[%s1 + $0x6e0] sm:$0xff]
      %v536 = vld [vmem:[%s1 + $0x6e8] sm:$0xff]
      %v537 = vld [vmem:[%s1 + $0x6f0] sm:$0xff]
      %v538 = vld [vmem:[%s1 + $0x6f8] sm:$0xff]
      %v539 = vld [vmem:[%s1 + $0x700] sm:$0xff]
      %v540 = vld [vmem:[%s1 + $0x708] sm:$0xff]
      %v541 = vld [vmem:[%s1 + $0x710] sm:$0xff]
      %v542 = vld [vmem:[%s1 + $0x718] sm:$0xff]
      %v543 = vld [vmem:[%s1 + $0x720] sm:$0xff]
      %v544 = vld [vmem:[%s1 + $0x728] sm:$0xff]
      %v545 = vld [vmem:[%s1 + $0x730] sm:$0xff]
      %v546 = vld [vmem:[%s1 + $0x738] sm:$0xff]
      %v547 = vld [vmem:[%s1 + $0x740] sm:$0xff]
      %v548 = vld [vmem:[%s1 + $0x748] sm:$0xff]
      %v549 = vld [vmem:[%s1 + $0x750] sm:$0xff]
      %v550 = vld [vmem:[%s1 + $0x758] sm:$0xff]
      %v551 = vld [vmem:[%s1 + $0x760] sm:$0xff]
      %v552 = vld [vmem:[%s1 + $0x768] sm:$0xff]
      %v553 = vld [vmem:[%s1 + $0x770] sm:$0xff]
      %v554 = vld [vmem:[%s1 + $0x778] sm:$0xff]
      %v555 = vld [vmem:[%s1 + $0x780] sm:$0xff]
      %v556 = vld [vmem:[%s1 + $0x788] sm:$0xff]
      %v557 = vld [vmem:[%s1 + $0x790] sm:$0xff]
      %v558 = vld [vmem:[%s1 + $0x798] sm:$0xff]
      %v559 = vld [vmem:[%s1 + $0x7a0] sm:$0xff]
      %v560 = vld [vmem:[%s1 + $0x7a8] sm:$0xff]
      %v561 = vld [vmem:[%s1 + $0x7b0] sm:$0xff]
      %v562 = vld [vmem:[%s1 + $0x7b8] sm:$0xff]
      %v563 = vld [vmem:[%s1 + $0x7c0] sm:$0xff]
      %v564 = vld [vmem:[%s1 + $0x7c8] sm:$0xff]
      %v565 = vld [vmem:[%s1 + $0x7d0] sm:$0xff]
      %v566 = vld [vmem:[%s1 + $0x7d8] sm:$0xff]
      %v567 = vld [vmem:[%s1 + $0x7e0] sm:$0xff]
      %v568 = vld [vmem:[%s1 + $0x7e8] sm:$0xff]
      %v569 = vld [vmem:[%s1 + $0x7f0] sm:$0xff]
      %v570 = vld [vmem:[%s1 + $0x7f8] sm:$0xff]
      %v573 = vunpack.c.l.b16 %v313
      %v574 = vunpack.c.h.b16 %v313
      %v575 = vunpack.c.l.b16 %v314
      %v576 = vunpack.c.h.b16 %v314
      %v577 = vpack.c.b16 %v573, %v573
      %v578 = vpack.c.b16 %v574, %v574
      %v579 = vpack.c.b16 %v575, %v575
      %v580 = vpack.c.b16 %v576, %v576
      %v841 = vunpack.c.l.b16 %v315
      %v842 = vunpack.c.h.b16 %v315
      %v843 = vunpack.c.l.b16 %v316
      %v844 = vunpack.c.h.b16 %v316
      %v845 = vunpack.c.l.b16 %v317
      %v846 = vunpack.c.h.b16 %v317
      %v847 = vunpack.c.l.b16 %v318
      %v848 = vunpack.c.h.b16 %v318
      %v849 = vunpack.c.l.b16 %v319
      %v850 = vunpack.c.h.b16 %v319
      %v851 = vunpack.c.l.b16 %v320
      %v852 = vunpack.c.h.b16 %v320
      %v853 = vunpack.c.l.b16 %v321
      %v854 = vunpack.c.h.b16 %v321
      %v855 = vunpack.c.l.b16 %v322
      %v856 = vunpack.c.h.b16 %v322
      %v857 = vunpack.c.l.b16 %v323
      %v858 = vunpack.c.h.b16 %v323
      %v859 = vunpack.c.l.b16 %v324
      %v860 = vunpack.c.h.b16 %v324
      %v861 = vunpack.c.l.b16 %v325
      %v862 = vunpack.c.h.b16 %v325
      %v863 = vunpack.c.l.b16 %v326
      %v864 = vunpack.c.h.b16 %v326
      %v865 = vunpack.c.l.b16 %v327
      %v866 = vunpack.c.h.b16 %v327
      %v867 = vunpack.c.l.b16 %v328
      %v868 = vunpack.c.h.b16 %v328
      %v869 = vunpack.c.l.b16 %v329
      %v870 = vunpack.c.h.b16 %v329
      %v871 = vunpack.c.l.b16 %v330
      %v872 = vunpack.c.h.b16 %v330
      %v873 = vunpack.c.l.b16 %v331
      %v874 = vunpack.c.h.b16 %v331
      %v875 = vunpack.c.l.b16 %v332
      %v876 = vunpack.c.h.b16 %v332
      %v877 = vunpack.c.l.b16 %v333
      %v878 = vunpack.c.h.b16 %v333
      %v879 = vunpack.c.l.b16 %v334
      %v880 = vunpack.c.h.b16 %v334
      %v881 = vunpack.c.l.b16 %v335
      %v882 = vunpack.c.h.b16 %v335
      %v883 = vunpack.c.l.b16 %v336
      %v884 = vunpack.c.h.b16 %v336
      %v885 = vunpack.c.l.b16 %v337
      %v886 = vunpack.c.h.b16 %v337
      %v887 = vunpack.c.l.b16 %v338
      %v888 = vunpack.c.h.b16 %v338
      %v889 = vunpack.c.l.b16 %v339
      %v890 = vunpack.c.h.b16 %v339
      %v891 = vunpack.c.l.b16 %v340
      %v892 = vunpack.c.h.b16 %v340
      %v893 = vunpack.c.l.b16 %v341
      %v894 = vunpack.c.h.b16 %v341
      %v895 = vunpack.c.l.b16 %v342
      %v896 = vunpack.c.h.b16 %v342
      %v897 = vunpack.c.l.b16 %v343
      %v898 = vunpack.c.h.b16 %v343
      %v899 = vunpack.c.l.b16 %v344
      %v900 = vunpack.c.h.b16 %v344
      %v901 = vunpack.c.l.b16 %v345
      %v902 = vunpack.c.h.b16 %v345
      %v903 = vunpack.c.l.b16 %v346
      %v904 = vunpack.c.h.b16 %v346
      %v905 = vunpack.c.l.b16 %v347
      %v906 = vunpack.c.h.b16 %v347
      %v907 = vunpack.c.l.b16 %v348
      %v908 = vunpack.c.h.b16 %v348
      %v909 = vunpack.c.l.b16 %v349
      %v910 = vunpack.c.h.b16 %v349
      %v911 = vunpack.c.l.b16 %v350
      %v912 = vunpack.c.h.b16 %v350
      %v913 = vunpack.c.l.b16 %v351
      %v914 = vunpack.c.h.b16 %v351
      %v915 = vunpack.c.l.b16 %v352
      %v916 = vunpack.c.h.b16 %v352
      %v917 = vunpack.c.l.b16 %v353
      %v918 = vunpack.c.h.b16 %v353
      %v919 = vunpack.c.l.b16 %v354
      %v920 = vunpack.c.h.b16 %v354
      %v921 = vunpack.c.l.b16 %v355
      %v922 = vunpack.c.h.b16 %v355
      %v923 = vunpack.c.l.b16 %v356
      %v924 = vunpack.c.h.b16 %v356
      %v925 = vunpack.c.l.b16 %v357
      %v926 = vunpack.c.h.b16 %v357
      %v927 = vunpack.c.l.b16 %v358
      %v928 = vunpack.c.h.b16 %v358
      %v929 = vunpack.c.l.b16 %v359
      %v930 = vunpack.c.h.b16 %v359
      %v931 = vunpack.c.l.b16 %v360
      %v932 = vunpack.c.h.b16 %v360
      %v933 = vunpack.c.l.b16 %v361
      %v934 = vunpack.c.h.b16 %v361
      %v935 = vunpack.c.l.b16 %v362
      %v936 = vunpack.c.h.b16 %v362
      %v937 = vunpack.c.l.b16 %v363
      %v938 = vunpack.c.h.b16 %v363
      %v939 = vunpack.c.l.b16 %v364
      %v940 = vunpack.c.h.b16 %v364
      %v941 = vunpack.c.l.b16 %v365
      %v942 = vunpack.c.h.b16 %v365
      %v943 = vunpack.c.l.b16 %v366
      %v944 = vunpack.c.h.b16 %v366
      %v945 = vunpack.c.l.b16 %v367
      %v946 = vunpack.c.h.b16 %v367
      %v947 = vunpack.c.l.b16 %v368
      %v948 = vunpack.c.h.b16 %v368
      %v949 = vunpack.c.l.b16 %v369
      %v950 = vunpack.c.h.b16 %v369
      %v951 = vunpack.c.l.b16 %v370
      %v952 = vunpack.c.h.b16 %v370
      %v953 = vunpack.c.l.b16 %v371
      %v954 = vunpack.c.h.b16 %v371
      %v955 = vunpack.c.l.b16 %v372
      %v956 = vunpack.c.h.b16 %v372
      %v957 = vunpack.c.l.b16 %v373
      %v958 = vunpack.c.h.b16 %v373
      %v959 = vunpack.c.l.b16 %v374
      %v960 = vunpack.c.h.b16 %v374
      %v961 = vunpack.c.l.b16 %v375
      %v962 = vunpack.c.h.b16 %v375
      %v963 = vunpack.c.l.b16 %v376
      %v964 = vunpack.c.h.b16 %v376
      %v965 = vunpack.c.l.b16 %v377
      %v966 = vunpack.c.h.b16 %v377
      %v967 = vunpack.c.l.b16 %v378
      %v968 = vunpack.c.h.b16 %v378
      %v969 = vunpack.c.l.b16 %v379
      %v970 = vunpack.c.h.b16 %v379
      %v971 = vunpack.c.l.b16 %v380
      %v972 = vunpack.c.h.b16 %v380
      %v973 = vunpack.c.l.b16 %v381
      %v974 = vunpack.c.h.b16 %v381
      %v975 = vunpack.c.l.b16 %v382
      %v976 = vunpack.c.h.b16 %v382
      %v977 = vunpack.c.l.b16 %v383
      %v978 = vunpack.c.h.b16 %v383
      %v979 = vunpack.c.l.b16 %v384
      %v980 = vunpack.c.h.b16 %v384
      %v981 = vunpack.c.l.b16 %v385
      %v982 = vunpack.c.h.b16 %v385
      %v983 = vunpack.c.l.b16 %v386
      %v984 = vunpack.c.h.b16 %v386
      %v985 = vunpack.c.l.b16 %v387
      %v986 = vunpack.c.h.b16 %v387
      %v987 = vunpack.c.l.b16 %v388
      %v988 = vunpack.c.h.b16 %v388
      %v989 = vunpack.c.l.b16 %v389
      %v990 = vunpack.c.h.b16 %v389
      %v991 = vunpack.c.l.b16 %v390
      %v992 = vunpack.c.h.b16 %v390
      %v993 = vunpack.c.l.b16 %v391
      %v994 = vunpack.c.h.b16 %v391
      %v995 = vunpack.c.l.b16 %v392
      %v996 = vunpack.c.h.b16 %v392
      %v997 = vunpack.c.l.b16 %v393
      %v998 = vunpack.c.h.b16 %v393
      %v999 = vunpack.c.l.b16 %v394
      %v1000 = vunpack.c.h.b16 %v394
      %v1001 = vunpack.c.l.b16 %v395
      %v1002 = vunpack.c.h.b16 %v395
      %v1003 = vunpack.c.l.b16 %v396
      %v1004 = vunpack.c.h.b16 %v396
      %v1005 = vunpack.c.l.b16 %v397
      %v1006 = vunpack.c.h.b16 %v397
      %v1007 = vunpack.c.l.b16 %v398
      %v1008 = vunpack.c.h.b16 %v398
      %v1009 = vunpack.c.l.b16 %v399
      %v1010 = vunpack.c.h.b16 %v399
      %v1011 = vunpack.c.l.b16 %v400
      %v1012 = vunpack.c.h.b16 %v400
      %v1013 = vunpack.c.l.b16 %v401
      %v1014 = vunpack.c.h.b16 %v401
      %v1015 = vunpack.c.l.b16 %v402
      %v1016 = vunpack.c.h.b16 %v402
      %v1017 = vunpack.c.l.b16 %v403
      %v1018 = vunpack.c.h.b16 %v403
      %v1019 = vunpack.c.l.b16 %v404
      %v1020 = vunpack.c.h.b16 %v404
      %v1021 = vunpack.c.l.b16 %v405
      %v1022 = vunpack.c.h.b16 %v405
      %v1023 = vunpack.c.l.b16 %v406
      %v1024 = vunpack.c.h.b16 %v406
      %v1025 = vunpack.c.l.b16 %v407
      %v1026 = vunpack.c.h.b16 %v407
      %v1027 = vunpack.c.l.b16 %v408
      %v1028 = vunpack.c.h.b16 %v408
      %v1029 = vunpack.c.l.b16 %v409
      %v1030 = vunpack.c.h.b16 %v409
      %v1031 = vunpack.c.l.b16 %v410
      %v1032 = vunpack.c.h.b16 %v410
      %v1033 = vunpack.c.l.b16 %v411
      %v1034 = vunpack.c.h.b16 %v411
      %v1035 = vunpack.c.l.b16 %v412
      %v1036 = vunpack.c.h.b16 %v412
      %v1037 = vunpack.c.l.b16 %v413
      %v1038 = vunpack.c.h.b16 %v413
      %v1039 = vunpack.c.l.b16 %v414
      %v1040 = vunpack.c.h.b16 %v414
      %v1041 = vunpack.c.l.b16 %v415
      %v1042 = vunpack.c.h.b16 %v415
      %v1043 = vunpack.c.l.b16 %v416
      %v1044 = vunpack.c.h.b16 %v416
      %v1045 = vunpack.c.l.b16 %v417
      %v1046 = vunpack.c.h.b16 %v417
      %v1047 = vunpack.c.l.b16 %v418
      %v1048 = vunpack.c.h.b16 %v418
      %v1049 = vunpack.c.l.b16 %v419
      %v1050 = vunpack.c.h.b16 %v419
      %v1051 = vunpack.c.l.b16 %v420
      %v1052 = vunpack.c.h.b16 %v420
      %v1053 = vunpack.c.l.b16 %v421
      %v1054 = vunpack.c.h.b16 %v421
      %v1055 = vunpack.c.l.b16 %v422
      %v1056 = vunpack.c.h.b16 %v422
      %v1057 = vunpack.c.l.b16 %v423
      %v1058 = vunpack.c.h.b16 %v423
      %v1059 = vunpack.c.l.b16 %v424
      %v1060 = vunpack.c.h.b16 %v424
      %v1061 = vunpack.c.l.b16 %v425
      %v1062 = vunpack.c.h.b16 %v425
      %v1063 = vunpack.c.l.b16 %v426
      %v1064 = vunpack.c.h.b16 %v426
      %v1065 = vunpack.c.l.b16 %v427
      %v1066 = vunpack.c.h.b16 %v427
      %v1067 = vunpack.c.l.b16 %v428
      %v1068 = vunpack.c.h.b16 %v428
      %v1069 = vunpack.c.l.b16 %v429
      %v1070 = vunpack.c.h.b16 %v429
      %v1071 = vunpack.c.l.b16 %v430
      %v1072 = vunpack.c.h.b16 %v430
      %v1073 = vunpack.c.l.b16 %v431
      %v1074 = vunpack.c.h.b16 %v431
      %v1075 = vunpack.c.l.b16 %v432
      %v1076 = vunpack.c.h.b16 %v432
      %v1077 = vunpack.c.l.b16 %v433
      %v1078 = vunpack.c.h.b16 %v433
      %v1079 = vunpack.c.l.b16 %v434
      %v1080 = vunpack.c.h.b16 %v434
      %v1081 = vunpack.c.l.b16 %v435
      %v1082 = vunpack.c.h.b16 %v435
      %v1083 = vunpack.c.l.b16 %v436
      %v1084 = vunpack.c.h.b16 %v436
      %v1085 = vunpack.c.l.b16 %v437
      %v1086 = vunpack.c.h.b16 %v437
      %v1087 = vunpack.c.l.b16 %v438
      %v1088 = vunpack.c.h.b16 %v438
      %v1089 = vunpack.c.l.b16 %v439
      %v1090 = vunpack.c.h.b16 %v439
      %v1091 = vunpack.c.l.b16 %v440
      %v1092 = vunpack.c.h.b16 %v440
      %v1093 = vunpack.c.l.b16 %v441
      %v1094 = vunpack.c.h.b16 %v441
      %v1095 = vunpack.c.l.b16 %v442
      %v1096 = vunpack.c.h.b16 %v442
      %v1097 = vunpack.c.l.b16 %v443
      %v1098 = vunpack.c.h.b16 %v443
      %v1099 = vunpack.c.l.b16 %v444
      %v1100 = vunpack.c.h.b16 %v444
      %v1101 = vunpack.c.l.b16 %v445
      %v1102 = vunpack.c.h.b16 %v445
      %v1103 = vunpack.c.l.b16 %v446
      %v1104 = vunpack.c.h.b16 %v446
      %v1105 = vunpack.c.l.b16 %v447
      %v1106 = vunpack.c.h.b16 %v447
      %v1107 = vunpack.c.l.b16 %v448
      %v1108 = vunpack.c.h.b16 %v448
      %v1109 = vunpack.c.l.b16 %v449
      %v1110 = vunpack.c.h.b16 %v449
      %v1111 = vunpack.c.l.b16 %v450
      %v1112 = vunpack.c.h.b16 %v450
      %v1113 = vunpack.c.l.b16 %v451
      %v1114 = vunpack.c.h.b16 %v451
      %v1115 = vunpack.c.l.b16 %v452
      %v1116 = vunpack.c.h.b16 %v452
      %v1117 = vunpack.c.l.b16 %v453
      %v1118 = vunpack.c.h.b16 %v453
      %v1119 = vunpack.c.l.b16 %v454
      %v1120 = vunpack.c.h.b16 %v454
      %v1121 = vunpack.c.l.b16 %v455
      %v1122 = vunpack.c.h.b16 %v455
      %v1123 = vunpack.c.l.b16 %v456
      %v1124 = vunpack.c.h.b16 %v456
      %v1125 = vunpack.c.l.b16 %v457
      %v1126 = vunpack.c.h.b16 %v457
      %v1127 = vunpack.c.l.b16 %v458
      %v1128 = vunpack.c.h.b16 %v458
      %v1129 = vunpack.c.l.b16 %v459
      %v1130 = vunpack.c.h.b16 %v459
      %v1131 = vunpack.c.l.b16 %v460
      %v1132 = vunpack.c.h.b16 %v460
      %v1133 = vunpack.c.l.b16 %v461
      %v1134 = vunpack.c.h.b16 %v461
      %v1135 = vunpack.c.l.b16 %v462
      %v1136 = vunpack.c.h.b16 %v462
      %v1137 = vunpack.c.l.b16 %v463
      %v1138 = vunpack.c.h.b16 %v463
      %v1139 = vunpack.c.l.b16 %v464
      %v1140 = vunpack.c.h.b16 %v464
      %v1141 = vunpack.c.l.b16 %v465
      %v1142 = vunpack.c.h.b16 %v465
      %v1143 = vunpack.c.l.b16 %v466
      %v1144 = vunpack.c.h.b16 %v466
      %v1145 = vunpack.c.l.b16 %v467
      %v1146 = vunpack.c.h.b16 %v467
      %v1147 = vunpack.c.l.b16 %v468
      %v1148 = vunpack.c.h.b16 %v468
      %v1149 = vunpack.c.l.b16 %v469
      %v1150 = vunpack.c.h.b16 %v469
      %v1151 = vunpack.c.l.b16 %v470
      %v1152 = vunpack.c.h.b16 %v470
      %v1153 = vunpack.c.l.b16 %v471
      %v1154 = vunpack.c.h.b16 %v471
      %v1155 = vunpack.c.l.b16 %v472
      %v1156 = vunpack.c.h.b16 %v472
      %v1157 = vunpack.c.l.b16 %v473
      %v1158 = vunpack.c.h.b16 %v473
      %v1159 = vunpack.c.l.b16 %v474
      %v1160 = vunpack.c.h.b16 %v474
      %v1161 = vunpack.c.l.b16 %v475
      %v1162 = vunpack.c.h.b16 %v475
      %v1163 = vunpack.c.l.b16 %v476
      %v1164 = vunpack.c.h.b16 %v476
      %v1165 = vunpack.c.l.b16 %v477
      %v1166 = vunpack.c.h.b16 %v477
      %v1167 = vunpack.c.l.b16 %v478
      %v1168 = vunpack.c.h.b16 %v478
      %v1169 = vunpack.c.l.b16 %v479
      %v1170 = vunpack.c.h.b16 %v479
      %v1171 = vunpack.c.l.b16 %v480
      %v1172 = vunpack.c.h.b16 %v480
      %v1173 = vunpack.c.l.b16 %v481
      %v1174 = vunpack.c.h.b16 %v481
      %v1175 = vunpack.c.l.b16 %v482
      %v1176 = vunpack.c.h.b16 %v482
      %v1177 = vunpack.c.l.b16 %v483
      %v1178 = vunpack.c.h.b16 %v483
      %v1179 = vunpack.c.l.b16 %v484
      %v1180 = vunpack.c.h.b16 %v484
      %v1181 = vunpack.c.l.b16 %v485
      %v1182 = vunpack.c.h.b16 %v485
      %v1183 = vunpack.c.l.b16 %v486
      %v1184 = vunpack.c.h.b16 %v486
      %v1185 = vunpack.c.l.b16 %v487
      %v1186 = vunpack.c.h.b16 %v487
      %v1187 = vunpack.c.l.b16 %v488
      %v1188 = vunpack.c.h.b16 %v488
      %v1189 = vunpack.c.l.b16 %v489
      %v1190 = vunpack.c.h.b16 %v489
      %v1191 = vunpack.c.l.b16 %v490
      %v1192 = vunpack.c.h.b16 %v490
      %v1193 = vunpack.c.l.b16 %v491
      %v1194 = vunpack.c.h.b16 %v491
      %v1195 = vunpack.c.l.b16 %v492
      %v1196 = vunpack.c.h.b16 %v492
      %v1197 = vunpack.c.l.b16 %v493
      %v1198 = vunpack.c.h.b16 %v493
      %v1199 = vunpack.c.l.b16 %v494
      %v1200 = vunpack.c.h.b16 %v494
      %v1201 = vunpack.c.l.b16 %v495
      %v1202 = vunpack.c.h.b16 %v495
      %v1203 = vunpack.c.l.b16 %v496
      %v1204 = vunpack.c.h.b16 %v496
      %v1205 = vunpack.c.l.b16 %v497
      %v1206 = vunpack.c.h.b16 %v497
      %v1207 = vunpack.c.l.b16 %v498
      %v1208 = vunpack.c.h.b16 %v498
      %v1209 = vunpack.c.l.b16 %v499
      %v1210 = vunpack.c.h.b16 %v499
      %v1211 = vunpack.c.l.b16 %v500
      %v1212 = vunpack.c.h.b16 %v500
      %v1213 = vunpack.c.l.b16 %v501
      %v1214 = vunpack.c.h.b16 %v501
      %v1215 = vunpack.c.l.b16 %v502
      %v1216 = vunpack.c.h.b16 %v502
      %v1217 = vunpack.c.l.b16 %v503
      %v1218 = vunpack.c.h.b16 %v503
      %v1219 = vunpack.c.l.b16 %v504
      %v1220 = vunpack.c.h.b16 %v504
      %v1221 = vunpack.c.l.b16 %v505
      %v1222 = vunpack.c.h.b16 %v505
      %v1223 = vunpack.c.l.b16 %v506
      %v1224 = vunpack.c.h.b16 %v506
      %v1225 = vunpack.c.l.b16 %v507
      %v1226 = vunpack.c.h.b16 %v507
      %v1227 = vunpack.c.l.b16 %v508
      %v1228 = vunpack.c.h.b16 %v508
      %v1229 = vunpack.c.l.b16 %v509
      %v1230 = vunpack.c.h.b16 %v509
      %v1231 = vunpack.c.l.b16 %v510
      %v1232 = vunpack.c.h.b16 %v510
      %v1233 = vunpack.c.l.b16 %v511
      %v1234 = vunpack.c.h.b16 %v511
      %v1235 = vunpack.c.l.b16 %v512
      %v1236 = vunpack.c.h.b16 %v512
      %v1237 = vunpack.c.l.b16 %v513
      %v1238 = vunpack.c.h.b16 %v513
      %v1239 = vunpack.c.l.b16 %v514
      %v1240 = vunpack.c.h.b16 %v514
      %v1241 = vunpack.c.l.b16 %v515
      %v1242 = vunpack.c.h.b16 %v515
      %v1243 = vunpack.c.l.b16 %v516
      %v1244 = vunpack.c.h.b16 %v516
      %v1245 = vunpack.c.l.b16 %v517
      %v1246 = vunpack.c.h.b16 %v517
      %v1247 = vunpack.c.l.b16 %v518
      %v1248 = vunpack.c.h.b16 %v518
      %v1249 = vunpack.c.l.b16 %v519
      %v1250 = vunpack.c.h.b16 %v519
      %v1251 = vunpack.c.l.b16 %v520
      %v1252 = vunpack.c.h.b16 %v520
      %v1253 = vunpack.c.l.b16 %v521
      %v1254 = vunpack.c.h.b16 %v521
      %v1255 = vunpack.c.l.b16 %v522
      %v1256 = vunpack.c.h.b16 %v522
      %v1257 = vunpack.c.l.b16 %v523
      %v1258 = vunpack.c.h.b16 %v523
      %v1259 = vunpack.c.l.b16 %v524
      %v1260 = vunpack.c.h.b16 %v524
      %v1261 = vunpack.c.l.b16 %v525
      %v1262 = vunpack.c.h.b16 %v525
      %v1263 = vunpack.c.l.b16 %v526
      %v1264 = vunpack.c.h.b16 %v526
      %v1265 = vunpack.c.l.b16 %v527
      %v1266 = vunpack.c.h.b16 %v527
      %v1267 = vunpack.c.l.b16 %v528
      %v1268 = vunpack.c.h.b16 %v528
      %v1269 = vunpack.c.l.b16 %v529
      %v1270 = vunpack.c.h.b16 %v529
      %v1271 = vunpack.c.l.b16 %v530
      %v1272 = vunpack.c.h.b16 %v530
      %v1273 = vunpack.c.l.b16 %v531
      %v1274 = vunpack.c.h.b16 %v531
      %v1275 = vunpack.c.l.b16 %v532
      %v1276 = vunpack.c.h.b16 %v532
      %v1277 = vunpack.c.l.b16 %v533
      %v1278 = vunpack.c.h.b16 %v533
      %v1279 = vunpack.c.l.b16 %v534
      %v1280 = vunpack.c.h.b16 %v534
      %v1281 = vunpack.c.l.b16 %v535
      %v1282 = vunpack.c.h.b16 %v535
      %v1283 = vunpack.c.l.b16 %v536
      %v1284 = vunpack.c.h.b16 %v536
      %v1285 = vunpack.c.l.b16 %v537
      %v1286 = vunpack.c.h.b16 %v537
      %v1287 = vunpack.c.l.b16 %v538
      %v1288 = vunpack.c.h.b16 %v538
      %v1289 = vunpack.c.l.b16 %v539
      %v1290 = vunpack.c.h.b16 %v539
      %v1291 = vunpack.c.l.b16 %v540
      %v1292 = vunpack.c.h.b16 %v540
      %v1293 = vunpack.c.l.b16 %v541
      %v1294 = vunpack.c.h.b16 %v541
      %v1295 = vunpack.c.l.b16 %v542
      %v1296 = vunpack.c.h.b16 %v542
      %v1297 = vunpack.c.l.b16 %v543
      %v1298 = vunpack.c.h.b16 %v543
      %v1299 = vunpack.c.l.b16 %v544
      %v1300 = vunpack.c.h.b16 %v544
      %v1301 = vunpack.c.l.b16 %v545
      %v1302 = vunpack.c.h.b16 %v545
      %v1303 = vunpack.c.l.b16 %v546
      %v1304 = vunpack.c.h.b16 %v546
      %v1305 = vunpack.c.l.b16 %v547
      %v1306 = vunpack.c.h.b16 %v547
      %v1307 = vunpack.c.l.b16 %v548
      %v1308 = vunpack.c.h.b16 %v548
      %v1309 = vunpack.c.l.b16 %v549
      %v1310 = vunpack.c.h.b16 %v549
      %v1311 = vunpack.c.l.b16 %v550
      %v1312 = vunpack.c.h.b16 %v550
      %v1313 = vunpack.c.l.b16 %v551
      %v1314 = vunpack.c.h.b16 %v551
      %v1315 = vunpack.c.l.b16 %v552
      %v1316 = vunpack.c.h.b16 %v552
      %v1317 = vunpack.c.l.b16 %v553
      %v1318 = vunpack.c.h.b16 %v553
      %v1319 = vunpack.c.l.b16 %v554
      %v1320 = vunpack.c.h.b16 %v554
      %v1321 = vunpack.c.l.b16 %v555
      %v1322 = vunpack.c.h.b16 %v555
      %v1323 = vunpack.c.l.b16 %v556
      %v1324 = vunpack.c.h.b16 %v556
      %v1325 = vunpack.c.l.b16 %v557
      %v1326 = vunpack.c.h.b16 %v557
      %v1327 = vunpack.c.l.b16 %v558
      %v1328 = vunpack.c.h.b16 %v558
      %v1329 = vunpack.c.l.b16 %v559
      %v1330 = vunpack.c.h.b16 %v559
      %v1331 = vunpack.c.l.b16 %v560
      %v1332 = vunpack.c.h.b16 %v560
      %v1333 = vunpack.c.l.b16 %v561
      %v1334 = vunpack.c.h.b16 %v561
      %v1335 = vunpack.c.l.b16 %v562
      %v1336 = vunpack.c.h.b16 %v562
      %v1337 = vunpack.c.l.b16 %v563
      %v1338 = vunpack.c.h.b16 %v563
      %v1339 = vunpack.c.l.b16 %v564
      %v1340 = vunpack.c.h.b16 %v564
      %v1341 = vunpack.c.l.b16 %v565
      %v1342 = vunpack.c.h.b16 %v565
      %v1343 = vunpack.c.l.b16 %v566
      %v1344 = vunpack.c.h.b16 %v566
      %v1345 = vunpack.c.l.b16 %v567
      %v1346 = vunpack.c.h.b16 %v567
      %v1347 = vunpack.c.l.b16 %v568
      %v1348 = vunpack.c.h.b16 %v568
      %v1349 = vunpack.c.l.b16 %v569
      %v1350 = vunpack.c.h.b16 %v569
      %v1351 = vunpack.c.l.b16 %v570
      %v1352 = vunpack.c.h.b16 %v570
      %v1353 = vpack.c.b16 %v849, %v841
      %v1354 = vpack.c.b16 %v850, %v842
      %v1355 = vpack.c.b16 %v851, %v843
      %v1356 = vpack.c.b16 %v852, %v844
      %v1357 = vpack.c.b16 %v853, %v845
      %v1358 = vpack.c.b16 %v854, %v846
      %v1359 = vpack.c.b16 %v855, %v847
      %v1360 = vpack.c.b16 %v856, %v848
      %v1361 = vpack.c.b16 %v865, %v857
      %v1362 = vpack.c.b16 %v866, %v858
      %v1363 = vpack.c.b16 %v867, %v859
      %v1364 = vpack.c.b16 %v868, %v860
      %v1365 = vpack.c.b16 %v869, %v861
      %v1366 = vpack.c.b16 %v870, %v862
      %v1367 = vpack.c.b16 %v871, %v863
      %v1368 = vpack.c.b16 %v872, %v864
      %v1369 = vpack.c.b16 %v881, %v873
      %v1370 = vpack.c.b16 %v882, %v874
      %v1371 = vpack.c.b16 %v883, %v875
      %v1372 = vpack.c.b16 %v884, %v876
      %v1373 = vpack.c.b16 %v885, %v877
      %v1374 = vpack.c.b16 %v886, %v878
      %v1375 = vpack.c.b16 %v887, %v879
      %v1376 = vpack.c.b16 %v888, %v880
      %v1377 = vpack.c.b16 %v897, %v889
      %v1378 = vpack.c.b16 %v898, %v890
      %v1379 = vpack.c.b16 %v899, %v891
      %v1380 = vpack.c.b16 %v900, %v892
      %v1381 = vpack.c.b16 %v901, %v893
      %v1382 = vpack.c.b16 %v902, %v894
      %v1383 = vpack.c.b16 %v903, %v895
      %v1384 = vpack.c.b16 %v904, %v896
      %v1385 = vpack.c.b16 %v913, %v905
      %v1386 = vpack.c.b16 %v914, %v906
      %v1387 = vpack.c.b16 %v915, %v907
      %v1388 = vpack.c.b16 %v916, %v908
      %v1389 = vpack.c.b16 %v917, %v909
      %v1390 = vpack.c.b16 %v918, %v910
      %v1391 = vpack.c.b16 %v919, %v911
      %v1392 = vpack.c.b16 %v920, %v912
      %v1393 = vpack.c.b16 %v929, %v921
      %v1394 = vpack.c.b16 %v930, %v922
      %v1395 = vpack.c.b16 %v931, %v923
      %v1396 = vpack.c.b16 %v932, %v924
      %v1397 = vpack.c.b16 %v933, %v925
      %v1398 = vpack.c.b16 %v934, %v926
      %v1399 = vpack.c.b16 %v935, %v927
      %v1400 = vpack.c.b16 %v936, %v928
      %v1401 = vpack.c.b16 %v945, %v937
      %v1402 = vpack.c.b16 %v946, %v938
      %v1403 = vpack.c.b16 %v947, %v939
      %v1404 = vpack.c.b16 %v948, %v940
      %v1405 = vpack.c.b16 %v949, %v941
      %v1406 = vpack.c.b16 %v950, %v942
      %v1407 = vpack.c.b16 %v951, %v943
      %v1408 = vpack.c.b16 %v952, %v944
      %v1409 = vpack.c.b16 %v961, %v953
      %v1410 = vpack.c.b16 %v962, %v954
      %v1411 = vpack.c.b16 %v963, %v955
      %v1412 = vpack.c.b16 %v964, %v956
      %v1413 = vpack.c.b16 %v965, %v957
      %v1414 = vpack.c.b16 %v966, %v958
      %v1415 = vpack.c.b16 %v967, %v959
      %v1416 = vpack.c.b16 %v968, %v960
      %v1417 = vpack.c.b16 %v977, %v969
      %v1418 = vpack.c.b16 %v978, %v970
      %v1419 = vpack.c.b16 %v979, %v971
      %v1420 = vpack.c.b16 %v980, %v972
      %v1421 = vpack.c.b16 %v981, %v973
      %v1422 = vpack.c.b16 %v982, %v974
      %v1423 = vpack.c.b16 %v983, %v975
      %v1424 = vpack.c.b16 %v984, %v976
      %v1425 = vpack.c.b16 %v993, %v985
      %v1426 = vpack.c.b16 %v994, %v986
      %v1427 = vpack.c.b16 %v995, %v987
      %v1428 = vpack.c.b16 %v996, %v988
      %v1429 = vpack.c.b16 %v997, %v989
      %v1430 = vpack.c.b16 %v998, %v990
      %v1431 = vpack.c.b16 %v999, %v991
      %v1432 = vpack.c.b16 %v1000, %v992
      %v1433 = vpack.c.b16 %v1009, %v1001
      %v1434 = vpack.c.b16 %v1010, %v1002
      %v1435 = vpack.c.b16 %v1011, %v1003
      %v1436 = vpack.c.b16 %v1012, %v1004
      %v1437 = vpack.c.b16 %v1013, %v1005
      %v1438 = vpack.c.b16 %v1014, %v1006
      %v1439 = vpack.c.b16 %v1015, %v1007
      %v1440 = vpack.c.b16 %v1016, %v1008
      %v1441 = vpack.c.b16 %v1025, %v1017
      %v1442 = vpack.c.b16 %v1026, %v1018
      %v1443 = vpack.c.b16 %v1027, %v1019
      %v1444 = vpack.c.b16 %v1028, %v1020
      %v1445 = vpack.c.b16 %v1029, %v1021
      %v1446 = vpack.c.b16 %v1030, %v1022
      %v1447 = vpack.c.b16 %v1031, %v1023
      %v1448 = vpack.c.b16 %v1032, %v1024
      %v1449 = vpack.c.b16 %v1041, %v1033
      %v1450 = vpack.c.b16 %v1042, %v1034
      %v1451 = vpack.c.b16 %v1043, %v1035
      %v1452 = vpack.c.b16 %v1044, %v1036
      %v1453 = vpack.c.b16 %v1045, %v1037
      %v1454 = vpack.c.b16 %v1046, %v1038
      %v1455 = vpack.c.b16 %v1047, %v1039
      %v1456 = vpack.c.b16 %v1048, %v1040
      %v1457 = vpack.c.b16 %v1057, %v1049
      %v1458 = vpack.c.b16 %v1058, %v1050
      %v1459 = vpack.c.b16 %v1059, %v1051
      %v1460 = vpack.c.b16 %v1060, %v1052
      %v1461 = vpack.c.b16 %v1061, %v1053
      %v1462 = vpack.c.b16 %v1062, %v1054
      %v1463 = vpack.c.b16 %v1063, %v1055
      %v1464 = vpack.c.b16 %v1064, %v1056
      %v1465 = vpack.c.b16 %v1073, %v1065
      %v1466 = vpack.c.b16 %v1074, %v1066
      %v1467 = vpack.c.b16 %v1075, %v1067
      %v1468 = vpack.c.b16 %v1076, %v1068
      %v1469 = vpack.c.b16 %v1077, %v1069
      %v1470 = vpack.c.b16 %v1078, %v1070
      %v1471 = vpack.c.b16 %v1079, %v1071
      %v1472 = vpack.c.b16 %v1080, %v1072
      %v1473 = vpack.c.b16 %v1089, %v1081
      %v1474 = vpack.c.b16 %v1090, %v1082
      %v1475 = vpack.c.b16 %v1091, %v1083
      %v1476 = vpack.c.b16 %v1092, %v1084
      %v1477 = vpack.c.b16 %v1093, %v1085
      %v1478 = vpack.c.b16 %v1094, %v1086
      %v1479 = vpack.c.b16 %v1095, %v1087
      %v1480 = vpack.c.b16 %v1096, %v1088
      %v1481 = vpack.c.b16 %v1105, %v1097
      %v1482 = vpack.c.b16 %v1106, %v1098
      %v1483 = vpack.c.b16 %v1107, %v1099
      %v1484 = vpack.c.b16 %v1108, %v1100
      %v1485 = vpack.c.b16 %v1109, %v1101
      %v1486 = vpack.c.b16 %v1110, %v1102
      %v1487 = vpack.c.b16 %v1111, %v1103
      %v1488 = vpack.c.b16 %v1112, %v1104
      %v1489 = vpack.c.b16 %v1121, %v1113
      %v1490 = vpack.c.b16 %v1122, %v1114
      %v1491 = vpack.c.b16 %v1123, %v1115
      %v1492 = vpack.c.b16 %v1124, %v1116
      %v1493 = vpack.c.b16 %v1125, %v1117
      %v1494 = vpack.c.b16 %v1126, %v1118
      %v1495 = vpack.c.b16 %v1127, %v1119
      %v1496 = vpack.c.b16 %v1128, %v1120
      %v1497 = vpack.c.b16 %v1137, %v1129
      %v1498 = vpack.c.b16 %v1138, %v1130
      %v1499 = vpack.c.b16 %v1139, %v1131
      %v1500 = vpack.c.b16 %v1140, %v1132
      %v1501 = vpack.c.b16 %v1141, %v1133
      %v1502 = vpack.c.b16 %v1142, %v1134
      %v1503 = vpack.c.b16 %v1143, %v1135
      %v1504 = vpack.c.b16 %v1144, %v1136
      %v1505 = vpack.c.b16 %v1153, %v1145
      %v1506 = vpack.c.b16 %v1154, %v1146
      %v1507 = vpack.c.b16 %v1155, %v1147
      %v1508 = vpack.c.b16 %v1156, %v1148
      %v1509 = vpack.c.b16 %v1157, %v1149
      %v1510 = vpack.c.b16 %v1158, %v1150
      %v1511 = vpack.c.b16 %v1159, %v1151
      %v1512 = vpack.c.b16 %v1160, %v1152
      %v1513 = vpack.c.b16 %v1169, %v1161
      %v1514 = vpack.c.b16 %v1170, %v1162
      %v1515 = vpack.c.b16 %v1171, %v1163
      %v1516 = vpack.c.b16 %v1172, %v1164
      %v1517 = vpack.c.b16 %v1173, %v1165
      %v1518 = vpack.c.b16 %v1174, %v1166
      %v1519 = vpack.c.b16 %v1175, %v1167
      %v1520 = vpack.c.b16 %v1176, %v1168
      %v1521 = vpack.c.b16 %v1185, %v1177
      %v1522 = vpack.c.b16 %v1186, %v1178
      %v1523 = vpack.c.b16 %v1187, %v1179
      %v1524 = vpack.c.b16 %v1188, %v1180
      %v1525 = vpack.c.b16 %v1189, %v1181
      %v1526 = vpack.c.b16 %v1190, %v1182
      %v1527 = vpack.c.b16 %v1191, %v1183
      %v1528 = vpack.c.b16 %v1192, %v1184
      %v1529 = vpack.c.b16 %v1201, %v1193
      %v1530 = vpack.c.b16 %v1202, %v1194
      %v1531 = vpack.c.b16 %v1203, %v1195
      %v1532 = vpack.c.b16 %v1204, %v1196
      %v1533 = vpack.c.b16 %v1205, %v1197
      %v1534 = vpack.c.b16 %v1206, %v1198
      %v1535 = vpack.c.b16 %v1207, %v1199
      %v1536 = vpack.c.b16 %v1208, %v1200
      %v1537 = vpack.c.b16 %v1217, %v1209
      %v1538 = vpack.c.b16 %v1218, %v1210
      %v1539 = vpack.c.b16 %v1219, %v1211
      %v1540 = vpack.c.b16 %v1220, %v1212
      %v1541 = vpack.c.b16 %v1221, %v1213
      %v1542 = vpack.c.b16 %v1222, %v1214
      %v1543 = vpack.c.b16 %v1223, %v1215
      %v1544 = vpack.c.b16 %v1224, %v1216
      %v1545 = vpack.c.b16 %v1233, %v1225
      %v1546 = vpack.c.b16 %v1234, %v1226
      %v1547 = vpack.c.b16 %v1235, %v1227
      %v1548 = vpack.c.b16 %v1236, %v1228
      %v1549 = vpack.c.b16 %v1237, %v1229
      %v1550 = vpack.c.b16 %v1238, %v1230
      %v1551 = vpack.c.b16 %v1239, %v1231
      %v1552 = vpack.c.b16 %v1240, %v1232
      %v1553 = vpack.c.b16 %v1249, %v1241
      %v1554 = vpack.c.b16 %v1250, %v1242
      %v1555 = vpack.c.b16 %v1251, %v1243
      %v1556 = vpack.c.b16 %v1252, %v1244
      %v1557 = vpack.c.b16 %v1253, %v1245
      %v1558 = vpack.c.b16 %v1254, %v1246
      %v1559 = vpack.c.b16 %v1255, %v1247
      %v1560 = vpack.c.b16 %v1256, %v1248
      %v1561 = vpack.c.b16 %v1265, %v1257
      %v1562 = vpack.c.b16 %v1266, %v1258
      %v1563 = vpack.c.b16 %v1267, %v1259
      %v1564 = vpack.c.b16 %v1268, %v1260
      %v1565 = vpack.c.b16 %v1269, %v1261
      %v1566 = vpack.c.b16 %v1270, %v1262
      %v1567 = vpack.c.b16 %v1271, %v1263
      %v1568 = vpack.c.b16 %v1272, %v1264
      %v1569 = vpack.c.b16 %v1281, %v1273
      %v1570 = vpack.c.b16 %v1282, %v1274
      %v1571 = vpack.c.b16 %v1283, %v1275
      %v1572 = vpack.c.b16 %v1284, %v1276
      %v1573 = vpack.c.b16 %v1285, %v1277
      %v1574 = vpack.c.b16 %v1286, %v1278
      %v1575 = vpack.c.b16 %v1287, %v1279
      %v1576 = vpack.c.b16 %v1288, %v1280
      %v1577 = vpack.c.b16 %v1297, %v1289
      %v1578 = vpack.c.b16 %v1298, %v1290
      %v1579 = vpack.c.b16 %v1299, %v1291
      %v1580 = vpack.c.b16 %v1300, %v1292
      %v1581 = vpack.c.b16 %v1301, %v1293
      %v1582 = vpack.c.b16 %v1302, %v1294
      %v1583 = vpack.c.b16 %v1303, %v1295
      %v1584 = vpack.c.b16 %v1304, %v1296
      %v1585 = vpack.c.b16 %v1313, %v1305
      %v1586 = vpack.c.b16 %v1314, %v1306
      %v1587 = vpack.c.b16 %v1315, %v1307
      %v1588 = vpack.c.b16 %v1316, %v1308
      %v1589 = vpack.c.b16 %v1317, %v1309
      %v1590 = vpack.c.b16 %v1318, %v1310
      %v1591 = vpack.c.b16 %v1319, %v1311
      %v1592 = vpack.c.b16 %v1320, %v1312
      %v1593 = vpack.c.b16 %v1329, %v1321
      %v1594 = vpack.c.b16 %v1330, %v1322
      %v1595 = vpack.c.b16 %v1331, %v1323
      %v1596 = vpack.c.b16 %v1332, %v1324
      %v1597 = vpack.c.b16 %v1333, %v1325
      %v1598 = vpack.c.b16 %v1334, %v1326
      %v1599 = vpack.c.b16 %v1335, %v1327
      %v1600 = vpack.c.b16 %v1336, %v1328
      %v1601 = vpack.c.b16 %v1345, %v1337
      %v1602 = vpack.c.b16 %v1346, %v1338
      %v1603 = vpack.c.b16 %v1347, %v1339
      %v1604 = vpack.c.b16 %v1348, %v1340
      %v1605 = vpack.c.b16 %v1349, %v1341
      %v1606 = vpack.c.b16 %v1350, %v1342
      %v1607 = vpack.c.b16 %v1351, %v1343
      %v1608 = vpack.c.b16 %v1352, %v1344
      %1865 = vmatprep.subr.bf16.mxu0 %v1354
      %1866 = vmatpush1.bf16.msra.mxu0 %v1353
      %1867 = vmatprep.subr.bf16.mxu0 %v1362
      %1868 = vmatpush1.bf16.msra.mxu0 %v1361
      %1869 = vmatprep.subr.bf16.mxu0 %v1370
      %1870 = vmatpush1.bf16.msra.mxu0 %v1369
      %1871 = vmatprep.subr.bf16.mxu0 %v1378
      %1872 = vmatpush1.bf16.msra.mxu0 %v1377
      %1873 = vmatprep.subr.bf16.mxu0 %v1386
      %1874 = vmatpush1.bf16.msra.mxu0 %v1385
      %1875 = vmatprep.subr.bf16.mxu0 %v1394
      %1876 = vmatpush1.bf16.msra.mxu0 %v1393
      %1877 = vmatprep.subr.bf16.mxu0 %v1402
      %1878 = vmatpush1.bf16.msra.mxu0 %v1401
      %1879 = vmatprep.subr.bf16.mxu0 %v1410
      %1880 = vmatpush1.bf16.msra.mxu0 %v1409
      %1881 = vmatprep.subr.bf16.mxu0 %v1418
      %1882 = vmatpush1.bf16.msra.mxu0 %v1417
      %1883 = vmatprep.subr.bf16.mxu0 %v1426
      %1884 = vmatpush1.bf16.msra.mxu0 %v1425
      %1885 = vmatprep.subr.bf16.mxu0 %v1434
      %1886 = vmatpush1.bf16.msra.mxu0 %v1433
      %1887 = vmatprep.subr.bf16.mxu0 %v1442
      %1888 = vmatpush1.bf16.msra.mxu0 %v1441
      %1889 = vmatprep.subr.bf16.mxu0 %v1450
      %1890 = vmatpush1.bf16.msra.mxu0 %v1449
      %1891 = vmatprep.subr.bf16.mxu0 %v1458
      %1892 = vmatpush1.bf16.msra.mxu0 %v1457
      %1893 = vmatprep.subr.bf16.mxu0 %v1466
      %1894 = vmatpush1.bf16.msra.mxu0 %v1465
      %1895 = vmatprep.subr.bf16.mxu0 %v1474
      %1896 = vmatpush1.bf16.msra.mxu0 %v1473
      %1897 = vmatprep.mubr.bf16.mxu0 %v578
      %1898 = vmatmul.mubr.bf16.gmra.mrb[0].mxu0 %v577
      %v1899 = vpop.f32.mrb[0].mxu0
      %v1900 = vadd.f32 0.0, %v1899
      %v1901 = vpop.f32.mrb[0].mxu0
      %v1902 = vadd.f32 0.0, %v1901
      %v1903 = vpop.f32.mrb[0].mxu0
      %v1904 = vpop.f32.mrb[0].mxu0
      %1905 = vdwg.mxu0
      %1906 = vmatprep.subr.bf16.mxu0 %v1482
      %1907 = vmatpush1.bf16.msra.mxu0 %v1481
      %1908 = vmatprep.subr.bf16.mxu0 %v1490
      %1909 = vmatpush1.bf16.msra.mxu0 %v1489
      %1910 = vmatprep.subr.bf16.mxu0 %v1498
      %1911 = vmatpush1.bf16.msra.mxu0 %v1497
      %1912 = vmatprep.subr.bf16.mxu0 %v1506
      %1913 = vmatpush1.bf16.msra.mxu0 %v1505
      %1914 = vmatprep.subr.bf16.mxu0 %v1514
      %1915 = vmatpush1.bf16.msra.mxu0 %v1513
      %1916 = vmatprep.subr.bf16.mxu0 %v1522
      %1917 = vmatpush1.bf16.msra.mxu0 %v1521
      %1918 = vmatprep.subr.bf16.mxu0 %v1530
      %1919 = vmatpush1.bf16.msra.mxu0 %v1529
      %1920 = vmatprep.subr.bf16.mxu0 %v1538
      %1921 = vmatpush1.bf16.msra.mxu0 %v1537
      %1922 = vmatprep.subr.bf16.mxu0 %v1546
      %1923 = vmatpush1.bf16.msra.mxu0 %v1545
      %1924 = vmatprep.subr.bf16.mxu0 %v1554
      %1925 = vmatpush1.bf16.msra.mxu0 %v1553
      %1926 = vmatprep.subr.bf16.mxu0 %v1562
      %1927 = vmatpush1.bf16.msra.mxu0 %v1561
      %1928 = vmatprep.subr.bf16.mxu0 %v1570
      %1929 = vmatpush1.bf16.msra.mxu0 %v1569
      %1930 = vmatprep.subr.bf16.mxu0 %v1578
      %1931 = vmatpush1.bf16.msra.mxu0 %v1577
      %1932 = vmatprep.subr.bf16.mxu0 %v1586
      %1933 = vmatpush1.bf16.msra.mxu0 %v1585
      %1934 = vmatprep.subr.bf16.mxu0 %v1594
      %1935 = vmatpush1.bf16.msra.mxu0 %v1593
      %1936 = vmatprep.subr.bf16.mxu0 %v1602
      %1937 = vmatpush1.bf16.msra.mxu0 %v1601
      %1938 = vmatprep.mubr.bf16.mxu0 %v580
      %1939 = vmatmul.mubr.bf16.gmra.mrb[0].mxu0 %v579
      %v1940 = vpop.f32.mrb[0].mxu0
      %v1941 = vadd.f32 %v1900, %v1940
      %v1942 = vpop.f32.mrb[0].mxu0
      %v1943 = vadd.f32 %v1902, %v1942
      %v1944 = vpop.f32.mrb[0].mxu0
      %v1945 = vpop.f32.mrb[0].mxu0
      %1946 = vdwg.mxu0
      %1947 = vmatprep.subr.bf16.mxu0 %v1356
      %1948 = vmatpush1.bf16.msra.mxu0 %v1355
      %1949 = vmatprep.subr.bf16.mxu0 %v1364
      %1950 = vmatpush1.bf16.msra.mxu0 %v1363
      %1951 = vmatprep.subr.bf16.mxu0 %v1372
      %1952 = vmatpush1.bf16.msra.mxu0 %v1371
      %1953 = vmatprep.subr.bf16.mxu0 %v1380
      %1954 = vmatpush1.bf16.msra.mxu0 %v1379
      %1955 = vmatprep.subr.bf16.mxu0 %v1388
      %1956 = vmatpush1.bf16.msra.mxu0 %v1387
      %1957 = vmatprep.subr.bf16.mxu0 %v1396
      %1958 = vmatpush1.bf16.msra.mxu0 %v1395
      %1959 = vmatprep.subr.bf16.mxu0 %v1404
      %1960 = vmatpush1.bf16.msra.mxu0 %v1403
      %1961 = vmatprep.subr.bf16.mxu0 %v1412
      %1962 = vmatpush1.bf16.msra.mxu0 %v1411
      %1963 = vmatprep.subr.bf16.mxu0 %v1420
      %1964 = vmatpush1.bf16.msra.mxu0 %v1419
      %1965 = vmatprep.subr.bf16.mxu0 %v1428
      %1966 = vmatpush1.bf16.msra.mxu0 %v1427
      %1967 = vmatprep.subr.bf16.mxu0 %v1436
      %1968 = vmatpush1.bf16.msra.mxu0 %v1435
      %1969 = vmatprep.subr.bf16.mxu0 %v1444
      %1970 = vmatpush1.bf16.msra.mxu0 %v1443
      %1971 = vmatprep.subr.bf16.mxu0 %v1452
      %1972 = vmatpush1.bf16.msra.mxu0 %v1451
      %1973 = vmatprep.subr.bf16.mxu0 %v1460
      %1974 = vmatpush1.bf16.msra.mxu0 %v1459
      %1975 = vmatprep.subr.bf16.mxu0 %v1468
      %1976 = vmatpush1.bf16.msra.mxu0 %v1467
      %1977 = vmatprep.subr.bf16.mxu0 %v1476
      %1978 = vmatpush1.bf16.msra.mxu0 %v1475
      %1979 = vmatprep.mubr.bf16.mxu0 %v578
      %1980 = vmatmul.mubr.bf16.gmra.mrb[0].mxu0 %v577
      %v1981 = vpop.f32.mrb[0].mxu0
      %v1982 = vadd.f32 0.0, %v1981
      %v1983 = vpop.f32.mrb[0].mxu0
      %v1984 = vadd.f32 0.0, %v1983
      %v1985 = vpop.f32.mrb[0].mxu0
      %v1986 = vpop.f32.mrb[0].mxu0
      %1987 = vdwg.mxu0
      %1988 = vmatprep.subr.bf16.mxu0 %v1484
      %1989 = vmatpush1.bf16.msra.mxu0 %v1483
      %1990 = vmatprep.subr.bf16.mxu0 %v1492
      %1991 = vmatpush1.bf16.msra.mxu0 %v1491
      %1992 = vmatprep.subr.bf16.mxu0 %v1500
      %1993 = vmatpush1.bf16.msra.mxu0 %v1499
      %1994 = vmatprep.subr.bf16.mxu0 %v1508
      %1995 = vmatpush1.bf16.msra.mxu0 %v1507
      %1996 = vmatprep.subr.bf16.mxu0 %v1516
      %1997 = vmatpush1.bf16.msra.mxu0 %v1515
      %1998 = vmatprep.subr.bf16.mxu0 %v1524
      %1999 = vmatpush1.bf16.msra.mxu0 %v1523
      %2000 = vmatprep.subr.bf16.mxu0 %v1532
      %2001 = vmatpush1.bf16.msra.mxu0 %v1531
      %2002 = vmatprep.subr.bf16.mxu0 %v1540
      %2003 = vmatpush1.bf16.msra.mxu0 %v1539
      %2004 = vmatprep.subr.bf16.mxu0 %v1548
      %2005 = vmatpush1.bf16.msra.mxu0 %v1547
      %2006 = vmatprep.subr.bf16.mxu0 %v1556
      %2007 = vmatpush1.bf16.msra.mxu0 %v1555
      %2008 = vmatprep.subr.bf16.mxu0 %v1564
      %2009 = vmatpush1.bf16.msra.mxu0 %v1563
      %2010 = vmatprep.subr.bf16.mxu0 %v1572
      %2011 = vmatpush1.bf16.msra.mxu0 %v1571
      %2012 = vmatprep.subr.bf16.mxu0 %v1580
      %2013 = vmatpush1.bf16.msra.mxu0 %v1579
      %2014 = vmatprep.subr.bf16.mxu0 %v1588
      %2015 = vmatpush1.bf16.msra.mxu0 %v1587
      %2016 = vmatprep.subr.bf16.mxu0 %v1596
      %2017 = vmatpush1.bf16.msra.mxu0 %v1595
      %2018 = vmatprep.subr.bf16.mxu0 %v1604
      %2019 = vmatpush1.bf16.msra.mxu0 %v1603
      %2020 = vmatprep.mubr.bf16.mxu0 %v580
      %2021 = vmatmul.mubr.bf16.gmra.mrb[0].mxu0 %v579
      %v2022 = vpop.f32.mrb[0].mxu0
      %v2023 = vadd.f32 %v1982, %v2022
      %v2024 = vpop.f32.mrb[0].mxu0
      %v2025 = vadd.f32 %v1984, %v2024
      %v2026 = vpop.f32.mrb[0].mxu0
      %v2027 = vpop.f32.mrb[0].mxu0
      %2028 = vdwg.mxu0
      %2029 = vmatprep.subr.bf16.mxu0 %v1358
      %2030 = vmatpush1.bf16.msra.mxu0 %v1357
      %2031 = vmatprep.subr.bf16.mxu0 %v1366
      %2032 = vmatpush1.bf16.msra.mxu0 %v1365
      %2033 = vmatprep.subr.bf16.mxu0 %v1374
      %2034 = vmatpush1.bf16.msra.mxu0 %v1373
      %2035 = vmatprep.subr.bf16.mxu0 %v1382
      %2036 = vmatpush1.bf16.msra.mxu0 %v1381
      %2037 = vmatprep.subr.bf16.mxu0 %v1390
      %2038 = vmatpush1.bf16.msra.mxu0 %v1389
      %2039 = vmatprep.subr.bf16.mxu0 %v1398
      %2040 = vmatpush1.bf16.msra.mxu0 %v1397
      %2041 = vmatprep.subr.bf16.mxu0 %v1406
      %2042 = vmatpush1.bf16.msra.mxu0 %v1405
      %2043 = vmatprep.subr.bf16.mxu0 %v1414
      %2044 = vmatpush1.bf16.msra.mxu0 %v1413
      %2045 = vmatprep.subr.bf16.mxu0 %v1422
      %2046 = vmatpush1.bf16.msra.mxu0 %v1421
      %2047 = vmatprep.subr.bf16.mxu0 %v1430
      %2048 = vmatpush1.bf16.msra.mxu0 %v1429
      %2049 = vmatprep.subr.bf16.mxu0 %v1438
      %2050 = vmatpush1.bf16.msra.mxu0 %v1437
      %2051 = vmatprep.subr.bf16.mxu0 %v1446
      %2052 = vmatpush1.bf16.msra.mxu0 %v1445
      %2053 = vmatprep.subr.bf16.mxu0 %v1454
      %2054 = vmatpush1.bf16.msra.mxu0 %v1453
      %2055 = vmatprep.subr.bf16.mxu0 %v1462
      %2056 = vmatpush1.bf16.msra.mxu0 %v1461
      %2057 = vmatprep.subr.bf16.mxu0 %v1470
      %2058 = vmatpush1.bf16.msra.mxu0 %v1469
      %2059 = vmatprep.subr.bf16.mxu0 %v1478
      %2060 = vmatpush1.bf16.msra.mxu0 %v1477
      %2061 = vmatprep.mubr.bf16.mxu0 %v578
      %2062 = vmatmul.mubr.bf16.gmra.mrb[0].mxu0 %v577
      %v2063 = vpop.f32.mrb[0].mxu0
      %v2064 = vadd.f32 0.0, %v2063
      %v2065 = vpop.f32.mrb[0].mxu0
      %v2066 = vadd.f32 0.0, %v2065
      %v2067 = vpop.f32.mrb[0].mxu0
      %v2068 = vpop.f32.mrb[0].mxu0
      %2069 = vdwg.mxu0
      %2070 = vmatprep.subr.bf16.mxu0 %v1486
      %2071 = vmatpush1.bf16.msra.mxu0 %v1485
      %2072 = vmatprep.subr.bf16.mxu0 %v1494
      %2073 = vmatpush1.bf16.msra.mxu0 %v1493
      %2074 = vmatprep.subr.bf16.mxu0 %v1502
      %2075 = vmatpush1.bf16.msra.mxu0 %v1501
      %2076 = vmatprep.subr.bf16.mxu0 %v1510
      %2077 = vmatpush1.bf16.msra.mxu0 %v1509
      %2078 = vmatprep.subr.bf16.mxu0 %v1518
      %2079 = vmatpush1.bf16.msra.mxu0 %v1517
      %2080 = vmatprep.subr.bf16.mxu0 %v1526
      %2081 = vmatpush1.bf16.msra.mxu0 %v1525
      %2082 = vmatprep.subr.bf16.mxu0 %v1534
      %2083 = vmatpush1.bf16.msra.mxu0 %v1533
      %2084 = vmatprep.subr.bf16.mxu0 %v1542
      %2085 = vmatpush1.bf16.msra.mxu0 %v1541
      %2086 = vmatprep.subr.bf16.mxu0 %v1550
      %2087 = vmatpush1.bf16.msra.mxu0 %v1549
      %2088 = vmatprep.subr.bf16.mxu0 %v1558
      %2089 = vmatpush1.bf16.msra.mxu0 %v1557
      %2090 = vmatprep.subr.bf16.mxu0 %v1566
      %2091 = vmatpush1.bf16.msra.mxu0 %v1565
      %2092 = vmatprep.subr.bf16.mxu0 %v1574
      %2093 = vmatpush1.bf16.msra.mxu0 %v1573
      %2094 = vmatprep.subr.bf16.mxu0 %v1582
      %2095 = vmatpush1.bf16.msra.mxu0 %v1581
      %2096 = vmatprep.subr.bf16.mxu0 %v1590
      %2097 = vmatpush1.bf16.msra.mxu0 %v1589
      %2098 = vmatprep.subr.bf16.mxu0 %v1598
      %2099 = vmatpush1.bf16.msra.mxu0 %v1597
      %2100 = vmatprep.subr.bf16.mxu0 %v1606
      %2101 = vmatpush1.bf16.msra.mxu0 %v1605
      %2102 = vmatprep.mubr.bf16.mxu0 %v580
      %2103 = vmatmul.mubr.bf16.gmra.mrb[0].mxu0 %v579
      %v2104 = vpop.f32.mrb[0].mxu0
      %v2105 = vadd.f32 %v2064, %v2104
      %v2106 = vpop.f32.mrb[0].mxu0
      %v2107 = vadd.f32 %v2066, %v2106
      %v2108 = vpop.f32.mrb[0].mxu0
      %v2109 = vpop.f32.mrb[0].mxu0
      %2110 = vdwg.mxu0
      %2111 = vmatprep.subr.bf16.mxu0 %v1360
      %2112 = vmatpush1.bf16.msra.mxu0 %v1359
      %2113 = vmatprep.subr.bf16.mxu0 %v1368
      %2114 = vmatpush1.bf16.msra.mxu0 %v1367
      %2115 = vmatprep.subr.bf16.mxu0 %v1376
      %2116 = vmatpush1.bf16.msra.mxu0 %v1375
      %2117 = vmatprep.subr.bf16.mxu0 %v1384
      %2118 = vmatpush1.bf16.msra.mxu0 %v1383
      %2119 = vmatprep.subr.bf16.mxu0 %v1392
      %2120 = vmatpush1.bf16.msra.mxu0 %v1391
      %2121 = vmatprep.subr.bf16.mxu0 %v1400
      %2122 = vmatpush1.bf16.msra.mxu0 %v1399
      %2123 = vmatprep.subr.bf16.mxu0 %v1408
      %2124 = vmatpush1.bf16.msra.mxu0 %v1407
      %2125 = vmatprep.subr.bf16.mxu0 %v1416
      %2126 = vmatpush1.bf16.msra.mxu0 %v1415
      %2127 = vmatprep.subr.bf16.mxu0 %v1424
      %2128 = vmatpush1.bf16.msra.mxu0 %v1423
      %2129 = vmatprep.subr.bf16.mxu0 %v1432
      %2130 = vmatpush1.bf16.msra.mxu0 %v1431
      %2131 = vmatprep.subr.bf16.mxu0 %v1440
      %2132 = vmatpush1.bf16.msra.mxu0 %v1439
      %2133 = vmatprep.subr.bf16.mxu0 %v1448
      %2134 = vmatpush1.bf16.msra.mxu0 %v1447
      %2135 = vmatprep.subr.bf16.mxu0 %v1456
      %2136 = vmatpush1.bf16.msra.mxu0 %v1455
      %2137 = vmatprep.subr.bf16.mxu0 %v1464
      %2138 = vmatpush1.bf16.msra.mxu0 %v1463
      %2139 = vmatprep.subr.bf16.mxu0 %v1472
      %2140 = vmatpush1.bf16.msra.mxu0 %v1471
      %2141 = vmatprep.subr.bf16.mxu0 %v1480
      %2142 = vmatpush1.bf16.msra.mxu0 %v1479
      %2143 = vmatprep.mubr.bf16.mxu0 %v578
      %2144 = vmatmul.mubr.bf16.gmra.mrb[0].mxu0 %v577
      %v2145 = vpop.f32.mrb[0].mxu0
      %v2146 = vadd.f32 0.0, %v2145
      %v2147 = vpop.f32.mrb[0].mxu0
      %v2148 = vadd.f32 0.0, %v2147
      %v2149 = vpop.f32.mrb[0].mxu0
      %v2150 = vpop.f32.mrb[0].mxu0
      %2151 = vdwg.mxu0
      %2152 = vmatprep.subr.bf16.mxu0 %v1488
      %2153 = vmatpush1.bf16.msra.mxu0 %v1487
      %2154 = vmatprep.subr.bf16.mxu0 %v1496
      %2155 = vmatpush1.bf16.msra.mxu0 %v1495
      %2156 = vmatprep.subr.bf16.mxu0 %v1504
      %2157 = vmatpush1.bf16.msra.mxu0 %v1503
      %2158 = vmatprep.subr.bf16.mxu0 %v1512
      %2159 = vmatpush1.bf16.msra.mxu0 %v1511
      %2160 = vmatprep.subr.bf16.mxu0 %v1520
      %2161 = vmatpush1.bf16.msra.mxu0 %v1519
      %2162 = vmatprep.subr.bf16.mxu0 %v1528
      %2163 = vmatpush1.bf16.msra.mxu0 %v1527
      %2164 = vmatprep.subr.bf16.mxu0 %v1536
      %2165 = vmatpush1.bf16.msra.mxu0 %v1535
      %2166 = vmatprep.subr.bf16.mxu0 %v1544
      %2167 = vmatpush1.bf16.msra.mxu0 %v1543
      %2168 = vmatprep.subr.bf16.mxu0 %v1552
      %2169 = vmatpush1.bf16.msra.mxu0 %v1551
      %2170 = vmatprep.subr.bf16.mxu0 %v1560
      %2171 = vmatpush1.bf16.msra.mxu0 %v1559
      %2172 = vmatprep.subr.bf16.mxu0 %v1568
      %2173 = vmatpush1.bf16.msra.mxu0 %v1567
      %2174 = vmatprep.subr.bf16.mxu0 %v1576
      %2175 = vmatpush1.bf16.msra.mxu0 %v1575
      %2176 = vmatprep.subr.bf16.mxu0 %v1584
      %2177 = vmatpush1.bf16.msra.mxu0 %v1583
      %2178 = vmatprep.subr.bf16.mxu0 %v1592
      %2179 = vmatpush1.bf16.msra.mxu0 %v1591
      %2180 = vmatprep.subr.bf16.mxu0 %v1600
      %2181 = vmatpush1.bf16.msra.mxu0 %v1599
      %2182 = vmatprep.subr.bf16.mxu0 %v1608
      %2183 = vmatpush1.bf16.msra.mxu0 %v1607
      %2184 = vmatprep.mubr.bf16.mxu0 %v580
      %2185 = vmatmul.mubr.bf16.gmra.mrb[0].mxu0 %v579
      %v2186 = vpop.f32.mrb[0].mxu0
      %v2187 = vadd.f32 %v2146, %v2186
      %v2188 = vpop.f32.mrb[0].mxu0
      %v2189 = vadd.f32 %v2148, %v2188
      %v2190 = vpop.f32.mrb[0].mxu0
      %v2191 = vpop.f32.mrb[0].mxu0
      %2192 = vdwg.mxu0
      %v2193 = vadd.f32 %v1941, %v1943
      %v2194 = vadd.f32 %v2193, %v2023
      %v2195 = vadd.f32 %v2194, %v2025
      %v2196 = vadd.f32 %v2195, %v2105
      %v2197 = vadd.f32 %v2196, %v2107
      %v2198 = vadd.f32 %v2197, %v2187
      %v2199 = vadd.f32 %v2198, %v2189
      %2200 = vadd.xlane.f32.xlu0 %v2199
      %v2201 = vpop.xlane.xlu0 %2200
      %v2202 = vrcp.pop 1024.0
      %v2203 = vmul.f32 %v2201, %v2202
      %v2204 = vsub.f32 %v1941, %v2203
      %v2205 = vsub.f32 %v1943, %v2203
      %v2206 = vsub.f32 %v2023, %v2203
      %v2207 = vsub.f32 %v2025, %v2203
      %v2208 = vsub.f32 %v2105, %v2203
      %v2209 = vsub.f32 %v2107, %v2203
      %v2210 = vsub.f32 %v2187, %v2203
      %v2211 = vsub.f32 %v2189, %v2203
      %v2212 = vmul.f32 %v2204, %v2204
      %v2213 = vmul.f32 %v2205, %v2205
      %v2214 = vmul.f32 %v2206, %v2206
      %v2215 = vmul.f32 %v2207, %v2207
      %v2216 = vmul.f32 %v2208, %v2208
      %v2217 = vmul.f32 %v2209, %v2209
      %v2218 = vmul.f32 %v2210, %v2210
      %v2219 = vmul.f32 %v2211, %v2211
      %v2220 = vadd.f32 %v2212, %v2213
      %v2221 = vadd.f32 %v2220, %v2214
      %v2222 = vadd.f32 %v2221, %v2215
      %v2223 = vadd.f32 %v2222, %v2216
      %v2224 = vadd.f32 %v2223, %v2217
      %v2225 = vadd.f32 %v2224, %v2218
      %v2226 = vadd.f32 %v2225, %v2219
      %2227 = vadd.xlane.f32.xlu0 %v2226
      %v2228 = vpop.xlane.xlu0 %2227
      %v2229 = vmul.f32 %v2228, %v2202
      %v2230 = vadd.f32 %v2229, 1e-05
      %v2231 = vrsqrt.pop %v2230
      %v2232 = vmul.f32 %v2204, %v2231
      %v2233 = vmul.f32 %v2205, %v2231
      %v2234 = vmul.f32 %v2206, %v2231
      %v2235 = vmul.f32 %v2207, %v2231
      %v2236 = vmul.f32 %v2208, %v2231
      %v2237 = vmul.f32 %v2209, %v2231
      %v2238 = vmul.f32 %v2210, %v2231
      %v2239 = vmul.f32 %v2211, %v2231
      %v2240 = vld [vmem:[%s303] sm:$0xff]
      %2242 = vset.pattern.permute.xlu0 0
      %2243 = vperm.xlu0 %2242, %v2240
      %v2244 = vpop.permute.xlu0 %2243
      %v2246 = vmul.f32 %v2232, %v2244
      %v2247 = vmul.f32 %v2233, %v2244
      %v2248 = vmul.f32 %v2234, %v2244
      %v2249 = vmul.f32 %v2235, %v2244
      %v2250 = vmul.f32 %v2236, %v2244
      %v2251 = vmul.f32 %v2237, %v2244
      %v2252 = vmul.f32 %v2238, %v2244
      %v2253 = vmul.f32 %v2239, %v2244
      %v2254 = vld [vmem:[%s307] sm:$0xff]
      %2256 = vset.pattern.permute.xlu0 0
      %2257 = vperm.xlu0 %2256, %v2254
      %v2258 = vpop.permute.xlu0 %2257
      %v2260 = vadd.f32 %v2246, %v2258
      %v2261 = vadd.f32 %v2247, %v2258
      %v2262 = vadd.f32 %v2248, %v2258
      %v2263 = vadd.f32 %v2249, %v2258
      %v2264 = vadd.f32 %v2250, %v2258
      %v2265 = vadd.f32 %v2251, %v2258
      %v2266 = vadd.f32 %v2252, %v2258
      %v2267 = vadd.f32 %v2253, %v2258
      %v2268 = vmul.f32 %v2260, 0.2
      %v2269 = vmul.f32 %v2261, 0.2
      %v2270 = vmul.f32 %v2262, 0.2
      %v2271 = vmul.f32 %v2263, 0.2
      %v2272 = vmul.f32 %v2264, 0.2
      %v2273 = vmul.f32 %v2265, 0.2
      %v2274 = vmul.f32 %v2266, 0.2
      %v2275 = vmul.f32 %v2267, 0.2
      %v2276 = vmax.f32 %v2260, %v2268
      %v2277 = vmax.f32 %v2261, %v2269
      %v2278 = vmax.f32 %v2262, %v2270
      %v2279 = vmax.f32 %v2263, %v2271
      %v2280 = vmax.f32 %v2264, %v2272
      %v2281 = vmax.f32 %v2265, %v2273
      %v2282 = vmax.f32 %v2266, %v2274
      %v2283 = vmax.f32 %v2267, %v2275
      %v2284 = vld [vmem:[%s4] sm:$0xff]
      %v2285 = vld [vmem:[%s4 + $0x8] sm:$0xff]
      %v2286 = vld [vmem:[%s4 + $0x10] sm:$0xff]
      %v2287 = vld [vmem:[%s4 + $0x18] sm:$0xff]
      %v2288 = vld [vmem:[%s4 + $0x20] sm:$0xff]
      %v2289 = vld [vmem:[%s4 + $0x28] sm:$0xff]
      %v2290 = vld [vmem:[%s4 + $0x30] sm:$0xff]
      %v2291 = vld [vmem:[%s4 + $0x38] sm:$0xff]
      %v2292 = vld [vmem:[%s4 + $0x40] sm:$0xff]
      %v2293 = vld [vmem:[%s4 + $0x48] sm:$0xff]
      %v2294 = vld [vmem:[%s4 + $0x50] sm:$0xff]
      %v2295 = vld [vmem:[%s4 + $0x58] sm:$0xff]
      %v2296 = vld [vmem:[%s4 + $0x60] sm:$0xff]
      %v2297 = vld [vmem:[%s4 + $0x68] sm:$0xff]
      %v2298 = vld [vmem:[%s4 + $0x70] sm:$0xff]
      %v2299 = vld [vmem:[%s4 + $0x78] sm:$0xff]
      %v2300 = vld [vmem:[%s4 + $0x80] sm:$0xff]
      %v2301 = vld [vmem:[%s4 + $0x88] sm:$0xff]
      %v2302 = vld [vmem:[%s4 + $0x90] sm:$0xff]
      %v2303 = vld [vmem:[%s4 + $0x98] sm:$0xff]
      %v2304 = vld [vmem:[%s4 + $0xa0] sm:$0xff]
      %v2305 = vld [vmem:[%s4 + $0xa8] sm:$0xff]
      %v2306 = vld [vmem:[%s4 + $0xb0] sm:$0xff]
      %v2307 = vld [vmem:[%s4 + $0xb8] sm:$0xff]
      %v2308 = vld [vmem:[%s4 + $0xc0] sm:$0xff]
      %v2309 = vld [vmem:[%s4 + $0xc8] sm:$0xff]
      %v2310 = vld [vmem:[%s4 + $0xd0] sm:$0xff]
      %v2311 = vld [vmem:[%s4 + $0xd8] sm:$0xff]
      %v2312 = vld [vmem:[%s4 + $0xe0] sm:$0xff]
      %v2313 = vld [vmem:[%s4 + $0xe8] sm:$0xff]
      %v2314 = vld [vmem:[%s4 + $0xf0] sm:$0xff]
      %v2315 = vld [vmem:[%s4 + $0xf8] sm:$0xff]
      %v2316 = vld [vmem:[%s4 + $0x100] sm:$0xff]
      %v2317 = vld [vmem:[%s4 + $0x108] sm:$0xff]
      %v2318 = vld [vmem:[%s4 + $0x110] sm:$0xff]
      %v2319 = vld [vmem:[%s4 + $0x118] sm:$0xff]
      %v2320 = vld [vmem:[%s4 + $0x120] sm:$0xff]
      %v2321 = vld [vmem:[%s4 + $0x128] sm:$0xff]
      %v2322 = vld [vmem:[%s4 + $0x130] sm:$0xff]
      %v2323 = vld [vmem:[%s4 + $0x138] sm:$0xff]
      %v2324 = vld [vmem:[%s4 + $0x140] sm:$0xff]
      %v2325 = vld [vmem:[%s4 + $0x148] sm:$0xff]
      %v2326 = vld [vmem:[%s4 + $0x150] sm:$0xff]
      %v2327 = vld [vmem:[%s4 + $0x158] sm:$0xff]
      %v2328 = vld [vmem:[%s4 + $0x160] sm:$0xff]
      %v2329 = vld [vmem:[%s4 + $0x168] sm:$0xff]
      %v2330 = vld [vmem:[%s4 + $0x170] sm:$0xff]
      %v2331 = vld [vmem:[%s4 + $0x178] sm:$0xff]
      %v2332 = vld [vmem:[%s4 + $0x180] sm:$0xff]
      %v2333 = vld [vmem:[%s4 + $0x188] sm:$0xff]
      %v2334 = vld [vmem:[%s4 + $0x190] sm:$0xff]
      %v2335 = vld [vmem:[%s4 + $0x198] sm:$0xff]
      %v2336 = vld [vmem:[%s4 + $0x1a0] sm:$0xff]
      %v2337 = vld [vmem:[%s4 + $0x1a8] sm:$0xff]
      %v2338 = vld [vmem:[%s4 + $0x1b0] sm:$0xff]
      %v2339 = vld [vmem:[%s4 + $0x1b8] sm:$0xff]
      %v2340 = vld [vmem:[%s4 + $0x1c0] sm:$0xff]
      %v2341 = vld [vmem:[%s4 + $0x1c8] sm:$0xff]
      %v2342 = vld [vmem:[%s4 + $0x1d0] sm:$0xff]
      %v2343 = vld [vmem:[%s4 + $0x1d8] sm:$0xff]
      %v2344 = vld [vmem:[%s4 + $0x1e0] sm:$0xff]
      %v2345 = vld [vmem:[%s4 + $0x1e8] sm:$0xff]
      %v2346 = vld [vmem:[%s4 + $0x1f0] sm:$0xff]
      %v2347 = vld [vmem:[%s4 + $0x1f8] sm:$0xff]
      %v2348 = vld [vmem:[%s4 + $0x200] sm:$0xff]
      %v2349 = vld [vmem:[%s4 + $0x208] sm:$0xff]
      %v2350 = vld [vmem:[%s4 + $0x210] sm:$0xff]
      %v2351 = vld [vmem:[%s4 + $0x218] sm:$0xff]
      %v2352 = vld [vmem:[%s4 + $0x220] sm:$0xff]
      %v2353 = vld [vmem:[%s4 + $0x228] sm:$0xff]
      %v2354 = vld [vmem:[%s4 + $0x230] sm:$0xff]
      %v2355 = vld [vmem:[%s4 + $0x238] sm:$0xff]
      %v2356 = vld [vmem:[%s4 + $0x240] sm:$0xff]
      %v2357 = vld [vmem:[%s4 + $0x248] sm:$0xff]
      %v2358 = vld [vmem:[%s4 + $0x250] sm:$0xff]
      %v2359 = vld [vmem:[%s4 + $0x258] sm:$0xff]
      %v2360 = vld [vmem:[%s4 + $0x260] sm:$0xff]
      %v2361 = vld [vmem:[%s4 + $0x268] sm:$0xff]
      %v2362 = vld [vmem:[%s4 + $0x270] sm:$0xff]
      %v2363 = vld [vmem:[%s4 + $0x278] sm:$0xff]
      %v2364 = vld [vmem:[%s4 + $0x280] sm:$0xff]
      %v2365 = vld [vmem:[%s4 + $0x288] sm:$0xff]
      %v2366 = vld [vmem:[%s4 + $0x290] sm:$0xff]
      %v2367 = vld [vmem:[%s4 + $0x298] sm:$0xff]
      %v2368 = vld [vmem:[%s4 + $0x2a0] sm:$0xff]
      %v2369 = vld [vmem:[%s4 + $0x2a8] sm:$0xff]
      %v2370 = vld [vmem:[%s4 + $0x2b0] sm:$0xff]
      %v2371 = vld [vmem:[%s4 + $0x2b8] sm:$0xff]
      %v2372 = vld [vmem:[%s4 + $0x2c0] sm:$0xff]
      %v2373 = vld [vmem:[%s4 + $0x2c8] sm:$0xff]
      %v2374 = vld [vmem:[%s4 + $0x2d0] sm:$0xff]
      %v2375 = vld [vmem:[%s4 + $0x2d8] sm:$0xff]
      %v2376 = vld [vmem:[%s4 + $0x2e0] sm:$0xff]
      %v2377 = vld [vmem:[%s4 + $0x2e8] sm:$0xff]
      %v2378 = vld [vmem:[%s4 + $0x2f0] sm:$0xff]
      %v2379 = vld [vmem:[%s4 + $0x2f8] sm:$0xff]
      %v2380 = vld [vmem:[%s4 + $0x300] sm:$0xff]
      %v2381 = vld [vmem:[%s4 + $0x308] sm:$0xff]
      %v2382 = vld [vmem:[%s4 + $0x310] sm:$0xff]
      %v2383 = vld [vmem:[%s4 + $0x318] sm:$0xff]
      %v2384 = vld [vmem:[%s4 + $0x320] sm:$0xff]
      %v2385 = vld [vmem:[%s4 + $0x328] sm:$0xff]
      %v2386 = vld [vmem:[%s4 + $0x330] sm:$0xff]
      %v2387 = vld [vmem:[%s4 + $0x338] sm:$0xff]
      %v2388 = vld [vmem:[%s4 + $0x340] sm:$0xff]
      %v2389 = vld [vmem:[%s4 + $0x348] sm:$0xff]
      %v2390 = vld [vmem:[%s4 + $0x350] sm:$0xff]
      %v2391 = vld [vmem:[%s4 + $0x358] sm:$0xff]
      %v2392 = vld [vmem:[%s4 + $0x360] sm:$0xff]
      %v2393 = vld [vmem:[%s4 + $0x368] sm:$0xff]
      %v2394 = vld [vmem:[%s4 + $0x370] sm:$0xff]
      %v2395 = vld [vmem:[%s4 + $0x378] sm:$0xff]
      %v2396 = vld [vmem:[%s4 + $0x380] sm:$0xff]
      %v2397 = vld [vmem:[%s4 + $0x388] sm:$0xff]
      %v2398 = vld [vmem:[%s4 + $0x390] sm:$0xff]
      %v2399 = vld [vmem:[%s4 + $0x398] sm:$0xff]
      %v2400 = vld [vmem:[%s4 + $0x3a0] sm:$0xff]
      %v2401 = vld [vmem:[%s4 + $0x3a8] sm:$0xff]
      %v2402 = vld [vmem:[%s4 + $0x3b0] sm:$0xff]
      %v2403 = vld [vmem:[%s4 + $0x3b8] sm:$0xff]
      %v2404 = vld [vmem:[%s4 + $0x3c0] sm:$0xff]
      %v2405 = vld [vmem:[%s4 + $0x3c8] sm:$0xff]
      %v2406 = vld [vmem:[%s4 + $0x3d0] sm:$0xff]
      %v2407 = vld [vmem:[%s4 + $0x3d8] sm:$0xff]
      %v2408 = vld [vmem:[%s4 + $0x3e0] sm:$0xff]
      %v2409 = vld [vmem:[%s4 + $0x3e8] sm:$0xff]
      %v2410 = vld [vmem:[%s4 + $0x3f0] sm:$0xff]
      %v2411 = vld [vmem:[%s4 + $0x3f8] sm:$0xff]
      %v2412 = vld [vmem:[%s5] sm:$0xff]
      %v2413 = vld [vmem:[%s5 + $0x8] sm:$0xff]
      %v2414 = vld [vmem:[%s6] sm:$0xff]
      %v2415 = vld [vmem:[%s6 + $0x8] sm:$0xff]
      %2416 = vmatprep.subr.mxu0 0.0
      %2417 = vmatpush1.msra.mxu0 %v2284
      %2418 = vmatprep.subr.mxu0 0.0
      %2419 = vmatpush1.msra.mxu0 %v2285
      %2420 = vmatprep.subr.mxu0 0.0
      %2421 = vmatpush1.msra.mxu0 %v2286
      %2422 = vmatprep.subr.mxu0 0.0
      %2423 = vmatpush1.msra.mxu0 %v2287
      %2424 = vmatprep.subr.mxu0 0.0
      %2425 = vmatpush1.msra.mxu0 %v2288
      %2426 = vmatprep.subr.mxu0 0.0
      %2427 = vmatpush1.msra.mxu0 %v2289
      %2428 = vmatprep.subr.mxu0 0.0
      %2429 = vmatpush1.msra.mxu0 %v2290
      %2430 = vmatprep.subr.mxu0 0.0
      %2431 = vmatpush1.msra.mxu0 %v2291
      %2432 = vmatprep.subr.mxu0 0.0
      %2433 = vmatpush1.msra.mxu0 %v2292
      %2434 = vmatprep.subr.mxu0 0.0
      %2435 = vmatpush1.msra.mxu0 %v2293
      %2436 = vmatprep.subr.mxu0 0.0
      %2437 = vmatpush1.msra.mxu0 %v2294
      %2438 = vmatprep.subr.mxu0 0.0
      %2439 = vmatpush1.msra.mxu0 %v2295
      %2440 = vmatprep.subr.mxu0 0.0
      %2441 = vmatpush1.msra.mxu0 %v2296
      %2442 = vmatprep.subr.mxu0 0.0
      %2443 = vmatpush1.msra.mxu0 %v2297
      %2444 = vmatprep.subr.mxu0 0.0
      %2445 = vmatpush1.msra.mxu0 %v2298
      %2446 = vmatprep.subr.mxu0 0.0
      %2447 = vmatpush1.msra.mxu0 %v2299
      %2448 = vmatprep.subr.mxu0 0.0
      %2449 = vmatpush1.msra.mxu0 %v2300
      %2450 = vmatprep.subr.mxu0 0.0
      %2451 = vmatpush1.msra.mxu0 %v2301
      %2452 = vmatprep.subr.mxu0 0.0
      %2453 = vmatpush1.msra.mxu0 %v2302
      %2454 = vmatprep.subr.mxu0 0.0
      %2455 = vmatpush1.msra.mxu0 %v2303
      %2456 = vmatprep.subr.mxu0 0.0
      %2457 = vmatpush1.msra.mxu0 %v2304
      %2458 = vmatprep.subr.mxu0 0.0
      %2459 = vmatpush1.msra.mxu0 %v2305
      %2460 = vmatprep.subr.mxu0 0.0
      %2461 = vmatpush1.msra.mxu0 %v2306
      %2462 = vmatprep.subr.mxu0 0.0
      %2463 = vmatpush1.msra.mxu0 %v2307
      %2464 = vmatprep.subr.mxu0 0.0
      %2465 = vmatpush1.msra.mxu0 %v2308
      %2466 = vmatprep.subr.mxu0 0.0
      %2467 = vmatpush1.msra.mxu0 %v2309
      %2468 = vmatprep.subr.mxu0 0.0
      %2469 = vmatpush1.msra.mxu0 %v2310
      %2470 = vmatprep.subr.mxu0 0.0
      %2471 = vmatpush1.msra.mxu0 %v2311
      %2472 = vmatprep.subr.mxu0 0.0
      %2473 = vmatpush1.msra.mxu0 %v2312
      %2474 = vmatprep.subr.mxu0 0.0
      %2475 = vmatpush1.msra.mxu0 %v2313
      %2476 = vmatprep.subr.mxu0 0.0
      %2477 = vmatpush1.msra.mxu0 %v2314
      %2478 = vmatprep.subr.mxu0 0.0
      %2479 = vmatpush1.msra.mxu0 %v2315
      %2480 = vmatprep.mubr.f32.mxu0 %v2277
      %2481 = vmatmul.mubr.f32.gmra.mrb[0].mxu0 %v2276
      %v2482 = vpop.f32.mrb[0].mxu0
      %v2483 = vadd.f32 0.0, %v2482
      %v2484 = vpop.f32.mrb[0].mxu0
      %2485 = vdwg.mxu0
      %2486 = vmatprep.subr.mxu0 0.0
      %2487 = vmatpush1.msra.mxu0 %v2316
      %2488 = vmatprep.subr.mxu0 0.0
      %2489 = vmatpush1.msra.mxu0 %v2317
      %2490 = vmatprep.subr.mxu0 0.0
      %2491 = vmatpush1.msra.mxu0 %v2318
      %2492 = vmatprep.subr.mxu0 0.0
      %2493 = vmatpush1.msra.mxu0 %v2319
      %2494 = vmatprep.subr.mxu0 0.0
      %2495 = vmatpush1.msra.mxu0 %v2320
      %2496 = vmatprep.subr.mxu0 0.0
      %2497 = vmatpush1.msra.mxu0 %v2321
      %2498 = vmatprep.subr.mxu0 0.0
      %2499 = vmatpush1.msra.mxu0 %v2322
      %2500 = vmatprep.subr.mxu0 0.0
      %2501 = vmatpush1.msra.mxu0 %v2323
      %2502 = vmatprep.subr.mxu0 0.0
      %2503 = vmatpush1.msra.mxu0 %v2324
      %2504 = vmatprep.subr.mxu0 0.0
      %2505 = vmatpush1.msra.mxu0 %v2325
      %2506 = vmatprep.subr.mxu0 0.0
      %2507 = vmatpush1.msra.mxu0 %v2326
      %2508 = vmatprep.subr.mxu0 0.0
      %2509 = vmatpush1.msra.mxu0 %v2327
      %2510 = vmatprep.subr.mxu0 0.0
      %2511 = vmatpush1.msra.mxu0 %v2328
      %2512 = vmatprep.subr.mxu0 0.0
      %2513 = vmatpush1.msra.mxu0 %v2329
      %2514 = vmatprep.subr.mxu0 0.0
      %2515 = vmatpush1.msra.mxu0 %v2330
      %2516 = vmatprep.subr.mxu0 0.0
      %2517 = vmatpush1.msra.mxu0 %v2331
      %2518 = vmatprep.subr.mxu0 0.0
      %2519 = vmatpush1.msra.mxu0 %v2332
      %2520 = vmatprep.subr.mxu0 0.0
      %2521 = vmatpush1.msra.mxu0 %v2333
      %2522 = vmatprep.subr.mxu0 0.0
      %2523 = vmatpush1.msra.mxu0 %v2334
      %2524 = vmatprep.subr.mxu0 0.0
      %2525 = vmatpush1.msra.mxu0 %v2335
      %2526 = vmatprep.subr.mxu0 0.0
      %2527 = vmatpush1.msra.mxu0 %v2336
      %2528 = vmatprep.subr.mxu0 0.0
      %2529 = vmatpush1.msra.mxu0 %v2337
      %2530 = vmatprep.subr.mxu0 0.0
      %2531 = vmatpush1.msra.mxu0 %v2338
      %2532 = vmatprep.subr.mxu0 0.0
      %2533 = vmatpush1.msra.mxu0 %v2339
      %2534 = vmatprep.subr.mxu0 0.0
      %2535 = vmatpush1.msra.mxu0 %v2340
      %2536 = vmatprep.subr.mxu0 0.0
      %2537 = vmatpush1.msra.mxu0 %v2341
      %2538 = vmatprep.subr.mxu0 0.0
      %2539 = vmatpush1.msra.mxu0 %v2342
      %2540 = vmatprep.subr.mxu0 0.0
      %2541 = vmatpush1.msra.mxu0 %v2343
      %2542 = vmatprep.subr.mxu0 0.0
      %2543 = vmatpush1.msra.mxu0 %v2344
      %2544 = vmatprep.subr.mxu0 0.0
      %2545 = vmatpush1.msra.mxu0 %v2345
      %2546 = vmatprep.subr.mxu0 0.0
      %2547 = vmatpush1.msra.mxu0 %v2346
      %2548 = vmatprep.subr.mxu0 0.0
      %2549 = vmatpush1.msra.mxu0 %v2347
      %2550 = vmatprep.mubr.f32.mxu0 %v2279
      %2551 = vmatmul.mubr.f32.gmra.mrb[0].mxu0 %v2278
      %v2552 = vpop.f32.mrb[0].mxu0
      %v2553 = vadd.f32 %v2483, %v2552
      %v2554 = vpop.f32.mrb[0].mxu0
      %2555 = vdwg.mxu0
      %2556 = vmatprep.subr.mxu0 0.0
      %2557 = vmatpush1.msra.mxu0 %v2348
      %2558 = vmatprep.subr.mxu0 0.0
      %2559 = vmatpush1.msra.mxu0 %v2349
      %2560 = vmatprep.subr.mxu0 0.0
      %2561 = vmatpush1.msra.mxu0 %v2350
      %2562 = vmatprep.subr.mxu0 0.0
      %2563 = vmatpush1.msra.mxu0 %v2351
      %2564 = vmatprep.subr.mxu0 0.0
      %2565 = vmatpush1.msra.mxu0 %v2352
      %2566 = vmatprep.subr.mxu0 0.0
      %2567 = vmatpush1.msra.mxu0 %v2353
      %2568 = vmatprep.subr.mxu0 0.0
      %2569 = vmatpush1.msra.mxu0 %v2354
      %2570 = vmatprep.subr.mxu0 0.0
      %2571 = vmatpush1.msra.mxu0 %v2355
      %2572 = vmatprep.subr.mxu0 0.0
      %2573 = vmatpush1.msra.mxu0 %v2356
      %2574 = vmatprep.subr.mxu0 0.0
      %2575 = vmatpush1.msra.mxu0 %v2357
      %2576 = vmatprep.subr.mxu0 0.0
      %2577 = vmatpush1.msra.mxu0 %v2358
      %2578 = vmatprep.subr.mxu0 0.0
      %2579 = vmatpush1.msra.mxu0 %v2359
      %2580 = vmatprep.subr.mxu0 0.0
      %2581 = vmatpush1.msra.mxu0 %v2360
      %2582 = vmatprep.subr.mxu0 0.0
      %2583 = vmatpush1.msra.mxu0 %v2361
      %2584 = vmatprep.subr.mxu0 0.0
      %2585 = vmatpush1.msra.mxu0 %v2362
      %2586 = vmatprep.subr.mxu0 0.0
      %2587 = vmatpush1.msra.mxu0 %v2363
      %2588 = vmatprep.subr.mxu0 0.0
      %2589 = vmatpush1.msra.mxu0 %v2364
      %2590 = vmatprep.subr.mxu0 0.0
      %2591 = vmatpush1.msra.mxu0 %v2365
      %2592 = vmatprep.subr.mxu0 0.0
      %2593 = vmatpush1.msra.mxu0 %v2366
      %2594 = vmatprep.subr.mxu0 0.0
      %2595 = vmatpush1.msra.mxu0 %v2367
      %2596 = vmatprep.subr.mxu0 0.0
      %2597 = vmatpush1.msra.mxu0 %v2368
      %2598 = vmatprep.subr.mxu0 0.0
      %2599 = vmatpush1.msra.mxu0 %v2369
      %2600 = vmatprep.subr.mxu0 0.0
      %2601 = vmatpush1.msra.mxu0 %v2370
      %2602 = vmatprep.subr.mxu0 0.0
      %2603 = vmatpush1.msra.mxu0 %v2371
      %2604 = vmatprep.subr.mxu0 0.0
      %2605 = vmatpush1.msra.mxu0 %v2372
      %2606 = vmatprep.subr.mxu0 0.0
      %2607 = vmatpush1.msra.mxu0 %v2373
      %2608 = vmatprep.subr.mxu0 0.0
      %2609 = vmatpush1.msra.mxu0 %v2374
      %2610 = vmatprep.subr.mxu0 0.0
      %2611 = vmatpush1.msra.mxu0 %v2375
      %2612 = vmatprep.subr.mxu0 0.0
      %2613 = vmatpush1.msra.mxu0 %v2376
      %2614 = vmatprep.subr.mxu0 0.0
      %2615 = vmatpush1.msra.mxu0 %v2377
      %2616 = vmatprep.subr.mxu0 0.0
      %2617 = vmatpush1.msra.mxu0 %v2378
      %2618 = vmatprep.subr.mxu0 0.0
      %2619 = vmatpush1.msra.mxu0 %v2379
      %2620 = vmatprep.mubr.f32.mxu0 %v2281
      %2621 = vmatmul.mubr.f32.gmra.mrb[0].mxu0 %v2280
      %v2622 = vpop.f32.mrb[0].mxu0
      %v2623 = vadd.f32 %v2553, %v2622
      %v2624 = vpop.f32.mrb[0].mxu0
      %2625 = vdwg.mxu0
      %2626 = vmatprep.subr.mxu0 0.0
      %2627 = vmatpush1.msra.mxu0 %v2380
      %2628 = vmatprep.subr.mxu0 0.0
      %2629 = vmatpush1.msra.mxu0 %v2381
      %2630 = vmatprep.subr.mxu0 0.0
      %2631 = vmatpush1.msra.mxu0 %v2382
      %2632 = vmatprep.subr.mxu0 0.0
      %2633 = vmatpush1.msra.mxu0 %v2383
      %2634 = vmatprep.subr.mxu0 0.0
      %2635 = vmatpush1.msra.mxu0 %v2384
      %2636 = vmatprep.subr.mxu0 0.0
      %2637 = vmatpush1.msra.mxu0 %v2385
      %2638 = vmatprep.subr.mxu0 0.0
      %2639 = vmatpush1.msra.mxu0 %v2386
      %2640 = vmatprep.subr.mxu0 0.0
      %2641 = vmatpush1.msra.mxu0 %v2387
      %2642 = vmatprep.subr.mxu0 0.0
      %2643 = vmatpush1.msra.mxu0 %v2388
      %2644 = vmatprep.subr.mxu0 0.0
      %2645 = vmatpush1.msra.mxu0 %v2389
      %2646 = vmatprep.subr.mxu0 0.0
      %2647 = vmatpush1.msra.mxu0 %v2390
      %2648 = vmatprep.subr.mxu0 0.0
      %2649 = vmatpush1.msra.mxu0 %v2391
      %2650 = vmatprep.subr.mxu0 0.0
      %2651 = vmatpush1.msra.mxu0 %v2392
      %2652 = vmatprep.subr.mxu0 0.0
      %2653 = vmatpush1.msra.mxu0 %v2393
      %2654 = vmatprep.subr.mxu0 0.0
      %2655 = vmatpush1.msra.mxu0 %v2394
      %2656 = vmatprep.subr.mxu0 0.0
      %2657 = vmatpush1.msra.mxu0 %v2395
      %2658 = vmatprep.subr.mxu0 0.0
      %2659 = vmatpush1.msra.mxu0 %v2396
      %2660 = vmatprep.subr.mxu0 0.0
      %2661 = vmatpush1.msra.mxu0 %v2397
      %2662 = vmatprep.subr.mxu0 0.0
      %2663 = vmatpush1.msra.mxu0 %v2398
      %2664 = vmatprep.subr.mxu0 0.0
      %2665 = vmatpush1.msra.mxu0 %v2399
      %2666 = vmatprep.subr.mxu0 0.0
      %2667 = vmatpush1.msra.mxu0 %v2400
      %2668 = vmatprep.subr.mxu0 0.0
      %2669 = vmatpush1.msra.mxu0 %v2401
      %2670 = vmatprep.subr.mxu0 0.0
      %2671 = vmatpush1.msra.mxu0 %v2402
      %2672 = vmatprep.subr.mxu0 0.0
      %2673 = vmatpush1.msra.mxu0 %v2403
      %2674 = vmatprep.subr.mxu0 0.0
      %2675 = vmatpush1.msra.mxu0 %v2404
      %2676 = vmatprep.subr.mxu0 0.0
      %2677 = vmatpush1.msra.mxu0 %v2405
      %2678 = vmatprep.subr.mxu0 0.0
      %2679 = vmatpush1.msra.mxu0 %v2406
      %2680 = vmatprep.subr.mxu0 0.0
      %2681 = vmatpush1.msra.mxu0 %v2407
      %2682 = vmatprep.subr.mxu0 0.0
      %2683 = vmatpush1.msra.mxu0 %v2408
      %2684 = vmatprep.subr.mxu0 0.0
      %2685 = vmatpush1.msra.mxu0 %v2409
      %2686 = vmatprep.subr.mxu0 0.0
      %2687 = vmatpush1.msra.mxu0 %v2410
      %2688 = vmatprep.subr.mxu0 0.0
      %2689 = vmatpush1.msra.mxu0 %v2411
      %2690 = vmatprep.mubr.f32.mxu0 %v2283
      %2691 = vmatmul.mubr.f32.gmra.mrb[0].mxu0 %v2282
      %v2692 = vpop.f32.mrb[0].mxu0
      %v2693 = vadd.f32 %v2623, %v2692
      %v2694 = vpop.f32.mrb[0].mxu0
      %2695 = vdwg.mxu0
      %v2698 = vcombine.high %v2412, %v2412
      %v2700 = vunpack.c.l.s4 1983009808
      %v2701 = vunpack.c.0.s8 %v2700
      %v2702 = vlaneseq
      %v2703 = vshrl.u32 %v2702, 7
      %v2704 = vsub.s32 %v2701, %v2703
      %v2705 = vrot.slane %v2412, %v2704
      %v2707 = vunpack.c.l.s4 1983009808
      %v2708 = vunpack.c.0.s8 %v2707
      %v2709 = vlaneseq
      %v2710 = vshrl.u32 %v2709, 7
      %v2711 = vsub.s32 %v2708, %v2710
      %v2712 = vrot.slane %v2698, %v2711
      %v2713 = vcombine.high %v2705, %v2705
      %v2714 = vcombine.high %v2712, %v2712
      %v2715 = vcombine.high %v2413, %v2413
      %v2717 = vunpack.c.l.s4 1983009808
      %v2718 = vunpack.c.0.s8 %v2717
      %v2719 = vlaneseq
      %v2720 = vshrl.u32 %v2719, 7
      %v2721 = vsub.s32 %v2718, %v2720
      %v2722 = vrot.slane %v2413, %v2721
      %v2724 = vunpack.c.l.s4 1983009808
      %v2725 = vunpack.c.0.s8 %v2724
      %v2726 = vlaneseq
      %v2727 = vshrl.u32 %v2726, 7
      %v2728 = vsub.s32 %v2725, %v2727
      %v2729 = vrot.slane %v2715, %v2728
      %v2730 = vcombine.high %v2722, %v2722
      %v2731 = vcombine.high %v2729, %v2729
      %vm2732 = vcmask 15360
      %v2734 = vsel %vm2732, %v2693, 0
      %vm2736 = vcmask 1041408
      %v2737 = vsel %vm2736, %v2705, 0
      %v2739 = vsel %vm2736, %v2713, 0
      %v2741 = vsel %vm2736, %v2712, 0
      %v2743 = vsel %vm2736, %v2714, 0
      %v2745 = vsel %vm2736, %v2722, 0
      %v2747 = vsel %vm2736, %v2730, 0
      %v2749 = vsel %vm2736, %v2729, 0
      %v2751 = vsel %vm2736, %v2731, 0
      %2753 = vmatprep.subr.mxu0 %v2739
      %2754 = vmatpush1.msra.mxu0 %v2737
      %2755 = vmatprep.subr.mxu0 0.0
      %2756 = vmatpush1.msra.mxu0 0.0
      %2757 = vmatprep.subr.mxu0 0.0
      %2758 = vmatpush1.msra.mxu0 0.0
      %2759 = vmatprep.subr.mxu0 0.0
      %2760 = vmatpush1.msra.mxu0 0.0
      %2761 = vmatprep.subr.mxu0 0.0
      %2762 = vmatpush1.msra.mxu0 0.0
      %2763 = vmatprep.subr.mxu0 0.0
      %2764 = vmatpush1.msra.mxu0 0.0
      %2765 = vmatprep.subr.mxu0 0.0
      %2766 = vmatpush1.msra.mxu0 0.0
      %2767 = vmatprep.subr.mxu0 0.0
      %2768 = vmatpush1.msra.mxu0 0.0
      %2769 = vmatprep.subr.mxu0 0.0
      %2770 = vmatpush1.msra.mxu0 0.0
      %2771 = vmatprep.subr.mxu0 0.0
      %2772 = vmatpush1.msra.mxu0 0.0
      %2773 = vmatprep.subr.mxu0 0.0
      %2774 = vmatpush1.msra.mxu0 0.0
      %2775 = vmatprep.subr.mxu0 0.0
      %2776 = vmatpush1.msra.mxu0 0.0
      %2777 = vmatprep.subr.mxu0 0.0
      %2778 = vmatpush1.msra.mxu0 0.0
      %2779 = vmatprep.subr.mxu0 0.0
      %2780 = vmatpush1.msra.mxu0 0.0
      %2781 = vmatprep.subr.mxu0 0.0
      %2782 = vmatpush1.msra.mxu0 0.0
      %2783 = vmatprep.subr.mxu0 0.0
      %2784 = vmatpush1.msra.mxu0 0.0
      %2785 = vmatprep.subr.mxu0 0.0
      %2786 = vmatpush1.msra.mxu0 0.0
      %2787 = vmatprep.subr.mxu0 0.0
      %2788 = vmatpush1.msra.mxu0 0.0
      %2789 = vmatprep.subr.mxu0 0.0
      %2790 = vmatpush1.msra.mxu0 0.0
      %2791 = vmatprep.subr.mxu0 0.0
      %2792 = vmatpush1.msra.mxu0 0.0
      %2793 = vmatprep.subr.mxu0 0.0
      %2794 = vmatpush1.msra.mxu0 0.0
      %2795 = vmatprep.subr.mxu0 0.0
      %2796 = vmatpush1.msra.mxu0 0.0
      %2797 = vmatprep.subr.mxu0 0.0
      %2798 = vmatpush1.msra.mxu0 0.0
      %2799 = vmatprep.subr.mxu0 0.0
      %2800 = vmatpush1.msra.mxu0 0.0
      %2801 = vmatprep.subr.mxu0 0.0
      %2802 = vmatpush1.msra.mxu0 0.0
      %2803 = vmatprep.subr.mxu0 0.0
      %2804 = vmatpush1.msra.mxu0 0.0
      %2805 = vmatprep.subr.mxu0 0.0
      %2806 = vmatpush1.msra.mxu0 0.0
      %2807 = vmatprep.subr.mxu0 0.0
      %2808 = vmatpush1.msra.mxu0 0.0
      %2809 = vmatprep.subr.mxu0 0.0
      %2810 = vmatpush1.msra.mxu0 0.0
      %2811 = vmatprep.subr.mxu0 0.0
      %2812 = vmatpush1.msra.mxu0 0.0
      %2813 = vmatprep.subr.mxu0 0.0
      %2814 = vmatpush1.msra.mxu0 0.0
      %2815 = vmatprep.subr.mxu0 0.0
      %2816 = vmatpush1.msra.mxu0 0.0
      %2817 = vmatprep.mubr.f32.mxu0 0.0
      %2818 = vmatmul.mubr.f32.gmra.mrb[0].mxu0 %v2734
      %v2819 = vpop.f32.mrb[0].mxu0
      %v2820 = vadd.f32 0.0, %v2819
      %v2821 = vpop.f32.mrb[0].mxu0
      %v2822 = vadd.f32 0.0, %v2821
      %2823 = vdwg.mxu0
      %2824 = vmatprep.subr.mxu0 %v2743
      %2825 = vmatpush1.msra.mxu0 %v2741
      %2826 = vmatprep.subr.mxu0 0.0
      %2827 = vmatpush1.msra.mxu0 0.0
      %2828 = vmatprep.subr.mxu0 0.0
      %2829 = vmatpush1.msra.mxu0 0.0
      %2830 = vmatprep.subr.mxu0 0.0
      %2831 = vmatpush1.msra.mxu0 0.0
      %2832 = vmatprep.subr.mxu0 0.0
      %2833 = vmatpush1.msra.mxu0 0.0
      %2834 = vmatprep.subr.mxu0 0.0
      %2835 = vmatpush1.msra.mxu0 0.0
      %2836 = vmatprep.subr.mxu0 0.0
      %2837 = vmatpush1.msra.mxu0 0.0
      %2838 = vmatprep.subr.mxu0 0.0
      %2839 = vmatpush1.msra.mxu0 0.0
      %2840 = vmatprep.subr.mxu0 0.0
      %2841 = vmatpush1.msra.mxu0 0.0
      %2842 = vmatprep.subr.mxu0 0.0
      %2843 = vmatpush1.msra.mxu0 0.0
      %2844 = vmatprep.subr.mxu0 0.0
      %2845 = vmatpush1.msra.mxu0 0.0
      %2846 = vmatprep.subr.mxu0 0.0
      %2847 = vmatpush1.msra.mxu0 0.0
      %2848 = vmatprep.subr.mxu0 0.0
      %2849 = vmatpush1.msra.mxu0 0.0
      %2850 = vmatprep.subr.mxu0 0.0
      %2851 = vmatpush1.msra.mxu0 0.0
      %2852 = vmatprep.subr.mxu0 0.0
      %2853 = vmatpush1.msra.mxu0 0.0
      %2854 = vmatprep.subr.mxu0 0.0
      %2855 = vmatpush1.msra.mxu0 0.0
      %2856 = vmatprep.subr.mxu0 0.0
      %2857 = vmatpush1.msra.mxu0 0.0
      %2858 = vmatprep.subr.mxu0 0.0
      %2859 = vmatpush1.msra.mxu0 0.0
      %2860 = vmatprep.subr.mxu0 0.0
      %2861 = vmatpush1.msra.mxu0 0.0
      %2862 = vmatprep.subr.mxu0 0.0
      %2863 = vmatpush1.msra.mxu0 0.0
      %2864 = vmatprep.subr.mxu0 0.0
      %2865 = vmatpush1.msra.mxu0 0.0
      %2866 = vmatprep.subr.mxu0 0.0
      %2867 = vmatpush1.msra.mxu0 0.0
      %2868 = vmatprep.subr.mxu0 0.0
      %2869 = vmatpush1.msra.mxu0 0.0
      %2870 = vmatprep.subr.mxu0 0.0
      %2871 = vmatpush1.msra.mxu0 0.0
      %2872 = vmatprep.subr.mxu0 0.0
      %2873 = vmatpush1.msra.mxu0 0.0
      %2874 = vmatprep.subr.mxu0 0.0
      %2875 = vmatpush1.msra.mxu0 0.0
      %2876 = vmatprep.subr.mxu0 0.0
      %2877 = vmatpush1.msra.mxu0 0.0
      %2878 = vmatprep.subr.mxu0 0.0
      %2879 = vmatpush1.msra.mxu0 0.0
      %2880 = vmatprep.subr.mxu0 0.0
      %2881 = vmatpush1.msra.mxu0 0.0
      %2882 = vmatprep.subr.mxu0 0.0
      %2883 = vmatpush1.msra.mxu0 0.0
      %2884 = vmatprep.subr.mxu0 0.0
      %2885 = vmatpush1.msra.mxu0 0.0
      %2886 = vmatprep.subr.mxu0 0.0
      %2887 = vmatpush1.msra.mxu0 0.0
      %2888 = vmatprep.mubr.f32.mxu0 0.0
      %2889 = vmatmul.mubr.f32.gmra.mrb[0].mxu0 %v2734
      %v2890 = vpop.f32.mrb[0].mxu0
      %v2891 = vadd.f32 0.0, %v2890
      %v2892 = vpop.f32.mrb[0].mxu0
      %v2893 = vadd.f32 0.0, %v2892
      %2894 = vdwg.mxu0
      %2895 = vmatprep.subr.mxu0 %v2747
      %2896 = vmatpush1.msra.mxu0 %v2745
      %2897 = vmatprep.subr.mxu0 0.0
      %2898 = vmatpush1.msra.mxu0 0.0
      %2899 = vmatprep.subr.mxu0 0.0
      %2900 = vmatpush1.msra.mxu0 0.0
      %2901 = vmatprep.subr.mxu0 0.0
      %2902 = vmatpush1.msra.mxu0 0.0
      %2903 = vmatprep.subr.mxu0 0.0
      %2904 = vmatpush1.msra.mxu0 0.0
      %2905 = vmatprep.subr.mxu0 0.0
      %2906 = vmatpush1.msra.mxu0 0.0
      %2907 = vmatprep.subr.mxu0 0.0
      %2908 = vmatpush1.msra.mxu0 0.0
      %2909 = vmatprep.subr.mxu0 0.0
      %2910 = vmatpush1.msra.mxu0 0.0
      %2911 = vmatprep.subr.mxu0 0.0
      %2912 = vmatpush1.msra.mxu0 0.0
      %2913 = vmatprep.subr.mxu0 0.0
      %2914 = vmatpush1.msra.mxu0 0.0
      %2915 = vmatprep.subr.mxu0 0.0
      %2916 = vmatpush1.msra.mxu0 0.0
      %2917 = vmatprep.subr.mxu0 0.0
      %2918 = vmatpush1.msra.mxu0 0.0
      %2919 = vmatprep.subr.mxu0 0.0
      %2920 = vmatpush1.msra.mxu0 0.0
      %2921 = vmatprep.subr.mxu0 0.0
      %2922 = vmatpush1.msra.mxu0 0.0
      %2923 = vmatprep.subr.mxu0 0.0
      %2924 = vmatpush1.msra.mxu0 0.0
      %2925 = vmatprep.subr.mxu0 0.0
      %2926 = vmatpush1.msra.mxu0 0.0
      %2927 = vmatprep.subr.mxu0 0.0
      %2928 = vmatpush1.msra.mxu0 0.0
      %2929 = vmatprep.subr.mxu0 0.0
      %2930 = vmatpush1.msra.mxu0 0.0
      %2931 = vmatprep.subr.mxu0 0.0
      %2932 = vmatpush1.msra.mxu0 0.0
      %2933 = vmatprep.subr.mxu0 0.0
      %2934 = vmatpush1.msra.mxu0 0.0
      %2935 = vmatprep.subr.mxu0 0.0
      %2936 = vmatpush1.msra.mxu0 0.0
      %2937 = vmatprep.subr.mxu0 0.0
      %2938 = vmatpush1.msra.mxu0 0.0
      %2939 = vmatprep.subr.mxu0 0.0
      %2940 = vmatpush1.msra.mxu0 0.0
      %2941 = vmatprep.subr.mxu0 0.0
      %2942 = vmatpush1.msra.mxu0 0.0
      %2943 = vmatprep.subr.mxu0 0.0
      %2944 = vmatpush1.msra.mxu0 0.0
      %2945 = vmatprep.subr.mxu0 0.0
      %2946 = vmatpush1.msra.mxu0 0.0
      %2947 = vmatprep.subr.mxu0 0.0
      %2948 = vmatpush1.msra.mxu0 0.0
      %2949 = vmatprep.subr.mxu0 0.0
      %2950 = vmatpush1.msra.mxu0 0.0
      %2951 = vmatprep.subr.mxu0 0.0
      %2952 = vmatpush1.msra.mxu0 0.0
      %2953 = vmatprep.subr.mxu0 0.0
      %2954 = vmatpush1.msra.mxu0 0.0
      %2955 = vmatprep.subr.mxu0 0.0
      %2956 = vmatpush1.msra.mxu0 0.0
      %2957 = vmatprep.subr.mxu0 0.0
      %2958 = vmatpush1.msra.mxu0 0.0
      %2959 = vmatprep.mubr.f32.mxu0 0.0
      %2960 = vmatmul.mubr.f32.gmra.mrb[0].mxu0 %v2734
      %v2961 = vpop.f32.mrb[0].mxu0
      %v2962 = vadd.f32 0.0, %v2961
      %v2963 = vpop.f32.mrb[0].mxu0
      %v2964 = vadd.f32 0.0, %v2963
      %2965 = vdwg.mxu0
      %2966 = vmatprep.subr.mxu0 %v2751
      %2967 = vmatpush1.msra.mxu0 %v2749
      %2968 = vmatprep.subr.mxu0 0.0
      %2969 = vmatpush1.msra.mxu0 0.0
      %2970 = vmatprep.subr.mxu0 0.0
      %2971 = vmatpush1.msra.mxu0 0.0
      %2972 = vmatprep.subr.mxu0 0.0
      %2973 = vmatpush1.msra.mxu0 0.0
      %2974 = vmatprep.subr.mxu0 0.0
      %2975 = vmatpush1.msra.mxu0 0.0
      %2976 = vmatprep.subr.mxu0 0.0
      %2977 = vmatpush1.msra.mxu0 0.0
      %2978 = vmatprep.subr.mxu0 0.0
      %2979 = vmatpush1.msra.mxu0 0.0
      %2980 = vmatprep.subr.mxu0 0.0
      %2981 = vmatpush1.msra.mxu0 0.0
      %2982 = vmatprep.subr.mxu0 0.0
      %2983 = vmatpush1.msra.mxu0 0.0
      %2984 = vmatprep.subr.mxu0 0.0
      %2985 = vmatpush1.msra.mxu0 0.0
      %2986 = vmatprep.subr.mxu0 0.0
      %2987 = vmatpush1.msra.mxu0 0.0
      %2988 = vmatprep.subr.mxu0 0.0
      %2989 = vmatpush1.msra.mxu0 0.0
      %2990 = vmatprep.subr.mxu0 0.0
      %2991 = vmatpush1.msra.mxu0 0.0
      %2992 = vmatprep.subr.mxu0 0.0
      %2993 = vmatpush1.msra.mxu0 0.0
      %2994 = vmatprep.subr.mxu0 0.0
      %2995 = vmatpush1.msra.mxu0 0.0
      %2996 = vmatprep.subr.mxu0 0.0
      %2997 = vmatpush1.msra.mxu0 0.0
      %2998 = vmatprep.subr.mxu0 0.0
      %2999 = vmatpush1.msra.mxu0 0.0
      %3000 = vmatprep.subr.mxu0 0.0
      %3001 = vmatpush1.msra.mxu0 0.0
      %3002 = vmatprep.subr.mxu0 0.0
      %3003 = vmatpush1.msra.mxu0 0.0
      %3004 = vmatprep.subr.mxu0 0.0
      %3005 = vmatpush1.msra.mxu0 0.0
      %3006 = vmatprep.subr.mxu0 0.0
      %3007 = vmatpush1.msra.mxu0 0.0
      %3008 = vmatprep.subr.mxu0 0.0
      %3009 = vmatpush1.msra.mxu0 0.0
      %3010 = vmatprep.subr.mxu0 0.0
      %3011 = vmatpush1.msra.mxu0 0.0
      %3012 = vmatprep.subr.mxu0 0.0
      %3013 = vmatpush1.msra.mxu0 0.0
      %3014 = vmatprep.subr.mxu0 0.0
      %3015 = vmatpush1.msra.mxu0 0.0
      %3016 = vmatprep.subr.mxu0 0.0
      %3017 = vmatpush1.msra.mxu0 0.0
      %3018 = vmatprep.subr.mxu0 0.0
      %3019 = vmatpush1.msra.mxu0 0.0
      %3020 = vmatprep.subr.mxu0 0.0
      %3021 = vmatpush1.msra.mxu0 0.0
      %3022 = vmatprep.subr.mxu0 0.0
      %3023 = vmatpush1.msra.mxu0 0.0
      %3024 = vmatprep.subr.mxu0 0.0
      %3025 = vmatpush1.msra.mxu0 0.0
      %3026 = vmatprep.subr.mxu0 0.0
      %3027 = vmatpush1.msra.mxu0 0.0
      %3028 = vmatprep.subr.mxu0 0.0
      %3029 = vmatpush1.msra.mxu0 0.0
      %3030 = vmatprep.mubr.f32.mxu0 0.0
      %3031 = vmatmul.mubr.f32.gmra.mrb[0].mxu0 %v2734
      %v3032 = vpop.f32.mrb[0].mxu0
      %v3033 = vadd.f32 0.0, %v3032
      %v3034 = vpop.f32.mrb[0].mxu0
      %v3035 = vadd.f32 0.0, %v3034
      %3036 = vdwg.mxu0
      %v3039 = vcombine.high %v2414, %v2414
      %v3041 = vunpack.c.l.s4 1983009808
      %v3042 = vunpack.c.0.s8 %v3041
      %v3043 = vlaneseq
      %v3044 = vshrl.u32 %v3043, 7
      %v3045 = vsub.s32 %v3042, %v3044
      %v3046 = vrot.slane %v2414, %v3045
      %v3048 = vunpack.c.l.s4 1983009808
      %v3049 = vunpack.c.0.s8 %v3048
      %v3050 = vlaneseq
      %v3051 = vshrl.u32 %v3050, 7
      %v3052 = vsub.s32 %v3049, %v3051
      %v3053 = vrot.slane %v3039, %v3052
      %v3054 = vcombine.high %v3046, %v3046
      %v3055 = vcombine.high %v3053, %v3053
      %v3056 = vcombine.high %v2415, %v2415
      %v3058 = vunpack.c.l.s4 1983009808
      %v3059 = vunpack.c.0.s8 %v3058
      %v3060 = vlaneseq
      %v3061 = vshrl.u32 %v3060, 7
      %v3062 = vsub.s32 %v3059, %v3061
      %v3063 = vrot.slane %v2415, %v3062
      %v3065 = vunpack.c.l.s4 1983009808
      %v3066 = vunpack.c.0.s8 %v3065
      %v3067 = vlaneseq
      %v3068 = vshrl.u32 %v3067, 7
      %v3069 = vsub.s32 %v3066, %v3068
      %v3070 = vrot.slane %v3056, %v3069
      %v3071 = vcombine.high %v3063, %v3063
      %v3072 = vcombine.high %v3070, %v3070
      %v3073 = vsel %vm2736, %v3046, 0
      %v3075 = vsel %vm2736, %v3054, 0
      %v3077 = vsel %vm2736, %v3053, 0
      %v3079 = vsel %vm2736, %v3055, 0
      %v3081 = vsel %vm2736, %v3063, 0
      %v3083 = vsel %vm2736, %v3071, 0
      %v3085 = vsel %vm2736, %v3070, 0
      %v3087 = vsel %vm2736, %v3072, 0
      %3089 = vmatprep.subr.mxu0 %v3075
      %3090 = vmatpush1.msra.mxu0 %v3073
      %3091 = vmatprep.subr.mxu0 0.0
      %3092 = vmatpush1.msra.mxu0 0.0
      %3093 = vmatprep.subr.mxu0 0.0
      %3094 = vmatpush1.msra.mxu0 0.0
      %3095 = vmatprep.subr.mxu0 0.0
      %3096 = vmatpush1.msra.mxu0 0.0
      %3097 = vmatprep.subr.mxu0 0.0
      %3098 = vmatpush1.msra.mxu0 0.0
      %3099 = vmatprep.subr.mxu0 0.0
      %3100 = vmatpush1.msra.mxu0 0.0
      %3101 = vmatprep.subr.mxu0 0.0
      %3102 = vmatpush1.msra.mxu0 0.0
      %3103 = vmatprep.subr.mxu0 0.0
      %3104 = vmatpush1.msra.mxu0 0.0
      %3105 = vmatprep.subr.mxu0 0.0
      %3106 = vmatpush1.msra.mxu0 0.0
      %3107 = vmatprep.subr.mxu0 0.0
      %3108 = vmatpush1.msra.mxu0 0.0
      %3109 = vmatprep.subr.mxu0 0.0
      %3110 = vmatpush1.msra.mxu0 0.0
      %3111 = vmatprep.subr.mxu0 0.0
      %3112 = vmatpush1.msra.mxu0 0.0
      %3113 = vmatprep.subr.mxu0 0.0
      %3114 = vmatpush1.msra.mxu0 0.0
      %3115 = vmatprep.subr.mxu0 0.0
      %3116 = vmatpush1.msra.mxu0 0.0
      %3117 = vmatprep.subr.mxu0 0.0
      %3118 = vmatpush1.msra.mxu0 0.0
      %3119 = vmatprep.subr.mxu0 0.0
      %3120 = vmatpush1.msra.mxu0 0.0
      %3121 = vmatprep.subr.mxu0 0.0
      %3122 = vmatpush1.msra.mxu0 0.0
      %3123 = vmatprep.subr.mxu0 0.0
      %3124 = vmatpush1.msra.mxu0 0.0
      %3125 = vmatprep.subr.mxu0 0.0
      %3126 = vmatpush1.msra.mxu0 0.0
      %3127 = vmatprep.subr.mxu0 0.0
      %3128 = vmatpush1.msra.mxu0 0.0
      %3129 = vmatprep.subr.mxu0 0.0
      %3130 = vmatpush1.msra.mxu0 0.0
      %3131 = vmatprep.subr.mxu0 0.0
      %3132 = vmatpush1.msra.mxu0 0.0
      %3133 = vmatprep.subr.mxu0 0.0
      %3134 = vmatpush1.msra.mxu0 0.0
      %3135 = vmatprep.subr.mxu0 0.0
      %3136 = vmatpush1.msra.mxu0 0.0
      %3137 = vmatprep.subr.mxu0 0.0
      %3138 = vmatpush1.msra.mxu0 0.0
      %3139 = vmatprep.subr.mxu0 0.0
      %3140 = vmatpush1.msra.mxu0 0.0
      %3141 = vmatprep.subr.mxu0 0.0
      %3142 = vmatpush1.msra.mxu0 0.0
      %3143 = vmatprep.subr.mxu0 0.0
      %3144 = vmatpush1.msra.mxu0 0.0
      %3145 = vmatprep.subr.mxu0 0.0
      %3146 = vmatpush1.msra.mxu0 0.0
      %3147 = vmatprep.subr.mxu0 0.0
      %3148 = vmatpush1.msra.mxu0 0.0
      %3149 = vmatprep.subr.mxu0 0.0
      %3150 = vmatpush1.msra.mxu0 0.0
      %3151 = vmatprep.subr.mxu0 0.0
      %3152 = vmatpush1.msra.mxu0 0.0
      %3153 = vmatprep.mubr.f32.mxu0 0.0
      %3154 = vmatmul.mubr.f32.gmra.mrb[0].mxu0 %v2734
      %v3155 = vpop.f32.mrb[0].mxu0
      %v3156 = vadd.f32 0.0, %v3155
      %v3157 = vpop.f32.mrb[0].mxu0
      %v3158 = vadd.f32 0.0, %v3157
      %3159 = vdwg.mxu0
      %3160 = vmatprep.subr.mxu0 %v3079
      %3161 = vmatpush1.msra.mxu0 %v3077
      %3162 = vmatprep.subr.mxu0 0.0
      %3163 = vmatpush1.msra.mxu0 0.0
      %3164 = vmatprep.subr.mxu0 0.0
      %3165 = vmatpush1.msra.mxu0 0.0
      %3166 = vmatprep.subr.mxu0 0.0
      %3167 = vmatpush1.msra.mxu0 0.0
      %3168 = vmatprep.subr.mxu0 0.0
      %3169 = vmatpush1.msra.mxu0 0.0
      %3170 = vmatprep.subr.mxu0 0.0
      %3171 = vmatpush1.msra.mxu0 0.0
      %3172 = vmatprep.subr.mxu0 0.0
      %3173 = vmatpush1.msra.mxu0 0.0
      %3174 = vmatprep.subr.mxu0 0.0
      %3175 = vmatpush1.msra.mxu0 0.0
      %3176 = vmatprep.subr.mxu0 0.0
      %3177 = vmatpush1.msra.mxu0 0.0
      %3178 = vmatprep.subr.mxu0 0.0
      %3179 = vmatpush1.msra.mxu0 0.0
      %3180 = vmatprep.subr.mxu0 0.0
      %3181 = vmatpush1.msra.mxu0 0.0
      %3182 = vmatprep.subr.mxu0 0.0
      %3183 = vmatpush1.msra.mxu0 0.0
      %3184 = vmatprep.subr.mxu0 0.0
      %3185 = vmatpush1.msra.mxu0 0.0
      %3186 = vmatprep.subr.mxu0 0.0
      %3187 = vmatpush1.msra.mxu0 0.0
      %3188 = vmatprep.subr.mxu0 0.0
      %3189 = vmatpush1.msra.mxu0 0.0
      %3190 = vmatprep.subr.mxu0 0.0
      %3191 = vmatpush1.msra.mxu0 0.0
      %3192 = vmatprep.subr.mxu0 0.0
      %3193 = vmatpush1.msra.mxu0 0.0
      %3194 = vmatprep.subr.mxu0 0.0
      %3195 = vmatpush1.msra.mxu0 0.0
      %3196 = vmatprep.subr.mxu0 0.0
      %3197 = vmatpush1.msra.mxu0 0.0
      %3198 = vmatprep.subr.mxu0 0.0
      %3199 = vmatpush1.msra.mxu0 0.0
      %3200 = vmatprep.subr.mxu0 0.0
      %3201 = vmatpush1.msra.mxu0 0.0
      %3202 = vmatprep.subr.mxu0 0.0
      %3203 = vmatpush1.msra.mxu0 0.0
      %3204 = vmatprep.subr.mxu0 0.0
      %3205 = vmatpush1.msra.mxu0 0.0
      %3206 = vmatprep.subr.mxu0 0.0
      %3207 = vmatpush1.msra.mxu0 0.0
      %3208 = vmatprep.subr.mxu0 0.0
      %3209 = vmatpush1.msra.mxu0 0.0
      %3210 = vmatprep.subr.mxu0 0.0
      %3211 = vmatpush1.msra.mxu0 0.0
      %3212 = vmatprep.subr.mxu0 0.0
      %3213 = vmatpush1.msra.mxu0 0.0
      %3214 = vmatprep.subr.mxu0 0.0
      %3215 = vmatpush1.msra.mxu0 0.0
      %3216 = vmatprep.subr.mxu0 0.0
      %3217 = vmatpush1.msra.mxu0 0.0
      %3218 = vmatprep.subr.mxu0 0.0
      %3219 = vmatpush1.msra.mxu0 0.0
      %3220 = vmatprep.subr.mxu0 0.0
      %3221 = vmatpush1.msra.mxu0 0.0
      %3222 = vmatprep.subr.mxu0 0.0
      %3223 = vmatpush1.msra.mxu0 0.0
      %3224 = vmatprep.mubr.f32.mxu0 0.0
      %3225 = vmatmul.mubr.f32.gmra.mrb[0].mxu0 %v2734
      %v3226 = vpop.f32.mrb[0].mxu0
      %v3227 = vadd.f32 0.0, %v3226
      %v3228 = vpop.f32.mrb[0].mxu0
      %v3229 = vadd.f32 0.0, %v3228
      %3230 = vdwg.mxu0
      %3231 = vmatprep.subr.mxu0 %v3083
      %3232 = vmatpush1.msra.mxu0 %v3081
      %3233 = vmatprep.subr.mxu0 0.0
      %3234 = vmatpush1.msra.mxu0 0.0
      %3235 = vmatprep.subr.mxu0 0.0
      %3236 = vmatpush1.msra.mxu0 0.0
      %3237 = vmatprep.subr.mxu0 0.0
      %3238 = vmatpush1.msra.mxu0 0.0
      %3239 = vmatprep.subr.mxu0 0.0
      %3240 = vmatpush1.msra.mxu0 0.0
      %3241 = vmatprep.subr.mxu0 0.0
      %3242 = vmatpush1.msra.mxu0 0.0
      %3243 = vmatprep.subr.mxu0 0.0
      %3244 = vmatpush1.msra.mxu0 0.0
      %3245 = vmatprep.subr.mxu0 0.0
      %3246 = vmatpush1.msra.mxu0 0.0
      %3247 = vmatprep.subr.mxu0 0.0
      %3248 = vmatpush1.msra.mxu0 0.0
      %3249 = vmatprep.subr.mxu0 0.0
      %3250 = vmatpush1.msra.mxu0 0.0
      %3251 = vmatprep.subr.mxu0 0.0
      %3252 = vmatpush1.msra.mxu0 0.0
      %3253 = vmatprep.subr.mxu0 0.0
      %3254 = vmatpush1.msra.mxu0 0.0
      %3255 = vmatprep.subr.mxu0 0.0
      %3256 = vmatpush1.msra.mxu0 0.0
      %3257 = vmatprep.subr.mxu0 0.0
      %3258 = vmatpush1.msra.mxu0 0.0
      %3259 = vmatprep.subr.mxu0 0.0
      %3260 = vmatpush1.msra.mxu0 0.0
      %3261 = vmatprep.subr.mxu0 0.0
      %3262 = vmatpush1.msra.mxu0 0.0
      %3263 = vmatprep.subr.mxu0 0.0
      %3264 = vmatpush1.msra.mxu0 0.0
      %3265 = vmatprep.subr.mxu0 0.0
      %3266 = vmatpush1.msra.mxu0 0.0
      %3267 = vmatprep.subr.mxu0 0.0
      %3268 = vmatpush1.msra.mxu0 0.0
      %3269 = vmatprep.subr.mxu0 0.0
      %3270 = vmatpush1.msra.mxu0 0.0
      %3271 = vmatprep.subr.mxu0 0.0
      %3272 = vmatpush1.msra.mxu0 0.0
      %3273 = vmatprep.subr.mxu0 0.0
      %3274 = vmatpush1.msra.mxu0 0.0
      %3275 = vmatprep.subr.mxu0 0.0
      %3276 = vmatpush1.msra.mxu0 0.0
      %3277 = vmatprep.subr.mxu0 0.0
      %3278 = vmatpush1.msra.mxu0 0.0
      %3279 = vmatprep.subr.mxu0 0.0
      %3280 = vmatpush1.msra.mxu0 0.0
      %3281 = vmatprep.subr.mxu0 0.0
      %3282 = vmatpush1.msra.mxu0 0.0
      %3283 = vmatprep.subr.mxu0 0.0
      %3284 = vmatpush1.msra.mxu0 0.0
      %3285 = vmatprep.subr.mxu0 0.0
      %3286 = vmatpush1.msra.mxu0 0.0
      %3287 = vmatprep.subr.mxu0 0.0
      %3288 = vmatpush1.msra.mxu0 0.0
      %3289 = vmatprep.subr.mxu0 0.0
      %3290 = vmatpush1.msra.mxu0 0.0
      %3291 = vmatprep.subr.mxu0 0.0
      %3292 = vmatpush1.msra.mxu0 0.0
      %3293 = vmatprep.subr.mxu0 0.0
      %3294 = vmatpush1.msra.mxu0 0.0
      %3295 = vmatprep.mubr.f32.mxu0 0.0
      %3296 = vmatmul.mubr.f32.gmra.mrb[0].mxu0 %v2734
      %v3297 = vpop.f32.mrb[0].mxu0
      %v3298 = vadd.f32 0.0, %v3297
      %v3299 = vpop.f32.mrb[0].mxu0
      %v3300 = vadd.f32 0.0, %v3299
      %3301 = vdwg.mxu0
      %3302 = vmatprep.subr.mxu0 %v3087
      %3303 = vmatpush1.msra.mxu0 %v3085
      %3304 = vmatprep.subr.mxu0 0.0
      %3305 = vmatpush1.msra.mxu0 0.0
      %3306 = vmatprep.subr.mxu0 0.0
      %3307 = vmatpush1.msra.mxu0 0.0
      %3308 = vmatprep.subr.mxu0 0.0
      %3309 = vmatpush1.msra.mxu0 0.0
      %3310 = vmatprep.subr.mxu0 0.0
      %3311 = vmatpush1.msra.mxu0 0.0
      %3312 = vmatprep.subr.mxu0 0.0
      %3313 = vmatpush1.msra.mxu0 0.0
      %3314 = vmatprep.subr.mxu0 0.0
      %3315 = vmatpush1.msra.mxu0 0.0
      %3316 = vmatprep.subr.mxu0 0.0
      %3317 = vmatpush1.msra.mxu0 0.0
      %3318 = vmatprep.subr.mxu0 0.0
      %3319 = vmatpush1.msra.mxu0 0.0
      %3320 = vmatprep.subr.mxu0 0.0
      %3321 = vmatpush1.msra.mxu0 0.0
      %3322 = vmatprep.subr.mxu0 0.0
      %3323 = vmatpush1.msra.mxu0 0.0
      %3324 = vmatprep.subr.mxu0 0.0
      %3325 = vmatpush1.msra.mxu0 0.0
      %3326 = vmatprep.subr.mxu0 0.0
      %3327 = vmatpush1.msra.mxu0 0.0
      %3328 = vmatprep.subr.mxu0 0.0
      %3329 = vmatpush1.msra.mxu0 0.0
      %3330 = vmatprep.subr.mxu0 0.0
      %3331 = vmatpush1.msra.mxu0 0.0
      %3332 = vmatprep.subr.mxu0 0.0
      %3333 = vmatpush1.msra.mxu0 0.0
      %3334 = vmatprep.subr.mxu0 0.0
      %3335 = vmatpush1.msra.mxu0 0.0
      %3336 = vmatprep.subr.mxu0 0.0
      %3337 = vmatpush1.msra.mxu0 0.0
      %3338 = vmatprep.subr.mxu0 0.0
      %3339 = vmatpush1.msra.mxu0 0.0
      %3340 = vmatprep.subr.mxu0 0.0
      %3341 = vmatpush1.msra.mxu0 0.0
      %3342 = vmatprep.subr.mxu0 0.0
      %3343 = vmatpush1.msra.mxu0 0.0
      %3344 = vmatprep.subr.mxu0 0.0
      %3345 = vmatpush1.msra.mxu0 0.0
      %3346 = vmatprep.subr.mxu0 0.0
      %3347 = vmatpush1.msra.mxu0 0.0
      %3348 = vmatprep.subr.mxu0 0.0
      %3349 = vmatpush1.msra.mxu0 0.0
      %3350 = vmatprep.subr.mxu0 0.0
      %3351 = vmatpush1.msra.mxu0 0.0
      %3352 = vmatprep.subr.mxu0 0.0
      %3353 = vmatpush1.msra.mxu0 0.0
      %3354 = vmatprep.subr.mxu0 0.0
      %3355 = vmatpush1.msra.mxu0 0.0
      %3356 = vmatprep.subr.mxu0 0.0
      %3357 = vmatpush1.msra.mxu0 0.0
      %3358 = vmatprep.subr.mxu0 0.0
      %3359 = vmatpush1.msra.mxu0 0.0
      %3360 = vmatprep.subr.mxu0 0.0
      %3361 = vmatpush1.msra.mxu0 0.0
      %3362 = vmatprep.subr.mxu0 0.0
      %3363 = vmatpush1.msra.mxu0 0.0
      %3364 = vmatprep.subr.mxu0 0.0
      %3365 = vmatpush1.msra.mxu0 0.0
      %3366 = vmatprep.mubr.f32.mxu0 0.0
      %3367 = vmatmul.mubr.f32.gmra.mrb[0].mxu0 %v2734
      %v3368 = vpop.f32.mrb[0].mxu0
      %v3369 = vadd.f32 0.0, %v3368
      %v3370 = vpop.f32.mrb[0].mxu0
      %v3371 = vadd.f32 0.0, %v3370
      %3372 = vdwg.mxu0
      %v3373 = vsub.f32 %v2276, %v2820
      %v3374 = vsub.f32 %v2277, %v2822
      %v3375 = vsub.f32 %v2278, %v2891
      %v3376 = vsub.f32 %v2279, %v2893
      %v3377 = vsub.f32 %v2280, %v2962
      %v3378 = vsub.f32 %v2281, %v2964
      %v3379 = vsub.f32 %v2282, %v3033
      %v3380 = vsub.f32 %v2283, %v3035
      %v3381 = vmul.f32 %v3373, %v3373
      %v3382 = vmul.f32 %v3374, %v3374
      %v3383 = vmul.f32 %v3375, %v3375
      %v3384 = vmul.f32 %v3376, %v3376
      %v3385 = vmul.f32 %v3377, %v3377
      %v3386 = vmul.f32 %v3378, %v3378
      %v3387 = vmul.f32 %v3379, %v3379
      %v3388 = vmul.f32 %v3380, %v3380
      %3389 = vmatprep.subr.mxu0 0.0
      %3390 = vmatpush1.msra.mxu0 %v2284
      %3391 = vmatprep.subr.mxu0 0.0
      %3392 = vmatpush1.msra.mxu0 %v2285
      %3393 = vmatprep.subr.mxu0 0.0
      %3394 = vmatpush1.msra.mxu0 %v2286
      %3395 = vmatprep.subr.mxu0 0.0
      %3396 = vmatpush1.msra.mxu0 %v2287
      %3397 = vmatprep.subr.mxu0 0.0
      %3398 = vmatpush1.msra.mxu0 %v2288
      %3399 = vmatprep.subr.mxu0 0.0
      %3400 = vmatpush1.msra.mxu0 %v2289
      %3401 = vmatprep.subr.mxu0 0.0
      %3402 = vmatpush1.msra.mxu0 %v2290
      %3403 = vmatprep.subr.mxu0 0.0
      %3404 = vmatpush1.msra.mxu0 %v2291
      %3405 = vmatprep.subr.mxu0 0.0
      %3406 = vmatpush1.msra.mxu0 %v2292
      %3407 = vmatprep.subr.mxu0 0.0
      %3408 = vmatpush1.msra.mxu0 %v2293
      %3409 = vmatprep.subr.mxu0 0.0
      %3410 = vmatpush1.msra.mxu0 %v2294
      %3411 = vmatprep.subr.mxu0 0.0
      %3412 = vmatpush1.msra.mxu0 %v2295
      %3413 = vmatprep.subr.mxu0 0.0
      %3414 = vmatpush1.msra.mxu0 %v2296
      %3415 = vmatprep.subr.mxu0 0.0
      %3416 = vmatpush1.msra.mxu0 %v2297
      %3417 = vmatprep.subr.mxu0 0.0
      %3418 = vmatpush1.msra.mxu0 %v2298
      %3419 = vmatprep.subr.mxu0 0.0
      %3420 = vmatpush1.msra.mxu0 %v2299
      %3421 = vmatprep.subr.mxu0 0.0
      %3422 = vmatpush1.msra.mxu0 %v2300
      %3423 = vmatprep.subr.mxu0 0.0
      %3424 = vmatpush1.msra.mxu0 %v2301
      %3425 = vmatprep.subr.mxu0 0.0
      %3426 = vmatpush1.msra.mxu0 %v2302
      %3427 = vmatprep.subr.mxu0 0.0
      %3428 = vmatpush1.msra.mxu0 %v2303
      %3429 = vmatprep.subr.mxu0 0.0
      %3430 = vmatpush1.msra.mxu0 %v2304
      %3431 = vmatprep.subr.mxu0 0.0
      %3432 = vmatpush1.msra.mxu0 %v2305
      %3433 = vmatprep.subr.mxu0 0.0
      %3434 = vmatpush1.msra.mxu0 %v2306
      %3435 = vmatprep.subr.mxu0 0.0
      %3436 = vmatpush1.msra.mxu0 %v2307
      %3437 = vmatprep.subr.mxu0 0.0
      %3438 = vmatpush1.msra.mxu0 %v2308
      %3439 = vmatprep.subr.mxu0 0.0
      %3440 = vmatpush1.msra.mxu0 %v2309
      %3441 = vmatprep.subr.mxu0 0.0
      %3442 = vmatpush1.msra.mxu0 %v2310
      %3443 = vmatprep.subr.mxu0 0.0
      %3444 = vmatpush1.msra.mxu0 %v2311
      %3445 = vmatprep.subr.mxu0 0.0
      %3446 = vmatpush1.msra.mxu0 %v2312
      %3447 = vmatprep.subr.mxu0 0.0
      %3448 = vmatpush1.msra.mxu0 %v2313
      %3449 = vmatprep.subr.mxu0 0.0
      %3450 = vmatpush1.msra.mxu0 %v2314
      %3451 = vmatprep.subr.mxu0 0.0
      %3452 = vmatpush1.msra.mxu0 %v2315
      %3453 = vmatprep.mubr.f32.mxu0 %v3382
      %3454 = vmatmul.mubr.f32.gmra.mrb[0].mxu0 %v3381
      %v3455 = vpop.f32.mrb[0].mxu0
      %v3456 = vadd.f32 0.0, %v3455
      %v3457 = vpop.f32.mrb[0].mxu0
      %3458 = vdwg.mxu0
      %3459 = vmatprep.subr.mxu0 0.0
      %3460 = vmatpush1.msra.mxu0 %v2316
      %3461 = vmatprep.subr.mxu0 0.0
      %3462 = vmatpush1.msra.mxu0 %v2317
      %3463 = vmatprep.subr.mxu0 0.0
      %3464 = vmatpush1.msra.mxu0 %v2318
      %3465 = vmatprep.subr.mxu0 0.0
      %3466 = vmatpush1.msra.mxu0 %v2319
      %3467 = vmatprep.subr.mxu0 0.0
      %3468 = vmatpush1.msra.mxu0 %v2320
      %3469 = vmatprep.subr.mxu0 0.0
      %3470 = vmatpush1.msra.mxu0 %v2321
      %3471 = vmatprep.subr.mxu0 0.0
      %3472 = vmatpush1.msra.mxu0 %v2322
      %3473 = vmatprep.subr.mxu0 0.0
      %3474 = vmatpush1.msra.mxu0 %v2323
      %3475 = vmatprep.subr.mxu0 0.0
      %3476 = vmatpush1.msra.mxu0 %v2324
      %3477 = vmatprep.subr.mxu0 0.0
      %3478 = vmatpush1.msra.mxu0 %v2325
      %3479 = vmatprep.subr.mxu0 0.0
      %3480 = vmatpush1.msra.mxu0 %v2326
      %3481 = vmatprep.subr.mxu0 0.0
      %3482 = vmatpush1.msra.mxu0 %v2327
      %3483 = vmatprep.subr.mxu0 0.0
      %3484 = vmatpush1.msra.mxu0 %v2328
      %3485 = vmatprep.subr.mxu0 0.0
      %3486 = vmatpush1.msra.mxu0 %v2329
      %3487 = vmatprep.subr.mxu0 0.0
      %3488 = vmatpush1.msra.mxu0 %v2330
      %3489 = vmatprep.subr.mxu0 0.0
      %3490 = vmatpush1.msra.mxu0 %v2331
      %3491 = vmatprep.subr.mxu0 0.0
      %3492 = vmatpush1.msra.mxu0 %v2332
      %3493 = vmatprep.subr.mxu0 0.0
      %3494 = vmatpush1.msra.mxu0 %v2333
      %3495 = vmatprep.subr.mxu0 0.0
      %3496 = vmatpush1.msra.mxu0 %v2334
      %3497 = vmatprep.subr.mxu0 0.0
      %3498 = vmatpush1.msra.mxu0 %v2335
      %3499 = vmatprep.subr.mxu0 0.0
      %3500 = vmatpush1.msra.mxu0 %v2336
      %3501 = vmatprep.subr.mxu0 0.0
      %3502 = vmatpush1.msra.mxu0 %v2337
      %3503 = vmatprep.subr.mxu0 0.0
      %3504 = vmatpush1.msra.mxu0 %v2338
      %3505 = vmatprep.subr.mxu0 0.0
      %3506 = vmatpush1.msra.mxu0 %v2339
      %3507 = vmatprep.subr.mxu0 0.0
      %3508 = vmatpush1.msra.mxu0 %v2340
      %3509 = vmatprep.subr.mxu0 0.0
      %3510 = vmatpush1.msra.mxu0 %v2341
      %3511 = vmatprep.subr.mxu0 0.0
      %3512 = vmatpush1.msra.mxu0 %v2342
      %3513 = vmatprep.subr.mxu0 0.0
      %3514 = vmatpush1.msra.mxu0 %v2343
      %3515 = vmatprep.subr.mxu0 0.0
      %3516 = vmatpush1.msra.mxu0 %v2344
      %3517 = vmatprep.subr.mxu0 0.0
      %3518 = vmatpush1.msra.mxu0 %v2345
      %3519 = vmatprep.subr.mxu0 0.0
      %3520 = vmatpush1.msra.mxu0 %v2346
      %3521 = vmatprep.subr.mxu0 0.0
      %3522 = vmatpush1.msra.mxu0 %v2347
      %3523 = vmatprep.mubr.f32.mxu0 %v3384
      %3524 = vmatmul.mubr.f32.gmra.mrb[0].mxu0 %v3383
      %v3525 = vpop.f32.mrb[0].mxu0
      %v3526 = vadd.f32 %v3456, %v3525
      %v3527 = vpop.f32.mrb[0].mxu0
      %3528 = vdwg.mxu0
      %3529 = vmatprep.subr.mxu0 0.0
      %3530 = vmatpush1.msra.mxu0 %v2348
      %3531 = vmatprep.subr.mxu0 0.0
      %3532 = vmatpush1.msra.mxu0 %v2349
      %3533 = vmatprep.subr.mxu0 0.0
      %3534 = vmatpush1.msra.mxu0 %v2350
      %3535 = vmatprep.subr.mxu0 0.0
      %3536 = vmatpush1.msra.mxu0 %v2351
      %3537 = vmatprep.subr.mxu0 0.0
      %3538 = vmatpush1.msra.mxu0 %v2352
      %3539 = vmatprep.subr.mxu0 0.0
      %3540 = vmatpush1.msra.mxu0 %v2353
      %3541 = vmatprep.subr.mxu0 0.0
      %3542 = vmatpush1.msra.mxu0 %v2354
      %3543 = vmatprep.subr.mxu0 0.0
      %3544 = vmatpush1.msra.mxu0 %v2355
      %3545 = vmatprep.subr.mxu0 0.0
      %3546 = vmatpush1.msra.mxu0 %v2356
      %3547 = vmatprep.subr.mxu0 0.0
      %3548 = vmatpush1.msra.mxu0 %v2357
      %3549 = vmatprep.subr.mxu0 0.0
      %3550 = vmatpush1.msra.mxu0 %v2358
      %3551 = vmatprep.subr.mxu0 0.0
      %3552 = vmatpush1.msra.mxu0 %v2359
      %3553 = vmatprep.subr.mxu0 0.0
      %3554 = vmatpush1.msra.mxu0 %v2360
      %3555 = vmatprep.subr.mxu0 0.0
      %3556 = vmatpush1.msra.mxu0 %v2361
      %3557 = vmatprep.subr.mxu0 0.0
      %3558 = vmatpush1.msra.mxu0 %v2362
      %3559 = vmatprep.subr.mxu0 0.0
      %3560 = vmatpush1.msra.mxu0 %v2363
      %3561 = vmatprep.subr.mxu0 0.0
      %3562 = vmatpush1.msra.mxu0 %v2364
      %3563 = vmatprep.subr.mxu0 0.0
      %3564 = vmatpush1.msra.mxu0 %v2365
      %3565 = vmatprep.subr.mxu0 0.0
      %3566 = vmatpush1.msra.mxu0 %v2366
      %3567 = vmatprep.subr.mxu0 0.0
      %3568 = vmatpush1.msra.mxu0 %v2367
      %3569 = vmatprep.subr.mxu0 0.0
      %3570 = vmatpush1.msra.mxu0 %v2368
      %3571 = vmatprep.subr.mxu0 0.0
      %3572 = vmatpush1.msra.mxu0 %v2369
      %3573 = vmatprep.subr.mxu0 0.0
      %3574 = vmatpush1.msra.mxu0 %v2370
      %3575 = vmatprep.subr.mxu0 0.0
      %3576 = vmatpush1.msra.mxu0 %v2371
      %3577 = vmatprep.subr.mxu0 0.0
      %3578 = vmatpush1.msra.mxu0 %v2372
      %3579 = vmatprep.subr.mxu0 0.0
      %3580 = vmatpush1.msra.mxu0 %v2373
      %3581 = vmatprep.subr.mxu0 0.0
      %3582 = vmatpush1.msra.mxu0 %v2374
      %3583 = vmatprep.subr.mxu0 0.0
      %3584 = vmatpush1.msra.mxu0 %v2375
      %3585 = vmatprep.subr.mxu0 0.0
      %3586 = vmatpush1.msra.mxu0 %v2376
      %3587 = vmatprep.subr.mxu0 0.0
      %3588 = vmatpush1.msra.mxu0 %v2377
      %3589 = vmatprep.subr.mxu0 0.0
      %3590 = vmatpush1.msra.mxu0 %v2378
      %3591 = vmatprep.subr.mxu0 0.0
      %3592 = vmatpush1.msra.mxu0 %v2379
      %3593 = vmatprep.mubr.f32.mxu0 %v3386
      %3594 = vmatmul.mubr.f32.gmra.mrb[0].mxu0 %v3385
      %v3595 = vpop.f32.mrb[0].mxu0
      %v3596 = vadd.f32 %v3526, %v3595
      %v3597 = vpop.f32.mrb[0].mxu0
      %3598 = vdwg.mxu0
      %3599 = vmatprep.subr.mxu0 0.0
      %3600 = vmatpush1.msra.mxu0 %v2380
      %3601 = vmatprep.subr.mxu0 0.0
      %3602 = vmatpush1.msra.mxu0 %v2381
      %3603 = vmatprep.subr.mxu0 0.0
      %3604 = vmatpush1.msra.mxu0 %v2382
      %3605 = vmatprep.subr.mxu0 0.0
      %3606 = vmatpush1.msra.mxu0 %v2383
      %3607 = vmatprep.subr.mxu0 0.0
      %3608 = vmatpush1.msra.mxu0 %v2384
      %3609 = vmatprep.subr.mxu0 0.0
      %3610 = vmatpush1.msra.mxu0 %v2385
      %3611 = vmatprep.subr.mxu0 0.0
      %3612 = vmatpush1.msra.mxu0 %v2386
      %3613 = vmatprep.subr.mxu0 0.0
      %3614 = vmatpush1.msra.mxu0 %v2387
      %3615 = vmatprep.subr.mxu0 0.0
      %3616 = vmatpush1.msra.mxu0 %v2388
      %3617 = vmatprep.subr.mxu0 0.0
      %3618 = vmatpush1.msra.mxu0 %v2389
      %3619 = vmatprep.subr.mxu0 0.0
      %3620 = vmatpush1.msra.mxu0 %v2390
      %3621 = vmatprep.subr.mxu0 0.0
      %3622 = vmatpush1.msra.mxu0 %v2391
      %3623 = vmatprep.subr.mxu0 0.0
      %3624 = vmatpush1.msra.mxu0 %v2392
      %3625 = vmatprep.subr.mxu0 0.0
      %3626 = vmatpush1.msra.mxu0 %v2393
      %3627 = vmatprep.subr.mxu0 0.0
      %3628 = vmatpush1.msra.mxu0 %v2394
      %3629 = vmatprep.subr.mxu0 0.0
      %3630 = vmatpush1.msra.mxu0 %v2395
      %3631 = vmatprep.subr.mxu0 0.0
      %3632 = vmatpush1.msra.mxu0 %v2396
      %3633 = vmatprep.subr.mxu0 0.0
      %3634 = vmatpush1.msra.mxu0 %v2397
      %3635 = vmatprep.subr.mxu0 0.0
      %3636 = vmatpush1.msra.mxu0 %v2398
      %3637 = vmatprep.subr.mxu0 0.0
      %3638 = vmatpush1.msra.mxu0 %v2399
      %3639 = vmatprep.subr.mxu0 0.0
      %3640 = vmatpush1.msra.mxu0 %v2400
      %3641 = vmatprep.subr.mxu0 0.0
      %3642 = vmatpush1.msra.mxu0 %v2401
      %3643 = vmatprep.subr.mxu0 0.0
      %3644 = vmatpush1.msra.mxu0 %v2402
      %3645 = vmatprep.subr.mxu0 0.0
      %3646 = vmatpush1.msra.mxu0 %v2403
      %3647 = vmatprep.subr.mxu0 0.0
      %3648 = vmatpush1.msra.mxu0 %v2404
      %3649 = vmatprep.subr.mxu0 0.0
      %3650 = vmatpush1.msra.mxu0 %v2405
      %3651 = vmatprep.subr.mxu0 0.0
      %3652 = vmatpush1.msra.mxu0 %v2406
      %3653 = vmatprep.subr.mxu0 0.0
      %3654 = vmatpush1.msra.mxu0 %v2407
      %3655 = vmatprep.subr.mxu0 0.0
      %3656 = vmatpush1.msra.mxu0 %v2408
      %3657 = vmatprep.subr.mxu0 0.0
      %3658 = vmatpush1.msra.mxu0 %v2409
      %3659 = vmatprep.subr.mxu0 0.0
      %3660 = vmatpush1.msra.mxu0 %v2410
      %3661 = vmatprep.subr.mxu0 0.0
      %3662 = vmatpush1.msra.mxu0 %v2411
      %3663 = vmatprep.mubr.f32.mxu0 %v3388
      %3664 = vmatmul.mubr.f32.gmra.mrb[0].mxu0 %v3387
      %v3665 = vpop.f32.mrb[0].mxu0
      %v3666 = vadd.f32 %v3596, %v3665
      %v3667 = vpop.f32.mrb[0].mxu0
      %3668 = vdwg.mxu0
      %v3669 = vmul.f32 %v3666, 1.0019569
      %v3671 = vsel %vm2732, %v3669, 0
      %3673 = vmatprep.subr.mxu0 %v2739
      %3674 = vmatpush1.msra.mxu0 %v2737
      %3675 = vmatprep.subr.mxu0 0.0
      %3676 = vmatpush1.msra.mxu0 0.0
      %3677 = vmatprep.subr.mxu0 0.0
      %3678 = vmatpush1.msra.mxu0 0.0
      %3679 = vmatprep.subr.mxu0 0.0
      %3680 = vmatpush1.msra.mxu0 0.0
      %3681 = vmatprep.subr.mxu0 0.0
      %3682 = vmatpush1.msra.mxu0 0.0
      %3683 = vmatprep.subr.mxu0 0.0
      %3684 = vmatpush1.msra.mxu0 0.0
      %3685 = vmatprep.subr.mxu0 0.0
      %3686 = vmatpush1.msra.mxu0 0.0
      %3687 = vmatprep.subr.mxu0 0.0
      %3688 = vmatpush1.msra.mxu0 0.0
      %3689 = vmatprep.subr.mxu0 0.0
      %3690 = vmatpush1.msra.mxu0 0.0
      %3691 = vmatprep.subr.mxu0 0.0
      %3692 = vmatpush1.msra.mxu0 0.0
      %3693 = vmatprep.subr.mxu0 0.0
      %3694 = vmatpush1.msra.mxu0 0.0
      %3695 = vmatprep.subr.mxu0 0.0
      %3696 = vmatpush1.msra.mxu0 0.0
      %3697 = vmatprep.subr.mxu0 0.0
      %3698 = vmatpush1.msra.mxu0 0.0
      %3699 = vmatprep.subr.mxu0 0.0
      %3700 = vmatpush1.msra.mxu0 0.0
      %3701 = vmatprep.subr.mxu0 0.0
      %3702 = vmatpush1.msra.mxu0 0.0
      %3703 = vmatprep.subr.mxu0 0.0
      %3704 = vmatpush1.msra.mxu0 0.0
      %3705 = vmatprep.subr.mxu0 0.0
      %3706 = vmatpush1.msra.mxu0 0.0
      %3707 = vmatprep.subr.mxu0 0.0
      %3708 = vmatpush1.msra.mxu0 0.0
      %3709 = vmatprep.subr.mxu0 0.0
      %3710 = vmatpush1.msra.mxu0 0.0
      %3711 = vmatprep.subr.mxu0 0.0
      %3712 = vmatpush1.msra.mxu0 0.0
      %3713 = vmatprep.subr.mxu0 0.0
      %3714 = vmatpush1.msra.mxu0 0.0
      %3715 = vmatprep.subr.mxu0 0.0
      %3716 = vmatpush1.msra.mxu0 0.0
      %3717 = vmatprep.subr.mxu0 0.0
      %3718 = vmatpush1.msra.mxu0 0.0
      %3719 = vmatprep.subr.mxu0 0.0
      %3720 = vmatpush1.msra.mxu0 0.0
      %3721 = vmatprep.subr.mxu0 0.0
      %3722 = vmatpush1.msra.mxu0 0.0
      %3723 = vmatprep.subr.mxu0 0.0
      %3724 = vmatpush1.msra.mxu0 0.0
      %3725 = vmatprep.subr.mxu0 0.0
      %3726 = vmatpush1.msra.mxu0 0.0
      %3727 = vmatprep.subr.mxu0 0.0
      %3728 = vmatpush1.msra.mxu0 0.0
      %3729 = vmatprep.subr.mxu0 0.0
      %3730 = vmatpush1.msra.mxu0 0.0
      %3731 = vmatprep.subr.mxu0 0.0
      %3732 = vmatpush1.msra.mxu0 0.0
      %3733 = vmatprep.subr.mxu0 0.0
      %3734 = vmatpush1.msra.mxu0 0.0
      %3735 = vmatprep.subr.mxu0 0.0
      %3736 = vmatpush1.msra.mxu0 0.0
      %3737 = vmatprep.mubr.f32.mxu0 0.0
      %3738 = vmatmul.mubr.f32.gmra.mrb[0].mxu0 %v3671
      %v3739 = vpop.f32.mrb[0].mxu0
      %v3740 = vadd.f32 1e-05, %v3739
      %v3741 = vpop.f32.mrb[0].mxu0
      %v3742 = vadd.f32 1e-05, %v3741
      %3743 = vdwg.mxu0
      %3744 = vmatprep.subr.mxu0 %v2743
      %3745 = vmatpush1.msra.mxu0 %v2741
      %3746 = vmatprep.subr.mxu0 0.0
      %3747 = vmatpush1.msra.mxu0 0.0
      %3748 = vmatprep.subr.mxu0 0.0
      %3749 = vmatpush1.msra.mxu0 0.0
      %3750 = vmatprep.subr.mxu0 0.0
      %3751 = vmatpush1.msra.mxu0 0.0
      %3752 = vmatprep.subr.mxu0 0.0
      %3753 = vmatpush1.msra.mxu0 0.0
      %3754 = vmatprep.subr.mxu0 0.0
      %3755 = vmatpush1.msra.mxu0 0.0
      %3756 = vmatprep.subr.mxu0 0.0
      %3757 = vmatpush1.msra.mxu0 0.0
      %3758 = vmatprep.subr.mxu0 0.0
      %3759 = vmatpush1.msra.mxu0 0.0
      %3760 = vmatprep.subr.mxu0 0.0
      %3761 = vmatpush1.msra.mxu0 0.0
      %3762 = vmatprep.subr.mxu0 0.0
      %3763 = vmatpush1.msra.mxu0 0.0
      %3764 = vmatprep.subr.mxu0 0.0
      %3765 = vmatpush1.msra.mxu0 0.0
      %3766 = vmatprep.subr.mxu0 0.0
      %3767 = vmatpush1.msra.mxu0 0.0
      %3768 = vmatprep.subr.mxu0 0.0
      %3769 = vmatpush1.msra.mxu0 0.0
      %3770 = vmatprep.subr.mxu0 0.0
      %3771 = vmatpush1.msra.mxu0 0.0
      %3772 = vmatprep.subr.mxu0 0.0
      %3773 = vmatpush1.msra.mxu0 0.0
      %3774 = vmatprep.subr.mxu0 0.0
      %3775 = vmatpush1.msra.mxu0 0.0
      %3776 = vmatprep.subr.mxu0 0.0
      %3777 = vmatpush1.msra.mxu0 0.0
      %3778 = vmatprep.subr.mxu0 0.0
      %3779 = vmatpush1.msra.mxu0 0.0
      %3780 = vmatprep.subr.mxu0 0.0
      %3781 = vmatpush1.msra.mxu0 0.0
      %3782 = vmatprep.subr.mxu0 0.0
      %3783 = vmatpush1.msra.mxu0 0.0
      %3784 = vmatprep.subr.mxu0 0.0
      %3785 = vmatpush1.msra.mxu0 0.0
      %3786 = vmatprep.subr.mxu0 0.0
      %3787 = vmatpush1.msra.mxu0 0.0
      %3788 = vmatprep.subr.mxu0 0.0
      %3789 = vmatpush1.msra.mxu0 0.0
      %3790 = vmatprep.subr.mxu0 0.0
      %3791 = vmatpush1.msra.mxu0 0.0
      %3792 = vmatprep.subr.mxu0 0.0
      %3793 = vmatpush1.msra.mxu0 0.0
      %3794 = vmatprep.subr.mxu0 0.0
      %3795 = vmatpush1.msra.mxu0 0.0
      %3796 = vmatprep.subr.mxu0 0.0
      %3797 = vmatpush1.msra.mxu0 0.0
      %3798 = vmatprep.subr.mxu0 0.0
      %3799 = vmatpush1.msra.mxu0 0.0
      %3800 = vmatprep.subr.mxu0 0.0
      %3801 = vmatpush1.msra.mxu0 0.0
      %3802 = vmatprep.subr.mxu0 0.0
      %3803 = vmatpush1.msra.mxu0 0.0
      %3804 = vmatprep.subr.mxu0 0.0
      %3805 = vmatpush1.msra.mxu0 0.0
      %3806 = vmatprep.subr.mxu0 0.0
      %3807 = vmatpush1.msra.mxu0 0.0
      %3808 = vmatprep.mubr.f32.mxu0 0.0
      %3809 = vmatmul.mubr.f32.gmra.mrb[0].mxu0 %v3671
      %v3810 = vpop.f32.mrb[0].mxu0
      %v3811 = vadd.f32 1e-05, %v3810
      %v3812 = vpop.f32.mrb[0].mxu0
      %v3813 = vadd.f32 1e-05, %v3812
      %3814 = vdwg.mxu0
      %3815 = vmatprep.subr.mxu0 %v2747
      %3816 = vmatpush1.msra.mxu0 %v2745
      %3817 = vmatprep.subr.mxu0 0.0
      %3818 = vmatpush1.msra.mxu0 0.0
      %3819 = vmatprep.subr.mxu0 0.0
      %3820 = vmatpush1.msra.mxu0 0.0
      %3821 = vmatprep.subr.mxu0 0.0
      %3822 = vmatpush1.msra.mxu0 0.0
      %3823 = vmatprep.subr.mxu0 0.0
      %3824 = vmatpush1.msra.mxu0 0.0
      %3825 = vmatprep.subr.mxu0 0.0
      %3826 = vmatpush1.msra.mxu0 0.0
      %3827 = vmatprep.subr.mxu0 0.0
      %3828 = vmatpush1.msra.mxu0 0.0
      %3829 = vmatprep.subr.mxu0 0.0
      %3830 = vmatpush1.msra.mxu0 0.0
      %3831 = vmatprep.subr.mxu0 0.0
      %3832 = vmatpush1.msra.mxu0 0.0
      %3833 = vmatprep.subr.mxu0 0.0
      %3834 = vmatpush1.msra.mxu0 0.0
      %3835 = vmatprep.subr.mxu0 0.0
      %3836 = vmatpush1.msra.mxu0 0.0
      %3837 = vmatprep.subr.mxu0 0.0
      %3838 = vmatpush1.msra.mxu0 0.0
      %3839 = vmatprep.subr.mxu0 0.0
      %3840 = vmatpush1.msra.mxu0 0.0
      %3841 = vmatprep.subr.mxu0 0.0
      %3842 = vmatpush1.msra.mxu0 0.0
      %3843 = vmatprep.subr.mxu0 0.0
      %3844 = vmatpush1.msra.mxu0 0.0
      %3845 = vmatprep.subr.mxu0 0.0
      %3846 = vmatpush1.msra.mxu0 0.0
      %3847 = vmatprep.subr.mxu0 0.0
      %3848 = vmatpush1.msra.mxu0 0.0
      %3849 = vmatprep.subr.mxu0 0.0
      %3850 = vmatpush1.msra.mxu0 0.0
      %3851 = vmatprep.subr.mxu0 0.0
      %3852 = vmatpush1.msra.mxu0 0.0
      %3853 = vmatprep.subr.mxu0 0.0
      %3854 = vmatpush1.msra.mxu0 0.0
      %3855 = vmatprep.subr.mxu0 0.0
      %3856 = vmatpush1.msra.mxu0 0.0
      %3857 = vmatprep.subr.mxu0 0.0
      %3858 = vmatpush1.msra.mxu0 0.0
      %3859 = vmatprep.subr.mxu0 0.0
      %3860 = vmatpush1.msra.mxu0 0.0
      %3861 = vmatprep.subr.mxu0 0.0
      %3862 = vmatpush1.msra.mxu0 0.0
      %3863 = vmatprep.subr.mxu0 0.0
      %3864 = vmatpush1.msra.mxu0 0.0
      %3865 = vmatprep.subr.mxu0 0.0
      %3866 = vmatpush1.msra.mxu0 0.0
      %3867 = vmatprep.subr.mxu0 0.0
      %3868 = vmatpush1.msra.mxu0 0.0
      %3869 = vmatprep.subr.mxu0 0.0
      %3870 = vmatpush1.msra.mxu0 0.0
      %3871 = vmatprep.subr.mxu0 0.0
      %3872 = vmatpush1.msra.mxu0 0.0
      %3873 = vmatprep.subr.mxu0 0.0
      %3874 = vmatpush1.msra.mxu0 0.0
      %3875 = vmatprep.subr.mxu0 0.0
      %3876 = vmatpush1.msra.mxu0 0.0
      %3877 = vmatprep.subr.mxu0 0.0
      %3878 = vmatpush1.msra.mxu0 0.0
      %3879 = vmatprep.mubr.f32.mxu0 0.0
      %3880 = vmatmul.mubr.f32.gmra.mrb[0].mxu0 %v3671
      %v3881 = vpop.f32.mrb[0].mxu0
      %v3882 = vadd.f32 1e-05, %v3881
      %v3883 = vpop.f32.mrb[0].mxu0
      %v3884 = vadd.f32 1e-05, %v3883
      %3885 = vdwg.mxu0
      %3886 = vmatprep.subr.mxu0 %v2751
      %3887 = vmatpush1.msra.mxu0 %v2749
      %3888 = vmatprep.subr.mxu0 0.0
      %3889 = vmatpush1.msra.mxu0 0.0
      %3890 = vmatprep.subr.mxu0 0.0
      %3891 = vmatpush1.msra.mxu0 0.0
      %3892 = vmatprep.subr.mxu0 0.0
      %3893 = vmatpush1.msra.mxu0 0.0
      %3894 = vmatprep.subr.mxu0 0.0
      %3895 = vmatpush1.msra.mxu0 0.0
      %3896 = vmatprep.subr.mxu0 0.0
      %3897 = vmatpush1.msra.mxu0 0.0
      %3898 = vmatprep.subr.mxu0 0.0
      %3899 = vmatpush1.msra.mxu0 0.0
      %3900 = vmatprep.subr.mxu0 0.0
      %3901 = vmatpush1.msra.mxu0 0.0
      %3902 = vmatprep.subr.mxu0 0.0
      %3903 = vmatpush1.msra.mxu0 0.0
      %3904 = vmatprep.subr.mxu0 0.0
      %3905 = vmatpush1.msra.mxu0 0.0
      %3906 = vmatprep.subr.mxu0 0.0
      %3907 = vmatpush1.msra.mxu0 0.0
      %3908 = vmatprep.subr.mxu0 0.0
      %3909 = vmatpush1.msra.mxu0 0.0
      %3910 = vmatprep.subr.mxu0 0.0
      %3911 = vmatpush1.msra.mxu0 0.0
      %3912 = vmatprep.subr.mxu0 0.0
      %3913 = vmatpush1.msra.mxu0 0.0
      %3914 = vmatprep.subr.mxu0 0.0
      %3915 = vmatpush1.msra.mxu0 0.0
      %3916 = vmatprep.subr.mxu0 0.0
      %3917 = vmatpush1.msra.mxu0 0.0
      %3918 = vmatprep.subr.mxu0 0.0
      %3919 = vmatpush1.msra.mxu0 0.0
      %3920 = vmatprep.subr.mxu0 0.0
      %3921 = vmatpush1.msra.mxu0 0.0
      %3922 = vmatprep.subr.mxu0 0.0
      %3923 = vmatpush1.msra.mxu0 0.0
      %3924 = vmatprep.subr.mxu0 0.0
      %3925 = vmatpush1.msra.mxu0 0.0
      %3926 = vmatprep.subr.mxu0 0.0
      %3927 = vmatpush1.msra.mxu0 0.0
      %3928 = vmatprep.subr.mxu0 0.0
      %3929 = vmatpush1.msra.mxu0 0.0
      %3930 = vmatprep.subr.mxu0 0.0
      %3931 = vmatpush1.msra.mxu0 0.0
      %3932 = vmatprep.subr.mxu0 0.0
      %3933 = vmatpush1.msra.mxu0 0.0
      %3934 = vmatprep.subr.mxu0 0.0
      %3935 = vmatpush1.msra.mxu0 0.0
      %3936 = vmatprep.subr.mxu0 0.0
      %3937 = vmatpush1.msra.mxu0 0.0
      %3938 = vmatprep.subr.mxu0 0.0
      %3939 = vmatpush1.msra.mxu0 0.0
      %3940 = vmatprep.subr.mxu0 0.0
      %3941 = vmatpush1.msra.mxu0 0.0
      %3942 = vmatprep.subr.mxu0 0.0
      %3943 = vmatpush1.msra.mxu0 0.0
      %3944 = vmatprep.subr.mxu0 0.0
      %3945 = vmatpush1.msra.mxu0 0.0
      %3946 = vmatprep.subr.mxu0 0.0
      %3947 = vmatpush1.msra.mxu0 0.0
      %3948 = vmatprep.subr.mxu0 0.0
      %3949 = vmatpush1.msra.mxu0 0.0
      %3950 = vmatprep.mubr.f32.mxu0 0.0
      %3951 = vmatmul.mubr.f32.gmra.mrb[0].mxu0 %v3671
      %v3952 = vpop.f32.mrb[0].mxu0
      %v3953 = vadd.f32 1e-05, %v3952
      %v3954 = vpop.f32.mrb[0].mxu0
      %v3955 = vadd.f32 1e-05, %v3954
      %3956 = vdwg.mxu0
      %v3957 = vrsqrt.pop %v3740
      %v3958 = vrsqrt.pop %v3742
      %v3959 = vrsqrt.pop %v3811
      %v3960 = vrsqrt.pop %v3813
      %v3961 = vrsqrt.pop %v3882
      %v3962 = vrsqrt.pop %v3884
      %v3963 = vrsqrt.pop %v3953
      %v3964 = vrsqrt.pop %v3955
      %v3965 = vmul.f32 %v3373, %v3957
      %v3966 = vmul.f32 %v3374, %v3958
      %v3967 = vmul.f32 %v3375, %v3959
      %v3968 = vmul.f32 %v3376, %v3960
      %v3969 = vmul.f32 %v3377, %v3961
      %v3970 = vmul.f32 %v3378, %v3962
      %v3971 = vmul.f32 %v3379, %v3963
      %v3972 = vmul.f32 %v3380, %v3964
      %3973 = vmatprep.subr.mxu0 %v3075
      %3974 = vmatpush1.msra.mxu0 %v3073
      %3975 = vmatprep.subr.mxu0 0.0
      %3976 = vmatpush1.msra.mxu0 0.0
      %3977 = vmatprep.subr.mxu0 0.0
      %3978 = vmatpush1.msra.mxu0 0.0
      %3979 = vmatprep.subr.mxu0 0.0
      %3980 = vmatpush1.msra.mxu0 0.0
      %3981 = vmatprep.subr.mxu0 0.0
      %3982 = vmatpush1.msra.mxu0 0.0
      %3983 = vmatprep.subr.mxu0 0.0
      %3984 = vmatpush1.msra.mxu0 0.0
      %3985 = vmatprep.subr.mxu0 0.0
      %3986 = vmatpush1.msra.mxu0 0.0
      %3987 = vmatprep.subr.mxu0 0.0
      %3988 = vmatpush1.msra.mxu0 0.0
      %3989 = vmatprep.subr.mxu0 0.0
      %3990 = vmatpush1.msra.mxu0 0.0
      %3991 = vmatprep.subr.mxu0 0.0
      %3992 = vmatpush1.msra.mxu0 0.0
      %3993 = vmatprep.subr.mxu0 0.0
      %3994 = vmatpush1.msra.mxu0 0.0
      %3995 = vmatprep.subr.mxu0 0.0
      %3996 = vmatpush1.msra.mxu0 0.0
      %3997 = vmatprep.subr.mxu0 0.0
      %3998 = vmatpush1.msra.mxu0 0.0
      %3999 = vmatprep.subr.mxu0 0.0
      %4000 = vmatpush1.msra.mxu0 0.0
      %4001 = vmatprep.subr.mxu0 0.0
      %4002 = vmatpush1.msra.mxu0 0.0
      %4003 = vmatprep.subr.mxu0 0.0
      %4004 = vmatpush1.msra.mxu0 0.0
      %4005 = vmatprep.subr.mxu0 0.0
      %4006 = vmatpush1.msra.mxu0 0.0
      %4007 = vmatprep.subr.mxu0 0.0
      %4008 = vmatpush1.msra.mxu0 0.0
      %4009 = vmatprep.subr.mxu0 0.0
      %4010 = vmatpush1.msra.mxu0 0.0
      %4011 = vmatprep.subr.mxu0 0.0
      %4012 = vmatpush1.msra.mxu0 0.0
      %4013 = vmatprep.subr.mxu0 0.0
      %4014 = vmatpush1.msra.mxu0 0.0
      %4015 = vmatprep.subr.mxu0 0.0
      %4016 = vmatpush1.msra.mxu0 0.0
      %4017 = vmatprep.subr.mxu0 0.0
      %4018 = vmatpush1.msra.mxu0 0.0
      %4019 = vmatprep.subr.mxu0 0.0
      %4020 = vmatpush1.msra.mxu0 0.0
      %4021 = vmatprep.subr.mxu0 0.0
      %4022 = vmatpush1.msra.mxu0 0.0
      %4023 = vmatprep.subr.mxu0 0.0
      %4024 = vmatpush1.msra.mxu0 0.0
      %4025 = vmatprep.subr.mxu0 0.0
      %4026 = vmatpush1.msra.mxu0 0.0
      %4027 = vmatprep.subr.mxu0 0.0
      %4028 = vmatpush1.msra.mxu0 0.0
      %4029 = vmatprep.subr.mxu0 0.0
      %4030 = vmatpush1.msra.mxu0 0.0
      %4031 = vmatprep.subr.mxu0 0.0
      %4032 = vmatpush1.msra.mxu0 0.0
      %4033 = vmatprep.subr.mxu0 0.0
      %4034 = vmatpush1.msra.mxu0 0.0
      %4035 = vmatprep.subr.mxu0 0.0
      %4036 = vmatpush1.msra.mxu0 0.0
      %4037 = vmatprep.mubr.f32.mxu0 0.0
      %4038 = vmatmul.mubr.f32.gmra.mrb[0].mxu0 %v3671
      %v4039 = vpop.f32.mrb[0].mxu0
      %v4040 = vadd.f32 1e-05, %v4039
      %v4041 = vpop.f32.mrb[0].mxu0
      %v4042 = vadd.f32 1e-05, %v4041
      %4043 = vdwg.mxu0
      %4044 = vmatprep.subr.mxu0 %v3079
      %4045 = vmatpush1.msra.mxu0 %v3077
      %4046 = vmatprep.subr.mxu0 0.0
      %4047 = vmatpush1.msra.mxu0 0.0
      %4048 = vmatprep.subr.mxu0 0.0
      %4049 = vmatpush1.msra.mxu0 0.0
      %4050 = vmatprep.subr.mxu0 0.0
      %4051 = vmatpush1.msra.mxu0 0.0
      %4052 = vmatprep.subr.mxu0 0.0
      %4053 = vmatpush1.msra.mxu0 0.0
      %4054 = vmatprep.subr.mxu0 0.0
      %4055 = vmatpush1.msra.mxu0 0.0
      %4056 = vmatprep.subr.mxu0 0.0
      %4057 = vmatpush1.msra.mxu0 0.0
      %4058 = vmatprep.subr.mxu0 0.0
      %4059 = vmatpush1.msra.mxu0 0.0
      %4060 = vmatprep.subr.mxu0 0.0
      %4061 = vmatpush1.msra.mxu0 0.0
      %4062 = vmatprep.subr.mxu0 0.0
      %4063 = vmatpush1.msra.mxu0 0.0
      %4064 = vmatprep.subr.mxu0 0.0
      %4065 = vmatpush1.msra.mxu0 0.0
      %4066 = vmatprep.subr.mxu0 0.0
      %4067 = vmatpush1.msra.mxu0 0.0
      %4068 = vmatprep.subr.mxu0 0.0
      %4069 = vmatpush1.msra.mxu0 0.0
      %4070 = vmatprep.subr.mxu0 0.0
      %4071 = vmatpush1.msra.mxu0 0.0
      %4072 = vmatprep.subr.mxu0 0.0
      %4073 = vmatpush1.msra.mxu0 0.0
      %4074 = vmatprep.subr.mxu0 0.0
      %4075 = vmatpush1.msra.mxu0 0.0
      %4076 = vmatprep.subr.mxu0 0.0
      %4077 = vmatpush1.msra.mxu0 0.0
      %4078 = vmatprep.subr.mxu0 0.0
      %4079 = vmatpush1.msra.mxu0 0.0
      %4080 = vmatprep.subr.mxu0 0.0
      %4081 = vmatpush1.msra.mxu0 0.0
      %4082 = vmatprep.subr.mxu0 0.0
      %4083 = vmatpush1.msra.mxu0 0.0
      %4084 = vmatprep.subr.mxu0 0.0
      %4085 = vmatpush1.msra.mxu0 0.0
      %4086 = vmatprep.subr.mxu0 0.0
      %4087 = vmatpush1.msra.mxu0 0.0
      %4088 = vmatprep.subr.mxu0 0.0
      %4089 = vmatpush1.msra.mxu0 0.0
      %4090 = vmatprep.subr.mxu0 0.0
      %4091 = vmatpush1.msra.mxu0 0.0
      %4092 = vmatprep.subr.mxu0 0.0
      %4093 = vmatpush1.msra.mxu0 0.0
      %4094 = vmatprep.subr.mxu0 0.0
      %4095 = vmatpush1.msra.mxu0 0.0
      %4096 = vmatprep.subr.mxu0 0.0
      %4097 = vmatpush1.msra.mxu0 0.0
      %4098 = vmatprep.subr.mxu0 0.0
      %4099 = vmatpush1.msra.mxu0 0.0
      %4100 = vmatprep.subr.mxu0 0.0
      %4101 = vmatpush1.msra.mxu0 0.0
      %4102 = vmatprep.subr.mxu0 0.0
      %4103 = vmatpush1.msra.mxu0 0.0
      %4104 = vmatprep.subr.mxu0 0.0
      %4105 = vmatpush1.msra.mxu0 0.0
      %4106 = vmatprep.subr.mxu0 0.0
      %4107 = vmatpush1.msra.mxu0 0.0
      %4108 = vmatprep.mubr.f32.mxu0 0.0
      %4109 = vmatmul.mubr.f32.gmra.mrb[0].mxu0 %v3671
      %v4110 = vpop.f32.mrb[0].mxu0
      %v4111 = vadd.f32 1e-05, %v4110
      %v4112 = vpop.f32.mrb[0].mxu0
      %v4113 = vadd.f32 1e-05, %v4112
      %4114 = vdwg.mxu0
      %4115 = vmatprep.subr.mxu0 %v3083
      %4116 = vmatpush1.msra.mxu0 %v3081
      %4117 = vmatprep.subr.mxu0 0.0
      %4118 = vmatpush1.msra.mxu0 0.0
      %4119 = vmatprep.subr.mxu0 0.0
      %4120 = vmatpush1.msra.mxu0 0.0
      %4121 = vmatprep.subr.mxu0 0.0
      %4122 = vmatpush1.msra.mxu0 0.0
      %4123 = vmatprep.subr.mxu0 0.0
      %4124 = vmatpush1.msra.mxu0 0.0
      %4125 = vmatprep.subr.mxu0 0.0
      %4126 = vmatpush1.msra.mxu0 0.0
      %4127 = vmatprep.subr.mxu0 0.0
      %4128 = vmatpush1.msra.mxu0 0.0
      %4129 = vmatprep.subr.mxu0 0.0
      %4130 = vmatpush1.msra.mxu0 0.0
      %4131 = vmatprep.subr.mxu0 0.0
      %4132 = vmatpush1.msra.mxu0 0.0
      %4133 = vmatprep.subr.mxu0 0.0
      %4134 = vmatpush1.msra.mxu0 0.0
      %4135 = vmatprep.subr.mxu0 0.0
      %4136 = vmatpush1.msra.mxu0 0.0
      %4137 = vmatprep.subr.mxu0 0.0
      %4138 = vmatpush1.msra.mxu0 0.0
      %4139 = vmatprep.subr.mxu0 0.0
      %4140 = vmatpush1.msra.mxu0 0.0
      %4141 = vmatprep.subr.mxu0 0.0
      %4142 = vmatpush1.msra.mxu0 0.0
      %4143 = vmatprep.subr.mxu0 0.0
      %4144 = vmatpush1.msra.mxu0 0.0
      %4145 = vmatprep.subr.mxu0 0.0
      %4146 = vmatpush1.msra.mxu0 0.0
      %4147 = vmatprep.subr.mxu0 0.0
      %4148 = vmatpush1.msra.mxu0 0.0
      %4149 = vmatprep.subr.mxu0 0.0
      %4150 = vmatpush1.msra.mxu0 0.0
      %4151 = vmatprep.subr.mxu0 0.0
      %4152 = vmatpush1.msra.mxu0 0.0
      %4153 = vmatprep.subr.mxu0 0.0
      %4154 = vmatpush1.msra.mxu0 0.0
      %4155 = vmatprep.subr.mxu0 0.0
      %4156 = vmatpush1.msra.mxu0 0.0
      %4157 = vmatprep.subr.mxu0 0.0
      %4158 = vmatpush1.msra.mxu0 0.0
      %4159 = vmatprep.subr.mxu0 0.0
      %4160 = vmatpush1.msra.mxu0 0.0
      %4161 = vmatprep.subr.mxu0 0.0
      %4162 = vmatpush1.msra.mxu0 0.0
      %4163 = vmatprep.subr.mxu0 0.0
      %4164 = vmatpush1.msra.mxu0 0.0
      %4165 = vmatprep.subr.mxu0 0.0
      %4166 = vmatpush1.msra.mxu0 0.0
      %4167 = vmatprep.subr.mxu0 0.0
      %4168 = vmatpush1.msra.mxu0 0.0
      %4169 = vmatprep.subr.mxu0 0.0
      %4170 = vmatpush1.msra.mxu0 0.0
      %4171 = vmatprep.subr.mxu0 0.0
      %4172 = vmatpush1.msra.mxu0 0.0
      %4173 = vmatprep.subr.mxu0 0.0
      %4174 = vmatpush1.msra.mxu0 0.0
      %4175 = vmatprep.subr.mxu0 0.0
      %4176 = vmatpush1.msra.mxu0 0.0
      %4177 = vmatprep.subr.mxu0 0.0
      %4178 = vmatpush1.msra.mxu0 0.0
      %4179 = vmatprep.mubr.f32.mxu0 0.0
      %4180 = vmatmul.mubr.f32.gmra.mrb[0].mxu0 %v3671
      %v4181 = vpop.f32.mrb[0].mxu0
      %v4182 = vadd.f32 1e-05, %v4181
      %v4183 = vpop.f32.mrb[0].mxu0
      %v4184 = vadd.f32 1e-05, %v4183
      %4185 = vdwg.mxu0
      %4186 = vmatprep.subr.mxu0 %v3087
      %4187 = vmatpush1.msra.mxu0 %v3085
      %4188 = vmatprep.subr.mxu0 0.0
      %4189 = vmatpush1.msra.mxu0 0.0
      %4190 = vmatprep.subr.mxu0 0.0
      %4191 = vmatpush1.msra.mxu0 0.0
      %4192 = vmatprep.subr.mxu0 0.0
      %4193 = vmatpush1.msra.mxu0 0.0
      %4194 = vmatprep.subr.mxu0 0.0
      %4195 = vmatpush1.msra.mxu0 0.0
      %4196 = vmatprep.subr.mxu0 0.0
      %4197 = vmatpush1.msra.mxu0 0.0
      %4198 = vmatprep.subr.mxu0 0.0
      %4199 = vmatpush1.msra.mxu0 0.0
      %4200 = vmatprep.subr.mxu0 0.0
      %4201 = vmatpush1.msra.mxu0 0.0
      %4202 = vmatprep.subr.mxu0 0.0
      %4203 = vmatpush1.msra.mxu0 0.0
      %4204 = vmatprep.subr.mxu0 0.0
      %4205 = vmatpush1.msra.mxu0 0.0
      %4206 = vmatprep.subr.mxu0 0.0
      %4207 = vmatpush1.msra.mxu0 0.0
      %4208 = vmatprep.subr.mxu0 0.0
      %4209 = vmatpush1.msra.mxu0 0.0
      %4210 = vmatprep.subr.mxu0 0.0
      %4211 = vmatpush1.msra.mxu0 0.0
      %4212 = vmatprep.subr.mxu0 0.0
      %4213 = vmatpush1.msra.mxu0 0.0
      %4214 = vmatprep.subr.mxu0 0.0
      %4215 = vmatpush1.msra.mxu0 0.0
      %4216 = vmatprep.subr.mxu0 0.0
      %4217 = vmatpush1.msra.mxu0 0.0
      %4218 = vmatprep.subr.mxu0 0.0
      %4219 = vmatpush1.msra.mxu0 0.0
      %4220 = vmatprep.subr.mxu0 0.0
      %4221 = vmatpush1.msra.mxu0 0.0
      %4222 = vmatprep.subr.mxu0 0.0
      %4223 = vmatpush1.msra.mxu0 0.0
      %4224 = vmatprep.subr.mxu0 0.0
      %4225 = vmatpush1.msra.mxu0 0.0
      %4226 = vmatprep.subr.mxu0 0.0
      %4227 = vmatpush1.msra.mxu0 0.0
      %4228 = vmatprep.subr.mxu0 0.0
      %4229 = vmatpush1.msra.mxu0 0.0
      %4230 = vmatprep.subr.mxu0 0.0
      %4231 = vmatpush1.msra.mxu0 0.0
      %4232 = vmatprep.subr.mxu0 0.0
      %4233 = vmatpush1.msra.mxu0 0.0
      %4234 = vmatprep.subr.mxu0 0.0
      %4235 = vmatpush1.msra.mxu0 0.0
      %4236 = vmatprep.subr.mxu0 0.0
      %4237 = vmatpush1.msra.mxu0 0.0
      %4238 = vmatprep.subr.mxu0 0.0
      %4239 = vmatpush1.msra.mxu0 0.0
      %4240 = vmatprep.subr.mxu0 0.0
      %4241 = vmatpush1.msra.mxu0 0.0
      %4242 = vmatprep.subr.mxu0 0.0
      %4243 = vmatpush1.msra.mxu0 0.0
      %4244 = vmatprep.subr.mxu0 0.0
      %4245 = vmatpush1.msra.mxu0 0.0
      %4246 = vmatprep.subr.mxu0 0.0
      %4247 = vmatpush1.msra.mxu0 0.0
      %4248 = vmatprep.subr.mxu0 0.0
      %4249 = vmatpush1.msra.mxu0 0.0
      %4250 = vmatprep.mubr.f32.mxu0 0.0
      %4251 = vmatmul.mubr.f32.gmra.mrb[0].mxu0 %v3671
      %v4252 = vpop.f32.mrb[0].mxu0
      %v4253 = vadd.f32 1e-05, %v4252
      %v4254 = vpop.f32.mrb[0].mxu0
      %v4255 = vadd.f32 1e-05, %v4254
      %4256 = vdwg.mxu0
      %v4257 = vrsqrt.pop %v4040
      %v4258 = vmul.f32 %v4040, %v4257
      %vm4259 = vcmp.eq.f32.partialorder %v4040, inf
      %v4260 = vsel %vm4259, %v4040, %v4258
      %vm4261 = vcmp.eq.f32.partialorder %v4040, 0.0
      %v4262 = vand.u32 %v4040, 2147483648
      %v4263 = vsel %vm4261, %v4262, %v4260
      %v4264 = vrsqrt.pop %v4042
      %v4265 = vmul.f32 %v4042, %v4264
      %vm4266 = vcmp.eq.f32.partialorder %v4042, inf
      %v4267 = vsel %vm4266, %v4042, %v4265
      %vm4268 = vcmp.eq.f32.partialorder %v4042, 0.0
      %v4269 = vand.u32 %v4042, 2147483648
      %v4270 = vsel %vm4268, %v4269, %v4267
      %v4271 = vrsqrt.pop %v4111
      %v4272 = vmul.f32 %v4111, %v4271
      %vm4273 = vcmp.eq.f32.partialorder %v4111, inf
      %v4274 = vsel %vm4273, %v4111, %v4272
      %vm4275 = vcmp.eq.f32.partialorder %v4111, 0.0
      %v4276 = vand.u32 %v4111, 2147483648
      %v4277 = vsel %vm4275, %v4276, %v4274
      %v4278 = vrsqrt.pop %v4113
      %v4279 = vmul.f32 %v4113, %v4278
      %vm4280 = vcmp.eq.f32.partialorder %v4113, inf
      %v4281 = vsel %vm4280, %v4113, %v4279
      %vm4282 = vcmp.eq.f32.partialorder %v4113, 0.0
      %v4283 = vand.u32 %v4113, 2147483648
      %v4284 = vsel %vm4282, %v4283, %v4281
      %v4285 = vrsqrt.pop %v4182
      %v4286 = vmul.f32 %v4182, %v4285
      %vm4287 = vcmp.eq.f32.partialorder %v4182, inf
      %v4288 = vsel %vm4287, %v4182, %v4286
      %vm4289 = vcmp.eq.f32.partialorder %v4182, 0.0
      %v4290 = vand.u32 %v4182, 2147483648
      %v4291 = vsel %vm4289, %v4290, %v4288
      %v4292 = vrsqrt.pop %v4184
      %v4293 = vmul.f32 %v4184, %v4292
      %vm4294 = vcmp.eq.f32.partialorder %v4184, inf
      %v4295 = vsel %vm4294, %v4184, %v4293
      %vm4296 = vcmp.eq.f32.partialorder %v4184, 0.0
      %v4297 = vand.u32 %v4184, 2147483648
      %v4298 = vsel %vm4296, %v4297, %v4295
      %v4299 = vrsqrt.pop %v4253
      %v4300 = vmul.f32 %v4253, %v4299
      %vm4301 = vcmp.eq.f32.partialorder %v4253, inf
      %v4302 = vsel %vm4301, %v4253, %v4300
      %vm4303 = vcmp.eq.f32.partialorder %v4253, 0.0
      %v4304 = vand.u32 %v4253, 2147483648
      %v4305 = vsel %vm4303, %v4304, %v4302
      %v4306 = vrsqrt.pop %v4255
      %v4307 = vmul.f32 %v4255, %v4306
      %vm4308 = vcmp.eq.f32.partialorder %v4255, inf
      %v4309 = vsel %vm4308, %v4255, %v4307
      %vm4310 = vcmp.eq.f32.partialorder %v4255, 0.0
      %v4311 = vand.u32 %v4255, 2147483648
      %v4312 = vsel %vm4310, %v4311, %v4309
      %v4313 = vmul.f32 %v3965, %v4263
      %v4314 = vmul.f32 %v3966, %v4270
      %v4315 = vmul.f32 %v3967, %v4277
      %v4316 = vmul.f32 %v3968, %v4284
      %v4317 = vmul.f32 %v3969, %v4291
      %v4318 = vmul.f32 %v3970, %v4298
      %v4319 = vmul.f32 %v3971, %v4305
      %v4320 = vmul.f32 %v3972, %v4312
      %v4321 = vadd.f32 %v4313, %v3156
      %v4322 = vadd.f32 %v4314, %v3158
      %v4323 = vadd.f32 %v4315, %v3227
      %v4324 = vadd.f32 %v4316, %v3229
      %v4325 = vadd.f32 %v4317, %v3298
      %v4326 = vadd.f32 %v4318, %v3300
      %v4327 = vadd.f32 %v4319, %v3369
      %v4328 = vadd.f32 %v4320, %v3371
      %v4329 = vmul.f32 %v2276, 0.5
      %v4330 = vmul.f32 %v2277, 0.5
      %v4331 = vmul.f32 %v2278, 0.5
      %v4332 = vmul.f32 %v2279, 0.5
      %v4333 = vmul.f32 %v2280, 0.5
      %v4334 = vmul.f32 %v2281, 0.5
      %v4335 = vmul.f32 %v2282, 0.5
      %v4336 = vmul.f32 %v2283, 0.5
      %v4337 = vmul.f32 %v4321, 0.5
      %v4338 = vmul.f32 %v4322, 0.5
      %v4339 = vmul.f32 %v4323, 0.5
      %v4340 = vmul.f32 %v4324, 0.5
      %v4341 = vmul.f32 %v4325, 0.5
      %v4342 = vmul.f32 %v4326, 0.5
      %v4343 = vmul.f32 %v4327, 0.5
      %v4344 = vmul.f32 %v4328, 0.5
      %v4345 = vadd.f32 %v4329, %v4337
      %v4346 = vadd.f32 %v4330, %v4338
      %v4347 = vadd.f32 %v4331, %v4339
      %v4348 = vadd.f32 %v4332, %v4340
      %v4349 = vadd.f32 %v4333, %v4341
      %v4350 = vadd.f32 %v4334, %v4342
      %v4351 = vadd.f32 %v4335, %v4343
      %v4352 = vadd.f32 %v4336, %v4344
      %v4353 = vpack.c.bf16 %v4345, %v4345
      %v4354 = vpack.c.bf16 %v4346, %v4346
      %v4355 = vpack.c.bf16 %v4347, %v4347
      %v4356 = vpack.c.bf16 %v4348, %v4348
      %v4357 = vpack.c.bf16 %v4349, %v4349
      %v4358 = vpack.c.bf16 %v4350, %v4350
      %v4359 = vpack.c.bf16 %v4351, %v4351
      %v4360 = vpack.c.bf16 %v4352, %v4352
      %v4369 = vunpack.c.l.b16 %v4353
      %v4370 = vunpack.c.l.b16 %v4354
      %v4371 = vunpack.c.l.b16 %v4355
      %v4372 = vunpack.c.l.b16 %v4356
      %v4373 = vunpack.c.l.b16 %v4357
      %v4374 = vunpack.c.l.b16 %v4358
      %v4375 = vunpack.c.l.b16 %v4359
      %v4376 = vunpack.c.l.b16 %v4360
      %v4377 = vpack.c.b16 %v4370, %v4369
      %v4378 = vpack.c.b16 %v4372, %v4371
      %v4379 = vpack.c.b16 %v4374, %v4373
      %v4380 = vpack.c.b16 %v4376, %v4375
      %4385 = vst [vmem:[%s312] sm:$0xff] %v4377
      %4386 = vst [vmem:[%s312 + $0x8] sm:$0xff] %v4378
      %4387 = vst [vmem:[%s312 + $0x10] sm:$0xff] %v4379
      %4388 = vst [vmem:[%s312 + $0x18] sm:$0xff] %v4380
      %p4389 = scmp.lt.s32.totalorder %s18, 1
      %s4390 = scalar_select %p4389, %s18, 1
      %s4391 = smul.addr %s4390, 8
      %s4392 = smul.addr %s4391, 4
      %s4393 = scalar_lea.vmem %s7, %s4392
      // Predicated region
      $region49: #{wgan3d_d_forward.4} parent=47 // pred_check
        %p4394 = pneg %p198
      $region50: #{wgan3d_d_forward.4} parent=47 // pred_check_branch
        %4396 = sbr.rel (%p4394) target = $region52
      $region51: #{wgan3d_d_forward.4} parent=47 // pred_region
        _
      $region52: #{wgan3d_d_forward.4} parent=47 // pred_fallthru
        _
    $region48: #{wgan3d_d_forward.4} parent=5 // pred_fallthru
      _
    %p4397 = scmp.le.s32.totalorder 2, %s13
    // Predicated region
    $region53: #{wgan3d_d_forward.4} parent=5 // pred_check
      %p4398 = pneg %p4397
    $region54: #{wgan3d_d_forward.4} parent=5 // pred_check_branch
      %4400 = sbr.rel (%p4398) target = $region56
    $region55: #{wgan3d_d_forward.4} parent=5 // pred_region
      %s4401 = ssub.s32 %s13, 2
      // Predicated region
      $region57: #{wgan3d_d_forward.4} parent=55 // pred_check
        %p4402 = pneg %p204
      $region58: #{wgan3d_d_forward.4} parent=55 // pred_check_branch
        %4404 = sbr.rel (%p4402) target = $region60
      $region59: #{wgan3d_d_forward.4} parent=55 // pred_region
        %p4405 = scmp.lt.s32.totalorder %s19, 1
        %s4406 = scalar_select %p4405, %s19, 1
        %s4407 = smul.addr %s4406, 8
        %s4408 = smul.addr %s4407, 4
        %s4409 = scalar_lea.vmem %s7, %s4408
      $region60: #{wgan3d_d_forward.4} parent=55 // pred_fallthru
        _
    $region56: #{wgan3d_d_forward.4} parent=5 // pred_fallthru
      _
  $region6: #{wgan3d_d_forward.4} parent=0 // loop_footer
    %s17 = sadd.s32 1, %s13
  $region7: #{wgan3d_d_forward.4} parent=0 // loop_footer_branch
    %12 = sbr.rel target = $region3
  $region8: #{wgan3d_d_forward.4} parent=0 // loop_exit
    _

// kernel: wgan3d_d_forward.5
$region0: #{wgan3d_d_forward.5}
  #allocation0 [shape = 'u32[]', space=smem, size = 0x4, offset = 0x4, fixed_abs, tag = 'smem constant byte address 0x4 - core index']
  #allocation1 [shape = 'u32[144,128]{1,0:T(1,128)}', space=vmem, size = 0x12000, scoped, tag = 'internal scratch']
  %s0 = inlined_call_operand.vmem [shape: bf16[32,1024], index: 0, kind: input, shape index: {}]
  %s1 = inlined_call_operand.vmem [shape: bf16[1024,128], index: 1, kind: input, shape index: {}]
  %s2 = inlined_call_operand.vmem [shape: f32[32,1], index: 2, kind: input, shape index: {}]
  %s3 = inlined_call_operand.vmem [shape: f32[32,1], index: 3, kind: input, shape index: {}]
  %s4 = inlined_call_operand.vmem [shape: f32[128,2], index: 4, kind: input, shape index: {}]
  %s5 = inlined_call_operand.vmem [shape: f32[2,128], index: 5, kind: input, shape index: {}]
  %s6 = inlined_call_operand.vmem [shape: f32[2,128], index: 6, kind: input, shape index: {}]
  %s7 = inlined_call_operand.vmem [shape: f32[32,64], index: 7, kind: input, shape index: {}]
  %s8 = inlined_call_operand.vmem [shape: f32[64,128], index: 8, kind: input, shape index: {}]
  %s9 = inlined_call_operand.hbm [shape: f32[1,2], index: 9, kind: output, shape index: {}]
  %s10 = sld [smem:[#allocation0]]
  $region46: #{wgan3d_d_forward.5} parent=0
    _
  %s12 = ssub.s32 1, %s10
  %s13 = scalar_select 0, %s12, %s10
  $region1: #{wgan3d_d_forward.5} parent=0
    #allocation2 [shape = 'u8[512]{0}', space=vmem, size = 0x400, scoped, tag = 'output window, operand 0, single buffered']
    #allocation3 [shape = 's32[1]{0}', space=sflag, size = 0x4, scoped, tag = 'scoped memory for wgan3d_d_forward.5']
    %14 = vsyncpa [#allocation3], 0
    // Predicated region
    $region2: #{wgan3d_d_forward.5} parent=1 // pred_check
      _
    $region3: #{wgan3d_d_forward.5} parent=1 // pred_check_branch
      %16 = sbr.rel (0) target = $region5
    $region4: #{wgan3d_d_forward.5} parent=1 // pred_region
      _
    $region5: #{wgan3d_d_forward.5} parent=1 // pred_fallthru
      _
    // Predicated region
    $region6: #{wgan3d_d_forward.5} parent=1 // pred_check
      _
    $region7: #{wgan3d_d_forward.5} parent=1 // pred_check_branch
      %18 = sbr.rel (0) target = $region9
    $region8: #{wgan3d_d_forward.5} parent=1 // pred_region
      _
    $region9: #{wgan3d_d_forward.5} parent=1 // pred_fallthru
      _
    // Predicated region
    $region10: #{wgan3d_d_forward.5} parent=1 // pred_check
      _
    $region11: #{wgan3d_d_forward.5} parent=1 // pred_check_branch
      %20 = sbr.rel (0) target = $region13
    $region12: #{wgan3d_d_forward.5} parent=1 // pred_region
      _
    $region13: #{wgan3d_d_forward.5} parent=1 // pred_fallthru
      _
    // Predicated region
    $region14: #{wgan3d_d_forward.5} parent=1 // pred_check
      _
    $region15: #{wgan3d_d_forward.5} parent=1 // pred_check_branch
      %22 = sbr.rel (0) target = $region17
    $region16: #{wgan3d_d_forward.5} parent=1 // pred_region
      _
    $region17: #{wgan3d_d_forward.5} parent=1 // pred_fallthru
      _
    // Predicated region
    $region18: #{wgan3d_d_forward.5} parent=1 // pred_check
      _
    $region19: #{wgan3d_d_forward.5} parent=1 // pred_check_branch
      %24 = sbr.rel (0) target = $region21
    $region20: #{wgan3d_d_forward.5} parent=1 // pred_region
      _
    $region21: #{wgan3d_d_forward.5} parent=1 // pred_fallthru
      _
    // Predicated region
    $region22: #{wgan3d_d_forward.5} parent=1 // pred_check
      _
    $region23: #{wgan3d_d_forward.5} parent=1 // pred_check_branch
      %26 = sbr.rel (0) target = $region25
    $region24: #{wgan3d_d_forward.5} parent=1 // pred_region
      _
    $region25: #{wgan3d_d_forward.5} parent=1 // pred_fallthru
      _
    // Predicated region
    $region26: #{wgan3d_d_forward.5} parent=1 // pred_check
      _
    $region27: #{wgan3d_d_forward.5} parent=1 // pred_check_branch
      %28 = sbr.rel (0) target = $region29
    $region28: #{wgan3d_d_forward.5} parent=1 // pred_region
      _
    $region29: #{wgan3d_d_forward.5} parent=1 // pred_fallthru
      _
    // Predicated region
    $region30: #{wgan3d_d_forward.5} parent=1 // pred_check
      _
    $region31: #{wgan3d_d_forward.5} parent=1 // pred_check_branch
      %30 = sbr.rel (0) target = $region33
    $region32: #{wgan3d_d_forward.5} parent=1 // pred_region
      _
    $region33: #{wgan3d_d_forward.5} parent=1 // pred_fallthru
      _
    // Predicated region
    $region34: #{wgan3d_d_forward.5} parent=1 // pred_check
      _
    $region35: #{wgan3d_d_forward.5} parent=1 // pred_check_branch
      %32 = sbr.rel (0) target = $region37
    $region36: #{wgan3d_d_forward.5} parent=1 // pred_region
      _
    $region37: #{wgan3d_d_forward.5} parent=1 // pred_fallthru
      _
    %v34 = vld [vmem:[%s0] sm:$0xff]
    %v35 = vld [vmem:[%s0 + $0x8] sm:$0xff]
    %v36 = vld [vmem:[%s0 + $0x10] sm:$0xff]
    %v37 = vld [vmem:[%s0 + $0x18] sm:$0xff]
    %v38 = vld [vmem:[%s0 + $0x20] sm:$0xff]
    %v39 = vld [vmem:[%s0 + $0x28] sm:$0xff]
    %v40 = vld [vmem:[%s0 + $0x30] sm:$0xff]
    %v41 = vld [vmem:[%s0 + $0x38] sm:$0xff]
    %v42 = vld [vmem:[%s0 + $0x40] sm:$0xff]
    %v43 = vld [vmem:[%s0 + $0x48] sm:$0xff]
    %v44 = vld [vmem:[%s0 + $0x50] sm:$0xff]
    %v45 = vld [vmem:[%s0 + $0x58] sm:$0xff]
    %v46 = vld [vmem:[%s0 + $0x60] sm:$0xff]
    %v47 = vld [vmem:[%s0 + $0x68] sm:$0xff]
    %v48 = vld [vmem:[%s0 + $0x70] sm:$0xff]
    %v49 = vld [vmem:[%s0 + $0x78] sm:$0xff]
    %v50 = vld [vmem:[%s1] sm:$0xf]
    %v51 = vld [vmem:[%s1 + $0x4] sm:$0xf]
    %v52 = vld [vmem:[%s1 + $0x8] sm:$0xf]
    %v53 = vld [vmem:[%s1 + $0xc] sm:$0xf]
    %v54 = vld [vmem:[%s1 + $0x10] sm:$0xf]
    %v55 = vld [vmem:[%s1 + $0x14] sm:$0xf]
    %v56 = vld [vmem:[%s1 + $0x18] sm:$0xf]
    %v57 = vld [vmem:[%s1 + $0x1c] sm:$0xf]
    %v58 = vld [vmem:[%s1 + $0x20] sm:$0xf]
    %v59 = vld [vmem:[%s1 + $0x24] sm:$0xf]
    %v60 = vld [vmem:[%s1 + $0x28] sm:$0xf]
    %v61 = vld [vmem:[%s1 + $0x2c] sm:$0xf]
    %v62 = vld [vmem:[%s1 + $0x30] sm:$0xf]
    %v63 = vld [vmem:[%s1 + $0x34] sm:$0xf]
    %v64 = vld [vmem:[%s1 + $0x38] sm:$0xf]
    %v65 = vld [vmem:[%s1 + $0x3c] sm:$0xf]
    %v66 = vld [vmem:[%s1 + $0x40] sm:$0xf]
    %v67 = vld [vmem:[%s1 + $0x44] sm:$0xf]
    %v68 = vld [vmem:[%s1 + $0x48] sm:$0xf]
    %v69 = vld [vmem:[%s1 + $0x4c] sm:$0xf]
    %v70 = vld [vmem:[%s1 + $0x50] sm:$0xf]
    %v71 = vld [vmem:[%s1 + $0x54] sm:$0xf]
    %v72 = vld [vmem:[%s1 + $0x58] sm:$0xf]
    %v73 = vld [vmem:[%s1 + $0x5c] sm:$0xf]
    %v74 = vld [vmem:[%s1 + $0x60] sm:$0xf]
    %v75 = vld [vmem:[%s1 + $0x64] sm:$0xf]
    %v76 = vld [vmem:[%s1 + $0x68] sm:$0xf]
    %v77 = vld [vmem:[%s1 + $0x6c] sm:$0xf]
    %v78 = vld [vmem:[%s1 + $0x70] sm:$0xf]
    %v79 = vld [vmem:[%s1 + $0x74] sm:$0xf]
    %v80 = vld [vmem:[%s1 + $0x78] sm:$0xf]
    %v81 = vld [vmem:[%s1 + $0x7c] sm:$0xf]
    %v82 = vld [vmem:[%s1 + $0x80] sm:$0xf]
    %v83 = vld [vmem:[%s1 + $0x84] sm:$0xf]
    %v84 = vld [vmem:[%s1 + $0x88] sm:$0xf]
    %v85 = vld [vmem:[%s1 + $0x8c] sm:$0xf]
    %v86 = vld [vmem:[%s1 + $0x90] sm:$0xf]
    %v87 = vld [vmem:[%s1 + $0x94] sm:$0xf]
    %v88 = vld [vmem:[%s1 + $0x98] sm:$0xf]
    %v89 = vld [vmem:[%s1 + $0x9c] sm:$0xf]
    %v90 = vld [vmem:[%s1 + $0xa0] sm:$0xf]
    %v91 = vld [vmem:[%s1 + $0xa4] sm:$0xf]
    %v92 = vld [vmem:[%s1 + $0xa8] sm:$0xf]
    %v93 = vld [vmem:[%s1 + $0xac] sm:$0xf]
    %v94 = vld [vmem:[%s1 + $0xb0] sm:$0xf]
    %v95 = vld [vmem:[%s1 + $0xb4] sm:$0xf]
    %v96 = vld [vmem:[%s1 + $0xb8] sm:$0xf]
    %v97 = vld [vmem:[%s1 + $0xbc] sm:$0xf]
    %v98 = vld [vmem:[%s1 + $0xc0] sm:$0xf]
    %v99 = vld [vmem:[%s1 + $0xc4] sm:$0xf]
    %v100 = vld [vmem:[%s1 + $0xc8] sm:$0xf]
    %v101 = vld [vmem:[%s1 + $0xcc] sm:$0xf]
    %v102 = vld [vmem:[%s1 + $0xd0] sm:$0xf]
    %v103 = vld [vmem:[%s1 + $0xd4] sm:$0xf]
    %v104 = vld [vmem:[%s1 + $0xd8] sm:$0xf]
    %v105 = vld [vmem:[%s1 + $0xdc] sm:$0xf]
    %v106 = vld [vmem:[%s1 + $0xe0] sm:$0xf]
    %v107 = vld [vmem:[%s1 + $0xe4] sm:$0xf]
    %v108 = vld [vmem:[%s1 + $0xe8] sm:$0xf]
    %v109 = vld [vmem:[%s1 + $0xec] sm:$0xf]
    %v110 = vld [vmem:[%s1 + $0xf0] sm:$0xf]
    %v111 = vld [vmem:[%s1 + $0xf4] sm:$0xf]
    %v112 = vld [vmem:[%s1 + $0xf8] sm:$0xf]
    %v113 = vld [vmem:[%s1 + $0xfc] sm:$0xf]
    %v114 = vld [vmem:[%s1 + $0x100] sm:$0xf]
    %v115 = vld [vmem:[%s1 + $0x104] sm:$0xf]
    %v116 = vld [vmem:[%s1 + $0x108] sm:$0xf]
    %v117 = vld [vmem:[%s1 + $0x10c] sm:$0xf]
    %v118 = vld [vmem:[%s1 + $0x110] sm:$0xf]
    %v119 = vld [vmem:[%s1 + $0x114] sm:$0xf]
    %v120 = vld [vmem:[%s1 + $0x118] sm:$0xf]
    %v121 = vld [vmem:[%s1 + $0x11c] sm:$0xf]
    %v122 = vld [vmem:[%s1 + $0x120] sm:$0xf]
    %v123 = vld [vmem:[%s1 + $0x124] sm:$0xf]
    %v124 = vld [vmem:[%s1 + $0x128] sm:$0xf]
    %v125 = vld [vmem:[%s1 + $0x12c] sm:$0xf]
    %v126 = vld [vmem:[%s1 + $0x130] sm:$0xf]
    %v127 = vld [vmem:[%s1 + $0x134] sm:$0xf]
    %v128 = vld [vmem:[%s1 + $0x138] sm:$0xf]
    %v129 = vld [vmem:[%s1 + $0x13c] sm:$0xf]
    %v130 = vld [vmem:[%s1 + $0x140] sm:$0xf]
    %v131 = vld [vmem:[%s1 + $0x144] sm:$0xf]
    %v132 = vld [vmem:[%s1 + $0x148] sm:$0xf]
    %v133 = vld [vmem:[%s1 + $0x14c] sm:$0xf]
    %v134 = vld [vmem:[%s1 + $0x150] sm:$0xf]
    %v135 = vld [vmem:[%s1 + $0x154] sm:$0xf]
    %v136 = vld [vmem:[%s1 + $0x158] sm:$0xf]
    %v137 = vld [vmem:[%s1 + $0x15c] sm:$0xf]
    %v138 = vld [vmem:[%s1 + $0x160] sm:$0xf]
    %v139 = vld [vmem:[%s1 + $0x164] sm:$0xf]
    %v140 = vld [vmem:[%s1 + $0x168] sm:$0xf]
    %v141 = vld [vmem:[%s1 + $0x16c] sm:$0xf]
    %v142 = vld [vmem:[%s1 + $0x170] sm:$0xf]
    %v143 = vld [vmem:[%s1 + $0x174] sm:$0xf]
    %v144 = vld [vmem:[%s1 + $0x178] sm:$0xf]
    %v145 = vld [vmem:[%s1 + $0x17c] sm:$0xf]
    %v146 = vld [vmem:[%s1 + $0x180] sm:$0xf]
    %v147 = vld [vmem:[%s1 + $0x184] sm:$0xf]
    %v148 = vld [vmem:[%s1 + $0x188] sm:$0xf]
    %v149 = vld [vmem:[%s1 + $0x18c] sm:$0xf]
    %v150 = vld [vmem:[%s1 + $0x190] sm:$0xf]
    %v151 = vld [vmem:[%s1 + $0x194] sm:$0xf]
    %v152 = vld [vmem:[%s1 + $0x198] sm:$0xf]
    %v153 = vld [vmem:[%s1 + $0x19c] sm:$0xf]
    %v154 = vld [vmem:[%s1 + $0x1a0] sm:$0xf]
    %v155 = vld [vmem:[%s1 + $0x1a4] sm:$0xf]
    %v156 = vld [vmem:[%s1 + $0x1a8] sm:$0xf]
    %v157 = vld [vmem:[%s1 + $0x1ac] sm:$0xf]
    %v158 = vld [vmem:[%s1 + $0x1b0] sm:$0xf]
    %v159 = vld [vmem:[%s1 + $0x1b4] sm:$0xf]
    %v160 = vld [vmem:[%s1 + $0x1b8] sm:$0xf]
    %v161 = vld [vmem:[%s1 + $0x1bc] sm:$0xf]
    %v162 = vld [vmem:[%s1 + $0x1c0] sm:$0xf]
    %v163 = vld [vmem:[%s1 + $0x1c4] sm:$0xf]
    %v164 = vld [vmem:[%s1 + $0x1c8] sm:$0xf]
    %v165 = vld [vmem:[%s1 + $0x1cc] sm:$0xf]
    %v166 = vld [vmem:[%s1 + $0x1d0] sm:$0xf]
    %v167 = vld [vmem:[%s1 + $0x1d4] sm:$0xf]
    %v168 = vld [vmem:[%s1 + $0x1d8] sm:$0xf]
    %v169 = vld [vmem:[%s1 + $0x1dc] sm:$0xf]
    %v170 = vld [vmem:[%s1 + $0x1e0] sm:$0xf]
    %v171 = vld [vmem:[%s1 + $0x1e4] sm:$0xf]
    %v172 = vld [vmem:[%s1 + $0x1e8] sm:$0xf]
    %v173 = vld [vmem:[%s1 + $0x1ec] sm:$0xf]
    %v174 = vld [vmem:[%s1 + $0x1f0] sm:$0xf]
    %v175 = vld [vmem:[%s1 + $0x1f4] sm:$0xf]
    %v176 = vld [vmem:[%s1 + $0x1f8] sm:$0xf]
    %v177 = vld [vmem:[%s1 + $0x1fc] sm:$0xf]
    %v194 = vunpack.c.l.b16 %v34
    %v195 = vunpack.c.h.b16 %v34
    %v196 = vunpack.c.l.b16 %v35
    %v197 = vunpack.c.h.b16 %v35
    %v198 = vunpack.c.l.b16 %v36
    %v199 = vunpack.c.h.b16 %v36
    %v200 = vunpack.c.l.b16 %v37
    %v201 = vunpack.c.h.b16 %v37
    %v202 = vunpack.c.l.b16 %v38
    %v203 = vunpack.c.h.b16 %v38
    %v204 = vunpack.c.l.b16 %v39
    %v205 = vunpack.c.h.b16 %v39
    %v206 = vunpack.c.l.b16 %v40
    %v207 = vunpack.c.h.b16 %v40
    %v208 = vunpack.c.l.b16 %v41
    %v209 = vunpack.c.h.b16 %v41
    %v210 = vunpack.c.l.b16 %v42
    %v211 = vunpack.c.h.b16 %v42
    %v212 = vunpack.c.l.b16 %v43
    %v213 = vunpack.c.h.b16 %v43
    %v214 = vunpack.c.l.b16 %v44
    %v215 = vunpack.c.h.b16 %v44
    %v216 = vunpack.c.l.b16 %v45
    %v217 = vunpack.c.h.b16 %v45
    %v218 = vunpack.c.l.b16 %v46
    %v219 = vunpack.c.h.b16 %v46
    %v220 = vunpack.c.l.b16 %v47
    %v221 = vunpack.c.h.b16 %v47
    %v222 = vunpack.c.l.b16 %v48
    %v223 = vunpack.c.h.b16 %v48
    %v224 = vunpack.c.l.b16 %v49
    %v225 = vunpack.c.h.b16 %v49
    %v226 = vpack.c.b16 %v202, %v194
    %v227 = vpack.c.b16 %v203, %v195
    %v228 = vpack.c.b16 %v204, %v196
    %v229 = vpack.c.b16 %v205, %v197
    %v230 = vpack.c.b16 %v206, %v198
    %v231 = vpack.c.b16 %v207, %v199
    %v232 = vpack.c.b16 %v208, %v200
    %v233 = vpack.c.b16 %v209, %v201
    %v234 = vpack.c.b16 %v218, %v210
    %v235 = vpack.c.b16 %v219, %v211
    %v236 = vpack.c.b16 %v220, %v212
    %v237 = vpack.c.b16 %v221, %v213
    %v238 = vpack.c.b16 %v222, %v214
    %v239 = vpack.c.b16 %v223, %v215
    %v240 = vpack.c.b16 %v224, %v216
    %v241 = vpack.c.b16 %v225, %v217
    %v386 = vunpack.c.l.b16 %v50
    %v387 = vunpack.c.l.b16 %v51
    %v388 = vunpack.c.l.b16 %v52
    %v389 = vunpack.c.l.b16 %v53
    %v390 = vunpack.c.l.b16 %v54
    %v391 = vunpack.c.l.b16 %v55
    %v392 = vunpack.c.l.b16 %v56
    %v393 = vunpack.c.l.b16 %v57
    %v394 = vunpack.c.l.b16 %v58
    %v395 = vunpack.c.l.b16 %v59
    %v396 = vunpack.c.l.b16 %v60
    %v397 = vunpack.c.l.b16 %v61
    %v398 = vunpack.c.l.b16 %v62
    %v399 = vunpack.c.l.b16 %v63
    %v400 = vunpack.c.l.b16 %v64
    %v401 = vunpack.c.l.b16 %v65
    %v402 = vunpack.c.l.b16 %v66
    %v403 = vunpack.c.l.b16 %v67
    %v404 = vunpack.c.l.b16 %v68
    %v405 = vunpack.c.l.b16 %v69
    %v406 = vunpack.c.l.b16 %v70
    %v407 = vunpack.c.l.b16 %v71
    %v408 = vunpack.c.l.b16 %v72
    %v409 = vunpack.c.l.b16 %v73
    %v410 = vunpack.c.l.b16 %v74
    %v411 = vunpack.c.l.b16 %v75
    %v412 = vunpack.c.l.b16 %v76
    %v413 = vunpack.c.l.b16 %v77
    %v414 = vunpack.c.l.b16 %v78
    %v415 = vunpack.c.l.b16 %v79
    %v416 = vunpack.c.l.b16 %v80
    %v417 = vunpack.c.l.b16 %v81
    %v418 = vunpack.c.l.b16 %v82
    %v419 = vunpack.c.l.b16 %v83
    %v420 = vunpack.c.l.b16 %v84
    %v421 = vunpack.c.l.b16 %v85
    %v422 = vunpack.c.l.b16 %v86
    %v423 = vunpack.c.l.b16 %v87
    %v424 = vunpack.c.l.b16 %v88
    %v425 = vunpack.c.l.b16 %v89
    %v426 = vunpack.c.l.b16 %v90
    %v427 = vunpack.c.l.b16 %v91
    %v428 = vunpack.c.l.b16 %v92
    %v429 = vunpack.c.l.b16 %v93
    %v430 = vunpack.c.l.b16 %v94
    %v431 = vunpack.c.l.b16 %v95
    %v432 = vunpack.c.l.b16 %v96
    %v433 = vunpack.c.l.b16 %v97
    %v434 = vunpack.c.l.b16 %v98
    %v435 = vunpack.c.l.b16 %v99
    %v436 = vunpack.c.l.b16 %v100
    %v437 = vunpack.c.l.b16 %v101
    %v438 = vunpack.c.l.b16 %v102
    %v439 = vunpack.c.l.b16 %v103
    %v440 = vunpack.c.l.b16 %v104
    %v441 = vunpack.c.l.b16 %v105
    %v442 = vunpack.c.l.b16 %v106
    %v443 = vunpack.c.l.b16 %v107
    %v444 = vunpack.c.l.b16 %v108
    %v445 = vunpack.c.l.b16 %v109
    %v446 = vunpack.c.l.b16 %v110
    %v447 = vunpack.c.l.b16 %v111
    %v448 = vunpack.c.l.b16 %v112
    %v449 = vunpack.c.l.b16 %v113
    %v450 = vunpack.c.l.b16 %v114
    %v451 = vunpack.c.l.b16 %v115
    %v452 = vunpack.c.l.b16 %v116
    %v453 = vunpack.c.l.b16 %v117
    %v454 = vunpack.c.l.b16 %v118
    %v455 = vunpack.c.l.b16 %v119
    %v456 = vunpack.c.l.b16 %v120
    %v457 = vunpack.c.l.b16 %v121
    %v458 = vunpack.c.l.b16 %v122
    %v459 = vunpack.c.l.b16 %v123
    %v460 = vunpack.c.l.b16 %v124
    %v461 = vunpack.c.l.b16 %v125
    %v462 = vunpack.c.l.b16 %v126
    %v463 = vunpack.c.l.b16 %v127
    %v464 = vunpack.c.l.b16 %v128
    %v465 = vunpack.c.l.b16 %v129
    %v466 = vunpack.c.l.b16 %v130
    %v467 = vunpack.c.l.b16 %v131
    %v468 = vunpack.c.l.b16 %v132
    %v469 = vunpack.c.l.b16 %v133
    %v470 = vunpack.c.l.b16 %v134
    %v471 = vunpack.c.l.b16 %v135
    %v472 = vunpack.c.l.b16 %v136
    %v473 = vunpack.c.l.b16 %v137
    %v474 = vunpack.c.l.b16 %v138
    %v475 = vunpack.c.l.b16 %v139
    %v476 = vunpack.c.l.b16 %v140
    %v477 = vunpack.c.l.b16 %v141
    %v478 = vunpack.c.l.b16 %v142
    %v479 = vunpack.c.l.b16 %v143
    %v480 = vunpack.c.l.b16 %v144
    %v481 = vunpack.c.l.b16 %v145
    %v482 = vunpack.c.l.b16 %v146
    %v483 = vunpack.c.l.b16 %v147
    %v484 = vunpack.c.l.b16 %v148
    %v485 = vunpack.c.l.b16 %v149
    %v486 = vunpack.c.l.b16 %v150
    %v487 = vunpack.c.l.b16 %v151
    %v488 = vunpack.c.l.b16 %v152
    %v489 = vunpack.c.l.b16 %v153
    %v490 = vunpack.c.l.b16 %v154
    %v491 = vunpack.c.l.b16 %v155
    %v492 = vunpack.c.l.b16 %v156
    %v493 = vunpack.c.l.b16 %v157
    %v494 = vunpack.c.l.b16 %v158
    %v495 = vunpack.c.l.b16 %v159
    %v496 = vunpack.c.l.b16 %v160
    %v497 = vunpack.c.l.b16 %v161
    %v498 = vunpack.c.l.b16 %v162
    %v499 = vunpack.c.l.b16 %v163
    %v500 = vunpack.c.l.b16 %v164
    %v501 = vunpack.c.l.b16 %v165
    %v502 = vunpack.c.l.b16 %v166
    %v503 = vunpack.c.l.b16 %v167
    %v504 = vunpack.c.l.b16 %v168
    %v505 = vunpack.c.l.b16 %v169
    %v506 = vunpack.c.l.b16 %v170
    %v507 = vunpack.c.l.b16 %v171
    %v508 = vunpack.c.l.b16 %v172
    %v509 = vunpack.c.l.b16 %v173
    %v510 = vunpack.c.l.b16 %v174
    %v511 = vunpack.c.l.b16 %v175
    %v512 = vunpack.c.l.b16 %v176
    %v513 = vunpack.c.l.b16 %v177
    %v514 = vpack.c.b16 %v387, %v386
    %v515 = vpack.c.b16 %v389, %v388
    %v516 = vpack.c.b16 %v391, %v390
    %v517 = vpack.c.b16 %v393, %v392
    %v518 = vpack.c.b16 %v395, %v394
    %v519 = vpack.c.b16 %v397, %v396
    %v520 = vpack.c.b16 %v399, %v398
    %v521 = vpack.c.b16 %v401, %v400
    %v522 = vpack.c.b16 %v403, %v402
    %v523 = vpack.c.b16 %v405, %v404
    %v524 = vpack.c.b16 %v407, %v406
    %v525 = vpack.c.b16 %v409, %v408
    %v526 = vpack.c.b16 %v411, %v410
    %v527 = vpack.c.b16 %v413, %v412
    %v528 = vpack.c.b16 %v415, %v414
    %v529 = vpack.c.b16 %v417, %v416
    %v530 = vpack.c.b16 %v419, %v418
    %v531 = vpack.c.b16 %v421, %v420
    %v532 = vpack.c.b16 %v423, %v422
    %v533 = vpack.c.b16 %v425, %v424
    %v534 = vpack.c.b16 %v427, %v426
    %v535 = vpack.c.b16 %v429, %v428
    %v536 = vpack.c.b16 %v431, %v430
    %v537 = vpack.c.b16 %v433, %v432
    %v538 = vpack.c.b16 %v435, %v434
    %v539 = vpack.c.b16 %v437, %v436
    %v540 = vpack.c.b16 %v439, %v438
    %v541 = vpack.c.b16 %v441, %v440
    %v542 = vpack.c.b16 %v443, %v442
    %v543 = vpack.c.b16 %v445, %v444
    %v544 = vpack.c.b16 %v447, %v446
    %v545 = vpack.c.b16 %v449, %v448
    %v546 = vpack.c.b16 %v451, %v450
    %v547 = vpack.c.b16 %v453, %v452
    %v548 = vpack.c.b16 %v455, %v454
    %v549 = vpack.c.b16 %v457, %v456
    %v550 = vpack.c.b16 %v459, %v458
    %v551 = vpack.c.b16 %v461, %v460
    %v552 = vpack.c.b16 %v463, %v462
    %v553 = vpack.c.b16 %v465, %v464
    %v554 = vpack.c.b16 %v467, %v466
    %v555 = vpack.c.b16 %v469, %v468
    %v556 = vpack.c.b16 %v471, %v470
    %v557 = vpack.c.b16 %v473, %v472
    %v558 = vpack.c.b16 %v475, %v474
    %v559 = vpack.c.b16 %v477, %v476
    %v560 = vpack.c.b16 %v479, %v478
    %v561 = vpack.c.b16 %v481, %v480
    %v562 = vpack.c.b16 %v483, %v482
    %v563 = vpack.c.b16 %v485, %v484
    %v564 = vpack.c.b16 %v487, %v486
    %v565 = vpack.c.b16 %v489, %v488
    %v566 = vpack.c.b16 %v491, %v490
    %v567 = vpack.c.b16 %v493, %v492
    %v568 = vpack.c.b16 %v495, %v494
    %v569 = vpack.c.b16 %v497, %v496
    %v570 = vpack.c.b16 %v499, %v498
    %v571 = vpack.c.b16 %v501, %v500
    %v572 = vpack.c.b16 %v503, %v502
    %v573 = vpack.c.b16 %v505, %v504
    %v574 = vpack.c.b16 %v507, %v506
    %v575 = vpack.c.b16 %v509, %v508
    %v576 = vpack.c.b16 %v511, %v510
    %v577 = vpack.c.b16 %v513, %v512
    %642 = vmatprep.subr.bf16.mxu0 0
    %643 = vmatpush1.bf16.msra.mxu0 %v514
    %644 = vmatprep.subr.bf16.mxu0 0
    %645 = vmatpush1.bf16.msra.mxu0 %v515
    %646 = vmatprep.subr.bf16.mxu0 0
    %647 = vmatpush1.bf16.msra.mxu0 %v516
    %648 = vmatprep.subr.bf16.mxu0 0
    %649 = vmatpush1.bf16.msra.mxu0 %v517
    %650 = vmatprep.subr.bf16.mxu0 0
    %651 = vmatpush1.bf16.msra.mxu0 %v518
    %652 = vmatprep.subr.bf16.mxu0 0
    %653 = vmatpush1.bf16.msra.mxu0 %v519
    %654 = vmatprep.subr.bf16.mxu0 0
    %655 = vmatpush1.bf16.msra.mxu0 %v520
    %656 = vmatprep.subr.bf16.mxu0 0
    %657 = vmatpush1.bf16.msra.mxu0 %v521
    %658 = vmatprep.subr.bf16.mxu0 0
    %659 = vmatpush1.bf16.msra.mxu0 %v522
    %660 = vmatprep.subr.bf16.mxu0 0
    %661 = vmatpush1.bf16.msra.mxu0 %v523
    %662 = vmatprep.subr.bf16.mxu0 0
    %663 = vmatpush1.bf16.msra.mxu0 %v524
    %664 = vmatprep.subr.bf16.mxu0 0
    %665 = vmatpush1.bf16.msra.mxu0 %v525
    %666 = vmatprep.subr.bf16.mxu0 0
    %667 = vmatpush1.bf16.msra.mxu0 %v526
    %668 = vmatprep.subr.bf16.mxu0 0
    %669 = vmatpush1.bf16.msra.mxu0 %v527
    %670 = vmatprep.subr.bf16.mxu0 0
    %671 = vmatpush1.bf16.msra.mxu0 %v528
    %672 = vmatprep.subr.bf16.mxu0 0
    %673 = vmatpush1.bf16.msra.mxu0 %v529
    %674 = vmatprep.mubr.bf16.mxu0 %v227
    %675 = vmatmul.mubr.bf16.gmra.mrb[0].mxu0 %v226
    %v676 = vpop.f32.mrb[0].mxu0
    %v677 = vadd.f32 0.0, %v676
    %v678 = vpop.f32.mrb[0].mxu0
    %v679 = vpop.f32.mrb[0].mxu0
    %v680 = vadd.f32 0.0, %v679
    %v681 = vpop.f32.mrb[0].mxu0
    %682 = vmatprep.mubr.bf16.mxu0 %v235
    %683 = vmatmul.mubr.bf16.gmra.mrb[0].mxu0 %v234
    %v684 = vpop.f32.mrb[0].mxu0
    %v685 = vadd.f32 0.0, %v684
    %v686 = vpop.f32.mrb[0].mxu0
    %v687 = vpop.f32.mrb[0].mxu0
    %v688 = vadd.f32 0.0, %v687
    %v689 = vpop.f32.mrb[0].mxu0
    %690 = vdwg.mxu0
    %691 = vmatprep.subr.bf16.mxu0 0
    %692 = vmatpush1.bf16.msra.mxu0 %v530
    %693 = vmatprep.subr.bf16.mxu0 0
    %694 = vmatpush1.bf16.msra.mxu0 %v531
    %695 = vmatprep.subr.bf16.mxu0 0
    %696 = vmatpush1.bf16.msra.mxu0 %v532
    %697 = vmatprep.subr.bf16.mxu0 0
    %698 = vmatpush1.bf16.msra.mxu0 %v533
    %699 = vmatprep.subr.bf16.mxu0 0
    %700 = vmatpush1.bf16.msra.mxu0 %v534
    %701 = vmatprep.subr.bf16.mxu0 0
    %702 = vmatpush1.bf16.msra.mxu0 %v535
    %703 = vmatprep.subr.bf16.mxu0 0
    %704 = vmatpush1.bf16.msra.mxu0 %v536
    %705 = vmatprep.subr.bf16.mxu0 0
    %706 = vmatpush1.bf16.msra.mxu0 %v537
    %707 = vmatprep.subr.bf16.mxu0 0
    %708 = vmatpush1.bf16.msra.mxu0 %v538
    %709 = vmatprep.subr.bf16.mxu0 0
    %710 = vmatpush1.bf16.msra.mxu0 %v539
    %711 = vmatprep.subr.bf16.mxu0 0
    %712 = vmatpush1.bf16.msra.mxu0 %v540
    %713 = vmatprep.subr.bf16.mxu0 0
    %714 = vmatpush1.bf16.msra.mxu0 %v541
    %715 = vmatprep.subr.bf16.mxu0 0
    %716 = vmatpush1.bf16.msra.mxu0 %v542
    %717 = vmatprep.subr.bf16.mxu0 0
    %718 = vmatpush1.bf16.msra.mxu0 %v543
    %719 = vmatprep.subr.bf16.mxu0 0
    %720 = vmatpush1.bf16.msra.mxu0 %v544
    %721 = vmatprep.subr.bf16.mxu0 0
    %722 = vmatpush1.bf16.msra.mxu0 %v545
    %723 = vmatprep.mubr.bf16.mxu0 %v229
    %724 = vmatmul.mubr.bf16.gmra.mrb[0].mxu0 %v228
    %v725 = vpop.f32.mrb[0].mxu0
    %v726 = vadd.f32 %v677, %v725
    %v727 = vpop.f32.mrb[0].mxu0
    %v728 = vpop.f32.mrb[0].mxu0
    %v729 = vadd.f32 %v680, %v728
    %v730 = vpop.f32.mrb[0].mxu0
    %731 = vmatprep.mubr.bf16.mxu0 %v237
    %732 = vmatmul.mubr.bf16.gmra.mrb[0].mxu0 %v236
    %v733 = vpop.f32.mrb[0].mxu0
    %v734 = vadd.f32 %v685, %v733
    %v735 = vpop.f32.mrb[0].mxu0
    %v736 = vpop.f32.mrb[0].mxu0
    %v737 = vadd.f32 %v688, %v736
    %v738 = vpop.f32.mrb[0].mxu0
    %739 = vdwg.mxu0
    %740 = vmatprep.subr.bf16.mxu0 0
    %741 = vmatpush1.bf16.msra.mxu0 %v546
    %742 = vmatprep.subr.bf16.mxu0 0
    %743 = vmatpush1.bf16.msra.mxu0 %v547
    %744 = vmatprep.subr.bf16.mxu0 0
    %745 = vmatpush1.bf16.msra.mxu0 %v548
    %746 = vmatprep.subr.bf16.mxu0 0
    %747 = vmatpush1.bf16.msra.mxu0 %v549
    %748 = vmatprep.subr.bf16.mxu0 0
    %749 = vmatpush1.bf16.msra.mxu0 %v550
    %750 = vmatprep.subr.bf16.mxu0 0
    %751 = vmatpush1.bf16.msra.mxu0 %v551
    %752 = vmatprep.subr.bf16.mxu0 0
    %753 = vmatpush1.bf16.msra.mxu0 %v552
    %754 = vmatprep.subr.bf16.mxu0 0
    %755 = vmatpush1.bf16.msra.mxu0 %v553
    %756 = vmatprep.subr.bf16.mxu0 0
    %757 = vmatpush1.bf16.msra.mxu0 %v554
    %758 = vmatprep.subr.bf16.mxu0 0
    %759 = vmatpush1.bf16.msra.mxu0 %v555
    %760 = vmatprep.subr.bf16.mxu0 0
    %761 = vmatpush1.bf16.msra.mxu0 %v556
    %762 = vmatprep.subr.bf16.mxu0 0
    %763 = vmatpush1.bf16.msra.mxu0 %v557
    %764 = vmatprep.subr.bf16.mxu0 0
    %765 = vmatpush1.bf16.msra.mxu0 %v558
    %766 = vmatprep.subr.bf16.mxu0 0
    %767 = vmatpush1.bf16.msra.mxu0 %v559
    %768 = vmatprep.subr.bf16.mxu0 0
    %769 = vmatpush1.bf16.msra.mxu0 %v560
    %770 = vmatprep.subr.bf16.mxu0 0
    %771 = vmatpush1.bf16.msra.mxu0 %v561
    %772 = vmatprep.mubr.bf16.mxu0 %v231
    %773 = vmatmul.mubr.bf16.gmra.mrb[0].mxu0 %v230
    %v774 = vpop.f32.mrb[0].mxu0
    %v775 = vadd.f32 %v726, %v774
    %v776 = vpop.f32.mrb[0].mxu0
    %v777 = vpop.f32.mrb[0].mxu0
    %v778 = vadd.f32 %v729, %v777
    %v779 = vpop.f32.mrb[0].mxu0
    %780 = vmatprep.mubr.bf16.mxu0 %v239
    %781 = vmatmul.mubr.bf16.gmra.mrb[0].mxu0 %v238
    %v782 = vpop.f32.mrb[0].mxu0
    %v783 = vadd.f32 %v734, %v782
    %v784 = vpop.f32.mrb[0].mxu0
    %v785 = vpop.f32.mrb[0].mxu0
    %v786 = vadd.f32 %v737, %v785
    %v787 = vpop.f32.mrb[0].mxu0
    %788 = vdwg.mxu0
    %789 = vmatprep.subr.bf16.mxu0 0
    %790 = vmatpush1.bf16.msra.mxu0 %v562
    %791 = vmatprep.subr.bf16.mxu0 0
    %792 = vmatpush1.bf16.msra.mxu0 %v563
    %793 = vmatprep.subr.bf16.mxu0 0
    %794 = vmatpush1.bf16.msra.mxu0 %v564
    %795 = vmatprep.subr.bf16.mxu0 0
    %796 = vmatpush1.bf16.msra.mxu0 %v565
    %797 = vmatprep.subr.bf16.mxu0 0
    %798 = vmatpush1.bf16.msra.mxu0 %v566
    %799 = vmatprep.subr.bf16.mxu0 0
    %800 = vmatpush1.bf16.msra.mxu0 %v567
    %801 = vmatprep.subr.bf16.mxu0 0
    %802 = vmatpush1.bf16.msra.mxu0 %v568
    %803 = vmatprep.subr.bf16.mxu0 0
    %804 = vmatpush1.bf16.msra.mxu0 %v569
    %805 = vmatprep.subr.bf16.mxu0 0
    %806 = vmatpush1.bf16.msra.mxu0 %v570
    %807 = vmatprep.subr.bf16.mxu0 0
    %808 = vmatpush1.bf16.msra.mxu0 %v571
    %809 = vmatprep.subr.bf16.mxu0 0
    %810 = vmatpush1.bf16.msra.mxu0 %v572
    %811 = vmatprep.subr.bf16.mxu0 0
    %812 = vmatpush1.bf16.msra.mxu0 %v573
    %813 = vmatprep.subr.bf16.mxu0 0
    %814 = vmatpush1.bf16.msra.mxu0 %v574
    %815 = vmatprep.subr.bf16.mxu0 0
    %816 = vmatpush1.bf16.msra.mxu0 %v575
    %817 = vmatprep.subr.bf16.mxu0 0
    %818 = vmatpush1.bf16.msra.mxu0 %v576
    %819 = vmatprep.subr.bf16.mxu0 0
    %820 = vmatpush1.bf16.msra.mxu0 %v577
    %821 = vmatprep.mubr.bf16.mxu0 %v233
    %822 = vmatmul.mubr.bf16.gmra.mrb[0].mxu0 %v232
    %v823 = vpop.f32.mrb[0].mxu0
    %v824 = vadd.f32 %v775, %v823
    %v825 = vpop.f32.mrb[0].mxu0
    %v826 = vpop.f32.mrb[0].mxu0
    %v827 = vadd.f32 %v778, %v826
    %v828 = vpop.f32.mrb[0].mxu0
    %829 = vmatprep.mubr.bf16.mxu0 %v241
    %830 = vmatmul.mubr.bf16.gmra.mrb[0].mxu0 %v240
    %v831 = vpop.f32.mrb[0].mxu0
    %v832 = vadd.f32 %v783, %v831
    %v833 = vpop.f32.mrb[0].mxu0
    %v834 = vpop.f32.mrb[0].mxu0
    %v835 = vadd.f32 %v786, %v834
    %v836 = vpop.f32.mrb[0].mxu0
    %837 = vdwg.mxu0
    %838 = vadd.xlane.f32.xlu0 %v824
    %v839 = vpop.xlane.xlu0 %838
    %840 = vadd.xlane.f32.xlu0 %v827
    %v841 = vpop.xlane.xlu0 %840
    %842 = vadd.xlane.f32.xlu0 %v832
    %v843 = vpop.xlane.xlu0 %842
    %844 = vadd.xlane.f32.xlu0 %v835
    %v845 = vpop.xlane.xlu0 %844
    %v846 = vrcp.pop 128.0
    %v847 = vmul.f32 %v839, %v846
    %v848 = vmul.f32 %v841, %v846
    %v849 = vmul.f32 %v843, %v846
    %v850 = vmul.f32 %v845, %v846
    %v851 = vsub.f32 %v824, %v847
    %v852 = vsub.f32 %v827, %v848
    %v853 = vsub.f32 %v832, %v849
    %v854 = vsub.f32 %v835, %v850
    %v855 = vmul.f32 %v851, %v851
    %v856 = vmul.f32 %v852, %v852
    %v857 = vmul.f32 %v853, %v853
    %v858 = vmul.f32 %v854, %v854
    %859 = vadd.xlane.f32.xlu0 %v855
    %v860 = vpop.xlane.xlu0 %859
    %861 = vadd.xlane.f32.xlu0 %v856
    %v862 = vpop.xlane.xlu0 %861
    %863 = vadd.xlane.f32.xlu0 %v857
    %v864 = vpop.xlane.xlu0 %863
    %865 = vadd.xlane.f32.xlu0 %v858
    %v866 = vpop.xlane.xlu0 %865
    %v867 = vmul.f32 %v860, %v846
    %v868 = vmul.f32 %v862, %v846
    %v869 = vmul.f32 %v864, %v846
    %v870 = vmul.f32 %v866, %v846
    %v871 = vadd.f32 %v867, 1e-05
    %v872 = vadd.f32 %v868, 1e-05
    %v873 = vadd.f32 %v869, 1e-05
    %v874 = vadd.f32 %v870, 1e-05
    %v875 = vrsqrt.pop %v871
    %v876 = vrsqrt.pop %v872
    %v877 = vrsqrt.pop %v873
    %v878 = vrsqrt.pop %v874
    %v879 = vmul.f32 %v851, %v875
    %v880 = vmul.f32 %v852, %v876
    %v881 = vmul.f32 %v853, %v877
    %v882 = vmul.f32 %v854, %v878
    %v883 = vld [vmem:[%s2] sm:$0xff]
    %v884 = vld [vmem:[%s2 + $0x8] sm:$0xff]
    %v885 = vld [vmem:[%s2 + $0x10] sm:$0xff]
    %v886 = vld [vmem:[%s2 + $0x18] sm:$0xff]
    %888 = vset.pattern.permute.xlu0 0
    %889 = vperm.xlu0 %888, %v883
    %v890 = vpop.permute.xlu0 %889
    %893 = vset.pattern.permute.xlu0 0
    %894 = vperm.xlu0 %893, %v884
    %v895 = vpop.permute.xlu0 %894
    %898 = vset.pattern.permute.xlu0 0
    %899 = vperm.xlu0 %898, %v885
    %v900 = vpop.permute.xlu0 %899
    %903 = vset.pattern.permute.xlu0 0
    %904 = vperm.xlu0 %903, %v886
    %v905 = vpop.permute.xlu0 %904
    %v907 = vmul.f32 %v879, %v890
    %v908 = vmul.f32 %v880, %v895
    %v909 = vmul.f32 %v881, %v900
    %v910 = vmul.f32 %v882, %v905
    %v911 = vld [vmem:[%s3] sm:$0xff]
    %v912 = vld [vmem:[%s3 + $0x8] sm:$0xff]
    %v913 = vld [vmem:[%s3 + $0x10] sm:$0xff]
    %v914 = vld [vmem:[%s3 + $0x18] sm:$0xff]
    %916 = vset.pattern.permute.xlu0 0
    %917 = vperm.xlu0 %916, %v911
    %v918 = vpop.permute.xlu0 %917
    %921 = vset.pattern.permute.xlu0 0
    %922 = vperm.xlu0 %921, %v912
    %v923 = vpop.permute.xlu0 %922
    %926 = vset.pattern.permute.xlu0 0
    %927 = vperm.xlu0 %926, %v913
    %v928 = vpop.permute.xlu0 %927
    %931 = vset.pattern.permute.xlu0 0
    %932 = vperm.xlu0 %931, %v914
    %v933 = vpop.permute.xlu0 %932
    %v935 = vadd.f32 %v907, %v918
    %v936 = vadd.f32 %v908, %v923
    %v937 = vadd.f32 %v909, %v928
    %v938 = vadd.f32 %v910, %v933
    %v939 = vmul.f32 %v935, 0.2
    %v940 = vmul.f32 %v936, 0.2
    %v941 = vmul.f32 %v937, 0.2
    %v942 = vmul.f32 %v938, 0.2
    %v943 = vmax.f32 %v935, %v939
    %v944 = vmax.f32 %v936, %v940
    %v945 = vmax.f32 %v937, %v941
    %v946 = vmax.f32 %v938, %v942
    %v947 = vld [vmem:[%s4] sm:$0xff]
    %v948 = vld [vmem:[%s4 + $0x8] sm:$0xff]
    %v949 = vld [vmem:[%s4 + $0x10] sm:$0xff]
    %v950 = vld [vmem:[%s4 + $0x18] sm:$0xff]
    %v951 = vld [vmem:[%s4 + $0x20] sm:$0xff]
    %v952 = vld [vmem:[%s4 + $0x28] sm:$0xff]
    %v953 = vld [vmem:[%s4 + $0x30] sm:$0xff]
    %v954 = vld [vmem:[%s4 + $0x38] sm:$0xff]
    %v955 = vld [vmem:[%s4 + $0x40] sm:$0xff]
    %v956 = vld [vmem:[%s4 + $0x48] sm:$0xff]
    %v957 = vld [vmem:[%s4 + $0x50] sm:$0xff]
    %v958 = vld [vmem:[%s4 + $0x58] sm:$0xff]
    %v959 = vld [vmem:[%s4 + $0x60] sm:$0xff]
    %v960 = vld [vmem:[%s4 + $0x68] sm:$0xff]
    %v961 = vld [vmem:[%s4 + $0x70] sm:$0xff]
    %v962 = vld [vmem:[%s4 + $0x78] sm:$0xff]
    %v963 = vld [vmem:[%s5] sm:$0x3]
    %v964 = vld [vmem:[%s6] sm:$0x3]
    %965 = vmatprep.subr.mxu0 0.0
    %966 = vmatpush1.msra.mxu0 %v947
    %967 = vmatprep.subr.mxu0 0.0
    %968 = vmatpush1.msra.mxu0 %v948
    %969 = vmatprep.subr.mxu0 0.0
    %970 = vmatpush1.msra.mxu0 %v949
    %971 = vmatprep.subr.mxu0 0.0
    %972 = vmatpush1.msra.mxu0 %v950
    %973 = vmatprep.subr.mxu0 0.0
    %974 = vmatpush1.msra.mxu0 %v951
    %975 = vmatprep.subr.mxu0 0.0
    %976 = vmatpush1.msra.mxu0 %v952
    %977 = vmatprep.subr.mxu0 0.0
    %978 = vmatpush1.msra.mxu0 %v953
    %979 = vmatprep.subr.mxu0 0.0
    %980 = vmatpush1.msra.mxu0 %v954
    %981 = vmatprep.subr.mxu0 0.0
    %982 = vmatpush1.msra.mxu0 %v955
    %983 = vmatprep.subr.mxu0 0.0
    %984 = vmatpush1.msra.mxu0 %v956
    %985 = vmatprep.subr.mxu0 0.0
    %986 = vmatpush1.msra.mxu0 %v957
    %987 = vmatprep.subr.mxu0 0.0
    %988 = vmatpush1.msra.mxu0 %v958
    %989 = vmatprep.subr.mxu0 0.0
    %990 = vmatpush1.msra.mxu0 %v959
    %991 = vmatprep.subr.mxu0 0.0
    %992 = vmatpush1.msra.mxu0 %v960
    %993 = vmatprep.subr.mxu0 0.0
    %994 = vmatpush1.msra.mxu0 %v961
    %995 = vmatprep.subr.mxu0 0.0
    %996 = vmatpush1.msra.mxu0 %v962
    %997 = vmatprep.subr.mxu0 0.0
    %998 = vmatpush1.msra.mxu0 0.0
    %999 = vmatprep.subr.mxu0 0.0
    %1000 = vmatpush1.msra.mxu0 0.0
    %1001 = vmatprep.subr.mxu0 0.0
    %1002 = vmatpush1.msra.mxu0 0.0
    %1003 = vmatprep.subr.mxu0 0.0
    %1004 = vmatpush1.msra.mxu0 0.0
    %1005 = vmatprep.subr.mxu0 0.0
    %1006 = vmatpush1.msra.mxu0 0.0
    %1007 = vmatprep.subr.mxu0 0.0
    %1008 = vmatpush1.msra.mxu0 0.0
    %1009 = vmatprep.subr.mxu0 0.0
    %1010 = vmatpush1.msra.mxu0 0.0
    %1011 = vmatprep.subr.mxu0 0.0
    %1012 = vmatpush1.msra.mxu0 0.0
    %1013 = vmatprep.subr.mxu0 0.0
    %1014 = vmatpush1.msra.mxu0 0.0
    %1015 = vmatprep.subr.mxu0 0.0
    %1016 = vmatpush1.msra.mxu0 0.0
    %1017 = vmatprep.subr.mxu0 0.0
    %1018 = vmatpush1.msra.mxu0 0.0
    %1019 = vmatprep.subr.mxu0 0.0
    %1020 = vmatpush1.msra.mxu0 0.0
    %1021 = vmatprep.subr.mxu0 0.0
    %1022 = vmatpush1.msra.mxu0 0.0
    %1023 = vmatprep.subr.mxu0 0.0
    %1024 = vmatpush1.msra.mxu0 0.0
    %1025 = vmatprep.subr.mxu0 0.0
    %1026 = vmatpush1.msra.mxu0 0.0
    %1027 = vmatprep.subr.mxu0 0.0
    %1028 = vmatpush1.msra.mxu0 0.0
    %1029 = vmatprep.mubr.f32.mxu0 0.0
    %1030 = vmatmul.mubr.f32.gmra.mrb[0].mxu0 %v943
    %v1031 = vpop.f32.mrb[0].mxu0
    %v1032 = vadd.f32 0.0, %v1031
    %v1033 = vpop.f32.mrb[0].mxu0
    %1034 = vmatprep.mubr.f32.mxu0 0.0
    %1035 = vmatmul.mubr.f32.gmra.mrb[0].mxu0 %v944
    %v1036 = vpop.f32.mrb[0].mxu0
    %v1037 = vadd.f32 0.0, %v1036
    %v1038 = vpop.f32.mrb[0].mxu0
    %1039 = vmatprep.mubr.f32.mxu0 0.0
    %1040 = vmatmul.mubr.f32.gmra.mrb[0].mxu0 %v945
    %v1041 = vpop.f32.mrb[0].mxu0
    %v1042 = vadd.f32 0.0, %v1041
    %v1043 = vpop.f32.mrb[0].mxu0
    %1044 = vmatprep.mubr.f32.mxu0 0.0
    %1045 = vmatmul.mubr.f32.gmra.mrb[0].mxu0 %v946
    %v1046 = vpop.f32.mrb[0].mxu0
    %v1047 = vadd.f32 0.0, %v1046
    %v1048 = vpop.f32.mrb[0].mxu0
    %1049 = vdwg.mxu0
    %vm1050 = vcmask 15360
    %v1052 = vsel %vm1050, %v1032, 0
    %v1055 = vsel %vm1050, %v1037, 0
    %v1058 = vsel %vm1050, %v1042, 0
    %v1061 = vsel %vm1050, %v1047, 0
    %vm1063 = vcmask 1041408
    %v1065 = vsel %vm1063, %v963, 0
    %1067 = vmatprep.subr.mxu0 0.0
    %1068 = vmatpush1.msra.mxu0 %v1065
    %1069 = vmatprep.subr.mxu0 0.0
    %1070 = vmatpush1.msra.mxu0 0.0
    %1071 = vmatprep.subr.mxu0 0.0
    %1072 = vmatpush1.msra.mxu0 0.0
    %1073 = vmatprep.subr.mxu0 0.0
    %1074 = vmatpush1.msra.mxu0 0.0
    %1075 = vmatprep.subr.mxu0 0.0
    %1076 = vmatpush1.msra.mxu0 0.0
    %1077 = vmatprep.subr.mxu0 0.0
    %1078 = vmatpush1.msra.mxu0 0.0
    %1079 = vmatprep.subr.mxu0 0.0
    %1080 = vmatpush1.msra.mxu0 0.0
    %1081 = vmatprep.subr.mxu0 0.0
    %1082 = vmatpush1.msra.mxu0 0.0
    %1083 = vmatprep.subr.mxu0 0.0
    %1084 = vmatpush1.msra.mxu0 0.0
    %1085 = vmatprep.subr.mxu0 0.0
    %1086 = vmatpush1.msra.mxu0 0.0
    %1087 = vmatprep.subr.mxu0 0.0
    %1088 = vmatpush1.msra.mxu0 0.0
    %1089 = vmatprep.subr.mxu0 0.0
    %1090 = vmatpush1.msra.mxu0 0.0
    %1091 = vmatprep.subr.mxu0 0.0
    %1092 = vmatpush1.msra.mxu0 0.0
    %1093 = vmatprep.subr.mxu0 0.0
    %1094 = vmatpush1.msra.mxu0 0.0
    %1095 = vmatprep.subr.mxu0 0.0
    %1096 = vmatpush1.msra.mxu0 0.0
    %1097 = vmatprep.subr.mxu0 0.0
    %1098 = vmatpush1.msra.mxu0 0.0
    %1099 = vmatprep.subr.mxu0 0.0
    %1100 = vmatpush1.msra.mxu0 0.0
    %1101 = vmatprep.subr.mxu0 0.0
    %1102 = vmatpush1.msra.mxu0 0.0
    %1103 = vmatprep.subr.mxu0 0.0
    %1104 = vmatpush1.msra.mxu0 0.0
    %1105 = vmatprep.subr.mxu0 0.0
    %1106 = vmatpush1.msra.mxu0 0.0
    %1107 = vmatprep.subr.mxu0 0.0
    %1108 = vmatpush1.msra.mxu0 0.0
    %1109 = vmatprep.subr.mxu0 0.0
    %1110 = vmatpush1.msra.mxu0 0.0
    %1111 = vmatprep.subr.mxu0 0.0
    %1112 = vmatpush1.msra.mxu0 0.0
    %1113 = vmatprep.subr.mxu0 0.0
    %1114 = vmatpush1.msra.mxu0 0.0
    %1115 = vmatprep.subr.mxu0 0.0
    %1116 = vmatpush1.msra.mxu0 0.0
    %1117 = vmatprep.subr.mxu0 0.0
    %1118 = vmatpush1.msra.mxu0 0.0
    %1119 = vmatprep.subr.mxu0 0.0
    %1120 = vmatpush1.msra.mxu0 0.0
    %1121 = vmatprep.subr.mxu0 0.0
    %1122 = vmatpush1.msra.mxu0 0.0
    %1123 = vmatprep.subr.mxu0 0.0
    %1124 = vmatpush1.msra.mxu0 0.0
    %1125 = vmatprep.subr.mxu0 0.0
    %1126 = vmatpush1.msra.mxu0 0.0
    %1127 = vmatprep.subr.mxu0 0.0
    %1128 = vmatpush1.msra.mxu0 0.0
    %1129 = vmatprep.subr.mxu0 0.0
    %1130 = vmatpush1.msra.mxu0 0.0
    %1131 = vmatprep.mubr.f32.mxu0 0.0
    %1132 = vmatmul.mubr.f32.gmra.mrb[0].mxu0 %v1052
    %v1133 = vpop.f32.mrb[0].mxu0
    %v1134 = vadd.f32 0.0, %v1133
    %v1135 = vpop.f32.mrb[0].mxu0
    %1136 = vmatprep.mubr.f32.mxu0 0.0
    %1137 = vmatmul.mubr.f32.gmra.mrb[0].mxu0 %v1055
    %v1138 = vpop.f32.mrb[0].mxu0
    %v1139 = vadd.f32 0.0, %v1138
    %v1140 = vpop.f32.mrb[0].mxu0
    %1141 = vmatprep.mubr.f32.mxu0 0.0
    %1142 = vmatmul.mubr.f32.gmra.mrb[0].mxu0 %v1058
    %v1143 = vpop.f32.mrb[0].mxu0
    %v1144 = vadd.f32 0.0, %v1143
    %v1145 = vpop.f32.mrb[0].mxu0
    %1146 = vmatprep.mubr.f32.mxu0 0.0
    %1147 = vmatmul.mubr.f32.gmra.mrb[0].mxu0 %v1061
    %v1148 = vpop.f32.mrb[0].mxu0
    %v1149 = vadd.f32 0.0, %v1148
    %v1150 = vpop.f32.mrb[0].mxu0
    %1151 = vdwg.mxu0
    %v1153 = vsel %vm1063, %v964, 0
    %1155 = vmatprep.subr.mxu0 0.0
    %1156 = vmatpush1.msra.mxu0 %v1153
    %1157 = vmatprep.subr.mxu0 0.0
    %1158 = vmatpush1.msra.mxu0 0.0
    %1159 = vmatprep.subr.mxu0 0.0
    %1160 = vmatpush1.msra.mxu0 0.0
    %1161 = vmatprep.subr.mxu0 0.0
    %1162 = vmatpush1.msra.mxu0 0.0
    %1163 = vmatprep.subr.mxu0 0.0
    %1164 = vmatpush1.msra.mxu0 0.0
    %1165 = vmatprep.subr.mxu0 0.0
    %1166 = vmatpush1.msra.mxu0 0.0
    %1167 = vmatprep.subr.mxu0 0.0
    %1168 = vmatpush1.msra.mxu0 0.0
    %1169 = vmatprep.subr.mxu0 0.0
    %1170 = vmatpush1.msra.mxu0 0.0
    %1171 = vmatprep.subr.mxu0 0.0
    %1172 = vmatpush1.msra.mxu0 0.0
    %1173 = vmatprep.subr.mxu0 0.0
    %1174 = vmatpush1.msra.mxu0 0.0
    %1175 = vmatprep.subr.mxu0 0.0
    %1176 = vmatpush1.msra.mxu0 0.0
    %1177 = vmatprep.subr.mxu0 0.0
    %1178 = vmatpush1.msra.mxu0 0.0
    %1179 = vmatprep.subr.mxu0 0.0
    %1180 = vmatpush1.msra.mxu0 0.0
    %1181 = vmatprep.subr.mxu0 0.0
    %1182 = vmatpush1.msra.mxu0 0.0
    %1183 = vmatprep.subr.mxu0 0.0
    %1184 = vmatpush1.msra.mxu0 0.0
    %1185 = vmatprep.subr.mxu0 0.0
    %1186 = vmatpush1.msra.mxu0 0.0
    %1187 = vmatprep.subr.mxu0 0.0
    %1188 = vmatpush1.msra.mxu0 0.0
    %1189 = vmatprep.subr.mxu0 0.0
    %1190 = vmatpush1.msra.mxu0 0.0
    %1191 = vmatprep.subr.mxu0 0.0
    %1192 = vmatpush1.msra.mxu0 0.0
    %1193 = vmatprep.subr.mxu0 0.0
    %1194 = vmatpush1.msra.mxu0 0.0
    %1195 = vmatprep.subr.mxu0 0.0
    %1196 = vmatpush1.msra.mxu0 0.0
    %1197 = vmatprep.subr.mxu0 0.0
    %1198 = vmatpush1.msra.mxu0 0.0
    %1199 = vmatprep.subr.mxu0 0.0
    %1200 = vmatpush1.msra.mxu0 0.0
    %1201 = vmatprep.subr.mxu0 0.0
    %1202 = vmatpush1.msra.mxu0 0.0
    %1203 = vmatprep.subr.mxu0 0.0
    %1204 = vmatpush1.msra.mxu0 0.0
    %1205 = vmatprep.subr.mxu0 0.0
    %1206 = vmatpush1.msra.mxu0 0.0
    %1207 = vmatprep.subr.mxu0 0.0
    %1208 = vmatpush1.msra.mxu0 0.0
    %1209 = vmatprep.subr.mxu0 0.0
    %1210 = vmatpush1.msra.mxu0 0.0
    %1211 = vmatprep.subr.mxu0 0.0
    %1212 = vmatpush1.msra.mxu0 0.0
    %1213 = vmatprep.subr.mxu0 0.0
    %1214 = vmatpush1.msra.mxu0 0.0
    %1215 = vmatprep.subr.mxu0 0.0
    %1216 = vmatpush1.msra.mxu0 0.0
    %1217 = vmatprep.subr.mxu0 0.0
    %1218 = vmatpush1.msra.mxu0 0.0
    %1219 = vmatprep.mubr.f32.mxu0 0.0
    %1220 = vmatmul.mubr.f32.gmra.mrb[0].mxu0 %v1052
    %v1221 = vpop.f32.mrb[0].mxu0
    %v1222 = vadd.f32 0.0, %v1221
    %v1223 = vpop.f32.mrb[0].mxu0
    %1224 = vmatprep.mubr.f32.mxu0 0.0
    %1225 = vmatmul.mubr.f32.gmra.mrb[0].mxu0 %v1055
    %v1226 = vpop.f32.mrb[0].mxu0
    %v1227 = vadd.f32 0.0, %v1226
    %v1228 = vpop.f32.mrb[0].mxu0
    %1229 = vmatprep.mubr.f32.mxu0 0.0
    %1230 = vmatmul.mubr.f32.gmra.mrb[0].mxu0 %v1058
    %v1231 = vpop.f32.mrb[0].mxu0
    %v1232 = vadd.f32 0.0, %v1231
    %v1233 = vpop.f32.mrb[0].mxu0
    %1234 = vmatprep.mubr.f32.mxu0 0.0
    %1235 = vmatmul.mubr.f32.gmra.mrb[0].mxu0 %v1061
    %v1236 = vpop.f32.mrb[0].mxu0
    %v1237 = vadd.f32 0.0, %v1236
    %v1238 = vpop.f32.mrb[0].mxu0
    %1239 = vdwg.mxu0
    %v1240 = vsub.f32 %v943, %v1134
    %v1241 = vsub.f32 %v944, %v1139
    %v1242 = vsub.f32 %v945, %v1144
    %v1243 = vsub.f32 %v946, %v1149
    %v1244 = vmul.f32 %v1240, %v1240
    %v1245 = vmul.f32 %v1241, %v1241
    %v1246 = vmul.f32 %v1242, %v1242
    %v1247 = vmul.f32 %v1243, %v1243
    %1248 = vmatprep.subr.mxu0 0.0
    %1249 = vmatpush1.msra.mxu0 %v947
    %1250 = vmatprep.subr.mxu0 0.0
    %1251 = vmatpush1.msra.mxu0 %v948
    %1252 = vmatprep.subr.mxu0 0.0
    %1253 = vmatpush1.msra.mxu0 %v949
    %1254 = vmatprep.subr.mxu0 0.0
    %1255 = vmatpush1.msra.mxu0 %v950
    %1256 = vmatprep.subr.mxu0 0.0
    %1257 = vmatpush1.msra.mxu0 %v951
    %1258 = vmatprep.subr.mxu0 0.0
    %1259 = vmatpush1.msra.mxu0 %v952
    %1260 = vmatprep.subr.mxu0 0.0
    %1261 = vmatpush1.msra.mxu0 %v953
    %1262 = vmatprep.subr.mxu0 0.0
    %1263 = vmatpush1.msra.mxu0 %v954
    %1264 = vmatprep.subr.mxu0 0.0
    %1265 = vmatpush1.msra.mxu0 %v955
    %1266 = vmatprep.subr.mxu0 0.0
    %1267 = vmatpush1.msra.mxu0 %v956
    %1268 = vmatprep.subr.mxu0 0.0
    %1269 = vmatpush1.msra.mxu0 %v957
    %1270 = vmatprep.subr.mxu0 0.0
    %1271 = vmatpush1.msra.mxu0 %v958
    %1272 = vmatprep.subr.mxu0 0.0
    %1273 = vmatpush1.msra.mxu0 %v959
    %1274 = vmatprep.subr.mxu0 0.0
    %1275 = vmatpush1.msra.mxu0 %v960
    %1276 = vmatprep.subr.mxu0 0.0
    %1277 = vmatpush1.msra.mxu0 %v961
    %1278 = vmatprep.subr.mxu0 0.0
    %1279 = vmatpush1.msra.mxu0 %v962
    %1280 = vmatprep.subr.mxu0 0.0
    %1281 = vmatpush1.msra.mxu0 0.0
    %1282 = vmatprep.subr.mxu0 0.0
    %1283 = vmatpush1.msra.mxu0 0.0
    %1284 = vmatprep.subr.mxu0 0.0
    %1285 = vmatpush1.msra.mxu0 0.0
    %1286 = vmatprep.subr.mxu0 0.0
    %1287 = vmatpush1.msra.mxu0 0.0
    %1288 = vmatprep.subr.mxu0 0.0
    %1289 = vmatpush1.msra.mxu0 0.0
    %1290 = vmatprep.subr.mxu0 0.0
    %1291 = vmatpush1.msra.mxu0 0.0
    %1292 = vmatprep.subr.mxu0 0.0
    %1293 = vmatpush1.msra.mxu0 0.0
    %1294 = vmatprep.subr.mxu0 0.0
    %1295 = vmatpush1.msra.mxu0 0.0
    %1296 = vmatprep.subr.mxu0 0.0
    %1297 = vmatpush1.msra.mxu0 0.0
    %1298 = vmatprep.subr.mxu0 0.0
    %1299 = vmatpush1.msra.mxu0 0.0
    %1300 = vmatprep.subr.mxu0 0.0
    %1301 = vmatpush1.msra.mxu0 0.0
    %1302 = vmatprep.subr.mxu0 0.0
    %1303 = vmatpush1.msra.mxu0 0.0
    %1304 = vmatprep.subr.mxu0 0.0
    %1305 = vmatpush1.msra.mxu0 0.0
    %1306 = vmatprep.subr.mxu0 0.0
    %1307 = vmatpush1.msra.mxu0 0.0
    %1308 = vmatprep.subr.mxu0 0.0
    %1309 = vmatpush1.msra.mxu0 0.0
    %1310 = vmatprep.subr.mxu0 0.0
    %1311 = vmatpush1.msra.mxu0 0.0
    %1312 = vmatprep.mubr.f32.mxu0 0.0
    %1313 = vmatmul.mubr.f32.gmra.mrb[0].mxu0 %v1244
    %v1314 = vpop.f32.mrb[0].mxu0
    %v1315 = vadd.f32 0.0, %v1314
    %v1316 = vpop.f32.mrb[0].mxu0
    %1317 = vmatprep.mubr.f32.mxu0 0.0
    %1318 = vmatmul.mubr.f32.gmra.mrb[0].mxu0 %v1245
    %v1319 = vpop.f32.mrb[0].mxu0
    %v1320 = vadd.f32 0.0, %v1319
    %v1321 = vpop.f32.mrb[0].mxu0
    %1322 = vmatprep.mubr.f32.mxu0 0.0
    %1323 = vmatmul.mubr.f32.gmra.mrb[0].mxu0 %v1246
    %v1324 = vpop.f32.mrb[0].mxu0
    %v1325 = vadd.f32 0.0, %v1324
    %v1326 = vpop.f32.mrb[0].mxu0
    %1327 = vmatprep.mubr.f32.mxu0 0.0
    %1328 = vmatmul.mubr.f32.gmra.mrb[0].mxu0 %v1247
    %v1329 = vpop.f32.mrb[0].mxu0
    %v1330 = vadd.f32 0.0, %v1329
    %v1331 = vpop.f32.mrb[0].mxu0
    %1332 = vdwg.mxu0
    %v1333 = vmul.f32 %v1315, 1.0158731
    %v1334 = vmul.f32 %v1320, 1.0158731
    %v1335 = vmul.f32 %v1325, 1.0158731
    %v1336 = vmul.f32 %v1330, 1.0158731
    %v1338 = vsel %vm1050, %v1333, 0
    %v1341 = vsel %vm1050, %v1334, 0
    %v1344 = vsel %vm1050, %v1335, 0
    %v1347 = vsel %vm1050, %v1336, 0
    %1349 = vmatprep.subr.mxu0 0.0
    %1350 = vmatpush1.msra.mxu0 %v1065
    %1351 = vmatprep.subr.mxu0 0.0
    %1352 = vmatpush1.msra.mxu0 0.0
    %1353 = vmatprep.subr.mxu0 0.0
    %1354 = vmatpush1.msra.mxu0 0.0
    %1355 = vmatprep.subr.mxu0 0.0
    %1356 = vmatpush1.msra.mxu0 0.0
    %1357 = vmatprep.subr.mxu0 0.0
    %1358 = vmatpush1.msra.mxu0 0.0
    %1359 = vmatprep.subr.mxu0 0.0
    %1360 = vmatpush1.msra.mxu0 0.0
    %1361 = vmatprep.subr.mxu0 0.0
    %1362 = vmatpush1.msra.mxu0 0.0
    %1363 = vmatprep.subr.mxu0 0.0
    %1364 = vmatpush1.msra.mxu0 0.0
    %1365 = vmatprep.subr.mxu0 0.0
    %1366 = vmatpush1.msra.mxu0 0.0
    %1367 = vmatprep.subr.mxu0 0.0
    %1368 = vmatpush1.msra.mxu0 0.0
    %1369 = vmatprep.subr.mxu0 0.0
    %1370 = vmatpush1.msra.mxu0 0.0
    %1371 = vmatprep.subr.mxu0 0.0
    %1372 = vmatpush1.msra.mxu0 0.0
    %1373 = vmatprep.subr.mxu0 0.0
    %1374 = vmatpush1.msra.mxu0 0.0
    %1375 = vmatprep.subr.mxu0 0.0
    %1376 = vmatpush1.msra.mxu0 0.0
    %1377 = vmatprep.subr.mxu0 0.0
    %1378 = vmatpush1.msra.mxu0 0.0
    %1379 = vmatprep.subr.mxu0 0.0
    %1380 = vmatpush1.msra.mxu0 0.0
    %1381 = vmatprep.subr.mxu0 0.0
    %1382 = vmatpush1.msra.mxu0 0.0
    %1383 = vmatprep.subr.mxu0 0.0
    %1384 = vmatpush1.msra.mxu0 0.0
    %1385 = vmatprep.subr.mxu0 0.0
    %1386 = vmatpush1.msra.mxu0 0.0
    %1387 = vmatprep.subr.mxu0 0.0
    %1388 = vmatpush1.msra.mxu0 0.0
    %1389 = vmatprep.subr.mxu0 0.0
    %1390 = vmatpush1.msra.mxu0 0.0
    %1391 = vmatprep.subr.mxu0 0.0
    %1392 = vmatpush1.msra.mxu0 0.0
    %1393 = vmatprep.subr.mxu0 0.0
    %1394 = vmatpush1.msra.mxu0 0.0
    %1395 = vmatprep.subr.mxu0 0.0
    %1396 = vmatpush1.msra.mxu0 0.0
    %1397 = vmatprep.subr.mxu0 0.0
    %1398 = vmatpush1.msra.mxu0 0.0
    %1399 = vmatprep.subr.mxu0 0.0
    %1400 = vmatpush1.msra.mxu0 0.0
    %1401 = vmatprep.subr.mxu0 0.0
    %1402 = vmatpush1.msra.mxu0 0.0
    %1403 = vmatprep.subr.mxu0 0.0
    %1404 = vmatpush1.msra.mxu0 0.0
    %1405 = vmatprep.subr.mxu0 0.0
    %1406 = vmatpush1.msra.mxu0 0.0
    %1407 = vmatprep.subr.mxu0 0.0
    %1408 = vmatpush1.msra.mxu0 0.0
    %1409 = vmatprep.subr.mxu0 0.0
    %1410 = vmatpush1.msra.mxu0 0.0
    %1411 = vmatprep.subr.mxu0 0.0
    %1412 = vmatpush1.msra.mxu0 0.0
    %1413 = vmatprep.mubr.f32.mxu0 0.0
    %1414 = vmatmul.mubr.f32.gmra.mrb[0].mxu0 %v1338
    %v1415 = vpop.f32.mrb[0].mxu0
    %v1416 = vadd.f32 1e-05, %v1415
    %v1417 = vpop.f32.mrb[0].mxu0
    %1418 = vmatprep.mubr.f32.mxu0 0.0
    %1419 = vmatmul.mubr.f32.gmra.mrb[0].mxu0 %v1341
    %v1420 = vpop.f32.mrb[0].mxu0
    %v1421 = vadd.f32 1e-05, %v1420
    %v1422 = vpop.f32.mrb[0].mxu0
    %1423 = vmatprep.mubr.f32.mxu0 0.0
    %1424 = vmatmul.mubr.f32.gmra.mrb[0].mxu0 %v1344
    %v1425 = vpop.f32.mrb[0].mxu0
    %v1426 = vadd.f32 1e-05, %v1425
    %v1427 = vpop.f32.mrb[0].mxu0
    %1428 = vmatprep.mubr.f32.mxu0 0.0
    %1429 = vmatmul.mubr.f32.gmra.mrb[0].mxu0 %v1347
    %v1430 = vpop.f32.mrb[0].mxu0
    %v1431 = vadd.f32 1e-05, %v1430
    %v1432 = vpop.f32.mrb[0].mxu0
    %1433 = vdwg.mxu0
    %v1434 = vrsqrt.pop %v1416
    %v1435 = vrsqrt.pop %v1421
    %v1436 = vrsqrt.pop %v1426
    %v1437 = vrsqrt.pop %v1431
    %v1438 = vmul.f32 %v1240, %v1434
    %v1439 = vmul.f32 %v1241, %v1435
    %v1440 = vmul.f32 %v1242, %v1436
    %v1441 = vmul.f32 %v1243, %v1437
    %1442 = vmatprep.subr.mxu0 0.0
    %1443 = vmatpush1.msra.mxu0 %v1153
    %1444 = vmatprep.subr.mxu0 0.0
    %1445 = vmatpush1.msra.mxu0 0.0
    %1446 = vmatprep.subr.mxu0 0.0
    %1447 = vmatpush1.msra.mxu0 0.0
    %1448 = vmatprep.subr.mxu0 0.0
    %1449 = vmatpush1.msra.mxu0 0.0
    %1450 = vmatprep.subr.mxu0 0.0
    %1451 = vmatpush1.msra.mxu0 0.0
    %1452 = vmatprep.subr.mxu0 0.0
    %1453 = vmatpush1.msra.mxu0 0.0
    %1454 = vmatprep.subr.mxu0 0.0
    %1455 = vmatpush1.msra.mxu0 0.0
    %1456 = vmatprep.subr.mxu0 0.0
    %1457 = vmatpush1.msra.mxu0 0.0
    %1458 = vmatprep.subr.mxu0 0.0
    %1459 = vmatpush1.msra.mxu0 0.0
    %1460 = vmatprep.subr.mxu0 0.0
    %1461 = vmatpush1.msra.mxu0 0.0
    %1462 = vmatprep.subr.mxu0 0.0
    %1463 = vmatpush1.msra.mxu0 0.0
    %1464 = vmatprep.subr.mxu0 0.0
    %1465 = vmatpush1.msra.mxu0 0.0
    %1466 = vmatprep.subr.mxu0 0.0
    %1467 = vmatpush1.msra.mxu0 0.0
    %1468 = vmatprep.subr.mxu0 0.0
    %1469 = vmatpush1.msra.mxu0 0.0
    %1470 = vmatprep.subr.mxu0 0.0
    %1471 = vmatpush1.msra.mxu0 0.0
    %1472 = vmatprep.subr.mxu0 0.0
    %1473 = vmatpush1.msra.mxu0 0.0
    %1474 = vmatprep.subr.mxu0 0.0
    %1475 = vmatpush1.msra.mxu0 0.0
    %1476 = vmatprep.subr.mxu0 0.0
    %1477 = vmatpush1.msra.mxu0 0.0
    %1478 = vmatprep.subr.mxu0 0.0
    %1479 = vmatpush1.msra.mxu0 0.0
    %1480 = vmatprep.subr.mxu0 0.0
    %1481 = vmatpush1.msra.mxu0 0.0
    %1482 = vmatprep.subr.mxu0 0.0
    %1483 = vmatpush1.msra.mxu0 0.0
    %1484 = vmatprep.subr.mxu0 0.0
    %1485 = vmatpush1.msra.mxu0 0.0
    %1486 = vmatprep.subr.mxu0 0.0
    %1487 = vmatpush1.msra.mxu0 0.0
    %1488 = vmatprep.subr.mxu0 0.0
    %1489 = vmatpush1.msra.mxu0 0.0
    %1490 = vmatprep.subr.mxu0 0.0
    %1491 = vmatpush1.msra.mxu0 0.0
    %1492 = vmatprep.subr.mxu0 0.0
    %1493 = vmatpush1.msra.mxu0 0.0
    %1494 = vmatprep.subr.mxu0 0.0
    %1495 = vmatpush1.msra.mxu0 0.0
    %1496 = vmatprep.subr.mxu0 0.0
    %1497 = vmatpush1.msra.mxu0 0.0
    %1498 = vmatprep.subr.mxu0 0.0
    %1499 = vmatpush1.msra.mxu0 0.0
    %1500 = vmatprep.subr.mxu0 0.0
    %1501 = vmatpush1.msra.mxu0 0.0
    %1502 = vmatprep.subr.mxu0 0.0
    %1503 = vmatpush1.msra.mxu0 0.0
    %1504 = vmatprep.subr.mxu0 0.0
    %1505 = vmatpush1.msra.mxu0 0.0
    %1506 = vmatprep.mubr.f32.mxu0 0.0
    %1507 = vmatmul.mubr.f32.gmra.mrb[0].mxu0 %v1338
    %v1508 = vpop.f32.mrb[0].mxu0
    %v1509 = vadd.f32 1e-05, %v1508
    %v1510 = vpop.f32.mrb[0].mxu0
    %1511 = vmatprep.mubr.f32.mxu0 0.0
    %1512 = vmatmul.mubr.f32.gmra.mrb[0].mxu0 %v1341
    %v1513 = vpop.f32.mrb[0].mxu0
    %v1514 = vadd.f32 1e-05, %v1513
    %v1515 = vpop.f32.mrb[0].mxu0
    %1516 = vmatprep.mubr.f32.mxu0 0.0
    %1517 = vmatmul.mubr.f32.gmra.mrb[0].mxu0 %v1344
    %v1518 = vpop.f32.mrb[0].mxu0
    %v1519 = vadd.f32 1e-05, %v1518
    %v1520 = vpop.f32.mrb[0].mxu0
    %1521 = vmatprep.mubr.f32.mxu0 0.0
    %1522 = vmatmul.mubr.f32.gmra.mrb[0].mxu0 %v1347
    %v1523 = vpop.f32.mrb[0].mxu0
    %v1524 = vadd.f32 1e-05, %v1523
    %v1525 = vpop.f32.mrb[0].mxu0
    %1526 = vdwg.mxu0
    %v1527 = vrsqrt.pop %v1509
    %v1528 = vmul.f32 %v1509, %v1527
    %vm1529 = vcmp.eq.f32.partialorder %v1509, inf
    %v1530 = vsel %vm1529, %v1509, %v1528
    %vm1531 = vcmp.eq.f32.partialorder %v1509, 0.0
    %v1532 = vand.u32 %v1509, 2147483648
    %v1533 = vsel %vm1531, %v1532, %v1530
    %v1534 = vrsqrt.pop %v1514
    %v1535 = vmul.f32 %v1514, %v1534
    %vm1536 = vcmp.eq.f32.partialorder %v1514, inf
    %v1537 = vsel %vm1536, %v1514, %v1535
    %vm1538 = vcmp.eq.f32.partialorder %v1514, 0.0
    %v1539 = vand.u32 %v1514, 2147483648
    %v1540 = vsel %vm1538, %v1539, %v1537
    %v1541 = vrsqrt.pop %v1519
    %v1542 = vmul.f32 %v1519, %v1541
    %vm1543 = vcmp.eq.f32.partialorder %v1519, inf
    %v1544 = vsel %vm1543, %v1519, %v1542
    %vm1545 = vcmp.eq.f32.partialorder %v1519, 0.0
    %v1546 = vand.u32 %v1519, 2147483648
    %v1547 = vsel %vm1545, %v1546, %v1544
    %v1548 = vrsqrt.pop %v1524
    %v1549 = vmul.f32 %v1524, %v1548
    %vm1550 = vcmp.eq.f32.partialorder %v1524, inf
    %v1551 = vsel %vm1550, %v1524, %v1549
    %vm1552 = vcmp.eq.f32.partialorder %v1524, 0.0
    %v1553 = vand.u32 %v1524, 2147483648
    %v1554 = vsel %vm1552, %v1553, %v1551
    %v1555 = vmul.f32 %v1438, %v1533
    %v1556 = vmul.f32 %v1439, %v1540
    %v1557 = vmul.f32 %v1440, %v1547
    %v1558 = vmul.f32 %v1441, %v1554
    %v1559 = vadd.f32 %v1555, %v1222
    %v1560 = vadd.f32 %v1556, %v1227
    %v1561 = vadd.f32 %v1557, %v1232
    %v1562 = vadd.f32 %v1558, %v1237
    %v1563 = vmul.f32 %v943, 0.5
    %v1564 = vmul.f32 %v944, 0.5
    %v1565 = vmul.f32 %v945, 0.5
    %v1566 = vmul.f32 %v946, 0.5
    %v1567 = vmul.f32 %v1559, 0.5
    %v1568 = vmul.f32 %v1560, 0.5
    %v1569 = vmul.f32 %v1561, 0.5
    %v1570 = vmul.f32 %v1562, 0.5
    %v1571 = vadd.f32 %v1563, %v1567
    %v1572 = vadd.f32 %v1564, %v1568
    %v1573 = vadd.f32 %v1565, %v1569
    %v1574 = vadd.f32 %v1566, %v1570
    %v1575 = vld [vmem:[%s7] sm:$0xff]
    %v1576 = vld [vmem:[%s7 + $0x8] sm:$0xff]
    %v1577 = vld [vmem:[%s7 + $0x10] sm:$0xff]
    %v1578 = vld [vmem:[%s7 + $0x18] sm:$0xff]
    %v1579 = vld [vmem:[%s8] sm:$0xff]
    %v1580 = vld [vmem:[%s8 + $0x8] sm:$0xff]
    %v1581 = vld [vmem:[%s8 + $0x10] sm:$0xff]
    %v1582 = vld [vmem:[%s8 + $0x18] sm:$0xff]
    %v1583 = vld [vmem:[%s8 + $0x20] sm:$0xff]
    %v1584 = vld [vmem:[%s8 + $0x28] sm:$0xff]
    %v1585 = vld [vmem:[%s8 + $0x30] sm:$0xff]
    %v1586 = vld [vmem:[%s8 + $0x38] sm:$0xff]
    %vm1587 = vcmask 523264
    %v1589 = vsel %vm1587, %v1575, 0
    %v1592 = vsel %vm1587, %v1576, 0
    %v1595 = vsel %vm1587, %v1577, 0
    %v1598 = vsel %vm1587, %v1578, 0
    %1600 = vmatprep.subr.mxu0 0.0
    %1601 = vmatpush1.msra.mxu0 %v1579
    %1602 = vmatprep.subr.mxu0 0.0
    %1603 = vmatpush1.msra.mxu0 %v1580
    %1604 = vmatprep.subr.mxu0 0.0
    %1605 = vmatpush1.msra.mxu0 %v1581
    %1606 = vmatprep.subr.mxu0 0.0
    %1607 = vmatpush1.msra.mxu0 %v1582
    %1608 = vmatprep.subr.mxu0 0.0
    %1609 = vmatpush1.msra.mxu0 %v1583
    %1610 = vmatprep.subr.mxu0 0.0
    %1611 = vmatpush1.msra.mxu0 %v1584
    %1612 = vmatprep.subr.mxu0 0.0
    %1613 = vmatpush1.msra.mxu0 %v1585
    %1614 = vmatprep.subr.mxu0 0.0
    %1615 = vmatpush1.msra.mxu0 %v1586
    %1616 = vmatprep.subr.mxu0 0.0
    %1617 = vmatpush1.msra.mxu0 0.0
    %1618 = vmatprep.subr.mxu0 0.0
    %1619 = vmatpush1.msra.mxu0 0.0
    %1620 = vmatprep.subr.mxu0 0.0
    %1621 = vmatpush1.msra.mxu0 0.0
    %1622 = vmatprep.subr.mxu0 0.0
    %1623 = vmatpush1.msra.mxu0 0.0
    %1624 = vmatprep.subr.mxu0 0.0
    %1625 = vmatpush1.msra.mxu0 0.0
    %1626 = vmatprep.subr.mxu0 0.0
    %1627 = vmatpush1.msra.mxu0 0.0
    %1628 = vmatprep.subr.mxu0 0.0
    %1629 = vmatpush1.msra.mxu0 0.0
    %1630 = vmatprep.subr.mxu0 0.0
    %1631 = vmatpush1.msra.mxu0 0.0
    %1632 = vmatprep.subr.mxu0 0.0
    %1633 = vmatpush1.msra.mxu0 0.0
    %1634 = vmatprep.subr.mxu0 0.0
    %1635 = vmatpush1.msra.mxu0 0.0
    %1636 = vmatprep.subr.mxu0 0.0
    %1637 = vmatpush1.msra.mxu0 0.0
    %1638 = vmatprep.subr.mxu0 0.0
    %1639 = vmatpush1.msra.mxu0 0.0
    %1640 = vmatprep.subr.mxu0 0.0
    %1641 = vmatpush1.msra.mxu0 0.0
    %1642 = vmatprep.subr.mxu0 0.0
    %1643 = vmatpush1.msra.mxu0 0.0
    %1644 = vmatprep.subr.mxu0 0.0
    %1645 = vmatpush1.msra.mxu0 0.0
    %1646 = vmatprep.subr.mxu0 0.0
    %1647 = vmatpush1.msra.mxu0 0.0
    %1648 = vmatprep.subr.mxu0 0.0
    %1649 = vmatpush1.msra.mxu0 0.0
    %1650 = vmatprep.subr.mxu0 0.0
    %1651 = vmatpush1.msra.mxu0 0.0
    %1652 = vmatprep.subr.mxu0 0.0
    %1653 = vmatpush1.msra.mxu0 0.0
    %1654 = vmatprep.subr.mxu0 0.0
    %1655 = vmatpush1.msra.mxu0 0.0
    %1656 = vmatprep.subr.mxu0 0.0
    %1657 = vmatpush1.msra.mxu0 0.0
    %1658 = vmatprep.subr.mxu0 0.0
    %1659 = vmatpush1.msra.mxu0 0.0
    %1660 = vmatprep.subr.mxu0 0.0
    %1661 = vmatpush1.msra.mxu0 0.0
    %1662 = vmatprep.subr.mxu0 0.0
    %1663 = vmatpush1.msra.mxu0 0.0
    %1664 = vmatprep.mubr.f32.mxu0 0.0
    %1665 = vmatmul.mubr.f32.gmra.mrb[0].mxu0 %v1589
    %v1666 = vpop.f32.mrb[0].mxu0
    %v1667 = vadd.f32 0.0, %v1666
    %v1668 = vpop.f32.mrb[0].mxu0
    %1669 = vmatprep.mubr.f32.mxu0 0.0
    %1670 = vmatmul.mubr.f32.gmra.mrb[0].mxu0 %v1592
    %v1671 = vpop.f32.mrb[0].mxu0
    %v1672 = vadd.f32 0.0, %v1671
    %v1673 = vpop.f32.mrb[0].mxu0
    %1674 = vmatprep.mubr.f32.mxu0 0.0
    %1675 = vmatmul.mubr.f32.gmra.mrb[0].mxu0 %v1595
    %v1676 = vpop.f32.mrb[0].mxu0
    %v1677 = vadd.f32 0.0, %v1676
    %v1678 = vpop.f32.mrb[0].mxu0
    %1679 = vmatprep.mubr.f32.mxu0 0.0
    %1680 = vmatmul.mubr.f32.gmra.mrb[0].mxu0 %v1598
    %v1681 = vpop.f32.mrb[0].mxu0
    %v1682 = vadd.f32 0.0, %v1681
    %v1683 = vpop.f32.mrb[0].mxu0
    %1684 = vdwg.mxu0
    %v1685 = vmul.f32 %v1571, %v1667
    %v1686 = vmul.f32 %v1572, %v1672
    %v1687 = vmul.f32 %v1573, %v1677
    %v1688 = vmul.f32 %v1574, %v1682
    %v1689 = vadd.f32 %v1685, %v1686
    %v1690 = vadd.f32 %v1689, %v1687
    %v1691 = vadd.f32 %v1690, %v1688
    %v1692 = vrot.slane %v1691, 4
    %v1693 = vadd.f32 %v1691, %v1692
    %v1694 = vrot.slane %v1693, 2
    %v1695 = vadd.f32 %v1693, %v1694
    %v1696 = vrot.slane %v1695, 1
    %v1697 = vadd.f32 %v1695, %v1696
    %1698 = vmatprep.subr.mxu0 0.0
    %1699 = vmatpush1.msra.mxu0 %v947
    %1700 = vmatprep.subr.mxu0 0.0
    %1701 = vmatpush1.msra.mxu0 %v948
    %1702 = vmatprep.subr.mxu0 0.0
    %1703 = vmatpush1.msra.mxu0 %v949
    %1704 = vmatprep.subr.mxu0 0.0
    %1705 = vmatpush1.msra.mxu0 %v950
    %1706 = vmatprep.subr.mxu0 0.0
    %1707 = vmatpush1.msra.mxu0 %v951
    %1708 = vmatprep.subr.mxu0 0.0
    %1709 = vmatpush1.msra.mxu0 %v952
    %1710 = vmatprep.subr.mxu0 0.0
    %1711 = vmatpush1.msra.mxu0 %v953
    %1712 = vmatprep.subr.mxu0 0.0
    %1713 = vmatpush1.msra.mxu0 %v954
    %1714 = vmatprep.subr.mxu0 0.0
    %1715 = vmatpush1.msra.mxu0 %v955
    %1716 = vmatprep.subr.mxu0 0.0
    %1717 = vmatpush1.msra.mxu0 %v956
    %1718 = vmatprep.subr.mxu0 0.0
    %1719 = vmatpush1.msra.mxu0 %v957
    %1720 = vmatprep.subr.mxu0 0.0
    %1721 = vmatpush1.msra.mxu0 %v958
    %1722 = vmatprep.subr.mxu0 0.0
    %1723 = vmatpush1.msra.mxu0 %v959
    %1724 = vmatprep.subr.mxu0 0.0
    %1725 = vmatpush1.msra.mxu0 %v960
    %1726 = vmatprep.subr.mxu0 0.0
    %1727 = vmatpush1.msra.mxu0 %v961
    %1728 = vmatprep.subr.mxu0 0.0
    %1729 = vmatpush1.msra.mxu0 %v962
    %1730 = vmatprep.subr.mxu0 0.0
    %1731 = vmatpush1.msra.mxu0 0.0
    %1732 = vmatprep.subr.mxu0 0.0
    %1733 = vmatpush1.msra.mxu0 0.0
    %1734 = vmatprep.subr.mxu0 0.0
    %1735 = vmatpush1.msra.mxu0 0.0
    %1736 = vmatprep.subr.mxu0 0.0
    %1737 = vmatpush1.msra.mxu0 0.0
    %1738 = vmatprep.subr.mxu0 0.0
    %1739 = vmatpush1.msra.mxu0 0.0
    %1740 = vmatprep.subr.mxu0 0.0
    %1741 = vmatpush1.msra.mxu0 0.0
    %1742 = vmatprep.subr.mxu0 0.0
    %1743 = vmatpush1.msra.mxu0 0.0
    %1744 = vmatprep.subr.mxu0 0.0
    %1745 = vmatpush1.msra.mxu0 0.0
    %1746 = vmatprep.subr.mxu0 0.0
    %1747 = vmatpush1.msra.mxu0 0.0
    %1748 = vmatprep.subr.mxu0 0.0
    %1749 = vmatpush1.msra.mxu0 0.0
    %1750 = vmatprep.subr.mxu0 0.0
    %1751 = vmatpush1.msra.mxu0 0.0
    %1752 = vmatprep.subr.mxu0 0.0
    %1753 = vmatpush1.msra.mxu0 0.0
    %1754 = vmatprep.subr.mxu0 0.0
    %1755 = vmatpush1.msra.mxu0 0.0
    %1756 = vmatprep.subr.mxu0 0.0
    %1757 = vmatpush1.msra.mxu0 0.0
    %1758 = vmatprep.subr.mxu0 0.0
    %1759 = vmatpush1.msra.mxu0 0.0
    %1760 = vmatprep.subr.mxu0 0.0
    %1761 = vmatpush1.msra.mxu0 0.0
    %1762 = vmatprep.mubr.f32.mxu0 0.0
    %1763 = vmatmul.mubr.f32.gmra.mrb[0].mxu0 %v1697
    %v1764 = vpop.f32.mrb[0].mxu0
    %v1765 = vadd.f32 0.0, %v1764
    %v1766 = vpop.f32.mrb[0].mxu0
    %1767 = vdwg.mxu0
    %v1768 = vmul.f32 %v1765, 64.0
    %vm1769 = vcmask 8192
    %1770 = vst.msk [vmem:[#allocation2] sm:$0x1] %vm1769, %v1768
    // Predicated region
    $region38: #{wgan3d_d_forward.5} parent=1 // pred_check
      _
    $region39: #{wgan3d_d_forward.5} parent=1 // pred_check_branch
      %1772 = sbr.rel (0) target = $region41
    $region40: #{wgan3d_d_forward.5} parent=1 // pred_region
      %s1774 = ssub.s32 16, 16
      %1775 = vsyncadd [#allocation3], %s1774
      %s1777 = sshll.u32 [#allocation2], 4
      %s1778 = int_to_ptr.vmem [resolvable:$true] %s1777
      %1780 = dma.vmem_to_hbm [thread:$0]  %s1778, 16, %s9, [#allocation3]
    $region41: #{wgan3d_d_forward.5} parent=1 // pred_fallthru
      _
    // Predicated region
    $region42: #{wgan3d_d_forward.5} parent=1 // pred_check
      _
    $region43: #{wgan3d_d_forward.5} parent=1 // pred_check_branch
      %1782 = sbr.rel (0) target = $region45
    $region44: #{wgan3d_d_forward.5} parent=1 // pred_region
      %1783 = dma.done [#allocation3], 16
    $region45: #{wgan3d_d_forward.5} parent=1 // pred_fallthru
      _
    %1784 = vsyncpa [#allocation3], 1

</llo_original>
